<compile_context>
chip_gen: v6e
topology: v6e:2x2x1
jax: 0.10.0
libtpu: 0.0.40
codegen_flags: <defaults>
</compile_context>

<pallas_src>
import jax
import jax.numpy as jnp
from jax.experimental import pallas as pl
from jax.experimental.pallas import tpu as pltpu

# ---------------------------------------------------------------------------
# Small synthetic configuration (stand-in for the real RNA-MSM encoder)
# ---------------------------------------------------------------------------
BATCH = 2
MSA_ROWS = 2          # MSA "rows" axis -> representations are [B, R, S, H]
SEQ = 8
HIDDEN = 32           # stands in for hidden_size=768
N_HEADS = 4
HEAD_DIM = HIDDEN // N_HEADS
FFN = 4 * HIDDEN
N_LAYERS = 2          # stands in for the 10+ RNA-MSM layers; last layer output
VOCAB = 24
N_CLASSES = 13        # fixed by the module: nn.Linear(hidden_size, 13)
CLS_PAD = 128         # lane-dense logits tile (sliced to 13 in the wrapper)
B_PAD = 8             # sublane-dense logits tile (sliced to BATCH in wrapper)
LN_EPS = 1e-5
BR = BATCH * MSA_ROWS


# ---------------------------------------------------------------------------
# In-kernel helpers (all elementwise / reduce ops that lower cleanly in Mosaic)
# ---------------------------------------------------------------------------
def _layer_norm_2d(x, w, b):
    mu = jnp.mean(x, axis=-1, keepdims=True)
    xc = x - mu
    var = jnp.mean(xc * xc, axis=-1, keepdims=True)
    return xc * jax.lax.rsqrt(var + LN_EPS) * w + b


def _erf(x):
    # Abramowitz & Stegun 7.1.26 rational approximation (max abs err ~1.5e-7).
    # Only mul/add/exp/select, so it lowers everywhere; exp rides the EUP slot.
    # Gives erf-based ("exact") GELU matching torch.nn.GELU.
    p = 0.3275911
    a1, a2, a3, a4, a5 = (0.254829592, -0.284496736, 1.421413741,
                          -1.453152027, 1.061405429)
    sgn = jnp.where(x >= 0.0, 1.0, -1.0)
    ax = jnp.abs(x)
    t = 1.0 / (1.0 + p * ax)
    poly = t * (a1 + t * (a2 + t * (a3 + t * (a4 + t * a5))))
    return sgn * (1.0 - poly * jnp.exp(-ax * ax))


def _gelu_exact(x):
    return 0.5 * x * (1.0 + _erf(x * 0.7071067811865476))


# ---------------------------------------------------------------------------
# Fused kernel: all encoder layers (grid axis) + CLS extraction + classifier
# ---------------------------------------------------------------------------
def fused_encoder_kernel(
    x_ref,                                     # (BR, S, H) embeddings
    ln1w_ref, ln1b_ref,                        # (1, 1, H) per-layer blocks
    wq_ref, bq_ref, wk_ref, bk_ref,
    wv_ref, bv_ref, wo_ref, bo_ref,
    ln2w_ref, ln2b_ref,
    w1_ref, b1_ref, w2_ref, b2_ref,
    flnw_ref, flnb_ref,                        # (1, H) final encoder LN
    wc_ref, bc_ref,                            # (H, 128), (1, 128) classifier
    o_ref,                                     # (B_PAD, CLS_PAD) logits tile
    x_scratch,                                 # VMEM (BR, S, H) f32, resident
):
    layer = pl.program_id(0)
    n_layers = pl.num_programs(0)

    @pl.when(layer == 0)
    def _():
        x_scratch[...] = x_ref[...]
        o_ref[...] = jnp.zeros_like(o_ref)     # one dense tile store; cheap

    x3 = x_scratch[...]                        # (BR, S, H)
    br, s, h = x3.shape
    x = x3.reshape(br * s, h)                  # 2-D form for all linears

    # Hoisted per-layer params; (1, dim) rows -> single stride-0 broadcast.
    ln1w = ln1w_ref[0]
    ln1b = ln1b_ref[0]
    ln2w = ln2w_ref[0]
    ln2b = ln2b_ref[0]
    bq = bq_ref[0]
    bk = bk_ref[0]
    bv = bv_ref[0]
    bo = bo_ref[0]
    b1 = b1_ref[0]
    b2 = b2_ref[0]
    wq = wq_ref[0]
    wk = wk_ref[0]
    wv = wv_ref[0]
    wo = wo_ref[0]
    w1 = w1_ref[0]
    w2 = w2_ref[0]

    # ---- self-attention block (pre-LN), heads folded into batch axis ----
    hn = _layer_norm_2d(x, ln1w, ln1b)
    scale = HEAD_DIM ** -0.5
    # Scale q (BR*S, H) before the score matmul rather than scaling the score
    # tensor afterwards; never more VPU work and keeps the MXU input small.
    q = (jnp.dot(hn, wq, preferred_element_type=jnp.float32) + bq) * scale
    k = jnp.dot(hn, wk, preferred_element_type=jnp.float32) + bk
    v = jnp.dot(hn, wv, preferred_element_type=jnp.float32) + bv

    def fold_heads(t):
        t = t.reshape(br, s, N_HEADS, HEAD_DIM)
        t = jnp.swapaxes(t, 1, 2)              # (BR, NH, S, D) -- XLU transpose
        return t.reshape(br * N_HEADS, s, HEAD_DIM)

    qh = fold_heads(q)
    kh = fold_heads(k)
    vh = fold_heads(v)

    scores = jnp.einsum('bqd,bkd->bqk', qh, kh,
                        preferred_element_type=jnp.float32)
    # TODO(synk): no attention padding mask (synthetic inputs have no padding).
    scores = scores - jnp.max(scores, axis=-1, keepdims=True)
    p = jnp.exp(scores)
    denom = jnp.sum(p, axis=-1, keepdims=True)
    p = p * pl.reciprocal(denom, approx=True)  # EUP slot, not a VPU divide
    ctx = jnp.einsum('bqk,bkd->bqd', p, vh,
                     preferred_element_type=jnp.float32)
    ctx = ctx.reshape(br, N_HEADS, s, HEAD_DIM)
    ctx = jnp.swapaxes(ctx, 1, 2).reshape(br * s, h)

    attn = jnp.dot(ctx, wo, preferred_element_type=jnp.float32) + bo
    x = x + attn

    # ---- feed-forward block (pre-LN) ----
    h2 = _layer_norm_2d(x, ln2w, ln2b)
    f = jnp.dot(h2, w1, preferred_element_type=jnp.float32) + b1
    f = _gelu_exact(f)
    f = jnp.dot(f, w2, preferred_element_type=jnp.float32) + b2
    x = x + f

    x_scratch[...] = x.reshape(br, s, h)

    # ---- fused head (last layer only): CLS -> final encoder LN -> Linear ----
    @pl.when(layer == n_layers - 1)
    def _():
        # Flat batch is r-major (r*B + b), so rows [0, BATCH) are MSA row 0;
        # token 0 of those rows == representations[:, 0, 0, :].
        cls = x.reshape(br, s, h)[:BATCH, 0, :]              # (B, H)
        # Final LayerNorm belongs to the synthetic encoder (emb_layer_norm_after
        # analogue); the classifier itself is a plain Linear as in the spec.
        cls = _layer_norm_2d(cls, flnw_ref[...], flnb_ref[...])
        cls = jnp.pad(cls, ((0, B_PAD - BATCH), (0, 0)))     # sublane-dense
        logits = jnp.dot(cls, wc_ref[...],
                         preferred_element_type=jnp.float32) + bc_ref[...]
        o_ref[...] = logits                                  # (8,128) dense store


# ---------------------------------------------------------------------------
# Wrapper
# ---------------------------------------------------------------------------
_PER_LAYER_SHAPES = (
    (1, HIDDEN), (1, HIDDEN),            # ln1 w, b
    (HIDDEN, HIDDEN), (1, HIDDEN),       # Wq, bq
    (HIDDEN, HIDDEN), (1, HIDDEN),       # Wk, bk
    (HIDDEN, HIDDEN), (1, HIDDEN),       # Wv, bv
    (HIDDEN, HIDDEN), (1, HIDDEN),       # Wo, bo
    (1, HIDDEN), (1, HIDDEN),            # ln2 w, b
    (HIDDEN, FFN), (1, FFN),             # W1, b1
    (FFN, HIDDEN), (1, HIDDEN),          # W2, b2
)


def _layer_spec(per_layer_shape):
    nd = len(per_layer_shape)
    return pl.BlockSpec((1,) + tuple(per_layer_shape),
                        lambda l, _nd=nd: (l,) + (0,) * _nd)


def _const_spec(shape):
    nd = len(shape)
    return pl.BlockSpec(tuple(shape), lambda l, _nd=nd: (0,) * _nd)


def rnamsm_forward(input_ids, params):
    # Embedding lookup (gather) stays in plain JAX; everything else is one
    # fused Pallas call.
    x = jnp.take(params['embed'], input_ids, axis=0)            # (B, R, S, H)
    b, r, s, h = x.shape
    x = jnp.transpose(x, (1, 0, 2, 3)).reshape(r * b, s, h)     # r-major flatten

    layer_args = params['layer_stack']                          # 16 stacked arrays
    head_args = (params['final_ln_w'], params['final_ln_b'],
                 params['cls_w_pad'], params['cls_b_pad'])

    in_specs = (
        [_const_spec((r * b, s, h))]
        + [_layer_spec(sh) for sh in _PER_LAYER_SHAPES]
        + [_const_spec((1, HIDDEN)), _const_spec((1, HIDDEN)),
           _const_spec((HIDDEN, CLS_PAD)), _const_spec((1, CLS_PAD))]
    )

    logits_pad = pl.pallas_call(
        fused_encoder_kernel,
        out_shape=jax.ShapeDtypeStruct((B_PAD, CLS_PAD), jnp.float32),
        grid_spec=pltpu.PrefetchScalarGridSpec(
            num_scalar_prefetch=0,
            grid=(N_LAYERS,),
            in_specs=in_specs,
            out_specs=_const_spec((B_PAD, CLS_PAD)),
            scratch_shapes=[pltpu.VMEM((r * b, s, h), jnp.float32)],
        ),
        compiler_params=pltpu.CompilerParams(
            dimension_semantics=("arbitrary",)),   # layers are sequential
    )(x, *layer_args, *head_args)

    return logits_pad[:b, :N_CLASSES]


rnamsm_for_seq_cls = jax.jit(rnamsm_forward)


# ---------------------------------------------------------------------------
# Deterministic synthetic parameters (no checkpoint load)
# ---------------------------------------------------------------------------
def init_params(key):
    def nrm(k, shape, scale=0.02):
        return scale * jax.random.normal(k, shape, dtype=jnp.float32)

    keys = jax.random.split(key, 8)
    L, H, F = N_LAYERS, HIDDEN, FFN
    zeros_h = jnp.zeros((L, 1, H), jnp.float32)
    ones_h = jnp.ones((L, 1, H), jnp.float32)

    layer_stack = (
        ones_h, zeros_h,                                              # ln1
        nrm(keys[1], (L, H, H)), zeros_h,                             # Wq, bq
        nrm(keys[2], (L, H, H)), zeros_h,                             # Wk, bk
        nrm(keys[3], (L, H, H)), zeros_h,                             # Wv, bv
        nrm(keys[4], (L, H, H)), zeros_h,                             # Wo, bo
        ones_h, zeros_h,                                              # ln2
        nrm(keys[5], (L, H, F)), jnp.zeros((L, 1, F), jnp.float32),   # W1, b1
        nrm(keys[6], (L, F, H)), zeros_h,                             # W2, b2
    )

    cls_w = nrm(keys[7], (H, N_CLASSES))                              # (in, out)
    cls_w_pad = jnp.zeros((H, CLS_PAD), jnp.float32).at[:, :N_CLASSES].set(cls_w)

    return {
        'embed': nrm(keys[0], (VOCAB, H)),
        'layer_stack': layer_stack,
        'final_ln_w': jnp.ones((1, H), jnp.float32),
        'final_ln_b': jnp.zeros((1, H), jnp.float32),
        'cls_w_pad': cls_w_pad,
        'cls_b_pad': jnp.zeros((1, CLS_PAD), jnp.float32),
    }


if __name__ == "__main__":
    key = jax.random.PRNGKey(0)
    pkey, dkey = jax.random.split(key)
    params = init_params(pkey)
    input_ids = jax.random.randint(
        dkey, (BATCH, MSA_ROWS, SEQ), 0, VOCAB, dtype=jnp.int32)

    logits = rnamsm_for_seq_cls(input_ids, params)
    logits = jax.block_until_ready(logits)
    assert logits.shape == (BATCH, N_CLASSES), logits.shape
    assert logits.dtype == jnp.float32
    assert bool(jnp.all(jnp.isfinite(logits)))
    print("KERNEL_OK")
</pallas_src>

<mosaic_0001>
module attributes {stable_mosaic.version = 11 : i64} {
  func.func @fused_encoder_kernel(%arg0: i32, %arg1: memref<4x8x32xf32, #tpu.memory_space<vmem>>, %arg2: memref<1x1x32xf32, #tpu.memory_space<vmem>>, %arg3: memref<1x1x32xf32, #tpu.memory_space<vmem>>, %arg4: memref<1x32x32xf32, #tpu.memory_space<vmem>>, %arg5: memref<1x1x32xf32, #tpu.memory_space<vmem>>, %arg6: memref<1x32x32xf32, #tpu.memory_space<vmem>>, %arg7: memref<1x1x32xf32, #tpu.memory_space<vmem>>, %arg8: memref<1x32x32xf32, #tpu.memory_space<vmem>>, %arg9: memref<1x1x32xf32, #tpu.memory_space<vmem>>, %arg10: memref<1x32x32xf32, #tpu.memory_space<vmem>>, %arg11: memref<1x1x32xf32, #tpu.memory_space<vmem>>, %arg12: memref<1x1x32xf32, #tpu.memory_space<vmem>>, %arg13: memref<1x1x32xf32, #tpu.memory_space<vmem>>, %arg14: memref<1x32x128xf32, #tpu.memory_space<vmem>>, %arg15: memref<1x1x128xf32, #tpu.memory_space<vmem>>, %arg16: memref<1x128x32xf32, #tpu.memory_space<vmem>>, %arg17: memref<1x1x32xf32, #tpu.memory_space<vmem>>, %arg18: memref<1x32xf32, #tpu.memory_space<vmem>>, %arg19: memref<1x32xf32, #tpu.memory_space<vmem>>, %arg20: memref<32x128xf32, #tpu.memory_space<vmem>>, %arg21: memref<1x128xf32, #tpu.memory_space<vmem>>, %arg22: memref<8x128xf32, #tpu.memory_space<vmem>>, %arg23: memref<4x8x32xf32, #tpu.memory_space<vmem>>) attributes {dimension_semantics = [#tpu.dimension_semantics<arbitrary>], iteration_bounds = array<i64: 2>, scalar_prefetch = 0 : i64, scratch_operands = 1 : i64, tpu.core_type = #tpu.core_type<tc>, window_params = [{pipeline_mode = #tpu.pipeline_mode<synchronous>, transform_indices = @transform_0, window_bounds = array<i64: 4, 8, 32>}, {transform_indices = @transform_1, window_bounds = array<i64: 1, 1, 32>}, {transform_indices = @transform_2, window_bounds = array<i64: 1, 1, 32>}, {transform_indices = @transform_3, window_bounds = array<i64: 1, 32, 32>}, {transform_indices = @transform_4, window_bounds = array<i64: 1, 1, 32>}, {transform_indices = @transform_5, window_bounds = array<i64: 1, 32, 32>}, {transform_indices = @transform_6, window_bounds = array<i64: 1, 1, 32>}, {transform_indices = @transform_7, window_bounds = array<i64: 1, 32, 32>}, {transform_indices = @transform_8, window_bounds = array<i64: 1, 1, 32>}, {transform_indices = @transform_9, window_bounds = array<i64: 1, 32, 32>}, {transform_indices = @transform_10, window_bounds = array<i64: 1, 1, 32>}, {transform_indices = @transform_11, window_bounds = array<i64: 1, 1, 32>}, {transform_indices = @transform_12, window_bounds = array<i64: 1, 1, 32>}, {transform_indices = @transform_13, window_bounds = array<i64: 1, 32, 128>}, {transform_indices = @transform_14, window_bounds = array<i64: 1, 1, 128>}, {transform_indices = @transform_15, window_bounds = array<i64: 1, 128, 32>}, {transform_indices = @transform_16, window_bounds = array<i64: 1, 1, 32>}, {pipeline_mode = #tpu.pipeline_mode<synchronous>, transform_indices = @transform_17, window_bounds = array<i64: 1, 32>}, {pipeline_mode = #tpu.pipeline_mode<synchronous>, transform_indices = @transform_18, window_bounds = array<i64: 1, 32>}, {pipeline_mode = #tpu.pipeline_mode<synchronous>, transform_indices = @transform_19, window_bounds = array<i64: 32, 128>}, {pipeline_mode = #tpu.pipeline_mode<synchronous>, transform_indices = @transform_20, window_bounds = array<i64: 1, 128>}, {pipeline_mode = #tpu.pipeline_mode<synchronous>, transform_indices = @transform_21, window_bounds = array<i64: 8, 128>}]} {
    %c0_i32 = arith.constant 0 : i32
    %0 = arith.cmpi eq, %arg0, %c0_i32 : i32
    %1 = arith.extui %0 : i1 to i32
    %c0_i32_0 = arith.constant 0 : i32
    %2 = arith.cmpi ne, %1, %c0_i32_0 : i32
    scf.if %2 {
      %c0_91 = arith.constant 0 : index
      %c0_92 = arith.constant 0 : index
      %c0_93 = arith.constant 0 : index
      %169 = vector.load %arg1[%c0_91, %c0_92, %c0_93] : memref<4x8x32xf32, #tpu.memory_space<vmem>>, vector<4x8x32xf32>
      %c0_94 = arith.constant 0 : index
      %c0_95 = arith.constant 0 : index
      %c0_96 = arith.constant 0 : index
      %170 = vector.load %arg23[%c0_94, %c0_95, %c0_96] : memref<4x8x32xf32, #tpu.memory_space<vmem>>, vector<4x8x32xf32>
      tpu.vector_store %arg23[%c0_94, %c0_95, %c0_96], %169 {strides = array<i32>} : memref<4x8x32xf32, #tpu.memory_space<vmem>>, vector<4x8x32xf32>,
      %cst_97 = arith.constant 0.000000e+00 : f32
      %171 = vector.broadcast %cst_97 : f32 to vector<8x128xf32>
      %c0_98 = arith.constant 0 : index
      %c0_99 = arith.constant 0 : index
      %172 = vector.load %arg22[%c0_98, %c0_99] : memref<8x128xf32, #tpu.memory_space<vmem>>, vector<8x128xf32>
      tpu.vector_store %arg22[%c0_98, %c0_99], %171 {strides = array<i32>} : memref<8x128xf32, #tpu.memory_space<vmem>>, vector<8x128xf32>,
    } else {
    }
    %c0 = arith.constant 0 : index
    %c0_1 = arith.constant 0 : index
    %c0_2 = arith.constant 0 : index
    %3 = vector.load %arg23[%c0, %c0_1, %c0_2] : memref<4x8x32xf32, #tpu.memory_space<vmem>>, vector<4x8x32xf32>
    %4 = vector.shape_cast %3 : vector<4x8x32xf32> to vector<32x32xf32>
    %c0_3 = arith.constant 0 : index
    %c0_4 = arith.constant 0 : index
    %c0_5 = arith.constant 0 : index
    %5 = vector.load %arg2[%c0_3, %c0_4, %c0_5] : memref<1x1x32xf32, #tpu.memory_space<vmem>>, vector<1x1x32xf32>
    %6 = vector.shape_cast %5 : vector<1x1x32xf32> to vector<1x32xf32>
    %c0_6 = arith.constant 0 : index
    %c0_7 = arith.constant 0 : index
    %c0_8 = arith.constant 0 : index
    %7 = vector.load %arg3[%c0_6, %c0_7, %c0_8] : memref<1x1x32xf32, #tpu.memory_space<vmem>>, vector<1x1x32xf32>
    %8 = vector.shape_cast %7 : vector<1x1x32xf32> to vector<1x32xf32>
    %c0_9 = arith.constant 0 : index
    %c0_10 = arith.constant 0 : index
    %c0_11 = arith.constant 0 : index
    %9 = vector.load %arg12[%c0_9, %c0_10, %c0_11] : memref<1x1x32xf32, #tpu.memory_space<vmem>>, vector<1x1x32xf32>
    %10 = vector.shape_cast %9 : vector<1x1x32xf32> to vector<1x32xf32>
    %c0_12 = arith.constant 0 : index
    %c0_13 = arith.constant 0 : index
    %c0_14 = arith.constant 0 : index
    %11 = vector.load %arg13[%c0_12, %c0_13, %c0_14] : memref<1x1x32xf32, #tpu.memory_space<vmem>>, vector<1x1x32xf32>
    %12 = vector.shape_cast %11 : vector<1x1x32xf32> to vector<1x32xf32>
    %c0_15 = arith.constant 0 : index
    %c0_16 = arith.constant 0 : index
    %c0_17 = arith.constant 0 : index
    %13 = vector.load %arg5[%c0_15, %c0_16, %c0_17] : memref<1x1x32xf32, #tpu.memory_space<vmem>>, vector<1x1x32xf32>
    %14 = vector.shape_cast %13 : vector<1x1x32xf32> to vector<1x32xf32>
    %c0_18 = arith.constant 0 : index
    %c0_19 = arith.constant 0 : index
    %c0_20 = arith.constant 0 : index
    %15 = vector.load %arg7[%c0_18, %c0_19, %c0_20] : memref<1x1x32xf32, #tpu.memory_space<vmem>>, vector<1x1x32xf32>
    %16 = vector.shape_cast %15 : vector<1x1x32xf32> to vector<1x32xf32>
    %c0_21 = arith.constant 0 : index
    %c0_22 = arith.constant 0 : index
    %c0_23 = arith.constant 0 : index
    %17 = vector.load %arg9[%c0_21, %c0_22, %c0_23] : memref<1x1x32xf32, #tpu.memory_space<vmem>>, vector<1x1x32xf32>
    %18 = vector.shape_cast %17 : vector<1x1x32xf32> to vector<1x32xf32>
    %c0_24 = arith.constant 0 : index
    %c0_25 = arith.constant 0 : index
    %c0_26 = arith.constant 0 : index
    %19 = vector.load %arg11[%c0_24, %c0_25, %c0_26] : memref<1x1x32xf32, #tpu.memory_space<vmem>>, vector<1x1x32xf32>
    %20 = vector.shape_cast %19 : vector<1x1x32xf32> to vector<1x32xf32>
    %c0_27 = arith.constant 0 : index
    %c0_28 = arith.constant 0 : index
    %c0_29 = arith.constant 0 : index
    %21 = vector.load %arg15[%c0_27, %c0_28, %c0_29] : memref<1x1x128xf32, #tpu.memory_space<vmem>>, vector<1x1x128xf32>
    %22 = vector.shape_cast %21 : vector<1x1x128xf32> to vector<1x128xf32>
    %c0_30 = arith.constant 0 : index
    %c0_31 = arith.constant 0 : index
    %c0_32 = arith.constant 0 : index
    %23 = vector.load %arg17[%c0_30, %c0_31, %c0_32] : memref<1x1x32xf32, #tpu.memory_space<vmem>>, vector<1x1x32xf32>
    %24 = vector.shape_cast %23 : vector<1x1x32xf32> to vector<1x32xf32>
    %c0_33 = arith.constant 0 : index
    %c0_34 = arith.constant 0 : index
    %c0_35 = arith.constant 0 : index
    %25 = vector.load %arg4[%c0_33, %c0_34, %c0_35] : memref<1x32x32xf32, #tpu.memory_space<vmem>>, vector<1x32x32xf32>
    %26 = vector.shape_cast %25 : vector<1x32x32xf32> to vector<32x32xf32>
    %c0_36 = arith.constant 0 : index
    %c0_37 = arith.constant 0 : index
    %c0_38 = arith.constant 0 : index
    %27 = vector.load %arg6[%c0_36, %c0_37, %c0_38] : memref<1x32x32xf32, #tpu.memory_space<vmem>>, vector<1x32x32xf32>
    %28 = vector.shape_cast %27 : vector<1x32x32xf32> to vector<32x32xf32>
    %c0_39 = arith.constant 0 : index
    %c0_40 = arith.constant 0 : index
    %c0_41 = arith.constant 0 : index
    %29 = vector.load %arg8[%c0_39, %c0_40, %c0_41] : memref<1x32x32xf32, #tpu.memory_space<vmem>>, vector<1x32x32xf32>
    %30 = vector.shape_cast %29 : vector<1x32x32xf32> to vector<32x32xf32>
    %c0_42 = arith.constant 0 : index
    %c0_43 = arith.constant 0 : index
    %c0_44 = arith.constant 0 : index
    %31 = vector.load %arg10[%c0_42, %c0_43, %c0_44] : memref<1x32x32xf32, #tpu.memory_space<vmem>>, vector<1x32x32xf32>
    %32 = vector.shape_cast %31 : vector<1x32x32xf32> to vector<32x32xf32>
    %c0_45 = arith.constant 0 : index
    %c0_46 = arith.constant 0 : index
    %c0_47 = arith.constant 0 : index
    %33 = vector.load %arg14[%c0_45, %c0_46, %c0_47] : memref<1x32x128xf32, #tpu.memory_space<vmem>>, vector<1x32x128xf32>
    %34 = vector.shape_cast %33 : vector<1x32x128xf32> to vector<32x128xf32>
    %c0_48 = arith.constant 0 : index
    %c0_49 = arith.constant 0 : index
    %c0_50 = arith.constant 0 : index
    %35 = vector.load %arg16[%c0_48, %c0_49, %c0_50] : memref<1x128x32xf32, #tpu.memory_space<vmem>>, vector<1x128x32xf32>
    %36 = vector.shape_cast %35 : vector<1x128x32xf32> to vector<128x32xf32>
    %cst = arith.constant dense<0.000000e+00> : vector<32xf32>
    %37 = vector.multi_reduction <add>, %4, %cst [1] : vector<32x32xf32> to vector<32xf32>
    %38 = vector.shape_cast %37 : vector<32xf32> to vector<32x1xf32>
    %cst_51 = arith.constant 3.200000e+01 : f32
    %39 = vector.broadcast %cst_51 : f32 to vector<32x1xf32>
    %40 = arith.divf %38, %39 : vector<32x1xf32>
    %41 = vector.broadcast %40 : vector<32x1xf32> to vector<32x32xf32>
    %42 = arith.subf %4, %41 : vector<32x32xf32>
    %43 = arith.mulf %42, %42 : vector<32x32xf32>
    %cst_52 = arith.constant dense<0.000000e+00> : vector<32xf32>
    %44 = vector.multi_reduction <add>, %43, %cst_52 [1] : vector<32x32xf32> to vector<32xf32>
    %45 = vector.shape_cast %44 : vector<32xf32> to vector<32x1xf32>
    %cst_53 = arith.constant 3.200000e+01 : f32
    %46 = vector.broadcast %cst_53 : f32 to vector<32x1xf32>
    %47 = arith.divf %45, %46 : vector<32x1xf32>
    %cst_54 = arith.constant 9.99999974E-6 : f32
    %48 = vector.broadcast %cst_54 : f32 to vector<32x1xf32>
    %49 = arith.addf %47, %48 : vector<32x1xf32>
    %50 = math.rsqrt %49 : vector<32x1xf32>
    %51 = vector.broadcast %50 : vector<32x1xf32> to vector<32x32xf32>
    %52 = arith.mulf %42, %51 : vector<32x32xf32>
    %53 = vector.broadcast %6 : vector<1x32xf32> to vector<32x32xf32>
    %54 = arith.mulf %52, %53 : vector<32x32xf32>
    %55 = vector.broadcast %8 : vector<1x32xf32> to vector<32x32xf32>
    %56 = arith.addf %54, %55 : vector<32x32xf32>
    %cst_55 = arith.constant dense<0.000000e+00> : vector<32x32xf32>
    %57 = tpu.matmul %56, %26, %cst_55 {dimension_numbers = #tpu.dot_dimension_numbers<[1], [0], [0], [1], [0, 0, 1, 1], [], []>} : vector<32x32xf32>, vector<32x32xf32>, vector<32x32xf32> -> vector<32x32xf32>
    %58 = vector.broadcast %14 : vector<1x32xf32> to vector<32x32xf32>
    %59 = arith.addf %57, %58 : vector<32x32xf32>
    %cst_56 = arith.constant 0.353553385 : f32
    %60 = vector.broadcast %cst_56 : f32 to vector<32x32xf32>
    %61 = arith.mulf %59, %60 : vector<32x32xf32>
    %cst_57 = arith.constant dense<0.000000e+00> : vector<32x32xf32>
    %62 = tpu.matmul %56, %28, %cst_57 {dimension_numbers = #tpu.dot_dimension_numbers<[1], [0], [0], [1], [0, 0, 1, 1], [], []>} : vector<32x32xf32>, vector<32x32xf32>, vector<32x32xf32> -> vector<32x32xf32>
    %63 = vector.broadcast %16 : vector<1x32xf32> to vector<32x32xf32>
    %64 = arith.addf %62, %63 : vector<32x32xf32>
    %cst_58 = arith.constant dense<0.000000e+00> : vector<32x32xf32>
    %65 = tpu.matmul %56, %30, %cst_58 {dimension_numbers = #tpu.dot_dimension_numbers<[1], [0], [0], [1], [0, 0, 1, 1], [], []>} : vector<32x32xf32>, vector<32x32xf32>, vector<32x32xf32> -> vector<32x32xf32>
    %66 = vector.broadcast %18 : vector<1x32xf32> to vector<32x32xf32>
    %67 = arith.addf %65, %66 : vector<32x32xf32>
    %68 = vector.shape_cast %61 : vector<32x32xf32> to vector<4x8x4x8xf32>
    %69 = tpu.transpose %68, [0, 2, 1, 3] : vector<4x8x4x8xf32> -> vector<4x4x8x8xf32>
    %70 = vector.shape_cast %69 : vector<4x4x8x8xf32> to vector<16x8x8xf32>
    %71 = vector.shape_cast %64 : vector<32x32xf32> to vector<4x8x4x8xf32>
    %72 = tpu.transpose %71, [0, 2, 1, 3] : vector<4x8x4x8xf32> -> vector<4x4x8x8xf32>
    %73 = vector.shape_cast %72 : vector<4x4x8x8xf32> to vector<16x8x8xf32>
    %74 = vector.shape_cast %67 : vector<32x32xf32> to vector<4x8x4x8xf32>
    %75 = tpu.transpose %74, [0, 2, 1, 3] : vector<4x8x4x8xf32> -> vector<4x4x8x8xf32>
    %76 = vector.shape_cast %75 : vector<4x4x8x8xf32> to vector<16x8x8xf32>
    "tpu.trace_start"() <{level = 10 : i32, message = "bqd,bkd->bqk"}> : () -> ()
    %cst_59 = arith.constant dense<0.000000e+00> : vector<16x8x8xf32>
    %77 = tpu.matmul %70, %73, %cst_59 {dimension_numbers = #tpu.dot_dimension_numbers<[2], [2], [1], [1], [0, 0, 0, 1, 1, 1], [0], [0]>} : vector<16x8x8xf32>, vector<16x8x8xf32>, vector<16x8x8xf32> -> vector<16x8x8xf32>
    "tpu.trace_stop"() : () -> ()
    %cst_60 = arith.constant dense<0xFF800000> : vector<16x8xf32>
    %78 = vector.multi_reduction <maximumf>, %77, %cst_60 [2] : vector<16x8x8xf32> to vector<16x8xf32>
    %79 = vector.shape_cast %78 : vector<16x8xf32> to vector<16x8x1xf32>
    %80 = vector.broadcast %79 : vector<16x8x1xf32> to vector<16x8x8xf32>
    %81 = arith.subf %77, %80 : vector<16x8x8xf32>
    %82 = math.exp %81 : vector<16x8x8xf32>
    %cst_61 = arith.constant dense<0.000000e+00> : vector<16x8xf32>
    %83 = vector.multi_reduction <add>, %82, %cst_61 [2] : vector<16x8x8xf32> to vector<16x8xf32>
    %84 = vector.shape_cast %83 : vector<16x8xf32> to vector<16x8x1xf32>
    %85 = tpu.reciprocal %84 {approx = true} : vector<16x8x1xf32> -> vector<16x8x1xf32>
    %86 = vector.broadcast %85 : vector<16x8x1xf32> to vector<16x8x8xf32>
    %87 = arith.mulf %82, %86 : vector<16x8x8xf32>
    "tpu.trace_start"() <{level = 10 : i32, message = "bqk,bkd->bqd"}> : () -> ()
    %cst_62 = arith.constant dense<0.000000e+00> : vector<16x8x8xf32>
    %88 = tpu.matmul %87, %76, %cst_62 {dimension_numbers = #tpu.dot_dimension_numbers<[2], [1], [1], [2], [0, 0, 0, 1, 1, 2], [0], [0]>} : vector<16x8x8xf32>, vector<16x8x8xf32>, vector<16x8x8xf32> -> vector<16x8x8xf32>
    "tpu.trace_stop"() : () -> ()
    %89 = vector.shape_cast %88 : vector<16x8x8xf32> to vector<4x4x8x8xf32>
    %90 = tpu.transpose %89, [0, 2, 1, 3] : vector<4x4x8x8xf32> -> vector<4x8x4x8xf32>
    %91 = vector.shape_cast %90 : vector<4x8x4x8xf32> to vector<32x32xf32>
    %cst_63 = arith.constant dense<0.000000e+00> : vector<32x32xf32>
    %92 = tpu.matmul %91, %32, %cst_63 {dimension_numbers = #tpu.dot_dimension_numbers<[1], [0], [0], [1], [0, 0, 1, 1], [], []>} : vector<32x32xf32>, vector<32x32xf32>, vector<32x32xf32> -> vector<32x32xf32>
    %93 = vector.broadcast %20 : vector<1x32xf32> to vector<32x32xf32>
    %94 = arith.addf %92, %93 : vector<32x32xf32>
    %95 = arith.addf %4, %94 : vector<32x32xf32>
    %cst_64 = arith.constant dense<0.000000e+00> : vector<32xf32>
    %96 = vector.multi_reduction <add>, %95, %cst_64 [1] : vector<32x32xf32> to vector<32xf32>
    %97 = vector.shape_cast %96 : vector<32xf32> to vector<32x1xf32>
    %cst_65 = arith.constant 3.200000e+01 : f32
    %98 = vector.broadcast %cst_65 : f32 to vector<32x1xf32>
    %99 = arith.divf %97, %98 : vector<32x1xf32>
    %100 = vector.broadcast %99 : vector<32x1xf32> to vector<32x32xf32>
    %101 = arith.subf %95, %100 : vector<32x32xf32>
    %102 = arith.mulf %101, %101 : vector<32x32xf32>
    %cst_66 = arith.constant dense<0.000000e+00> : vector<32xf32>
    %103 = vector.multi_reduction <add>, %102, %cst_66 [1] : vector<32x32xf32> to vector<32xf32>
    %104 = vector.shape_cast %103 : vector<32xf32> to vector<32x1xf32>
    %cst_67 = arith.constant 3.200000e+01 : f32
    %105 = vector.broadcast %cst_67 : f32 to vector<32x1xf32>
    %106 = arith.divf %104, %105 : vector<32x1xf32>
    %cst_68 = arith.constant 9.99999974E-6 : f32
    %107 = vector.broadcast %cst_68 : f32 to vector<32x1xf32>
    %108 = arith.addf %106, %107 : vector<32x1xf32>
    %109 = math.rsqrt %108 : vector<32x1xf32>
    %110 = vector.broadcast %109 : vector<32x1xf32> to vector<32x32xf32>
    %111 = arith.mulf %101, %110 : vector<32x32xf32>
    %112 = vector.broadcast %10 : vector<1x32xf32> to vector<32x32xf32>
    %113 = arith.mulf %111, %112 : vector<32x32xf32>
    %114 = vector.broadcast %12 : vector<1x32xf32> to vector<32x32xf32>
    %115 = arith.addf %113, %114 : vector<32x32xf32>
    %cst_69 = arith.constant dense<0.000000e+00> : vector<32x128xf32>
    %116 = tpu.matmul %115, %34, %cst_69 {dimension_numbers = #tpu.dot_dimension_numbers<[1], [0], [0], [1], [0, 0, 1, 1], [], []>} : vector<32x32xf32>, vector<32x128xf32>, vector<32x128xf32> -> vector<32x128xf32>
    %117 = vector.broadcast %22 : vector<1x128xf32> to vector<32x128xf32>
    %118 = arith.addf %116, %117 : vector<32x128xf32>
    %cst_70 = arith.constant 5.000000e-01 : f32
    %119 = vector.broadcast %cst_70 : f32 to vector<32x128xf32>
    %120 = arith.mulf %119, %118 : vector<32x128xf32>
    %cst_71 = arith.constant 0.707106769 : f32
    %121 = vector.broadcast %cst_71 : f32 to vector<32x128xf32>
    %122 = arith.mulf %118, %121 : vector<32x128xf32>
    %cst_72 = arith.constant 0.000000e+00 : f32
    %123 = vector.broadcast %cst_72 : f32 to vector<32x128xf32>
    %124 = arith.cmpf oge, %122, %123 : vector<32x128xf32>
    %cst_73 = arith.constant 1.000000e+00 : f32
    %cst_74 = arith.constant -1.000000e+00 : f32
    %125 = vector.broadcast %cst_73 : f32 to vector<32x128xf32>
    %126 = vector.broadcast %cst_74 : f32 to vector<32x128xf32>
    %127 = arith.select %124, %125, %126 : vector<32x128xi1>, vector<32x128xf32>
    %128 = math.absf %122 : vector<32x128xf32>
    %cst_75 = arith.constant 0.327591091 : f32
    %129 = vector.broadcast %cst_75 : f32 to vector<32x128xf32>
    %130 = arith.mulf %129, %128 : vector<32x128xf32>
    %cst_76 = arith.constant 1.000000e+00 : f32
    %131 = vector.broadcast %cst_76 : f32 to vector<32x128xf32>
    %132 = arith.addf %131, %130 : vector<32x128xf32>
    %cst_77 = arith.constant 1.000000e+00 : f32
    %133 = vector.broadcast %cst_77 : f32 to vector<32x128xf32>
    %134 = arith.divf %133, %132 : vector<32x128xf32>
    %cst_78 = arith.constant 1.06140542 : f32
    %135 = vector.broadcast %cst_78 : f32 to vector<32x128xf32>
    %136 = arith.mulf %134, %135 : vector<32x128xf32>
    %cst_79 = arith.constant -1.45315206 : f32
    %137 = vector.broadcast %cst_79 : f32 to vector<32x128xf32>
    %138 = arith.addf %137, %136 : vector<32x128xf32>
    %139 = arith.mulf %134, %138 : vector<32x128xf32>
    %cst_80 = arith.constant 1.42141378 : f32
    %140 = vector.broadcast %cst_80 : f32 to vector<32x128xf32>
    %141 = arith.addf %140, %139 : vector<32x128xf32>
    %142 = arith.mulf %134, %141 : vector<32x128xf32>
    %cst_81 = arith.constant -0.284496725 : f32
    %143 = vector.broadcast %cst_81 : f32 to vector<32x128xf32>
    %144 = arith.addf %143, %142 : vector<32x128xf32>
    %145 = arith.mulf %134, %144 : vector<32x128xf32>
    %cst_82 = arith.constant 0.254829586 : f32
    %146 = vector.broadcast %cst_82 : f32 to vector<32x128xf32>
    %147 = arith.addf %146, %145 : vector<32x128xf32>
    %148 = arith.mulf %134, %147 : vector<32x128xf32>
    %cst_83 = arith.constant 0.000000e+00 : f32
    %149 = vector.broadcast %cst_83 : f32 to vector<32x128xf32>
    %150 = arith.subf %149, %128 : vector<32x128xf32>
    %151 = arith.mulf %150, %128 : vector<32x128xf32>
    %152 = math.exp %151 : vector<32x128xf32>
    %153 = arith.mulf %148, %152 : vector<32x128xf32>
    %cst_84 = arith.constant 1.000000e+00 : f32
    %154 = vector.broadcast %cst_84 : f32 to vector<32x128xf32>
    %155 = arith.subf %154, %153 : vector<32x128xf32>
    %156 = arith.mulf %127, %155 : vector<32x128xf32>
    %cst_85 = arith.constant 1.000000e+00 : f32
    %157 = vector.broadcast %cst_85 : f32 to vector<32x128xf32>
    %158 = arith.addf %157, %156 : vector<32x128xf32>
    %159 = arith.mulf %120, %158 : vector<32x128xf32>
    %cst_86 = arith.constant dense<0.000000e+00> : vector<32x32xf32>
    %160 = tpu.matmul %159, %36, %cst_86 {dimension_numbers = #tpu.dot_dimension_numbers<[1], [0], [0], [1], [0, 0, 1, 1], [], []>} : vector<32x128xf32>, vector<128x32xf32>, vector<32x32xf32> -> vector<32x32xf32>
    %161 = vector.broadcast %24 : vector<1x32xf32> to vector<32x32xf32>
    %162 = arith.addf %160, %161 : vector<32x32xf32>
    %163 = arith.addf %95, %162 : vector<32x32xf32>
    %164 = vector.shape_cast %163 : vector<32x32xf32> to vector<4x8x32xf32>
    %c0_87 = arith.constant 0 : index
    %c0_88 = arith.constant 0 : index
    %c0_89 = arith.constant 0 : index
    %165 = vector.load %arg23[%c0_87, %c0_88, %c0_89] : memref<4x8x32xf32, #tpu.memory_space<vmem>>, vector<4x8x32xf32>
    tpu.vector_store %arg23[%c0_87, %c0_88, %c0_89], %164 {strides = array<i32>} : memref<4x8x32xf32, #tpu.memory_space<vmem>>, vector<4x8x32xf32>,
    %c1_i32 = arith.constant 1 : i32
    %166 = arith.cmpi eq, %arg0, %c1_i32 : i32
    %167 = arith.extui %166 : i1 to i32
    %c0_i32_90 = arith.constant 0 : i32
    %168 = arith.cmpi ne, %167, %c0_i32_90 : i32
    scf.if %168 {
      %169 = vector.shape_cast %163 : vector<32x32xf32> to vector<4x8x32xf32>
      %170 = vector.extract_strided_slice %169 {offsets = [0, 0, 0], sizes = [2, 1, 32], strides = [1, 1, 1]} : vector<4x8x32xf32> to vector<2x1x32xf32>
      %171 = vector.shape_cast %170 : vector<2x1x32xf32> to vector<2x32xf32>
      %c0_91 = arith.constant 0 : index
      %c0_92 = arith.constant 0 : index
      %172 = vector.load %arg18[%c0_91, %c0_92] : memref<1x32xf32, #tpu.memory_space<vmem>>, vector<1x32xf32>
      %c0_93 = arith.constant 0 : index
      %c0_94 = arith.constant 0 : index
      %173 = vector.load %arg19[%c0_93, %c0_94] : memref<1x32xf32, #tpu.memory_space<vmem>>, vector<1x32xf32>
      %cst_95 = arith.constant dense<0.000000e+00> : vector<2xf32>
      %174 = vector.multi_reduction <add>, %171, %cst_95 [1] : vector<2x32xf32> to vector<2xf32>
      %175 = vector.shape_cast %174 : vector<2xf32> to vector<2x1xf32>
      %cst_96 = arith.constant 3.200000e+01 : f32
      %176 = vector.broadcast %cst_96 : f32 to vector<2x1xf32>
      %177 = arith.divf %175, %176 : vector<2x1xf32>
      %178 = vector.broadcast %177 : vector<2x1xf32> to vector<2x32xf32>
      %179 = arith.subf %171, %178 : vector<2x32xf32>
      %180 = arith.mulf %179, %179 : vector<2x32xf32>
      %cst_97 = arith.constant dense<0.000000e+00> : vector<2xf32>
      %181 = vector.multi_reduction <add>, %180, %cst_97 [1] : vector<2x32xf32> to vector<2xf32>
      %182 = vector.shape_cast %181 : vector<2xf32> to vector<2x1xf32>
      %cst_98 = arith.constant 3.200000e+01 : f32
      %183 = vector.broadcast %cst_98 : f32 to vector<2x1xf32>
      %184 = arith.divf %182, %183 : vector<2x1xf32>
      %cst_99 = arith.constant 9.99999974E-6 : f32
      %185 = vector.broadcast %cst_99 : f32 to vector<2x1xf32>
      %186 = arith.addf %184, %185 : vector<2x1xf32>
      %187 = math.rsqrt %186 : vector<2x1xf32>
      %188 = vector.broadcast %187 : vector<2x1xf32> to vector<2x32xf32>
      %189 = arith.mulf %179, %188 : vector<2x32xf32>
      %190 = vector.broadcast %172 : vector<1x32xf32> to vector<2x32xf32>
      %191 = arith.mulf %189, %190 : vector<2x32xf32>
      %192 = vector.broadcast %173 : vector<1x32xf32> to vector<2x32xf32>
      %193 = arith.addf %191, %192 : vector<2x32xf32>
      %c0_i32_100 = arith.constant 0 : i32
      %194 = arith.sitofp %c0_i32_100 : i32 to f32
      %195 = vector.broadcast %194 : f32 to vector<6x32xf32>
      %196 = tpu.concatenate %193, %195 in 0 : vector<2x32xf32>, vector<6x32xf32> -> vector<8x32xf32>
      %c0_101 = arith.constant 0 : index
      %c0_102 = arith.constant 0 : index
      %197 = vector.load %arg20[%c0_101, %c0_102] : memref<32x128xf32, #tpu.memory_space<vmem>>, vector<32x128xf32>
      %cst_103 = arith.constant dense<0.000000e+00> : vector<8x128xf32>
      %198 = tpu.matmul %196, %197, %cst_103 {dimension_numbers = #tpu.dot_dimension_numbers<[1], [0], [0], [1], [0, 0, 1, 1], [], []>} : vector<8x32xf32>, vector<32x128xf32>, vector<8x128xf32> -> vector<8x128xf32>
      %c0_104 = arith.constant 0 : index
      %c0_105 = arith.constant 0 : index
      %199 = vector.load %arg21[%c0_104, %c0_105] : memref<1x128xf32, #tpu.memory_space<vmem>>, vector<1x128xf32>
      %200 = vector.broadcast %199 : vector<1x128xf32> to vector<8x128xf32>
      %201 = arith.addf %198, %200 : vector<8x128xf32>
      %c0_106 = arith.constant 0 : index
      %c0_107 = arith.constant 0 : index
      %202 = vector.load %arg22[%c0_106, %c0_107] : memref<8x128xf32, #tpu.memory_space<vmem>>, vector<8x128xf32>
      tpu.vector_store %arg22[%c0_106, %c0_107], %201 {strides = array<i32>} : memref<8x128xf32, #tpu.memory_space<vmem>>, vector<8x128xf32>,
    } else {
    }
    return
  }
  func.func @transform_0(%arg0: i32) -> (i32, i32, i32) {
    %c0_i32 = arith.constant 0 : i32
    %c0_i32_0 = arith.constant 0 : i32
    %c0_i32_1 = arith.constant 0 : i32
    %c0_i32_2 = arith.constant 0 : i32
    return %c0_i32, %c0_i32_0, %c0_i32_1 : i32, i32, i32
  }
  func.func @transform_1(%arg0: i32) -> (i32, i32, i32) {
    %c0_i32 = arith.constant 0 : i32
    %c0_i32_0 = arith.constant 0 : i32
    %c0_i32_1 = arith.constant 0 : i32
    return %arg0, %c0_i32, %c0_i32_0 : i32, i32, i32
  }
  func.func @transform_2(%arg0: i32) -> (i32, i32, i32) {
    %c0_i32 = arith.constant 0 : i32
    %c0_i32_0 = arith.constant 0 : i32
    %c0_i32_1 = arith.constant 0 : i32
    return %arg0, %c0_i32, %c0_i32_0 : i32, i32, i32
  }
  func.func @transform_3(%arg0: i32) -> (i32, i32, i32) {
    %c0_i32 = arith.constant 0 : i32
    %c0_i32_0 = arith.constant 0 : i32
    %c0_i32_1 = arith.constant 0 : i32
    return %arg0, %c0_i32, %c0_i32_0 : i32, i32, i32
  }
  func.func @transform_4(%arg0: i32) -> (i32, i32, i32) {
    %c0_i32 = arith.constant 0 : i32
    %c0_i32_0 = arith.constant 0 : i32
    %c0_i32_1 = arith.constant 0 : i32
    return %arg0, %c0_i32, %c0_i32_0 : i32, i32, i32
  }
  func.func @transform_5(%arg0: i32) -> (i32, i32, i32) {
    %c0_i32 = arith.constant 0 : i32
    %c0_i32_0 = arith.constant 0 : i32
    %c0_i32_1 = arith.constant 0 : i32
    return %arg0, %c0_i32, %c0_i32_0 : i32, i32, i32
  }
  func.func @transform_6(%arg0: i32) -> (i32, i32, i32) {
    %c0_i32 = arith.constant 0 : i32
    %c0_i32_0 = arith.constant 0 : i32
    %c0_i32_1 = arith.constant 0 : i32
    return %arg0, %c0_i32, %c0_i32_0 : i32, i32, i32
  }
  func.func @transform_7(%arg0: i32) -> (i32, i32, i32) {
    %c0_i32 = arith.constant 0 : i32
    %c0_i32_0 = arith.constant 0 : i32
    %c0_i32_1 = arith.constant 0 : i32
    return %arg0, %c0_i32, %c0_i32_0 : i32, i32, i32
  }
  func.func @transform_8(%arg0: i32) -> (i32, i32, i32) {
    %c0_i32 = arith.constant 0 : i32
    %c0_i32_0 = arith.constant 0 : i32
    %c0_i32_1 = arith.constant 0 : i32
    return %arg0, %c0_i32, %c0_i32_0 : i32, i32, i32
  }
  func.func @transform_9(%arg0: i32) -> (i32, i32, i32) {
    %c0_i32 = arith.constant 0 : i32
    %c0_i32_0 = arith.constant 0 : i32
    %c0_i32_1 = arith.constant 0 : i32
    return %arg0, %c0_i32, %c0_i32_0 : i32, i32, i32
  }
  func.func @transform_10(%arg0: i32) -> (i32, i32, i32) {
    %c0_i32 = arith.constant 0 : i32
    %c0_i32_0 = arith.constant 0 : i32
    %c0_i32_1 = arith.constant 0 : i32
    return %arg0, %c0_i32, %c0_i32_0 : i32, i32, i32
  }
  func.func @transform_11(%arg0: i32) -> (i32, i32, i32) {
    %c0_i32 = arith.constant 0 : i32
    %c0_i32_0 = arith.constant 0 : i32
    %c0_i32_1 = arith.constant 0 : i32
    return %arg0, %c0_i32, %c0_i32_0 : i32, i32, i32
  }
  func.func @transform_12(%arg0: i32) -> (i32, i32, i32) {
    %c0_i32 = arith.constant 0 : i32
    %c0_i32_0 = arith.constant 0 : i32
    %c0_i32_1 = arith.constant 0 : i32
    return %arg0, %c0_i32, %c0_i32_0 : i32, i32, i32
  }
  func.func @transform_13(%arg0: i32) -> (i32, i32, i32) {
    %c0_i32 = arith.constant 0 : i32
    %c0_i32_0 = arith.constant 0 : i32
    %c0_i32_1 = arith.constant 0 : i32
    return %arg0, %c0_i32, %c0_i32_0 : i32, i32, i32
  }
  func.func @transform_14(%arg0: i32) -> (i32, i32, i32) {
    %c0_i32 = arith.constant 0 : i32
    %c0_i32_0 = arith.constant 0 : i32
    %c0_i32_1 = arith.constant 0 : i32
    return %arg0, %c0_i32, %c0_i32_0 : i32, i32, i32
  }
  func.func @transform_15(%arg0: i32) -> (i32, i32, i32) {
    %c0_i32 = arith.constant 0 : i32
    %c0_i32_0 = arith.constant 0 : i32
    %c0_i32_1 = arith.constant 0 : i32
    return %arg0, %c0_i32, %c0_i32_0 : i32, i32, i32
  }
  func.func @transform_16(%arg0: i32) -> (i32, i32, i32) {
    %c0_i32 = arith.constant 0 : i32
    %c0_i32_0 = arith.constant 0 : i32
    %c0_i32_1 = arith.constant 0 : i32
    return %arg0, %c0_i32, %c0_i32_0 : i32, i32, i32
  }
  func.func @transform_17(%arg0: i32) -> (i32, i32) {
    %c0_i32 = arith.constant 0 : i32
    %c0_i32_0 = arith.constant 0 : i32
    %c0_i32_1 = arith.constant 0 : i32
    return %c0_i32, %c0_i32_0 : i32, i32
  }
  func.func @transform_18(%arg0: i32) -> (i32, i32) {
    %c0_i32 = arith.constant 0 : i32
    %c0_i32_0 = arith.constant 0 : i32
    %c0_i32_1 = arith.constant 0 : i32
    return %c0_i32, %c0_i32_0 : i32, i32
  }
  func.func @transform_19(%arg0: i32) -> (i32, i32) {
    %c0_i32 = arith.constant 0 : i32
    %c0_i32_0 = arith.constant 0 : i32
    %c0_i32_1 = arith.constant 0 : i32
    return %c0_i32, %c0_i32_0 : i32, i32
  }
  func.func @transform_20(%arg0: i32) -> (i32, i32) {
    %c0_i32 = arith.constant 0 : i32
    %c0_i32_0 = arith.constant 0 : i32
    %c0_i32_1 = arith.constant 0 : i32
    return %c0_i32, %c0_i32_0 : i32, i32
  }
  func.func @transform_21(%arg0: i32) -> (i32, i32) {
    %c0_i32 = arith.constant 0 : i32
    %c0_i32_0 = arith.constant 0 : i32
    %c0_i32_1 = arith.constant 0 : i32
    return %c0_i32, %c0_i32_0 : i32, i32
  }
}

</mosaic_0001>

<llo_original>
// kernel: rnamsm_forward.1
$region0: #{rnamsm_forward.1}
  #allocation0 [shape = 'u32[]', space=smem, size = 0x4, offset = 0x4, fixed_abs, tag = 'smem constant byte address 0x4 - core index']
  #allocation1 [shape = 'u32[144,128]{1,0:T(1,128)}', space=vmem, size = 0x12000, scoped, tag = 'internal scratch']
  #allocation2 [shape = 'f32[4,8,32]{2,1,0:T(8,128)}', space=vmem, size = 0x4000, scoped, tag = 'scratch operand']
  %s0 = inlined_call_operand.vmem [shape: f32[4,8,32], index: 0, kind: input, shape index: {}]
  %s1 = inlined_call_operand.vmem [shape: f32[2,1,32], index: 1, kind: input, shape index: {}]
  %s2 = inlined_call_operand.vmem [shape: f32[2,1,32], index: 2, kind: input, shape index: {}]
  %s3 = inlined_call_operand.vmem [shape: f32[2,32,32], index: 3, kind: input, shape index: {}]
  %s4 = inlined_call_operand.vmem [shape: f32[2,1,32], index: 4, kind: input, shape index: {}]
  %s5 = inlined_call_operand.vmem [shape: f32[2,32,32], index: 5, kind: input, shape index: {}]
  %s6 = inlined_call_operand.vmem [shape: f32[2,1,32], index: 6, kind: input, shape index: {}]
  %s7 = inlined_call_operand.vmem [shape: f32[2,32,32], index: 7, kind: input, shape index: {}]
  %s8 = inlined_call_operand.vmem [shape: f32[2,1,32], index: 8, kind: input, shape index: {}]
  %s9 = inlined_call_operand.vmem [shape: f32[2,32,32], index: 9, kind: input, shape index: {}]
  %s10 = inlined_call_operand.vmem [shape: f32[2,1,32], index: 10, kind: input, shape index: {}]
  %s11 = inlined_call_operand.vmem [shape: f32[2,1,32], index: 11, kind: input, shape index: {}]
  %s12 = inlined_call_operand.vmem [shape: f32[2,1,32], index: 12, kind: input, shape index: {}]
  %s13 = inlined_call_operand.vmem [shape: f32[2,32,128], index: 13, kind: input, shape index: {}]
  %s14 = inlined_call_operand.vmem [shape: f32[2,1,128], index: 14, kind: input, shape index: {}]
  %s15 = inlined_call_operand.vmem [shape: f32[2,128,32], index: 15, kind: input, shape index: {}]
  %s16 = inlined_call_operand.vmem [shape: f32[2,1,32], index: 16, kind: input, shape index: {}]
  %s17 = inlined_call_operand.vmem [shape: f32[1,32], index: 17, kind: input, shape index: {}]
  %s18 = inlined_call_operand.vmem [shape: f32[1,32], index: 18, kind: input, shape index: {}]
  %s19 = inlined_call_operand.vmem [shape: f32[32,128], index: 19, kind: input, shape index: {}]
  %s20 = inlined_call_operand.vmem [shape: f32[1,128], index: 20, kind: input, shape index: {}]
  %s21 = inlined_call_operand.vmem [shape: f32[8,128], index: 21, kind: output, shape index: {}]
  %s22 = sld [smem:[#allocation0]]
  $region125: #{rnamsm_forward.1} parent=0
    _
  %s24 = ssub.s32 1, %s22
  %s25 = scalar_select 0, %s24, %s22
  loop: start=0, step=1, limit=4
  $region2: #{rnamsm_forward.1} parent=0 // loop_pre_header
    _
  $region3: #{rnamsm_forward.1} parent=0 // loop_header
    %s27 = sphi 0, %s31
    %p28 = scmp.ge.s32.totalorder %s27, 4
    %s35 = sphi 0, %s35
    %s37 = sphi 0, %s35
    %s38 = sphi 0, %s37
    %s52 = sphi 0, %s38
    %s58 = sphi 0, %s60
    %s61 = sphi 0, %s58
    %s62 = sphi 0, %s61
    %s78 = sphi 0, %s62
    %s84 = sphi 0, %s86
    %s87 = sphi 0, %s84
    %s88 = sphi 0, %s87
    %s104 = sphi 0, %s88
    %s110 = sphi 0, %s112
    %s113 = sphi 0, %s110
    %s114 = sphi 0, %s113
    %s130 = sphi 0, %s114
    %s136 = sphi 0, %s138
    %s139 = sphi 0, %s136
    %s140 = sphi 0, %s139
    %s156 = sphi 0, %s140
    %s162 = sphi 0, %s164
    %s165 = sphi 0, %s162
    %s166 = sphi 0, %s165
    %s182 = sphi 0, %s166
    %s188 = sphi 0, %s190
    %s191 = sphi 0, %s188
    %s192 = sphi 0, %s191
    %s208 = sphi 0, %s192
    %s214 = sphi 0, %s216
    %s217 = sphi 0, %s214
    %s218 = sphi 0, %s217
    %s234 = sphi 0, %s218
    %s240 = sphi 0, %s242
    %s243 = sphi 0, %s240
    %s244 = sphi 0, %s243
    %s260 = sphi 0, %s244
    %s266 = sphi 0, %s268
    %s269 = sphi 0, %s266
    %s270 = sphi 0, %s269
    %s286 = sphi 0, %s270
    %s292 = sphi 0, %s294
    %s295 = sphi 0, %s292
    %s296 = sphi 0, %s295
    %s312 = sphi 0, %s296
    %s318 = sphi 0, %s320
    %s321 = sphi 0, %s318
    %s322 = sphi 0, %s321
    %s338 = sphi 0, %s322
    %s344 = sphi 0, %s346
    %s347 = sphi 0, %s344
    %s348 = sphi 0, %s347
    %s364 = sphi 0, %s348
    %s370 = sphi 0, %s372
    %s373 = sphi 0, %s370
    %s374 = sphi 0, %s373
    %s390 = sphi 0, %s374
    %s396 = sphi 0, %s398
    %s399 = sphi 0, %s396
    %s400 = sphi 0, %s399
    %s416 = sphi 0, %s400
    %s422 = sphi 0, %s424
    %s425 = sphi 0, %s422
    %s426 = sphi 0, %s425
    %s442 = sphi 0, %s426
    %s448 = sphi 0, %s450
    %s451 = sphi 0, %s448
    %s452 = sphi 0, %s451
    %s468 = sphi 0, %s452
    %s472 = sphi 0, %s472
    %s474 = sphi 0, %s472
    %s475 = sphi 0, %s474
    %s489 = sphi 0, %s475
    %s493 = sphi 0, %s493
    %s495 = sphi 0, %s493
    %s496 = sphi 0, %s495
    %s510 = sphi 0, %s496
    %s514 = sphi 0, %s514
    %s516 = sphi 0, %s514
    %s517 = sphi 0, %s516
    %s531 = sphi 0, %s517
    %s535 = sphi 0, %s535
    %s537 = sphi 0, %s535
    %s538 = sphi 0, %s537
    %s552 = sphi 0, %s538
    %s556 = sphi 0, %s556
    %s558 = sphi 0, %s556
    %s559 = sphi 0, %s558
    %s573 = sphi 0, %s559
  $region4: #{rnamsm_forward.1} parent=0 // loop_header_branch
    %30 = sbr.rel (%p28) target = $region8
  $region5: #{rnamsm_forward.1} parent=0 // loop_body
    %s32 = ssub.s32 %s27, 1
    %s33 = ssub.s32 %s27, 2
    %s34 = sadd.s32 %s27, 1
    %s36 = sadd.s32 %s35, 1
    %p39 = scmp.eq.s32.totalorder %s27, 1
    %p40 = scmp.ne.s32.totalorder %s35, %s37
    %p41 = scmp.eq.s32.totalorder %s27, 0
    %p42 = por %p40, %p41
    %p43 = scmp.ne.s32.totalorder %s35, %s37
    %p44 = scmp.eq.s32.totalorder %s32, 1
    %p45 = por %p43, %p44
    %p46 = scmp.ne.s32.totalorder %s37, %s38
    %p47 = scmp.eq.s32.totalorder %s32, 0
    %p48 = por %p46, %p47
    %p49 = scmp.ne.s32.totalorder %s37, %s38
    %p50 = scmp.eq.s32.totalorder %s33, 1
    %p51 = por %p49, %p50
    %p53 = scmp.ne.s32.totalorder %s38, %s52
    %p54 = scmp.eq.s32.totalorder %s33, 0
    %p55 = por %p53, %p54
    %s56 = ssub.s32 %s27, %s34
    %p57 = scmp.eq.s32.totalorder %s56, 0
    %s59 = sadd.s32 %s58, 1
    %s60 = scalar_select %p57, %s58, %s59
    %p63 = pneg %p57
    %p64 = scmp.eq.s32.totalorder %s27, 1
    %p65 = por %p63, %p64
    %p66 = scmp.ne.s32.totalorder %s58, %s61
    %p67 = scmp.eq.s32.totalorder %s27, 0
    %p68 = por %p66, %p67
    %p69 = scmp.ne.s32.totalorder %s58, %s61
    %p70 = scmp.eq.s32.totalorder %s32, 1
    %p71 = por %p69, %p70
    %p72 = scmp.ne.s32.totalorder %s61, %s62
    %p73 = scmp.eq.s32.totalorder %s32, 0
    %p74 = por %p72, %p73
    %p75 = scmp.ne.s32.totalorder %s61, %s62
    %p76 = scmp.eq.s32.totalorder %s33, 1
    %p77 = por %p75, %p76
    %p79 = scmp.ne.s32.totalorder %s62, %s78
    %p80 = scmp.eq.s32.totalorder %s33, 0
    %p81 = por %p79, %p80
    %s82 = ssub.s32 %s27, %s34
    %p83 = scmp.eq.s32.totalorder %s82, 0
    %s85 = sadd.s32 %s84, 1
    %s86 = scalar_select %p83, %s84, %s85
    %p89 = pneg %p83
    %p90 = scmp.eq.s32.totalorder %s27, 1
    %p91 = por %p89, %p90
    %p92 = scmp.ne.s32.totalorder %s84, %s87
    %p93 = scmp.eq.s32.totalorder %s27, 0
    %p94 = por %p92, %p93
    %p95 = scmp.ne.s32.totalorder %s84, %s87
    %p96 = scmp.eq.s32.totalorder %s32, 1
    %p97 = por %p95, %p96
    %p98 = scmp.ne.s32.totalorder %s87, %s88
    %p99 = scmp.eq.s32.totalorder %s32, 0
    %p100 = por %p98, %p99
    %p101 = scmp.ne.s32.totalorder %s87, %s88
    %p102 = scmp.eq.s32.totalorder %s33, 1
    %p103 = por %p101, %p102
    %p105 = scmp.ne.s32.totalorder %s88, %s104
    %p106 = scmp.eq.s32.totalorder %s33, 0
    %p107 = por %p105, %p106
    %s108 = ssub.s32 %s27, %s34
    %p109 = scmp.eq.s32.totalorder %s108, 0
    %s111 = sadd.s32 %s110, 1
    %s112 = scalar_select %p109, %s110, %s111
    %p115 = pneg %p109
    %p116 = scmp.eq.s32.totalorder %s27, 1
    %p117 = por %p115, %p116
    %p118 = scmp.ne.s32.totalorder %s110, %s113
    %p119 = scmp.eq.s32.totalorder %s27, 0
    %p120 = por %p118, %p119
    %p121 = scmp.ne.s32.totalorder %s110, %s113
    %p122 = scmp.eq.s32.totalorder %s32, 1
    %p123 = por %p121, %p122
    %p124 = scmp.ne.s32.totalorder %s113, %s114
    %p125 = scmp.eq.s32.totalorder %s32, 0
    %p126 = por %p124, %p125
    %p127 = scmp.ne.s32.totalorder %s113, %s114
    %p128 = scmp.eq.s32.totalorder %s33, 1
    %p129 = por %p127, %p128
    %p131 = scmp.ne.s32.totalorder %s114, %s130
    %p132 = scmp.eq.s32.totalorder %s33, 0
    %p133 = por %p131, %p132
    %s134 = ssub.s32 %s27, %s34
    %p135 = scmp.eq.s32.totalorder %s134, 0
    %s137 = sadd.s32 %s136, 1
    %s138 = scalar_select %p135, %s136, %s137
    %p141 = pneg %p135
    %p142 = scmp.eq.s32.totalorder %s27, 1
    %p143 = por %p141, %p142
    %p144 = scmp.ne.s32.totalorder %s136, %s139
    %p145 = scmp.eq.s32.totalorder %s27, 0
    %p146 = por %p144, %p145
    %p147 = scmp.ne.s32.totalorder %s136, %s139
    %p148 = scmp.eq.s32.totalorder %s32, 1
    %p149 = por %p147, %p148
    %p150 = scmp.ne.s32.totalorder %s139, %s140
    %p151 = scmp.eq.s32.totalorder %s32, 0
    %p152 = por %p150, %p151
    %p153 = scmp.ne.s32.totalorder %s139, %s140
    %p154 = scmp.eq.s32.totalorder %s33, 1
    %p155 = por %p153, %p154
    %p157 = scmp.ne.s32.totalorder %s140, %s156
    %p158 = scmp.eq.s32.totalorder %s33, 0
    %p159 = por %p157, %p158
    %s160 = ssub.s32 %s27, %s34
    %p161 = scmp.eq.s32.totalorder %s160, 0
    %s163 = sadd.s32 %s162, 1
    %s164 = scalar_select %p161, %s162, %s163
    %p167 = pneg %p161
    %p168 = scmp.eq.s32.totalorder %s27, 1
    %p169 = por %p167, %p168
    %p170 = scmp.ne.s32.totalorder %s162, %s165
    %p171 = scmp.eq.s32.totalorder %s27, 0
    %p172 = por %p170, %p171
    %p173 = scmp.ne.s32.totalorder %s162, %s165
    %p174 = scmp.eq.s32.totalorder %s32, 1
    %p175 = por %p173, %p174
    %p176 = scmp.ne.s32.totalorder %s165, %s166
    %p177 = scmp.eq.s32.totalorder %s32, 0
    %p178 = por %p176, %p177
    %p179 = scmp.ne.s32.totalorder %s165, %s166
    %p180 = scmp.eq.s32.totalorder %s33, 1
    %p181 = por %p179, %p180
    %p183 = scmp.ne.s32.totalorder %s166, %s182
    %p184 = scmp.eq.s32.totalorder %s33, 0
    %p185 = por %p183, %p184
    %s186 = ssub.s32 %s27, %s34
    %p187 = scmp.eq.s32.totalorder %s186, 0
    %s189 = sadd.s32 %s188, 1
    %s190 = scalar_select %p187, %s188, %s189
    %p193 = pneg %p187
    %p194 = scmp.eq.s32.totalorder %s27, 1
    %p195 = por %p193, %p194
    %p196 = scmp.ne.s32.totalorder %s188, %s191
    %p197 = scmp.eq.s32.totalorder %s27, 0
    %p198 = por %p196, %p197
    %p199 = scmp.ne.s32.totalorder %s188, %s191
    %p200 = scmp.eq.s32.totalorder %s32, 1
    %p201 = por %p199, %p200
    %p202 = scmp.ne.s32.totalorder %s191, %s192
    %p203 = scmp.eq.s32.totalorder %s32, 0
    %p204 = por %p202, %p203
    %p205 = scmp.ne.s32.totalorder %s191, %s192
    %p206 = scmp.eq.s32.totalorder %s33, 1
    %p207 = por %p205, %p206
    %p209 = scmp.ne.s32.totalorder %s192, %s208
    %p210 = scmp.eq.s32.totalorder %s33, 0
    %p211 = por %p209, %p210
    %s212 = ssub.s32 %s27, %s34
    %p213 = scmp.eq.s32.totalorder %s212, 0
    %s215 = sadd.s32 %s214, 1
    %s216 = scalar_select %p213, %s214, %s215
    %p219 = pneg %p213
    %p220 = scmp.eq.s32.totalorder %s27, 1
    %p221 = por %p219, %p220
    %p222 = scmp.ne.s32.totalorder %s214, %s217
    %p223 = scmp.eq.s32.totalorder %s27, 0
    %p224 = por %p222, %p223
    %p225 = scmp.ne.s32.totalorder %s214, %s217
    %p226 = scmp.eq.s32.totalorder %s32, 1
    %p227 = por %p225, %p226
    %p228 = scmp.ne.s32.totalorder %s217, %s218
    %p229 = scmp.eq.s32.totalorder %s32, 0
    %p230 = por %p228, %p229
    %p231 = scmp.ne.s32.totalorder %s217, %s218
    %p232 = scmp.eq.s32.totalorder %s33, 1
    %p233 = por %p231, %p232
    %p235 = scmp.ne.s32.totalorder %s218, %s234
    %p236 = scmp.eq.s32.totalorder %s33, 0
    %p237 = por %p235, %p236
    %s238 = ssub.s32 %s27, %s34
    %p239 = scmp.eq.s32.totalorder %s238, 0
    %s241 = sadd.s32 %s240, 1
    %s242 = scalar_select %p239, %s240, %s241
    %p245 = pneg %p239
    %p246 = scmp.eq.s32.totalorder %s27, 1
    %p247 = por %p245, %p246
    %p248 = scmp.ne.s32.totalorder %s240, %s243
    %p249 = scmp.eq.s32.totalorder %s27, 0
    %p250 = por %p248, %p249
    %p251 = scmp.ne.s32.totalorder %s240, %s243
    %p252 = scmp.eq.s32.totalorder %s32, 1
    %p253 = por %p251, %p252
    %p254 = scmp.ne.s32.totalorder %s243, %s244
    %p255 = scmp.eq.s32.totalorder %s32, 0
    %p256 = por %p254, %p255
    %p257 = scmp.ne.s32.totalorder %s243, %s244
    %p258 = scmp.eq.s32.totalorder %s33, 1
    %p259 = por %p257, %p258
    %p261 = scmp.ne.s32.totalorder %s244, %s260
    %p262 = scmp.eq.s32.totalorder %s33, 0
    %p263 = por %p261, %p262
    %s264 = ssub.s32 %s27, %s34
    %p265 = scmp.eq.s32.totalorder %s264, 0
    %s267 = sadd.s32 %s266, 1
    %s268 = scalar_select %p265, %s266, %s267
    %p271 = pneg %p265
    %p272 = scmp.eq.s32.totalorder %s27, 1
    %p273 = por %p271, %p272
    %p274 = scmp.ne.s32.totalorder %s266, %s269
    %p275 = scmp.eq.s32.totalorder %s27, 0
    %p276 = por %p274, %p275
    %p277 = scmp.ne.s32.totalorder %s266, %s269
    %p278 = scmp.eq.s32.totalorder %s32, 1
    %p279 = por %p277, %p278
    %p280 = scmp.ne.s32.totalorder %s269, %s270
    %p281 = scmp.eq.s32.totalorder %s32, 0
    %p282 = por %p280, %p281
    %p283 = scmp.ne.s32.totalorder %s269, %s270
    %p284 = scmp.eq.s32.totalorder %s33, 1
    %p285 = por %p283, %p284
    %p287 = scmp.ne.s32.totalorder %s270, %s286
    %p288 = scmp.eq.s32.totalorder %s33, 0
    %p289 = por %p287, %p288
    %s290 = ssub.s32 %s27, %s34
    %p291 = scmp.eq.s32.totalorder %s290, 0
    %s293 = sadd.s32 %s292, 1
    %s294 = scalar_select %p291, %s292, %s293
    %p297 = pneg %p291
    %p298 = scmp.eq.s32.totalorder %s27, 1
    %p299 = por %p297, %p298
    %p300 = scmp.ne.s32.totalorder %s292, %s295
    %p301 = scmp.eq.s32.totalorder %s27, 0
    %p302 = por %p300, %p301
    %p303 = scmp.ne.s32.totalorder %s292, %s295
    %p304 = scmp.eq.s32.totalorder %s32, 1
    %p305 = por %p303, %p304
    %p306 = scmp.ne.s32.totalorder %s295, %s296
    %p307 = scmp.eq.s32.totalorder %s32, 0
    %p308 = por %p306, %p307
    %p309 = scmp.ne.s32.totalorder %s295, %s296
    %p310 = scmp.eq.s32.totalorder %s33, 1
    %p311 = por %p309, %p310
    %p313 = scmp.ne.s32.totalorder %s296, %s312
    %p314 = scmp.eq.s32.totalorder %s33, 0
    %p315 = por %p313, %p314
    %s316 = ssub.s32 %s27, %s34
    %p317 = scmp.eq.s32.totalorder %s316, 0
    %s319 = sadd.s32 %s318, 1
    %s320 = scalar_select %p317, %s318, %s319
    %p323 = pneg %p317
    %p324 = scmp.eq.s32.totalorder %s27, 1
    %p325 = por %p323, %p324
    %p326 = scmp.ne.s32.totalorder %s318, %s321
    %p327 = scmp.eq.s32.totalorder %s27, 0
    %p328 = por %p326, %p327
    %p329 = scmp.ne.s32.totalorder %s318, %s321
    %p330 = scmp.eq.s32.totalorder %s32, 1
    %p331 = por %p329, %p330
    %p332 = scmp.ne.s32.totalorder %s321, %s322
    %p333 = scmp.eq.s32.totalorder %s32, 0
    %p334 = por %p332, %p333
    %p335 = scmp.ne.s32.totalorder %s321, %s322
    %p336 = scmp.eq.s32.totalorder %s33, 1
    %p337 = por %p335, %p336
    %p339 = scmp.ne.s32.totalorder %s322, %s338
    %p340 = scmp.eq.s32.totalorder %s33, 0
    %p341 = por %p339, %p340
    %s342 = ssub.s32 %s27, %s34
    %p343 = scmp.eq.s32.totalorder %s342, 0
    %s345 = sadd.s32 %s344, 1
    %s346 = scalar_select %p343, %s344, %s345
    %p349 = pneg %p343
    %p350 = scmp.eq.s32.totalorder %s27, 1
    %p351 = por %p349, %p350
    %p352 = scmp.ne.s32.totalorder %s344, %s347
    %p353 = scmp.eq.s32.totalorder %s27, 0
    %p354 = por %p352, %p353
    %p355 = scmp.ne.s32.totalorder %s344, %s347
    %p356 = scmp.eq.s32.totalorder %s32, 1
    %p357 = por %p355, %p356
    %p358 = scmp.ne.s32.totalorder %s347, %s348
    %p359 = scmp.eq.s32.totalorder %s32, 0
    %p360 = por %p358, %p359
    %p361 = scmp.ne.s32.totalorder %s347, %s348
    %p362 = scmp.eq.s32.totalorder %s33, 1
    %p363 = por %p361, %p362
    %p365 = scmp.ne.s32.totalorder %s348, %s364
    %p366 = scmp.eq.s32.totalorder %s33, 0
    %p367 = por %p365, %p366
    %s368 = ssub.s32 %s27, %s34
    %p369 = scmp.eq.s32.totalorder %s368, 0
    %s371 = sadd.s32 %s370, 1
    %s372 = scalar_select %p369, %s370, %s371
    %p375 = pneg %p369
    %p376 = scmp.eq.s32.totalorder %s27, 1
    %p377 = por %p375, %p376
    %p378 = scmp.ne.s32.totalorder %s370, %s373
    %p379 = scmp.eq.s32.totalorder %s27, 0
    %p380 = por %p378, %p379
    %p381 = scmp.ne.s32.totalorder %s370, %s373
    %p382 = scmp.eq.s32.totalorder %s32, 1
    %p383 = por %p381, %p382
    %p384 = scmp.ne.s32.totalorder %s373, %s374
    %p385 = scmp.eq.s32.totalorder %s32, 0
    %p386 = por %p384, %p385
    %p387 = scmp.ne.s32.totalorder %s373, %s374
    %p388 = scmp.eq.s32.totalorder %s33, 1
    %p389 = por %p387, %p388
    %p391 = scmp.ne.s32.totalorder %s374, %s390
    %p392 = scmp.eq.s32.totalorder %s33, 0
    %p393 = por %p391, %p392
    %s394 = ssub.s32 %s27, %s34
    %p395 = scmp.eq.s32.totalorder %s394, 0
    %s397 = sadd.s32 %s396, 1
    %s398 = scalar_select %p395, %s396, %s397
    %p401 = pneg %p395
    %p402 = scmp.eq.s32.totalorder %s27, 1
    %p403 = por %p401, %p402
    %p404 = scmp.ne.s32.totalorder %s396, %s399
    %p405 = scmp.eq.s32.totalorder %s27, 0
    %p406 = por %p404, %p405
    %p407 = scmp.ne.s32.totalorder %s396, %s399
    %p408 = scmp.eq.s32.totalorder %s32, 1
    %p409 = por %p407, %p408
    %p410 = scmp.ne.s32.totalorder %s399, %s400
    %p411 = scmp.eq.s32.totalorder %s32, 0
    %p412 = por %p410, %p411
    %p413 = scmp.ne.s32.totalorder %s399, %s400
    %p414 = scmp.eq.s32.totalorder %s33, 1
    %p415 = por %p413, %p414
    %p417 = scmp.ne.s32.totalorder %s400, %s416
    %p418 = scmp.eq.s32.totalorder %s33, 0
    %p419 = por %p417, %p418
    %s420 = ssub.s32 %s27, %s34
    %p421 = scmp.eq.s32.totalorder %s420, 0
    %s423 = sadd.s32 %s422, 1
    %s424 = scalar_select %p421, %s422, %s423
    %p427 = pneg %p421
    %p428 = scmp.eq.s32.totalorder %s27, 1
    %p429 = por %p427, %p428
    %p430 = scmp.ne.s32.totalorder %s422, %s425
    %p431 = scmp.eq.s32.totalorder %s27, 0
    %p432 = por %p430, %p431
    %p433 = scmp.ne.s32.totalorder %s422, %s425
    %p434 = scmp.eq.s32.totalorder %s32, 1
    %p435 = por %p433, %p434
    %p436 = scmp.ne.s32.totalorder %s425, %s426
    %p437 = scmp.eq.s32.totalorder %s32, 0
    %p438 = por %p436, %p437
    %p439 = scmp.ne.s32.totalorder %s425, %s426
    %p440 = scmp.eq.s32.totalorder %s33, 1
    %p441 = por %p439, %p440
    %p443 = scmp.ne.s32.totalorder %s426, %s442
    %p444 = scmp.eq.s32.totalorder %s33, 0
    %p445 = por %p443, %p444
    %s446 = ssub.s32 %s27, %s34
    %p447 = scmp.eq.s32.totalorder %s446, 0
    %s449 = sadd.s32 %s448, 1
    %s450 = scalar_select %p447, %s448, %s449
    %p453 = pneg %p447
    %p454 = scmp.eq.s32.totalorder %s27, 1
    %p455 = por %p453, %p454
    %p456 = scmp.ne.s32.totalorder %s448, %s451
    %p457 = scmp.eq.s32.totalorder %s27, 0
    %p458 = por %p456, %p457
    %p459 = scmp.ne.s32.totalorder %s448, %s451
    %p460 = scmp.eq.s32.totalorder %s32, 1
    %p461 = por %p459, %p460
    %p462 = scmp.ne.s32.totalorder %s451, %s452
    %p463 = scmp.eq.s32.totalorder %s32, 0
    %p464 = por %p462, %p463
    %p465 = scmp.ne.s32.totalorder %s451, %s452
    %p466 = scmp.eq.s32.totalorder %s33, 1
    %p467 = por %p465, %p466
    %p469 = scmp.ne.s32.totalorder %s452, %s468
    %p470 = scmp.eq.s32.totalorder %s33, 0
    %p471 = por %p469, %p470
    %s473 = sadd.s32 %s472, 1
    %p476 = scmp.eq.s32.totalorder %s27, 1
    %p477 = scmp.ne.s32.totalorder %s472, %s474
    %p478 = scmp.eq.s32.totalorder %s27, 0
    %p479 = por %p477, %p478
    %p480 = scmp.ne.s32.totalorder %s472, %s474
    %p481 = scmp.eq.s32.totalorder %s32, 1
    %p482 = por %p480, %p481
    %p483 = scmp.ne.s32.totalorder %s474, %s475
    %p484 = scmp.eq.s32.totalorder %s32, 0
    %p485 = por %p483, %p484
    %p486 = scmp.ne.s32.totalorder %s474, %s475
    %p487 = scmp.eq.s32.totalorder %s33, 1
    %p488 = por %p486, %p487
    %p490 = scmp.ne.s32.totalorder %s475, %s489
    %p491 = scmp.eq.s32.totalorder %s33, 0
    %p492 = por %p490, %p491
    %s494 = sadd.s32 %s493, 1
    %p497 = scmp.eq.s32.totalorder %s27, 1
    %p498 = scmp.ne.s32.totalorder %s493, %s495
    %p499 = scmp.eq.s32.totalorder %s27, 0
    %p500 = por %p498, %p499
    %p501 = scmp.ne.s32.totalorder %s493, %s495
    %p502 = scmp.eq.s32.totalorder %s32, 1
    %p503 = por %p501, %p502
    %p504 = scmp.ne.s32.totalorder %s495, %s496
    %p505 = scmp.eq.s32.totalorder %s32, 0
    %p506 = por %p504, %p505
    %p507 = scmp.ne.s32.totalorder %s495, %s496
    %p508 = scmp.eq.s32.totalorder %s33, 1
    %p509 = por %p507, %p508
    %p511 = scmp.ne.s32.totalorder %s496, %s510
    %p512 = scmp.eq.s32.totalorder %s33, 0
    %p513 = por %p511, %p512
    %s515 = sadd.s32 %s514, 1
    %p518 = scmp.eq.s32.totalorder %s27, 1
    %p519 = scmp.ne.s32.totalorder %s514, %s516
    %p520 = scmp.eq.s32.totalorder %s27, 0
    %p521 = por %p519, %p520
    %p522 = scmp.ne.s32.totalorder %s514, %s516
    %p523 = scmp.eq.s32.totalorder %s32, 1
    %p524 = por %p522, %p523
    %p525 = scmp.ne.s32.totalorder %s516, %s517
    %p526 = scmp.eq.s32.totalorder %s32, 0
    %p527 = por %p525, %p526
    %p528 = scmp.ne.s32.totalorder %s516, %s517
    %p529 = scmp.eq.s32.totalorder %s33, 1
    %p530 = por %p528, %p529
    %p532 = scmp.ne.s32.totalorder %s517, %s531
    %p533 = scmp.eq.s32.totalorder %s33, 0
    %p534 = por %p532, %p533
    %s536 = sadd.s32 %s535, 1
    %p539 = scmp.eq.s32.totalorder %s27, 1
    %p540 = scmp.ne.s32.totalorder %s535, %s537
    %p541 = scmp.eq.s32.totalorder %s27, 0
    %p542 = por %p540, %p541
    %p543 = scmp.ne.s32.totalorder %s535, %s537
    %p544 = scmp.eq.s32.totalorder %s32, 1
    %p545 = por %p543, %p544
    %p546 = scmp.ne.s32.totalorder %s537, %s538
    %p547 = scmp.eq.s32.totalorder %s32, 0
    %p548 = por %p546, %p547
    %p549 = scmp.ne.s32.totalorder %s537, %s538
    %p550 = scmp.eq.s32.totalorder %s33, 1
    %p551 = por %p549, %p550
    %p553 = scmp.ne.s32.totalorder %s538, %s552
    %p554 = scmp.eq.s32.totalorder %s33, 0
    %p555 = por %p553, %p554
    %s557 = sadd.s32 %s556, 1
    %p560 = scmp.eq.s32.totalorder %s27, 1
    %p561 = scmp.ne.s32.totalorder %s556, %s558
    %p562 = scmp.eq.s32.totalorder %s27, 0
    %p563 = por %p561, %p562
    %p564 = scmp.ne.s32.totalorder %s556, %s558
    %p565 = scmp.eq.s32.totalorder %s32, 1
    %p566 = por %p564, %p565
    %p567 = scmp.ne.s32.totalorder %s558, %s559
    %p568 = scmp.eq.s32.totalorder %s32, 0
    %p569 = por %p567, %p568
    %p570 = scmp.ne.s32.totalorder %s558, %s559
    %p571 = scmp.eq.s32.totalorder %s33, 1
    %p572 = por %p570, %p571
    %p574 = scmp.ne.s32.totalorder %s559, %s573
    %p575 = scmp.eq.s32.totalorder %s33, 0
    %p576 = por %p574, %p575
    %p577 = scmp.le.s32.totalorder 1, %s27
    %p578 = scmp.lt.s32.totalorder %s27, 3
    %p579 = pnand %p577, %p578
    %p580 = pneg %p579
    // Predicated region
    $region9: #{rnamsm_forward.1} parent=5 // pred_check
      _
    $region10: #{rnamsm_forward.1} parent=5 // pred_check_branch
      %582 = sbr.rel (%p579) target = $region12
    $region11: #{rnamsm_forward.1} parent=5 // pred_region
      %s583 = ssub.s32 %s27, 1
      // Predicated region
      $region13: #{rnamsm_forward.1} parent=11 // pred_check
        %p584 = pneg %p48
      $region14: #{rnamsm_forward.1} parent=11 // pred_check_branch
        %586 = sbr.rel (%p584) target = $region16
      $region15: #{rnamsm_forward.1} parent=11 // pred_region
        _
      $region16: #{rnamsm_forward.1} parent=11 // pred_fallthru
        _
      // Predicated region
      $region17: #{rnamsm_forward.1} parent=11 // pred_check
        %p587 = pneg %p485
      $region18: #{rnamsm_forward.1} parent=11 // pred_check_branch
        %589 = sbr.rel (%p587) target = $region20
      $region19: #{rnamsm_forward.1} parent=11 // pred_region
        _
      $region20: #{rnamsm_forward.1} parent=11 // pred_fallthru
        _
      // Predicated region
      $region21: #{rnamsm_forward.1} parent=11 // pred_check
        %p590 = pneg %p506
      $region22: #{rnamsm_forward.1} parent=11 // pred_check_branch
        %592 = sbr.rel (%p590) target = $region24
      $region23: #{rnamsm_forward.1} parent=11 // pred_region
        _
      $region24: #{rnamsm_forward.1} parent=11 // pred_fallthru
        _
      // Predicated region
      $region25: #{rnamsm_forward.1} parent=11 // pred_check
        %p593 = pneg %p527
      $region26: #{rnamsm_forward.1} parent=11 // pred_check_branch
        %595 = sbr.rel (%p593) target = $region28
      $region27: #{rnamsm_forward.1} parent=11 // pred_region
        _
      $region28: #{rnamsm_forward.1} parent=11 // pred_fallthru
        _
      // Predicated region
      $region29: #{rnamsm_forward.1} parent=11 // pred_check
        %p596 = pneg %p548
      $region30: #{rnamsm_forward.1} parent=11 // pred_check_branch
        %598 = sbr.rel (%p596) target = $region32
      $region31: #{rnamsm_forward.1} parent=11 // pred_region
        _
      $region32: #{rnamsm_forward.1} parent=11 // pred_fallthru
        _
    $region12: #{rnamsm_forward.1} parent=5 // pred_fallthru
      _
    %p599 = scmp.lt.s32.totalorder %s27, 2
    // Predicated region
    $region33: #{rnamsm_forward.1} parent=5 // pred_check
      %p600 = pneg %p599
    $region34: #{rnamsm_forward.1} parent=5 // pred_check_branch
      %602 = sbr.rel (%p600) target = $region36
    $region35: #{rnamsm_forward.1} parent=5 // pred_region
      // Predicated region
      $region37: #{rnamsm_forward.1} parent=35 // pred_check
        %p603 = pneg %p68
      $region38: #{rnamsm_forward.1} parent=35 // pred_check_branch
        %605 = sbr.rel (%p603) target = $region40
      $region39: #{rnamsm_forward.1} parent=35 // pred_region
        %p606 = scmp.lt.s32.totalorder %s27, 1
        %s607 = scalar_select %p606, %s27, 1
        %s608 = scalar_lea.vmem %s1, %s607
      $region40: #{rnamsm_forward.1} parent=35 // pred_fallthru
        _
      // Predicated region
      $region41: #{rnamsm_forward.1} parent=35 // pred_check
        %p609 = pneg %p94
      $region42: #{rnamsm_forward.1} parent=35 // pred_check_branch
        %611 = sbr.rel (%p609) target = $region44
      $region43: #{rnamsm_forward.1} parent=35 // pred_region
        %p612 = scmp.lt.s32.totalorder %s27, 1
        %s613 = scalar_select %p612, %s27, 1
        %s614 = scalar_lea.vmem %s2, %s613
      $region44: #{rnamsm_forward.1} parent=35 // pred_fallthru
        _
      // Predicated region
      $region45: #{rnamsm_forward.1} parent=35 // pred_check
        %p615 = pneg %p120
      $region46: #{rnamsm_forward.1} parent=35 // pred_check_branch
        %617 = sbr.rel (%p615) target = $region48
      $region47: #{rnamsm_forward.1} parent=35 // pred_region
        %p618 = scmp.lt.s32.totalorder %s27, 1
        %s619 = scalar_select %p618, %s27, 1
        %s620 = smul.addr %s619, 4
        %s621 = smul.addr %s620, 8
        %s622 = scalar_lea.vmem %s3, %s621
      $region48: #{rnamsm_forward.1} parent=35 // pred_fallthru
        _
      // Predicated region
      $region49: #{rnamsm_forward.1} parent=35 // pred_check
        %p623 = pneg %p146
      $region50: #{rnamsm_forward.1} parent=35 // pred_check_branch
        %625 = sbr.rel (%p623) target = $region52
      $region51: #{rnamsm_forward.1} parent=35 // pred_region
        %p626 = scmp.lt.s32.totalorder %s27, 1
        %s627 = scalar_select %p626, %s27, 1
        %s628 = scalar_lea.vmem %s4, %s627
      $region52: #{rnamsm_forward.1} parent=35 // pred_fallthru
        _
      // Predicated region
      $region53: #{rnamsm_forward.1} parent=35 // pred_check
        %p629 = pneg %p172
      $region54: #{rnamsm_forward.1} parent=35 // pred_check_branch
        %631 = sbr.rel (%p629) target = $region56
      $region55: #{rnamsm_forward.1} parent=35 // pred_region
        %p632 = scmp.lt.s32.totalorder %s27, 1
        %s633 = scalar_select %p632, %s27, 1
        %s634 = smul.addr %s633, 4
        %s635 = smul.addr %s634, 8
        %s636 = scalar_lea.vmem %s5, %s635
      $region56: #{rnamsm_forward.1} parent=35 // pred_fallthru
        _
      // Predicated region
      $region57: #{rnamsm_forward.1} parent=35 // pred_check
        %p637 = pneg %p198
      $region58: #{rnamsm_forward.1} parent=35 // pred_check_branch
        %639 = sbr.rel (%p637) target = $region60
      $region59: #{rnamsm_forward.1} parent=35 // pred_region
        %p640 = scmp.lt.s32.totalorder %s27, 1
        %s641 = scalar_select %p640, %s27, 1
        %s642 = scalar_lea.vmem %s6, %s641
      $region60: #{rnamsm_forward.1} parent=35 // pred_fallthru
        _
      // Predicated region
      $region61: #{rnamsm_forward.1} parent=35 // pred_check
        %p643 = pneg %p224
      $region62: #{rnamsm_forward.1} parent=35 // pred_check_branch
        %645 = sbr.rel (%p643) target = $region64
      $region63: #{rnamsm_forward.1} parent=35 // pred_region
        %p646 = scmp.lt.s32.totalorder %s27, 1
        %s647 = scalar_select %p646, %s27, 1
        %s648 = smul.addr %s647, 4
        %s649 = smul.addr %s648, 8
        %s650 = scalar_lea.vmem %s7, %s649
      $region64: #{rnamsm_forward.1} parent=35 // pred_fallthru
        _
      // Predicated region
      $region65: #{rnamsm_forward.1} parent=35 // pred_check
        %p651 = pneg %p250
      $region66: #{rnamsm_forward.1} parent=35 // pred_check_branch
        %653 = sbr.rel (%p651) target = $region68
      $region67: #{rnamsm_forward.1} parent=35 // pred_region
        %p654 = scmp.lt.s32.totalorder %s27, 1
        %s655 = scalar_select %p654, %s27, 1
        %s656 = scalar_lea.vmem %s8, %s655
      $region68: #{rnamsm_forward.1} parent=35 // pred_fallthru
        _
      // Predicated region
      $region69: #{rnamsm_forward.1} parent=35 // pred_check
        %p657 = pneg %p276
      $region70: #{rnamsm_forward.1} parent=35 // pred_check_branch
        %659 = sbr.rel (%p657) target = $region72
      $region71: #{rnamsm_forward.1} parent=35 // pred_region
        %p660 = scmp.lt.s32.totalorder %s27, 1
        %s661 = scalar_select %p660, %s27, 1
        %s662 = smul.addr %s661, 4
        %s663 = smul.addr %s662, 8
        %s664 = scalar_lea.vmem %s9, %s663
      $region72: #{rnamsm_forward.1} parent=35 // pred_fallthru
        _
      // Predicated region
      $region73: #{rnamsm_forward.1} parent=35 // pred_check
        %p665 = pneg %p302
      $region74: #{rnamsm_forward.1} parent=35 // pred_check_branch
        %667 = sbr.rel (%p665) target = $region76
      $region75: #{rnamsm_forward.1} parent=35 // pred_region
        %p668 = scmp.lt.s32.totalorder %s27, 1
        %s669 = scalar_select %p668, %s27, 1
        %s670 = scalar_lea.vmem %s10, %s669
      $region76: #{rnamsm_forward.1} parent=35 // pred_fallthru
        _
      // Predicated region
      $region77: #{rnamsm_forward.1} parent=35 // pred_check
        %p671 = pneg %p328
      $region78: #{rnamsm_forward.1} parent=35 // pred_check_branch
        %673 = sbr.rel (%p671) target = $region80
      $region79: #{rnamsm_forward.1} parent=35 // pred_region
        %p674 = scmp.lt.s32.totalorder %s27, 1
        %s675 = scalar_select %p674, %s27, 1
        %s676 = scalar_lea.vmem %s11, %s675
      $region80: #{rnamsm_forward.1} parent=35 // pred_fallthru
        _
      // Predicated region
      $region81: #{rnamsm_forward.1} parent=35 // pred_check
        %p677 = pneg %p354
      $region82: #{rnamsm_forward.1} parent=35 // pred_check_branch
        %679 = sbr.rel (%p677) target = $region84
      $region83: #{rnamsm_forward.1} parent=35 // pred_region
        %p680 = scmp.lt.s32.totalorder %s27, 1
        %s681 = scalar_select %p680, %s27, 1
        %s682 = scalar_lea.vmem %s12, %s681
      $region84: #{rnamsm_forward.1} parent=35 // pred_fallthru
        _
      // Predicated region
      $region85: #{rnamsm_forward.1} parent=35 // pred_check
        %p683 = pneg %p380
      $region86: #{rnamsm_forward.1} parent=35 // pred_check_branch
        %685 = sbr.rel (%p683) target = $region88
      $region87: #{rnamsm_forward.1} parent=35 // pred_region
        %p686 = scmp.lt.s32.totalorder %s27, 1
        %s687 = scalar_select %p686, %s27, 1
        %s688 = smul.addr %s687, 4
        %s689 = smul.addr %s688, 8
        %s690 = scalar_lea.vmem %s13, %s689
      $region88: #{rnamsm_forward.1} parent=35 // pred_fallthru
        _
      // Predicated region
      $region89: #{rnamsm_forward.1} parent=35 // pred_check
        %p691 = pneg %p406
      $region90: #{rnamsm_forward.1} parent=35 // pred_check_branch
        %693 = sbr.rel (%p691) target = $region92
      $region91: #{rnamsm_forward.1} parent=35 // pred_region
        %p694 = scmp.lt.s32.totalorder %s27, 1
        %s695 = scalar_select %p694, %s27, 1
        %s696 = scalar_lea.vmem %s14, %s695
      $region92: #{rnamsm_forward.1} parent=35 // pred_fallthru
        _
      // Predicated region
      $region93: #{rnamsm_forward.1} parent=35 // pred_check
        %p697 = pneg %p432
      $region94: #{rnamsm_forward.1} parent=35 // pred_check_branch
        %699 = sbr.rel (%p697) target = $region96
      $region95: #{rnamsm_forward.1} parent=35 // pred_region
        %p700 = scmp.lt.s32.totalorder %s27, 1
        %s701 = scalar_select %p700, %s27, 1
        %s702 = smul.addr %s701, 16
        %s703 = smul.addr %s702, 8
        %s704 = scalar_lea.vmem %s15, %s703
      $region96: #{rnamsm_forward.1} parent=35 // pred_fallthru
        _
      // Predicated region
      $region97: #{rnamsm_forward.1} parent=35 // pred_check
        %p705 = pneg %p458
      $region98: #{rnamsm_forward.1} parent=35 // pred_check_branch
        %707 = sbr.rel (%p705) target = $region100
      $region99: #{rnamsm_forward.1} parent=35 // pred_region
        %p708 = scmp.lt.s32.totalorder %s27, 1
        %s709 = scalar_select %p708, %s27, 1
        %s710 = scalar_lea.vmem %s16, %s709
      $region100: #{rnamsm_forward.1} parent=35 // pred_fallthru
        _
    $region36: #{rnamsm_forward.1} parent=5 // pred_fallthru
      _
    %p711 = scmp.le.s32.totalorder 1, %s27
    %p712 = scmp.lt.s32.totalorder %s27, 3
    %p713 = pnand %p711, %p712
    %p714 = pneg %p713
    // Predicated region
    $region101: #{rnamsm_forward.1} parent=5 // pred_check
      _
    $region102: #{rnamsm_forward.1} parent=5 // pred_check_branch
      %716 = sbr.rel (%p713) target = $region104
    $region103: #{rnamsm_forward.1} parent=5 // pred_region
      %s717 = ssub.s32 %s27, 1
      %p718 = pneg %p48
      %p719 = pneg %p45
      %p720 = scmp.lt.s32.totalorder %s32, 1
      %s721 = scalar_select %p720, %s32, 1
      %s722 = scalar_lea.vmem %s1, %s721
      %p723 = pneg %p74
      %p724 = pneg %p71
      %p725 = scmp.lt.s32.totalorder %s32, 1
      %s726 = scalar_select %p725, %s32, 1
      %s727 = scalar_lea.vmem %s2, %s726
      %p728 = pneg %p100
      %p729 = pneg %p97
      %p730 = scmp.lt.s32.totalorder %s32, 1
      %s731 = scalar_select %p730, %s32, 1
      %s732 = smul.addr %s731, 4
      %s733 = smul.addr %s732, 8
      %s734 = scalar_lea.vmem %s3, %s733
      %p735 = pneg %p126
      %p736 = pneg %p123
      %p737 = scmp.lt.s32.totalorder %s32, 1
      %s738 = scalar_select %p737, %s32, 1
      %s739 = scalar_lea.vmem %s4, %s738
      %p740 = pneg %p152
      %p741 = pneg %p149
      %p742 = scmp.lt.s32.totalorder %s32, 1
      %s743 = scalar_select %p742, %s32, 1
      %s744 = smul.addr %s743, 4
      %s745 = smul.addr %s744, 8
      %s746 = scalar_lea.vmem %s5, %s745
      %p747 = pneg %p178
      %p748 = pneg %p175
      %p749 = scmp.lt.s32.totalorder %s32, 1
      %s750 = scalar_select %p749, %s32, 1
      %s751 = scalar_lea.vmem %s6, %s750
      %p752 = pneg %p204
      %p753 = pneg %p201
      %p754 = scmp.lt.s32.totalorder %s32, 1
      %s755 = scalar_select %p754, %s32, 1
      %s756 = smul.addr %s755, 4
      %s757 = smul.addr %s756, 8
      %s758 = scalar_lea.vmem %s7, %s757
      %p759 = pneg %p230
      %p760 = pneg %p227
      %p761 = scmp.lt.s32.totalorder %s32, 1
      %s762 = scalar_select %p761, %s32, 1
      %s763 = scalar_lea.vmem %s8, %s762
      %p764 = pneg %p256
      %p765 = pneg %p253
      %p766 = scmp.lt.s32.totalorder %s32, 1
      %s767 = scalar_select %p766, %s32, 1
      %s768 = smul.addr %s767, 4
      %s769 = smul.addr %s768, 8
      %s770 = scalar_lea.vmem %s9, %s769
      %p771 = pneg %p282
      %p772 = pneg %p279
      %p773 = scmp.lt.s32.totalorder %s32, 1
      %s774 = scalar_select %p773, %s32, 1
      %s775 = scalar_lea.vmem %s10, %s774
      %p776 = pneg %p308
      %p777 = pneg %p305
      %p778 = scmp.lt.s32.totalorder %s32, 1
      %s779 = scalar_select %p778, %s32, 1
      %s780 = scalar_lea.vmem %s11, %s779
      %p781 = pneg %p334
      %p782 = pneg %p331
      %p783 = scmp.lt.s32.totalorder %s32, 1
      %s784 = scalar_select %p783, %s32, 1
      %s785 = scalar_lea.vmem %s12, %s784
      %p786 = pneg %p360
      %p787 = pneg %p357
      %p788 = scmp.lt.s32.totalorder %s32, 1
      %s789 = scalar_select %p788, %s32, 1
      %s790 = smul.addr %s789, 4
      %s791 = smul.addr %s790, 8
      %s792 = scalar_lea.vmem %s13, %s791
      %p793 = pneg %p386
      %p794 = pneg %p383
      %p795 = scmp.lt.s32.totalorder %s32, 1
      %s796 = scalar_select %p795, %s32, 1
      %s797 = scalar_lea.vmem %s14, %s796
      %p798 = pneg %p412
      %p799 = pneg %p409
      %p800 = scmp.lt.s32.totalorder %s32, 1
      %s801 = scalar_select %p800, %s32, 1
      %s802 = smul.addr %s801, 16
      %s803 = smul.addr %s802, 8
      %s804 = scalar_lea.vmem %s15, %s803
      %p805 = pneg %p438
      %p806 = pneg %p435
      %p807 = scmp.lt.s32.totalorder %s32, 1
      %s808 = scalar_select %p807, %s32, 1
      %s809 = scalar_lea.vmem %s16, %s808
      %p810 = pneg %p464
      %p811 = pneg %p461
      %p812 = pneg %p485
      %p813 = pneg %p482
      %p814 = pneg %p506
      %p815 = pneg %p503
      %p816 = pneg %p527
      %p817 = pneg %p524
      %p818 = pneg %p548
      %p819 = pneg %p545
      %p820 = pneg %p569
      %p821 = pneg %p566
      %p822 = scmp.lt.s32.totalorder %s32, 1
      %s823 = scalar_select %p822, %s32, 1
      %s824 = scalar_lea.vmem %s1, %s823
      %p825 = scmp.lt.s32.totalorder %s32, 1
      %s826 = scalar_select %p825, %s32, 1
      %s827 = scalar_lea.vmem %s2, %s826
      %p828 = scmp.lt.s32.totalorder %s32, 1
      %s829 = scalar_select %p828, %s32, 1
      %s830 = smul.addr %s829, 4
      %s831 = smul.addr %s830, 8
      %s832 = scalar_lea.vmem %s3, %s831
      %p833 = scmp.lt.s32.totalorder %s32, 1
      %s834 = scalar_select %p833, %s32, 1
      %s835 = scalar_lea.vmem %s4, %s834
      %p836 = scmp.lt.s32.totalorder %s32, 1
      %s837 = scalar_select %p836, %s32, 1
      %s838 = smul.addr %s837, 4
      %s839 = smul.addr %s838, 8
      %s840 = scalar_lea.vmem %s5, %s839
      %p841 = scmp.lt.s32.totalorder %s32, 1
      %s842 = scalar_select %p841, %s32, 1
      %s843 = scalar_lea.vmem %s6, %s842
      %p844 = scmp.lt.s32.totalorder %s32, 1
      %s845 = scalar_select %p844, %s32, 1
      %s846 = smul.addr %s845, 4
      %s847 = smul.addr %s846, 8
      %s848 = scalar_lea.vmem %s7, %s847
      %p849 = scmp.lt.s32.totalorder %s32, 1
      %s850 = scalar_select %p849, %s32, 1
      %s851 = scalar_lea.vmem %s8, %s850
      %p852 = scmp.lt.s32.totalorder %s32, 1
      %s853 = scalar_select %p852, %s32, 1
      %s854 = smul.addr %s853, 4
      %s855 = smul.addr %s854, 8
      %s856 = scalar_lea.vmem %s9, %s855
      %p857 = scmp.lt.s32.totalorder %s32, 1
      %s858 = scalar_select %p857, %s32, 1
      %s859 = scalar_lea.vmem %s10, %s858
      %p860 = scmp.lt.s32.totalorder %s32, 1
      %s861 = scalar_select %p860, %s32, 1
      %s862 = scalar_lea.vmem %s11, %s861
      %p863 = scmp.lt.s32.totalorder %s32, 1
      %s864 = scalar_select %p863, %s32, 1
      %s865 = scalar_lea.vmem %s12, %s864
      %p866 = scmp.lt.s32.totalorder %s32, 1
      %s867 = scalar_select %p866, %s32, 1
      %s868 = smul.addr %s867, 4
      %s869 = smul.addr %s868, 8
      %s870 = scalar_lea.vmem %s13, %s869
      %p871 = scmp.lt.s32.totalorder %s32, 1
      %s872 = scalar_select %p871, %s32, 1
      %s873 = scalar_lea.vmem %s14, %s872
      %p874 = scmp.lt.s32.totalorder %s32, 1
      %s875 = scalar_select %p874, %s32, 1
      %s876 = smul.addr %s875, 16
      %s877 = smul.addr %s876, 8
      %s878 = scalar_lea.vmem %s15, %s877
      %p879 = scmp.lt.s32.totalorder %s32, 1
      %s880 = scalar_select %p879, %s32, 1
      %s881 = scalar_lea.vmem %s16, %s880
      %p882 = scmp.eq.s32.totalorder %s32, 0
      // Predicated region
      $region105: #{rnamsm_forward.1} parent=103 // pred_check
        %p883 = pneg %p882
      $region106: #{rnamsm_forward.1} parent=103 // pred_check_branch
        %885 = sbr.rel (%p883) target = $region108
      $region107: #{rnamsm_forward.1} parent=103 // pred_region
        %v886 = vld [vmem:[%s0] sm:$0xff]
        %v887 = vld [vmem:[%s0 + $0x8] sm:$0xff]
        %v888 = vld [vmem:[%s0 + $0x10] sm:$0xff]
        %v889 = vld [vmem:[%s0 + $0x18] sm:$0xff]
        %vm890 = vcmask 261120
        %891 = vst.msk [vmem:[#allocation2] sm:$0xff] %vm890, %v886
        %892 = vst.msk [vmem:[#allocation2 + $0x8] sm:$0xff] %vm890, %v887
        %893 = vst.msk [vmem:[#allocation2 + $0x10] sm:$0xff] %vm890, %v888
        %894 = vst.msk [vmem:[#allocation2 + $0x18] sm:$0xff] %vm890, %v889
        %895 = vst [vmem:[%s21] sm:$0xff] 0.0
      $region108: #{rnamsm_forward.1} parent=103 // pred_fallthru
        _
      %v896 = vld [vmem:[#allocation2] sm:$0xff]
      %v897 = vld [vmem:[#allocation2 + $0x8] sm:$0xff]
      %v898 = vld [vmem:[#allocation2 + $0x10] sm:$0xff]
      %v899 = vld [vmem:[#allocation2 + $0x18] sm:$0xff]
      %v900 = vld [vmem:[%s824] sm:$0x1]
      %v901 = vld [vmem:[%s827] sm:$0x1]
      %v902 = vld [vmem:[%s862] sm:$0x1]
      %v903 = vld [vmem:[%s865] sm:$0x1]
      %v904 = vld [vmem:[%s835] sm:$0x1]
      %v905 = vld [vmem:[%s843] sm:$0x1]
      %v906 = vld [vmem:[%s851] sm:$0x1]
      %v907 = vld [vmem:[%s859] sm:$0x1]
      %v908 = vld [vmem:[%s873] sm:$0x1]
      %v909 = vld [vmem:[%s881] sm:$0x1]
      %v910 = vld [vmem:[%s832] sm:$0xff]
      %v911 = vld [vmem:[%s832 + $0x8] sm:$0xff]
      %v912 = vld [vmem:[%s832 + $0x10] sm:$0xff]
      %v913 = vld [vmem:[%s832 + $0x18] sm:$0xff]
      %v914 = vld [vmem:[%s840] sm:$0xff]
      %v915 = vld [vmem:[%s840 + $0x8] sm:$0xff]
      %v916 = vld [vmem:[%s840 + $0x10] sm:$0xff]
      %v917 = vld [vmem:[%s840 + $0x18] sm:$0xff]
      %v918 = vld [vmem:[%s848] sm:$0xff]
      %v919 = vld [vmem:[%s848 + $0x8] sm:$0xff]
      %v920 = vld [vmem:[%s848 + $0x10] sm:$0xff]
      %v921 = vld [vmem:[%s848 + $0x18] sm:$0xff]
      %v922 = vld [vmem:[%s856] sm:$0xff]
      %v923 = vld [vmem:[%s856 + $0x8] sm:$0xff]
      %v924 = vld [vmem:[%s856 + $0x10] sm:$0xff]
      %v925 = vld [vmem:[%s856 + $0x18] sm:$0xff]
      %v926 = vld [vmem:[%s870] sm:$0xff]
      %v927 = vld [vmem:[%s870 + $0x8] sm:$0xff]
      %v928 = vld [vmem:[%s870 + $0x10] sm:$0xff]
      %v929 = vld [vmem:[%s870 + $0x18] sm:$0xff]
      %v930 = vld [vmem:[%s878] sm:$0xff]
      %v931 = vld [vmem:[%s878 + $0x8] sm:$0xff]
      %v932 = vld [vmem:[%s878 + $0x10] sm:$0xff]
      %v933 = vld [vmem:[%s878 + $0x18] sm:$0xff]
      %v934 = vld [vmem:[%s878 + $0x20] sm:$0xff]
      %v935 = vld [vmem:[%s878 + $0x28] sm:$0xff]
      %v936 = vld [vmem:[%s878 + $0x30] sm:$0xff]
      %v937 = vld [vmem:[%s878 + $0x38] sm:$0xff]
      %v938 = vld [vmem:[%s878 + $0x40] sm:$0xff]
      %v939 = vld [vmem:[%s878 + $0x48] sm:$0xff]
      %v940 = vld [vmem:[%s878 + $0x50] sm:$0xff]
      %v941 = vld [vmem:[%s878 + $0x58] sm:$0xff]
      %v942 = vld [vmem:[%s878 + $0x60] sm:$0xff]
      %v943 = vld [vmem:[%s878 + $0x68] sm:$0xff]
      %v944 = vld [vmem:[%s878 + $0x70] sm:$0xff]
      %v945 = vld [vmem:[%s878 + $0x78] sm:$0xff]
      %vm946 = vcmask 261120
      %v947 = vsel %vm946, %v896, 0.0
      %948 = vadd.xlane.f32.xlu0 %v947
      %v949 = vpop.xlane.xlu0 %948
      %v950 = vsel %vm946, %v897, 0.0
      %951 = vadd.xlane.f32.xlu0 %v950
      %v952 = vpop.xlane.xlu0 %951
      %v953 = vsel %vm946, %v898, 0.0
      %954 = vadd.xlane.f32.xlu0 %v953
      %v955 = vpop.xlane.xlu0 %954
      %v956 = vsel %vm946, %v899, 0.0
      %957 = vadd.xlane.f32.xlu0 %v956
      %v958 = vpop.xlane.xlu0 %957
      %v959 = vrcp.pop 32.0
      %v960 = vmul.f32 %v949, %v959
      %v961 = vmul.f32 %v952, %v959
      %v962 = vmul.f32 %v955, %v959
      %v963 = vmul.f32 %v958, %v959
      %v964 = vsub.f32 %v896, %v960
      %v965 = vsub.f32 %v897, %v961
      %v966 = vsub.f32 %v898, %v962
      %v967 = vsub.f32 %v899, %v963
      %v968 = vmul.f32 %v964, %v964
      %v969 = vmul.f32 %v965, %v965
      %v970 = vmul.f32 %v966, %v966
      %v971 = vmul.f32 %v967, %v967
      %v972 = vsel %vm946, %v968, 0.0
      %973 = vadd.xlane.f32.xlu0 %v972
      %v974 = vpop.xlane.xlu0 %973
      %v975 = vsel %vm946, %v969, 0.0
      %976 = vadd.xlane.f32.xlu0 %v975
      %v977 = vpop.xlane.xlu0 %976
      %v978 = vsel %vm946, %v970, 0.0
      %979 = vadd.xlane.f32.xlu0 %v978
      %v980 = vpop.xlane.xlu0 %979
      %v981 = vsel %vm946, %v971, 0.0
      %982 = vadd.xlane.f32.xlu0 %v981
      %v983 = vpop.xlane.xlu0 %982
      %v984 = vmul.f32 %v974, %v959
      %v985 = vmul.f32 %v977, %v959
      %v986 = vmul.f32 %v980, %v959
      %v987 = vmul.f32 %v983, %v959
      %v988 = vadd.f32 %v984, 1e-05
      %v989 = vadd.f32 %v985, 1e-05
      %v990 = vadd.f32 %v986, 1e-05
      %v991 = vadd.f32 %v987, 1e-05
      %v992 = vrsqrt.pop %v988
      %v993 = vrsqrt.pop %v989
      %v994 = vrsqrt.pop %v990
      %v995 = vrsqrt.pop %v991
      %v996 = vmul.f32 %v964, %v992
      %v997 = vmul.f32 %v965, %v993
      %v998 = vmul.f32 %v966, %v994
      %v999 = vmul.f32 %v967, %v995
      %v1001 = vlaneseq
      %v1002 = vshrl.u32 %v1001, 7
      %v1003 = vsub.s32 0, %v1002
      %v1004 = vrot.slane %v900, %v1003
      %v1006 = vmul.f32 %v996, %v1004
      %v1007 = vmul.f32 %v997, %v1004
      %v1008 = vmul.f32 %v998, %v1004
      %v1009 = vmul.f32 %v999, %v1004
      %v1011 = vlaneseq
      %v1012 = vshrl.u32 %v1011, 7
      %v1013 = vsub.s32 0, %v1012
      %v1014 = vrot.slane %v901, %v1013
      %v1016 = vadd.f32 %v1006, %v1014
      %v1017 = vadd.f32 %v1007, %v1014
      %v1018 = vadd.f32 %v1008, %v1014
      %v1019 = vadd.f32 %v1009, %v1014
      %v1021 = vlaneseq
      %v1022 = vshrl.u32 %v1021, 7
      %v1023 = vsub.s32 0, %v1022
      %v1024 = vrot.slane %v904, %v1023
      %v1027 = vsel %vm946, %v1016, 0
      %v1030 = vsel %vm946, %v1017, 0
      %v1033 = vsel %vm946, %v1018, 0
      %v1036 = vsel %vm946, %v1019, 0
      %1038 = vmatprep.subr.mxu0 0.0
      %1039 = vmatpush1.msra.mxu0 0.0
      %1040 = vmatprep.subr.mxu0 0.0
      %1041 = vmatpush1.msra.mxu0 0.0
      %1042 = vmatprep.subr.mxu0 0.0
      %1043 = vmatpush1.msra.mxu0 0.0
      %1044 = vmatprep.subr.mxu0 0.0
      %1045 = vmatpush1.msra.mxu0 0.0
      %1046 = vmatprep.subr.mxu0 0.0
      %1047 = vmatpush1.msra.mxu0 0.0
      %1048 = vmatprep.subr.mxu0 0.0
      %1049 = vmatpush1.msra.mxu0 0.0
      %1050 = vmatprep.subr.mxu0 0.0
      %1051 = vmatpush1.msra.mxu0 0.0
      %1052 = vmatprep.subr.mxu0 0.0
      %1053 = vmatpush1.msra.mxu0 0.0
      %1054 = vmatprep.subr.mxu0 0.0
      %1055 = vmatpush1.msra.mxu0 0.0
      %1056 = vmatprep.subr.mxu0 0.0
      %1057 = vmatpush1.msra.mxu0 0.0
      %1058 = vmatprep.subr.mxu0 0.0
      %1059 = vmatpush1.msra.mxu0 0.0
      %1060 = vmatprep.subr.mxu0 0.0
      %1061 = vmatpush1.msra.mxu0 0.0
      %1062 = vmatprep.subr.mxu0 0.0
      %1063 = vmatpush1.msra.mxu0 %v913
      %1064 = vmatprep.subr.mxu0 0.0
      %1065 = vmatpush1.msra.mxu0 %v912
      %1066 = vmatprep.subr.mxu0 0.0
      %1067 = vmatpush1.msra.mxu0 %v911
      %1068 = vmatprep.subr.mxu0 0.0
      %1069 = vmatpush1.msra.mxu0 %v910
      %1070 = vmatprep.subr.mxu0 0.0
      %1071 = vmatpush2.msra.mxu0 0.0
      %1072 = vmatprep.subr.mxu0 0.0
      %1073 = vmatpush2.msra.mxu0 0.0
      %1074 = vmatprep.subr.mxu0 0.0
      %1075 = vmatpush2.msra.mxu0 0.0
      %1076 = vmatprep.subr.mxu0 0.0
      %1077 = vmatpush2.msra.mxu0 0.0
      %1078 = vmatprep.subr.mxu0 0.0
      %1079 = vmatpush2.msra.mxu0 0.0
      %1080 = vmatprep.subr.mxu0 0.0
      %1081 = vmatpush2.msra.mxu0 0.0
      %1082 = vmatprep.subr.mxu0 0.0
      %1083 = vmatpush2.msra.mxu0 0.0
      %1084 = vmatprep.subr.mxu0 0.0
      %1085 = vmatpush2.msra.mxu0 0.0
      %1086 = vmatprep.subr.mxu0 0.0
      %1087 = vmatpush2.msra.mxu0 0.0
      %1088 = vmatprep.subr.mxu0 0.0
      %1089 = vmatpush2.msra.mxu0 0.0
      %1090 = vmatprep.subr.mxu0 0.0
      %1091 = vmatpush2.msra.mxu0 0.0
      %1092 = vmatprep.subr.mxu0 0.0
      %1093 = vmatpush2.msra.mxu0 0.0
      %1094 = vmatprep.subr.mxu0 0.0
      %1095 = vmatpush2.msra.mxu0 0.0
      %1096 = vmatprep.subr.mxu0 0.0
      %1097 = vmatpush2.msra.mxu0 0.0
      %1098 = vmatprep.subr.mxu0 0.0
      %1099 = vmatpush2.msra.mxu0 0.0
      %1100 = vmatprep.subr.mxu0 0.0
      %1101 = vmatpush2.msra.mxu0 0.0
      %1102 = vmatprep.mubr.f32.mxu0 0.0
      %1103 = vmatmul.mubr.f32.gmra.mxu0 %v1027
      %v1104 = vpop.f32.mrf.mxu0
      %v1105 = vadd.f32 %v1024, %v1104
      %v1106 = vpop.f32.mrf.mxu0
      %1107 = vmatprep.mubr.f32.mxu0 0.0
      %1108 = vmatmul.mubr.f32.gmra.mxu0 %v1030
      %v1109 = vpop.f32.mrf.mxu0
      %v1110 = vadd.f32 %v1024, %v1109
      %v1111 = vpop.f32.mrf.mxu0
      %1112 = vmatprep.mubr.f32.mxu0 0.0
      %1113 = vmatmul.mubr.f32.gmra.mxu0 %v1033
      %v1114 = vpop.f32.mrf.mxu0
      %v1115 = vadd.f32 %v1024, %v1114
      %v1116 = vpop.f32.mrf.mxu0
      %1117 = vmatprep.mubr.f32.mxu0 0.0
      %1118 = vmatmul.mubr.f32.gmra.mxu0 %v1036
      %v1119 = vpop.f32.mrf.mxu0
      %v1120 = vadd.f32 %v1024, %v1119
      %v1121 = vpop.f32.mrf.mxu0
      %1122 = vdwg.mxu0
      %v1123 = vmul.f32 %v1105, 0.35355338
      %v1124 = vmul.f32 %v1110, 0.35355338
      %v1125 = vmul.f32 %v1115, 0.35355338
      %v1126 = vmul.f32 %v1120, 0.35355338
      %v1128 = vlaneseq
      %v1129 = vshrl.u32 %v1128, 7
      %v1130 = vsub.s32 0, %v1129
      %v1131 = vrot.slane %v905, %v1130
      %1133 = vmatprep.subr.mxu0 0.0
      %1134 = vmatpush1.msra.mxu0 0.0
      %1135 = vmatprep.subr.mxu0 0.0
      %1136 = vmatpush1.msra.mxu0 0.0
      %1137 = vmatprep.subr.mxu0 0.0
      %1138 = vmatpush1.msra.mxu0 0.0
      %1139 = vmatprep.subr.mxu0 0.0
      %1140 = vmatpush1.msra.mxu0 0.0
      %1141 = vmatprep.subr.mxu0 0.0
      %1142 = vmatpush1.msra.mxu0 0.0
      %1143 = vmatprep.subr.mxu0 0.0
      %1144 = vmatpush1.msra.mxu0 0.0
      %1145 = vmatprep.subr.mxu0 0.0
      %1146 = vmatpush1.msra.mxu0 0.0
      %1147 = vmatprep.subr.mxu0 0.0
      %1148 = vmatpush1.msra.mxu0 0.0
      %1149 = vmatprep.subr.mxu0 0.0
      %1150 = vmatpush1.msra.mxu0 0.0
      %1151 = vmatprep.subr.mxu0 0.0
      %1152 = vmatpush1.msra.mxu0 0.0
      %1153 = vmatprep.subr.mxu0 0.0
      %1154 = vmatpush1.msra.mxu0 0.0
      %1155 = vmatprep.subr.mxu0 0.0
      %1156 = vmatpush1.msra.mxu0 0.0
      %1157 = vmatprep.subr.mxu0 0.0
      %1158 = vmatpush1.msra.mxu0 %v917
      %1159 = vmatprep.subr.mxu0 0.0
      %1160 = vmatpush1.msra.mxu0 %v916
      %1161 = vmatprep.subr.mxu0 0.0
      %1162 = vmatpush1.msra.mxu0 %v915
      %1163 = vmatprep.subr.mxu0 0.0
      %1164 = vmatpush1.msra.mxu0 %v914
      %1165 = vmatprep.subr.mxu0 0.0
      %1166 = vmatpush2.msra.mxu0 0.0
      %1167 = vmatprep.subr.mxu0 0.0
      %1168 = vmatpush2.msra.mxu0 0.0
      %1169 = vmatprep.subr.mxu0 0.0
      %1170 = vmatpush2.msra.mxu0 0.0
      %1171 = vmatprep.subr.mxu0 0.0
      %1172 = vmatpush2.msra.mxu0 0.0
      %1173 = vmatprep.subr.mxu0 0.0
      %1174 = vmatpush2.msra.mxu0 0.0
      %1175 = vmatprep.subr.mxu0 0.0
      %1176 = vmatpush2.msra.mxu0 0.0
      %1177 = vmatprep.subr.mxu0 0.0
      %1178 = vmatpush2.msra.mxu0 0.0
      %1179 = vmatprep.subr.mxu0 0.0
      %1180 = vmatpush2.msra.mxu0 0.0
      %1181 = vmatprep.subr.mxu0 0.0
      %1182 = vmatpush2.msra.mxu0 0.0
      %1183 = vmatprep.subr.mxu0 0.0
      %1184 = vmatpush2.msra.mxu0 0.0
      %1185 = vmatprep.subr.mxu0 0.0
      %1186 = vmatpush2.msra.mxu0 0.0
      %1187 = vmatprep.subr.mxu0 0.0
      %1188 = vmatpush2.msra.mxu0 0.0
      %1189 = vmatprep.subr.mxu0 0.0
      %1190 = vmatpush2.msra.mxu0 0.0
      %1191 = vmatprep.subr.mxu0 0.0
      %1192 = vmatpush2.msra.mxu0 0.0
      %1193 = vmatprep.subr.mxu0 0.0
      %1194 = vmatpush2.msra.mxu0 0.0
      %1195 = vmatprep.subr.mxu0 0.0
      %1196 = vmatpush2.msra.mxu0 0.0
      %1197 = vmatprep.mubr.f32.mxu0 0.0
      %1198 = vmatmul.mubr.f32.gmra.mxu0 %v1027
      %v1199 = vpop.f32.mrf.mxu0
      %v1200 = vadd.f32 %v1131, %v1199
      %v1201 = vpop.f32.mrf.mxu0
      %1202 = vmatprep.mubr.f32.mxu0 0.0
      %1203 = vmatmul.mubr.f32.gmra.mxu0 %v1030
      %v1204 = vpop.f32.mrf.mxu0
      %v1205 = vadd.f32 %v1131, %v1204
      %v1206 = vpop.f32.mrf.mxu0
      %1207 = vmatprep.mubr.f32.mxu0 0.0
      %1208 = vmatmul.mubr.f32.gmra.mxu0 %v1033
      %v1209 = vpop.f32.mrf.mxu0
      %v1210 = vadd.f32 %v1131, %v1209
      %v1211 = vpop.f32.mrf.mxu0
      %1212 = vmatprep.mubr.f32.mxu0 0.0
      %1213 = vmatmul.mubr.f32.gmra.mxu0 %v1036
      %v1214 = vpop.f32.mrf.mxu0
      %v1215 = vadd.f32 %v1131, %v1214
      %v1216 = vpop.f32.mrf.mxu0
      %1217 = vdwg.mxu0
      %v1219 = vlaneseq
      %v1220 = vshrl.u32 %v1219, 7
      %v1221 = vsub.s32 0, %v1220
      %v1222 = vrot.slane %v906, %v1221
      %1224 = vmatprep.subr.mxu0 0.0
      %1225 = vmatpush1.msra.mxu0 0.0
      %1226 = vmatprep.subr.mxu0 0.0
      %1227 = vmatpush1.msra.mxu0 0.0
      %1228 = vmatprep.subr.mxu0 0.0
      %1229 = vmatpush1.msra.mxu0 0.0
      %1230 = vmatprep.subr.mxu0 0.0
      %1231 = vmatpush1.msra.mxu0 0.0
      %1232 = vmatprep.subr.mxu0 0.0
      %1233 = vmatpush1.msra.mxu0 0.0
      %1234 = vmatprep.subr.mxu0 0.0
      %1235 = vmatpush1.msra.mxu0 0.0
      %1236 = vmatprep.subr.mxu0 0.0
      %1237 = vmatpush1.msra.mxu0 0.0
      %1238 = vmatprep.subr.mxu0 0.0
      %1239 = vmatpush1.msra.mxu0 0.0
      %1240 = vmatprep.subr.mxu0 0.0
      %1241 = vmatpush1.msra.mxu0 0.0
      %1242 = vmatprep.subr.mxu0 0.0
      %1243 = vmatpush1.msra.mxu0 0.0
      %1244 = vmatprep.subr.mxu0 0.0
      %1245 = vmatpush1.msra.mxu0 0.0
      %1246 = vmatprep.subr.mxu0 0.0
      %1247 = vmatpush1.msra.mxu0 0.0
      %1248 = vmatprep.subr.mxu0 0.0
      %1249 = vmatpush1.msra.mxu0 %v921
      %1250 = vmatprep.subr.mxu0 0.0
      %1251 = vmatpush1.msra.mxu0 %v920
      %1252 = vmatprep.subr.mxu0 0.0
      %1253 = vmatpush1.msra.mxu0 %v919
      %1254 = vmatprep.subr.mxu0 0.0
      %1255 = vmatpush1.msra.mxu0 %v918
      %1256 = vmatprep.subr.mxu0 0.0
      %1257 = vmatpush2.msra.mxu0 0.0
      %1258 = vmatprep.subr.mxu0 0.0
      %1259 = vmatpush2.msra.mxu0 0.0
      %1260 = vmatprep.subr.mxu0 0.0
      %1261 = vmatpush2.msra.mxu0 0.0
      %1262 = vmatprep.subr.mxu0 0.0
      %1263 = vmatpush2.msra.mxu0 0.0
      %1264 = vmatprep.subr.mxu0 0.0
      %1265 = vmatpush2.msra.mxu0 0.0
      %1266 = vmatprep.subr.mxu0 0.0
      %1267 = vmatpush2.msra.mxu0 0.0
      %1268 = vmatprep.subr.mxu0 0.0
      %1269 = vmatpush2.msra.mxu0 0.0
      %1270 = vmatprep.subr.mxu0 0.0
      %1271 = vmatpush2.msra.mxu0 0.0
      %1272 = vmatprep.subr.mxu0 0.0
      %1273 = vmatpush2.msra.mxu0 0.0
      %1274 = vmatprep.subr.mxu0 0.0
      %1275 = vmatpush2.msra.mxu0 0.0
      %1276 = vmatprep.subr.mxu0 0.0
      %1277 = vmatpush2.msra.mxu0 0.0
      %1278 = vmatprep.subr.mxu0 0.0
      %1279 = vmatpush2.msra.mxu0 0.0
      %1280 = vmatprep.subr.mxu0 0.0
      %1281 = vmatpush2.msra.mxu0 0.0
      %1282 = vmatprep.subr.mxu0 0.0
      %1283 = vmatpush2.msra.mxu0 0.0
      %1284 = vmatprep.subr.mxu0 0.0
      %1285 = vmatpush2.msra.mxu0 0.0
      %1286 = vmatprep.subr.mxu0 0.0
      %1287 = vmatpush2.msra.mxu0 0.0
      %1288 = vmatprep.mubr.f32.mxu0 0.0
      %1289 = vmatmul.mubr.f32.gmra.mxu0 %v1027
      %v1290 = vpop.f32.mrf.mxu0
      %v1291 = vadd.f32 %v1222, %v1290
      %v1292 = vpop.f32.mrf.mxu0
      %1293 = vmatprep.mubr.f32.mxu0 0.0
      %1294 = vmatmul.mubr.f32.gmra.mxu0 %v1030
      %v1295 = vpop.f32.mrf.mxu0
      %v1296 = vadd.f32 %v1222, %v1295
      %v1297 = vpop.f32.mrf.mxu0
      %1298 = vmatprep.mubr.f32.mxu0 0.0
      %1299 = vmatmul.mubr.f32.gmra.mxu0 %v1033
      %v1300 = vpop.f32.mrf.mxu0
      %v1301 = vadd.f32 %v1222, %v1300
      %v1302 = vpop.f32.mrf.mxu0
      %1303 = vmatprep.mubr.f32.mxu0 0.0
      %1304 = vmatmul.mubr.f32.gmra.mxu0 %v1036
      %v1305 = vpop.f32.mrf.mxu0
      %v1306 = vadd.f32 %v1222, %v1305
      %v1307 = vpop.f32.mrf.mxu0
      %1308 = vdwg.mxu0
      %1313 = vrot.lane.b32.xlu0 %v1123, 120
      %v1314 = vpop.permute.xlu0 %1313
      %1315 = vrot.lane.b32.xlu0 %v1124, 120
      %v1316 = vpop.permute.xlu0 %1315
      %1317 = vrot.lane.b32.xlu0 %v1125, 120
      %v1318 = vpop.permute.xlu0 %1317
      %1319 = vrot.lane.b32.xlu0 %v1126, 120
      %v1320 = vpop.permute.xlu0 %1319
      %1325 = vrot.lane.b32.xlu0 %v1123, 112
      %v1326 = vpop.permute.xlu0 %1325
      %1327 = vrot.lane.b32.xlu0 %v1124, 112
      %v1328 = vpop.permute.xlu0 %1327
      %1329 = vrot.lane.b32.xlu0 %v1125, 112
      %v1330 = vpop.permute.xlu0 %1329
      %1331 = vrot.lane.b32.xlu0 %v1126, 112
      %v1332 = vpop.permute.xlu0 %1331
      %1337 = vrot.lane.b32.xlu0 %v1123, 104
      %v1338 = vpop.permute.xlu0 %1337
      %1339 = vrot.lane.b32.xlu0 %v1124, 104
      %v1340 = vpop.permute.xlu0 %1339
      %1341 = vrot.lane.b32.xlu0 %v1125, 104
      %v1342 = vpop.permute.xlu0 %1341
      %1343 = vrot.lane.b32.xlu0 %v1126, 104
      %v1344 = vpop.permute.xlu0 %1343
      %v1349 = vcombine.low %v1123, %v1326
      %v1350 = vcombine.high %v1123, %v1326
      %v1352 = vunpack.c.l.s4 1983009808
      %v1353 = vunpack.c.0.s8 %v1352
      %v1354 = vlaneseq
      %v1355 = vshrl.u32 %v1354, 7
      %v1356 = vsub.s32 %v1353, %v1355
      %v1357 = vrot.slane %v1349, %v1356
      %v1359 = vunpack.c.l.s4 1983009808
      %v1360 = vunpack.c.0.s8 %v1359
      %v1361 = vlaneseq
      %v1362 = vshrl.u32 %v1361, 7
      %v1363 = vsub.s32 %v1360, %v1362
      %v1364 = vrot.slane %v1350, %v1363
      %v1365 = vcombine.low %v1314, %v1338
      %v1366 = vcombine.high %v1314, %v1338
      %v1368 = vunpack.c.l.s4 1983009808
      %v1369 = vunpack.c.0.s8 %v1368
      %v1370 = vlaneseq
      %v1371 = vshrl.u32 %v1370, 7
      %v1372 = vsub.s32 %v1369, %v1371
      %v1373 = vrot.slane %v1365, %v1372
      %v1375 = vunpack.c.l.s4 1983009808
      %v1376 = vunpack.c.0.s8 %v1375
      %v1377 = vlaneseq
      %v1378 = vshrl.u32 %v1377, 7
      %v1379 = vsub.s32 %v1376, %v1378
      %v1380 = vrot.slane %v1366, %v1379
      %v1381 = vcombine.low %v1357, %v1373
      %v1382 = vcombine.high %v1357, %v1373
      %v1384 = vunpack.c.l.s4 1934713408
      %v1385 = vunpack.c.0.s8 %v1384
      %v1386 = vlaneseq
      %v1387 = vshrl.u32 %v1386, 7
      %v1388 = vsub.s32 %v1385, %v1387
      %v1389 = vrot.slane %v1381, %v1388
      %v1391 = vunpack.c.l.s4 1934713408
      %v1392 = vunpack.c.0.s8 %v1391
      %v1393 = vlaneseq
      %v1394 = vshrl.u32 %v1393, 7
      %v1395 = vsub.s32 %v1392, %v1394
      %v1396 = vrot.slane %v1382, %v1395
      %v1397 = vcombine.low %v1364, %v1380
      %v1398 = vcombine.high %v1364, %v1380
      %v1400 = vunpack.c.l.s4 1934713408
      %v1401 = vunpack.c.0.s8 %v1400
      %v1402 = vlaneseq
      %v1403 = vshrl.u32 %v1402, 7
      %v1404 = vsub.s32 %v1401, %v1403
      %v1405 = vrot.slane %v1397, %v1404
      %v1407 = vunpack.c.l.s4 1934713408
      %v1408 = vunpack.c.0.s8 %v1407
      %v1409 = vlaneseq
      %v1410 = vshrl.u32 %v1409, 7
      %v1411 = vsub.s32 %v1408, %v1410
      %v1412 = vrot.slane %v1398, %v1411
      %v1413 = vcombine.high %v1389, 0.0
      %v1414 = vcombine.high %v1396, 0.0
      %v1415 = vcombine.high %v1405, 0.0
      %v1416 = vcombine.high %v1412, 0.0
      %v1417 = vcombine.low %v1124, %v1328
      %v1418 = vcombine.high %v1124, %v1328
      %v1420 = vunpack.c.l.s4 1983009808
      %v1421 = vunpack.c.0.s8 %v1420
      %v1422 = vlaneseq
      %v1423 = vshrl.u32 %v1422, 7
      %v1424 = vsub.s32 %v1421, %v1423
      %v1425 = vrot.slane %v1417, %v1424
      %v1427 = vunpack.c.l.s4 1983009808
      %v1428 = vunpack.c.0.s8 %v1427
      %v1429 = vlaneseq
      %v1430 = vshrl.u32 %v1429, 7
      %v1431 = vsub.s32 %v1428, %v1430
      %v1432 = vrot.slane %v1418, %v1431
      %v1433 = vcombine.low %v1316, %v1340
      %v1434 = vcombine.high %v1316, %v1340
      %v1436 = vunpack.c.l.s4 1983009808
      %v1437 = vunpack.c.0.s8 %v1436
      %v1438 = vlaneseq
      %v1439 = vshrl.u32 %v1438, 7
      %v1440 = vsub.s32 %v1437, %v1439
      %v1441 = vrot.slane %v1433, %v1440
      %v1443 = vunpack.c.l.s4 1983009808
      %v1444 = vunpack.c.0.s8 %v1443
      %v1445 = vlaneseq
      %v1446 = vshrl.u32 %v1445, 7
      %v1447 = vsub.s32 %v1444, %v1446
      %v1448 = vrot.slane %v1434, %v1447
      %v1449 = vcombine.low %v1425, %v1441
      %v1450 = vcombine.high %v1425, %v1441
      %v1452 = vunpack.c.l.s4 1934713408
      %v1453 = vunpack.c.0.s8 %v1452
      %v1454 = vlaneseq
      %v1455 = vshrl.u32 %v1454, 7
      %v1456 = vsub.s32 %v1453, %v1455
      %v1457 = vrot.slane %v1449, %v1456
      %v1459 = vunpack.c.l.s4 1934713408
      %v1460 = vunpack.c.0.s8 %v1459
      %v1461 = vlaneseq
      %v1462 = vshrl.u32 %v1461, 7
      %v1463 = vsub.s32 %v1460, %v1462
      %v1464 = vrot.slane %v1450, %v1463
      %v1465 = vcombine.low %v1432, %v1448
      %v1466 = vcombine.high %v1432, %v1448
      %v1468 = vunpack.c.l.s4 1934713408
      %v1469 = vunpack.c.0.s8 %v1468
      %v1470 = vlaneseq
      %v1471 = vshrl.u32 %v1470, 7
      %v1472 = vsub.s32 %v1469, %v1471
      %v1473 = vrot.slane %v1465, %v1472
      %v1475 = vunpack.c.l.s4 1934713408
      %v1476 = vunpack.c.0.s8 %v1475
      %v1477 = vlaneseq
      %v1478 = vshrl.u32 %v1477, 7
      %v1479 = vsub.s32 %v1476, %v1478
      %v1480 = vrot.slane %v1466, %v1479
      %v1481 = vcombine.high %v1457, 0.0
      %v1482 = vcombine.high %v1464, 0.0
      %v1483 = vcombine.high %v1473, 0.0
      %v1484 = vcombine.high %v1480, 0.0
      %v1485 = vcombine.low %v1125, %v1330
      %v1486 = vcombine.high %v1125, %v1330
      %v1488 = vunpack.c.l.s4 1983009808
      %v1489 = vunpack.c.0.s8 %v1488
      %v1490 = vlaneseq
      %v1491 = vshrl.u32 %v1490, 7
      %v1492 = vsub.s32 %v1489, %v1491
      %v1493 = vrot.slane %v1485, %v1492
      %v1495 = vunpack.c.l.s4 1983009808
      %v1496 = vunpack.c.0.s8 %v1495
      %v1497 = vlaneseq
      %v1498 = vshrl.u32 %v1497, 7
      %v1499 = vsub.s32 %v1496, %v1498
      %v1500 = vrot.slane %v1486, %v1499
      %v1501 = vcombine.low %v1318, %v1342
      %v1502 = vcombine.high %v1318, %v1342
      %v1504 = vunpack.c.l.s4 1983009808
      %v1505 = vunpack.c.0.s8 %v1504
      %v1506 = vlaneseq
      %v1507 = vshrl.u32 %v1506, 7
      %v1508 = vsub.s32 %v1505, %v1507
      %v1509 = vrot.slane %v1501, %v1508
      %v1511 = vunpack.c.l.s4 1983009808
      %v1512 = vunpack.c.0.s8 %v1511
      %v1513 = vlaneseq
      %v1514 = vshrl.u32 %v1513, 7
      %v1515 = vsub.s32 %v1512, %v1514
      %v1516 = vrot.slane %v1502, %v1515
      %v1517 = vcombine.low %v1493, %v1509
      %v1518 = vcombine.high %v1493, %v1509
      %v1520 = vunpack.c.l.s4 1934713408
      %v1521 = vunpack.c.0.s8 %v1520
      %v1522 = vlaneseq
      %v1523 = vshrl.u32 %v1522, 7
      %v1524 = vsub.s32 %v1521, %v1523
      %v1525 = vrot.slane %v1517, %v1524
      %v1527 = vunpack.c.l.s4 1934713408
      %v1528 = vunpack.c.0.s8 %v1527
      %v1529 = vlaneseq
      %v1530 = vshrl.u32 %v1529, 7
      %v1531 = vsub.s32 %v1528, %v1530
      %v1532 = vrot.slane %v1518, %v1531
      %v1533 = vcombine.low %v1500, %v1516
      %v1534 = vcombine.high %v1500, %v1516
      %v1536 = vunpack.c.l.s4 1934713408
      %v1537 = vunpack.c.0.s8 %v1536
      %v1538 = vlaneseq
      %v1539 = vshrl.u32 %v1538, 7
      %v1540 = vsub.s32 %v1537, %v1539
      %v1541 = vrot.slane %v1533, %v1540
      %v1543 = vunpack.c.l.s4 1934713408
      %v1544 = vunpack.c.0.s8 %v1543
      %v1545 = vlaneseq
      %v1546 = vshrl.u32 %v1545, 7
      %v1547 = vsub.s32 %v1544, %v1546
      %v1548 = vrot.slane %v1534, %v1547
      %v1549 = vcombine.high %v1525, 0.0
      %v1550 = vcombine.high %v1532, 0.0
      %v1551 = vcombine.high %v1541, 0.0
      %v1552 = vcombine.high %v1548, 0.0
      %v1553 = vcombine.low %v1126, %v1332
      %v1554 = vcombine.high %v1126, %v1332
      %v1556 = vunpack.c.l.s4 1983009808
      %v1557 = vunpack.c.0.s8 %v1556
      %v1558 = vlaneseq
      %v1559 = vshrl.u32 %v1558, 7
      %v1560 = vsub.s32 %v1557, %v1559
      %v1561 = vrot.slane %v1553, %v1560
      %v1563 = vunpack.c.l.s4 1983009808
      %v1564 = vunpack.c.0.s8 %v1563
      %v1565 = vlaneseq
      %v1566 = vshrl.u32 %v1565, 7
      %v1567 = vsub.s32 %v1564, %v1566
      %v1568 = vrot.slane %v1554, %v1567
      %v1569 = vcombine.low %v1320, %v1344
      %v1570 = vcombine.high %v1320, %v1344
      %v1572 = vunpack.c.l.s4 1983009808
      %v1573 = vunpack.c.0.s8 %v1572
      %v1574 = vlaneseq
      %v1575 = vshrl.u32 %v1574, 7
      %v1576 = vsub.s32 %v1573, %v1575
      %v1577 = vrot.slane %v1569, %v1576
      %v1579 = vunpack.c.l.s4 1983009808
      %v1580 = vunpack.c.0.s8 %v1579
      %v1581 = vlaneseq
      %v1582 = vshrl.u32 %v1581, 7
      %v1583 = vsub.s32 %v1580, %v1582
      %v1584 = vrot.slane %v1570, %v1583
      %v1585 = vcombine.low %v1561, %v1577
      %v1586 = vcombine.high %v1561, %v1577
      %v1588 = vunpack.c.l.s4 1934713408
      %v1589 = vunpack.c.0.s8 %v1588
      %v1590 = vlaneseq
      %v1591 = vshrl.u32 %v1590, 7
      %v1592 = vsub.s32 %v1589, %v1591
      %v1593 = vrot.slane %v1585, %v1592
      %v1595 = vunpack.c.l.s4 1934713408
      %v1596 = vunpack.c.0.s8 %v1595
      %v1597 = vlaneseq
      %v1598 = vshrl.u32 %v1597, 7
      %v1599 = vsub.s32 %v1596, %v1598
      %v1600 = vrot.slane %v1586, %v1599
      %v1601 = vcombine.low %v1568, %v1584
      %v1602 = vcombine.high %v1568, %v1584
      %v1604 = vunpack.c.l.s4 1934713408
      %v1605 = vunpack.c.0.s8 %v1604
      %v1606 = vlaneseq
      %v1607 = vshrl.u32 %v1606, 7
      %v1608 = vsub.s32 %v1605, %v1607
      %v1609 = vrot.slane %v1601, %v1608
      %v1611 = vunpack.c.l.s4 1934713408
      %v1612 = vunpack.c.0.s8 %v1611
      %v1613 = vlaneseq
      %v1614 = vshrl.u32 %v1613, 7
      %v1615 = vsub.s32 %v1612, %v1614
      %v1616 = vrot.slane %v1602, %v1615
      %v1617 = vcombine.high %v1593, 0.0
      %v1618 = vcombine.high %v1600, 0.0
      %v1619 = vcombine.high %v1609, 0.0
      %v1620 = vcombine.high %v1616, 0.0
      %v1621 = vcombine.low %v1389, %v1396
      %v1623 = vunpack.c.l.s4 1983009808
      %v1624 = vunpack.c.0.s8 %v1623
      %v1625 = vlaneseq
      %v1626 = vshrl.u32 %v1625, 7
      %v1627 = vsub.s32 %v1624, %v1626
      %v1628 = vrot.slane %v1621, %v1627
      %v1629 = vcombine.low %v1413, %v1414
      %v1631 = vunpack.c.l.s4 1983009808
      %v1632 = vunpack.c.0.s8 %v1631
      %v1633 = vlaneseq
      %v1634 = vshrl.u32 %v1633, 7
      %v1635 = vsub.s32 %v1632, %v1634
      %v1636 = vrot.slane %v1629, %v1635
      %v1637 = vcombine.low %v1405, %v1412
      %v1639 = vunpack.c.l.s4 1983009808
      %v1640 = vunpack.c.0.s8 %v1639
      %v1641 = vlaneseq
      %v1642 = vshrl.u32 %v1641, 7
      %v1643 = vsub.s32 %v1640, %v1642
      %v1644 = vrot.slane %v1637, %v1643
      %v1645 = vcombine.low %v1415, %v1416
      %v1647 = vunpack.c.l.s4 1983009808
      %v1648 = vunpack.c.0.s8 %v1647
      %v1649 = vlaneseq
      %v1650 = vshrl.u32 %v1649, 7
      %v1651 = vsub.s32 %v1648, %v1650
      %v1652 = vrot.slane %v1645, %v1651
      %v1653 = vcombine.low %v1628, %v1636
      %v1654 = vcombine.high %v1628, %v1636
      %v1656 = vunpack.c.l.s4 1934713408
      %v1657 = vunpack.c.0.s8 %v1656
      %v1658 = vlaneseq
      %v1659 = vshrl.u32 %v1658, 7
      %v1660 = vsub.s32 %v1657, %v1659
      %v1661 = vrot.slane %v1653, %v1660
      %v1663 = vunpack.c.l.s4 1934713408
      %v1664 = vunpack.c.0.s8 %v1663
      %v1665 = vlaneseq
      %v1666 = vshrl.u32 %v1665, 7
      %v1667 = vsub.s32 %v1664, %v1666
      %v1668 = vrot.slane %v1654, %v1667
      %v1669 = vcombine.low %v1644, %v1652
      %v1670 = vcombine.high %v1644, %v1652
      %v1672 = vunpack.c.l.s4 1934713408
      %v1673 = vunpack.c.0.s8 %v1672
      %v1674 = vlaneseq
      %v1675 = vshrl.u32 %v1674, 7
      %v1676 = vsub.s32 %v1673, %v1675
      %v1677 = vrot.slane %v1669, %v1676
      %v1679 = vunpack.c.l.s4 1934713408
      %v1680 = vunpack.c.0.s8 %v1679
      %v1681 = vlaneseq
      %v1682 = vshrl.u32 %v1681, 7
      %v1683 = vsub.s32 %v1680, %v1682
      %v1684 = vrot.slane %v1670, %v1683
      %v1685 = vcombine.low %v1661, %v1677
      %v1686 = vcombine.high %v1661, %v1677
      %v1687 = vcombine.low %v1668, %v1684
      %v1688 = vcombine.high %v1668, %v1684
      %v1689 = vcombine.low %v1457, %v1464
      %v1691 = vunpack.c.l.s4 1983009808
      %v1692 = vunpack.c.0.s8 %v1691
      %v1693 = vlaneseq
      %v1694 = vshrl.u32 %v1693, 7
      %v1695 = vsub.s32 %v1692, %v1694
      %v1696 = vrot.slane %v1689, %v1695
      %v1697 = vcombine.low %v1481, %v1482
      %v1699 = vunpack.c.l.s4 1983009808
      %v1700 = vunpack.c.0.s8 %v1699
      %v1701 = vlaneseq
      %v1702 = vshrl.u32 %v1701, 7
      %v1703 = vsub.s32 %v1700, %v1702
      %v1704 = vrot.slane %v1697, %v1703
      %v1705 = vcombine.low %v1473, %v1480
      %v1707 = vunpack.c.l.s4 1983009808
      %v1708 = vunpack.c.0.s8 %v1707
      %v1709 = vlaneseq
      %v1710 = vshrl.u32 %v1709, 7
      %v1711 = vsub.s32 %v1708, %v1710
      %v1712 = vrot.slane %v1705, %v1711
      %v1713 = vcombine.low %v1483, %v1484
      %v1715 = vunpack.c.l.s4 1983009808
      %v1716 = vunpack.c.0.s8 %v1715
      %v1717 = vlaneseq
      %v1718 = vshrl.u32 %v1717, 7
      %v1719 = vsub.s32 %v1716, %v1718
      %v1720 = vrot.slane %v1713, %v1719
      %v1721 = vcombine.low %v1696, %v1704
      %v1722 = vcombine.high %v1696, %v1704
      %v1724 = vunpack.c.l.s4 1934713408
      %v1725 = vunpack.c.0.s8 %v1724
      %v1726 = vlaneseq
      %v1727 = vshrl.u32 %v1726, 7
      %v1728 = vsub.s32 %v1725, %v1727
      %v1729 = vrot.slane %v1721, %v1728
      %v1731 = vunpack.c.l.s4 1934713408
      %v1732 = vunpack.c.0.s8 %v1731
      %v1733 = vlaneseq
      %v1734 = vshrl.u32 %v1733, 7
      %v1735 = vsub.s32 %v1732, %v1734
      %v1736 = vrot.slane %v1722, %v1735
      %v1737 = vcombine.low %v1712, %v1720
      %v1738 = vcombine.high %v1712, %v1720
      %v1740 = vunpack.c.l.s4 1934713408
      %v1741 = vunpack.c.0.s8 %v1740
      %v1742 = vlaneseq
      %v1743 = vshrl.u32 %v1742, 7
      %v1744 = vsub.s32 %v1741, %v1743
      %v1745 = vrot.slane %v1737, %v1744
      %v1747 = vunpack.c.l.s4 1934713408
      %v1748 = vunpack.c.0.s8 %v1747
      %v1749 = vlaneseq
      %v1750 = vshrl.u32 %v1749, 7
      %v1751 = vsub.s32 %v1748, %v1750
      %v1752 = vrot.slane %v1738, %v1751
      %v1753 = vcombine.low %v1729, %v1745
      %v1754 = vcombine.high %v1729, %v1745
      %v1755 = vcombine.low %v1736, %v1752
      %v1756 = vcombine.high %v1736, %v1752
      %v1757 = vcombine.low %v1525, %v1532
      %v1759 = vunpack.c.l.s4 1983009808
      %v1760 = vunpack.c.0.s8 %v1759
      %v1761 = vlaneseq
      %v1762 = vshrl.u32 %v1761, 7
      %v1763 = vsub.s32 %v1760, %v1762
      %v1764 = vrot.slane %v1757, %v1763
      %v1765 = vcombine.low %v1549, %v1550
      %v1767 = vunpack.c.l.s4 1983009808
      %v1768 = vunpack.c.0.s8 %v1767
      %v1769 = vlaneseq
      %v1770 = vshrl.u32 %v1769, 7
      %v1771 = vsub.s32 %v1768, %v1770
      %v1772 = vrot.slane %v1765, %v1771
      %v1773 = vcombine.low %v1541, %v1548
      %v1775 = vunpack.c.l.s4 1983009808
      %v1776 = vunpack.c.0.s8 %v1775
      %v1777 = vlaneseq
      %v1778 = vshrl.u32 %v1777, 7
      %v1779 = vsub.s32 %v1776, %v1778
      %v1780 = vrot.slane %v1773, %v1779
      %v1781 = vcombine.low %v1551, %v1552
      %v1783 = vunpack.c.l.s4 1983009808
      %v1784 = vunpack.c.0.s8 %v1783
      %v1785 = vlaneseq
      %v1786 = vshrl.u32 %v1785, 7
      %v1787 = vsub.s32 %v1784, %v1786
      %v1788 = vrot.slane %v1781, %v1787
      %v1789 = vcombine.low %v1764, %v1772
      %v1790 = vcombine.high %v1764, %v1772
      %v1792 = vunpack.c.l.s4 1934713408
      %v1793 = vunpack.c.0.s8 %v1792
      %v1794 = vlaneseq
      %v1795 = vshrl.u32 %v1794, 7
      %v1796 = vsub.s32 %v1793, %v1795
      %v1797 = vrot.slane %v1789, %v1796
      %v1799 = vunpack.c.l.s4 1934713408
      %v1800 = vunpack.c.0.s8 %v1799
      %v1801 = vlaneseq
      %v1802 = vshrl.u32 %v1801, 7
      %v1803 = vsub.s32 %v1800, %v1802
      %v1804 = vrot.slane %v1790, %v1803
      %v1805 = vcombine.low %v1780, %v1788
      %v1806 = vcombine.high %v1780, %v1788
      %v1808 = vunpack.c.l.s4 1934713408
      %v1809 = vunpack.c.0.s8 %v1808
      %v1810 = vlaneseq
      %v1811 = vshrl.u32 %v1810, 7
      %v1812 = vsub.s32 %v1809, %v1811
      %v1813 = vrot.slane %v1805, %v1812
      %v1815 = vunpack.c.l.s4 1934713408
      %v1816 = vunpack.c.0.s8 %v1815
      %v1817 = vlaneseq
      %v1818 = vshrl.u32 %v1817, 7
      %v1819 = vsub.s32 %v1816, %v1818
      %v1820 = vrot.slane %v1806, %v1819
      %v1821 = vcombine.low %v1797, %v1813
      %v1822 = vcombine.high %v1797, %v1813
      %v1823 = vcombine.low %v1804, %v1820
      %v1824 = vcombine.high %v1804, %v1820
      %v1825 = vcombine.low %v1593, %v1600
      %v1827 = vunpack.c.l.s4 1983009808
      %v1828 = vunpack.c.0.s8 %v1827
      %v1829 = vlaneseq
      %v1830 = vshrl.u32 %v1829, 7
      %v1831 = vsub.s32 %v1828, %v1830
      %v1832 = vrot.slane %v1825, %v1831
      %v1833 = vcombine.low %v1617, %v1618
      %v1835 = vunpack.c.l.s4 1983009808
      %v1836 = vunpack.c.0.s8 %v1835
      %v1837 = vlaneseq
      %v1838 = vshrl.u32 %v1837, 7
      %v1839 = vsub.s32 %v1836, %v1838
      %v1840 = vrot.slane %v1833, %v1839
      %v1841 = vcombine.low %v1609, %v1616
      %v1843 = vunpack.c.l.s4 1983009808
      %v1844 = vunpack.c.0.s8 %v1843
      %v1845 = vlaneseq
      %v1846 = vshrl.u32 %v1845, 7
      %v1847 = vsub.s32 %v1844, %v1846
      %v1848 = vrot.slane %v1841, %v1847
      %v1849 = vcombine.low %v1619, %v1620
      %v1851 = vunpack.c.l.s4 1983009808
      %v1852 = vunpack.c.0.s8 %v1851
      %v1853 = vlaneseq
      %v1854 = vshrl.u32 %v1853, 7
      %v1855 = vsub.s32 %v1852, %v1854
      %v1856 = vrot.slane %v1849, %v1855
      %v1857 = vcombine.low %v1832, %v1840
      %v1858 = vcombine.high %v1832, %v1840
      %v1860 = vunpack.c.l.s4 1934713408
      %v1861 = vunpack.c.0.s8 %v1860
      %v1862 = vlaneseq
      %v1863 = vshrl.u32 %v1862, 7
      %v1864 = vsub.s32 %v1861, %v1863
      %v1865 = vrot.slane %v1857, %v1864
      %v1867 = vunpack.c.l.s4 1934713408
      %v1868 = vunpack.c.0.s8 %v1867
      %v1869 = vlaneseq
      %v1870 = vshrl.u32 %v1869, 7
      %v1871 = vsub.s32 %v1868, %v1870
      %v1872 = vrot.slane %v1858, %v1871
      %v1873 = vcombine.low %v1848, %v1856
      %v1874 = vcombine.high %v1848, %v1856
      %v1876 = vunpack.c.l.s4 1934713408
      %v1877 = vunpack.c.0.s8 %v1876
      %v1878 = vlaneseq
      %v1879 = vshrl.u32 %v1878, 7
      %v1880 = vsub.s32 %v1877, %v1879
      %v1881 = vrot.slane %v1873, %v1880
      %v1883 = vunpack.c.l.s4 1934713408
      %v1884 = vunpack.c.0.s8 %v1883
      %v1885 = vlaneseq
      %v1886 = vshrl.u32 %v1885, 7
      %v1887 = vsub.s32 %v1884, %v1886
      %v1888 = vrot.slane %v1874, %v1887
      %v1889 = vcombine.low %v1865, %v1881
      %v1890 = vcombine.high %v1865, %v1881
      %v1891 = vcombine.low %v1872, %v1888
      %v1892 = vcombine.high %v1872, %v1888
      %1897 = vrot.lane.b32.xlu0 %v1200, 120
      %v1898 = vpop.permute.xlu0 %1897
      %1899 = vrot.lane.b32.xlu0 %v1205, 120
      %v1900 = vpop.permute.xlu0 %1899
      %1901 = vrot.lane.b32.xlu0 %v1210, 120
      %v1902 = vpop.permute.xlu0 %1901
      %1903 = vrot.lane.b32.xlu0 %v1215, 120
      %v1904 = vpop.permute.xlu0 %1903
      %1909 = vrot.lane.b32.xlu0 %v1200, 112
      %v1910 = vpop.permute.xlu0 %1909
      %1911 = vrot.lane.b32.xlu0 %v1205, 112
      %v1912 = vpop.permute.xlu0 %1911
      %1913 = vrot.lane.b32.xlu0 %v1210, 112
      %v1914 = vpop.permute.xlu0 %1913
      %1915 = vrot.lane.b32.xlu0 %v1215, 112
      %v1916 = vpop.permute.xlu0 %1915
      %1921 = vrot.lane.b32.xlu0 %v1200, 104
      %v1922 = vpop.permute.xlu0 %1921
      %1923 = vrot.lane.b32.xlu0 %v1205, 104
      %v1924 = vpop.permute.xlu0 %1923
      %1925 = vrot.lane.b32.xlu0 %v1210, 104
      %v1926 = vpop.permute.xlu0 %1925
      %1927 = vrot.lane.b32.xlu0 %v1215, 104
      %v1928 = vpop.permute.xlu0 %1927
      %v1933 = vcombine.low %v1200, %v1910
      %v1934 = vcombine.high %v1200, %v1910
      %v1936 = vunpack.c.l.s4 1983009808
      %v1937 = vunpack.c.0.s8 %v1936
      %v1938 = vlaneseq
      %v1939 = vshrl.u32 %v1938, 7
      %v1940 = vsub.s32 %v1937, %v1939
      %v1941 = vrot.slane %v1933, %v1940
      %v1943 = vunpack.c.l.s4 1983009808
      %v1944 = vunpack.c.0.s8 %v1943
      %v1945 = vlaneseq
      %v1946 = vshrl.u32 %v1945, 7
      %v1947 = vsub.s32 %v1944, %v1946
      %v1948 = vrot.slane %v1934, %v1947
      %v1949 = vcombine.low %v1898, %v1922
      %v1950 = vcombine.high %v1898, %v1922
      %v1952 = vunpack.c.l.s4 1983009808
      %v1953 = vunpack.c.0.s8 %v1952
      %v1954 = vlaneseq
      %v1955 = vshrl.u32 %v1954, 7
      %v1956 = vsub.s32 %v1953, %v1955
      %v1957 = vrot.slane %v1949, %v1956
      %v1959 = vunpack.c.l.s4 1983009808
      %v1960 = vunpack.c.0.s8 %v1959
      %v1961 = vlaneseq
      %v1962 = vshrl.u32 %v1961, 7
      %v1963 = vsub.s32 %v1960, %v1962
      %v1964 = vrot.slane %v1950, %v1963
      %v1965 = vcombine.low %v1941, %v1957
      %v1966 = vcombine.high %v1941, %v1957
      %v1968 = vunpack.c.l.s4 1934713408
      %v1969 = vunpack.c.0.s8 %v1968
      %v1970 = vlaneseq
      %v1971 = vshrl.u32 %v1970, 7
      %v1972 = vsub.s32 %v1969, %v1971
      %v1973 = vrot.slane %v1965, %v1972
      %v1975 = vunpack.c.l.s4 1934713408
      %v1976 = vunpack.c.0.s8 %v1975
      %v1977 = vlaneseq
      %v1978 = vshrl.u32 %v1977, 7
      %v1979 = vsub.s32 %v1976, %v1978
      %v1980 = vrot.slane %v1966, %v1979
      %v1981 = vcombine.low %v1948, %v1964
      %v1982 = vcombine.high %v1948, %v1964
      %v1984 = vunpack.c.l.s4 1934713408
      %v1985 = vunpack.c.0.s8 %v1984
      %v1986 = vlaneseq
      %v1987 = vshrl.u32 %v1986, 7
      %v1988 = vsub.s32 %v1985, %v1987
      %v1989 = vrot.slane %v1981, %v1988
      %v1991 = vunpack.c.l.s4 1934713408
      %v1992 = vunpack.c.0.s8 %v1991
      %v1993 = vlaneseq
      %v1994 = vshrl.u32 %v1993, 7
      %v1995 = vsub.s32 %v1992, %v1994
      %v1996 = vrot.slane %v1982, %v1995
      %v1997 = vcombine.high %v1973, 0.0
      %v1998 = vcombine.high %v1980, 0.0
      %v1999 = vcombine.high %v1989, 0.0
      %v2000 = vcombine.high %v1996, 0.0
      %v2001 = vcombine.low %v1205, %v1912
      %v2002 = vcombine.high %v1205, %v1912
      %v2004 = vunpack.c.l.s4 1983009808
      %v2005 = vunpack.c.0.s8 %v2004
      %v2006 = vlaneseq
      %v2007 = vshrl.u32 %v2006, 7
      %v2008 = vsub.s32 %v2005, %v2007
      %v2009 = vrot.slane %v2001, %v2008
      %v2011 = vunpack.c.l.s4 1983009808
      %v2012 = vunpack.c.0.s8 %v2011
      %v2013 = vlaneseq
      %v2014 = vshrl.u32 %v2013, 7
      %v2015 = vsub.s32 %v2012, %v2014
      %v2016 = vrot.slane %v2002, %v2015
      %v2017 = vcombine.low %v1900, %v1924
      %v2018 = vcombine.high %v1900, %v1924
      %v2020 = vunpack.c.l.s4 1983009808
      %v2021 = vunpack.c.0.s8 %v2020
      %v2022 = vlaneseq
      %v2023 = vshrl.u32 %v2022, 7
      %v2024 = vsub.s32 %v2021, %v2023
      %v2025 = vrot.slane %v2017, %v2024
      %v2027 = vunpack.c.l.s4 1983009808
      %v2028 = vunpack.c.0.s8 %v2027
      %v2029 = vlaneseq
      %v2030 = vshrl.u32 %v2029, 7
      %v2031 = vsub.s32 %v2028, %v2030
      %v2032 = vrot.slane %v2018, %v2031
      %v2033 = vcombine.low %v2009, %v2025
      %v2034 = vcombine.high %v2009, %v2025
      %v2036 = vunpack.c.l.s4 1934713408
      %v2037 = vunpack.c.0.s8 %v2036
      %v2038 = vlaneseq
      %v2039 = vshrl.u32 %v2038, 7
      %v2040 = vsub.s32 %v2037, %v2039
      %v2041 = vrot.slane %v2033, %v2040
      %v2043 = vunpack.c.l.s4 1934713408
      %v2044 = vunpack.c.0.s8 %v2043
      %v2045 = vlaneseq
      %v2046 = vshrl.u32 %v2045, 7
      %v2047 = vsub.s32 %v2044, %v2046
      %v2048 = vrot.slane %v2034, %v2047
      %v2049 = vcombine.low %v2016, %v2032
      %v2050 = vcombine.high %v2016, %v2032
      %v2052 = vunpack.c.l.s4 1934713408
      %v2053 = vunpack.c.0.s8 %v2052
      %v2054 = vlaneseq
      %v2055 = vshrl.u32 %v2054, 7
      %v2056 = vsub.s32 %v2053, %v2055
      %v2057 = vrot.slane %v2049, %v2056
      %v2059 = vunpack.c.l.s4 1934713408
      %v2060 = vunpack.c.0.s8 %v2059
      %v2061 = vlaneseq
      %v2062 = vshrl.u32 %v2061, 7
      %v2063 = vsub.s32 %v2060, %v2062
      %v2064 = vrot.slane %v2050, %v2063
      %v2065 = vcombine.high %v2041, 0.0
      %v2066 = vcombine.high %v2048, 0.0
      %v2067 = vcombine.high %v2057, 0.0
      %v2068 = vcombine.high %v2064, 0.0
      %v2069 = vcombine.low %v1210, %v1914
      %v2070 = vcombine.high %v1210, %v1914
      %v2072 = vunpack.c.l.s4 1983009808
      %v2073 = vunpack.c.0.s8 %v2072
      %v2074 = vlaneseq
      %v2075 = vshrl.u32 %v2074, 7
      %v2076 = vsub.s32 %v2073, %v2075
      %v2077 = vrot.slane %v2069, %v2076
      %v2079 = vunpack.c.l.s4 1983009808
      %v2080 = vunpack.c.0.s8 %v2079
      %v2081 = vlaneseq
      %v2082 = vshrl.u32 %v2081, 7
      %v2083 = vsub.s32 %v2080, %v2082
      %v2084 = vrot.slane %v2070, %v2083
      %v2085 = vcombine.low %v1902, %v1926
      %v2086 = vcombine.high %v1902, %v1926
      %v2088 = vunpack.c.l.s4 1983009808
      %v2089 = vunpack.c.0.s8 %v2088
      %v2090 = vlaneseq
      %v2091 = vshrl.u32 %v2090, 7
      %v2092 = vsub.s32 %v2089, %v2091
      %v2093 = vrot.slane %v2085, %v2092
      %v2095 = vunpack.c.l.s4 1983009808
      %v2096 = vunpack.c.0.s8 %v2095
      %v2097 = vlaneseq
      %v2098 = vshrl.u32 %v2097, 7
      %v2099 = vsub.s32 %v2096, %v2098
      %v2100 = vrot.slane %v2086, %v2099
      %v2101 = vcombine.low %v2077, %v2093
      %v2102 = vcombine.high %v2077, %v2093
      %v2104 = vunpack.c.l.s4 1934713408
      %v2105 = vunpack.c.0.s8 %v2104
      %v2106 = vlaneseq
      %v2107 = vshrl.u32 %v2106, 7
      %v2108 = vsub.s32 %v2105, %v2107
      %v2109 = vrot.slane %v2101, %v2108
      %v2111 = vunpack.c.l.s4 1934713408
      %v2112 = vunpack.c.0.s8 %v2111
      %v2113 = vlaneseq
      %v2114 = vshrl.u32 %v2113, 7
      %v2115 = vsub.s32 %v2112, %v2114
      %v2116 = vrot.slane %v2102, %v2115
      %v2117 = vcombine.low %v2084, %v2100
      %v2118 = vcombine.high %v2084, %v2100
      %v2120 = vunpack.c.l.s4 1934713408
      %v2121 = vunpack.c.0.s8 %v2120
      %v2122 = vlaneseq
      %v2123 = vshrl.u32 %v2122, 7
      %v2124 = vsub.s32 %v2121, %v2123
      %v2125 = vrot.slane %v2117, %v2124
      %v2127 = vunpack.c.l.s4 1934713408
      %v2128 = vunpack.c.0.s8 %v2127
      %v2129 = vlaneseq
      %v2130 = vshrl.u32 %v2129, 7
      %v2131 = vsub.s32 %v2128, %v2130
      %v2132 = vrot.slane %v2118, %v2131
      %v2133 = vcombine.high %v2109, 0.0
      %v2134 = vcombine.high %v2116, 0.0
      %v2135 = vcombine.high %v2125, 0.0
      %v2136 = vcombine.high %v2132, 0.0
      %v2137 = vcombine.low %v1215, %v1916
      %v2138 = vcombine.high %v1215, %v1916
      %v2140 = vunpack.c.l.s4 1983009808
      %v2141 = vunpack.c.0.s8 %v2140
      %v2142 = vlaneseq
      %v2143 = vshrl.u32 %v2142, 7
      %v2144 = vsub.s32 %v2141, %v2143
      %v2145 = vrot.slane %v2137, %v2144
      %v2147 = vunpack.c.l.s4 1983009808
      %v2148 = vunpack.c.0.s8 %v2147
      %v2149 = vlaneseq
      %v2150 = vshrl.u32 %v2149, 7
      %v2151 = vsub.s32 %v2148, %v2150
      %v2152 = vrot.slane %v2138, %v2151
      %v2153 = vcombine.low %v1904, %v1928
      %v2154 = vcombine.high %v1904, %v1928
      %v2156 = vunpack.c.l.s4 1983009808
      %v2157 = vunpack.c.0.s8 %v2156
      %v2158 = vlaneseq
      %v2159 = vshrl.u32 %v2158, 7
      %v2160 = vsub.s32 %v2157, %v2159
      %v2161 = vrot.slane %v2153, %v2160
      %v2163 = vunpack.c.l.s4 1983009808
      %v2164 = vunpack.c.0.s8 %v2163
      %v2165 = vlaneseq
      %v2166 = vshrl.u32 %v2165, 7
      %v2167 = vsub.s32 %v2164, %v2166
      %v2168 = vrot.slane %v2154, %v2167
      %v2169 = vcombine.low %v2145, %v2161
      %v2170 = vcombine.high %v2145, %v2161
      %v2172 = vunpack.c.l.s4 1934713408
      %v2173 = vunpack.c.0.s8 %v2172
      %v2174 = vlaneseq
      %v2175 = vshrl.u32 %v2174, 7
      %v2176 = vsub.s32 %v2173, %v2175
      %v2177 = vrot.slane %v2169, %v2176
      %v2179 = vunpack.c.l.s4 1934713408
      %v2180 = vunpack.c.0.s8 %v2179
      %v2181 = vlaneseq
      %v2182 = vshrl.u32 %v2181, 7
      %v2183 = vsub.s32 %v2180, %v2182
      %v2184 = vrot.slane %v2170, %v2183
      %v2185 = vcombine.low %v2152, %v2168
      %v2186 = vcombine.high %v2152, %v2168
      %v2188 = vunpack.c.l.s4 1934713408
      %v2189 = vunpack.c.0.s8 %v2188
      %v2190 = vlaneseq
      %v2191 = vshrl.u32 %v2190, 7
      %v2192 = vsub.s32 %v2189, %v2191
      %v2193 = vrot.slane %v2185, %v2192
      %v2195 = vunpack.c.l.s4 1934713408
      %v2196 = vunpack.c.0.s8 %v2195
      %v2197 = vlaneseq
      %v2198 = vshrl.u32 %v2197, 7
      %v2199 = vsub.s32 %v2196, %v2198
      %v2200 = vrot.slane %v2186, %v2199
      %v2201 = vcombine.high %v2177, 0.0
      %v2202 = vcombine.high %v2184, 0.0
      %v2203 = vcombine.high %v2193, 0.0
      %v2204 = vcombine.high %v2200, 0.0
      %v2205 = vcombine.low %v1973, %v1980
      %v2207 = vunpack.c.l.s4 1983009808
      %v2208 = vunpack.c.0.s8 %v2207
      %v2209 = vlaneseq
      %v2210 = vshrl.u32 %v2209, 7
      %v2211 = vsub.s32 %v2208, %v2210
      %v2212 = vrot.slane %v2205, %v2211
      %v2213 = vcombine.low %v1997, %v1998
      %v2215 = vunpack.c.l.s4 1983009808
      %v2216 = vunpack.c.0.s8 %v2215
      %v2217 = vlaneseq
      %v2218 = vshrl.u32 %v2217, 7
      %v2219 = vsub.s32 %v2216, %v2218
      %v2220 = vrot.slane %v2213, %v2219
      %v2221 = vcombine.low %v1989, %v1996
      %v2223 = vunpack.c.l.s4 1983009808
      %v2224 = vunpack.c.0.s8 %v2223
      %v2225 = vlaneseq
      %v2226 = vshrl.u32 %v2225, 7
      %v2227 = vsub.s32 %v2224, %v2226
      %v2228 = vrot.slane %v2221, %v2227
      %v2229 = vcombine.low %v1999, %v2000
      %v2231 = vunpack.c.l.s4 1983009808
      %v2232 = vunpack.c.0.s8 %v2231
      %v2233 = vlaneseq
      %v2234 = vshrl.u32 %v2233, 7
      %v2235 = vsub.s32 %v2232, %v2234
      %v2236 = vrot.slane %v2229, %v2235
      %v2237 = vcombine.low %v2212, %v2220
      %v2238 = vcombine.high %v2212, %v2220
      %v2240 = vunpack.c.l.s4 1934713408
      %v2241 = vunpack.c.0.s8 %v2240
      %v2242 = vlaneseq
      %v2243 = vshrl.u32 %v2242, 7
      %v2244 = vsub.s32 %v2241, %v2243
      %v2245 = vrot.slane %v2237, %v2244
      %v2247 = vunpack.c.l.s4 1934713408
      %v2248 = vunpack.c.0.s8 %v2247
      %v2249 = vlaneseq
      %v2250 = vshrl.u32 %v2249, 7
      %v2251 = vsub.s32 %v2248, %v2250
      %v2252 = vrot.slane %v2238, %v2251
      %v2253 = vcombine.low %v2228, %v2236
      %v2254 = vcombine.high %v2228, %v2236
      %v2256 = vunpack.c.l.s4 1934713408
      %v2257 = vunpack.c.0.s8 %v2256
      %v2258 = vlaneseq
      %v2259 = vshrl.u32 %v2258, 7
      %v2260 = vsub.s32 %v2257, %v2259
      %v2261 = vrot.slane %v2253, %v2260
      %v2263 = vunpack.c.l.s4 1934713408
      %v2264 = vunpack.c.0.s8 %v2263
      %v2265 = vlaneseq
      %v2266 = vshrl.u32 %v2265, 7
      %v2267 = vsub.s32 %v2264, %v2266
      %v2268 = vrot.slane %v2254, %v2267
      %v2269 = vcombine.low %v2245, %v2261
      %v2270 = vcombine.high %v2245, %v2261
      %v2271 = vcombine.low %v2252, %v2268
      %v2272 = vcombine.high %v2252, %v2268
      %v2273 = vcombine.low %v2041, %v2048
      %v2275 = vunpack.c.l.s4 1983009808
      %v2276 = vunpack.c.0.s8 %v2275
      %v2277 = vlaneseq
      %v2278 = vshrl.u32 %v2277, 7
      %v2279 = vsub.s32 %v2276, %v2278
      %v2280 = vrot.slane %v2273, %v2279
      %v2281 = vcombine.low %v2065, %v2066
      %v2283 = vunpack.c.l.s4 1983009808
      %v2284 = vunpack.c.0.s8 %v2283
      %v2285 = vlaneseq
      %v2286 = vshrl.u32 %v2285, 7
      %v2287 = vsub.s32 %v2284, %v2286
      %v2288 = vrot.slane %v2281, %v2287
      %v2289 = vcombine.low %v2057, %v2064
      %v2291 = vunpack.c.l.s4 1983009808
      %v2292 = vunpack.c.0.s8 %v2291
      %v2293 = vlaneseq
      %v2294 = vshrl.u32 %v2293, 7
      %v2295 = vsub.s32 %v2292, %v2294
      %v2296 = vrot.slane %v2289, %v2295
      %v2297 = vcombine.low %v2067, %v2068
      %v2299 = vunpack.c.l.s4 1983009808
      %v2300 = vunpack.c.0.s8 %v2299
      %v2301 = vlaneseq
      %v2302 = vshrl.u32 %v2301, 7
      %v2303 = vsub.s32 %v2300, %v2302
      %v2304 = vrot.slane %v2297, %v2303
      %v2305 = vcombine.low %v2280, %v2288
      %v2306 = vcombine.high %v2280, %v2288
      %v2308 = vunpack.c.l.s4 1934713408
      %v2309 = vunpack.c.0.s8 %v2308
      %v2310 = vlaneseq
      %v2311 = vshrl.u32 %v2310, 7
      %v2312 = vsub.s32 %v2309, %v2311
      %v2313 = vrot.slane %v2305, %v2312
      %v2315 = vunpack.c.l.s4 1934713408
      %v2316 = vunpack.c.0.s8 %v2315
      %v2317 = vlaneseq
      %v2318 = vshrl.u32 %v2317, 7
      %v2319 = vsub.s32 %v2316, %v2318
      %v2320 = vrot.slane %v2306, %v2319
      %v2321 = vcombine.low %v2296, %v2304
      %v2322 = vcombine.high %v2296, %v2304
      %v2324 = vunpack.c.l.s4 1934713408
      %v2325 = vunpack.c.0.s8 %v2324
      %v2326 = vlaneseq
      %v2327 = vshrl.u32 %v2326, 7
      %v2328 = vsub.s32 %v2325, %v2327
      %v2329 = vrot.slane %v2321, %v2328
      %v2331 = vunpack.c.l.s4 1934713408
      %v2332 = vunpack.c.0.s8 %v2331
      %v2333 = vlaneseq
      %v2334 = vshrl.u32 %v2333, 7
      %v2335 = vsub.s32 %v2332, %v2334
      %v2336 = vrot.slane %v2322, %v2335
      %v2337 = vcombine.low %v2313, %v2329
      %v2338 = vcombine.high %v2313, %v2329
      %v2339 = vcombine.low %v2320, %v2336
      %v2340 = vcombine.high %v2320, %v2336
      %v2341 = vcombine.low %v2109, %v2116
      %v2343 = vunpack.c.l.s4 1983009808
      %v2344 = vunpack.c.0.s8 %v2343
      %v2345 = vlaneseq
      %v2346 = vshrl.u32 %v2345, 7
      %v2347 = vsub.s32 %v2344, %v2346
      %v2348 = vrot.slane %v2341, %v2347
      %v2349 = vcombine.low %v2133, %v2134
      %v2351 = vunpack.c.l.s4 1983009808
      %v2352 = vunpack.c.0.s8 %v2351
      %v2353 = vlaneseq
      %v2354 = vshrl.u32 %v2353, 7
      %v2355 = vsub.s32 %v2352, %v2354
      %v2356 = vrot.slane %v2349, %v2355
      %v2357 = vcombine.low %v2125, %v2132
      %v2359 = vunpack.c.l.s4 1983009808
      %v2360 = vunpack.c.0.s8 %v2359
      %v2361 = vlaneseq
      %v2362 = vshrl.u32 %v2361, 7
      %v2363 = vsub.s32 %v2360, %v2362
      %v2364 = vrot.slane %v2357, %v2363
      %v2365 = vcombine.low %v2135, %v2136
      %v2367 = vunpack.c.l.s4 1983009808
      %v2368 = vunpack.c.0.s8 %v2367
      %v2369 = vlaneseq
      %v2370 = vshrl.u32 %v2369, 7
      %v2371 = vsub.s32 %v2368, %v2370
      %v2372 = vrot.slane %v2365, %v2371
      %v2373 = vcombine.low %v2348, %v2356
      %v2374 = vcombine.high %v2348, %v2356
      %v2376 = vunpack.c.l.s4 1934713408
      %v2377 = vunpack.c.0.s8 %v2376
      %v2378 = vlaneseq
      %v2379 = vshrl.u32 %v2378, 7
      %v2380 = vsub.s32 %v2377, %v2379
      %v2381 = vrot.slane %v2373, %v2380
      %v2383 = vunpack.c.l.s4 1934713408
      %v2384 = vunpack.c.0.s8 %v2383
      %v2385 = vlaneseq
      %v2386 = vshrl.u32 %v2385, 7
      %v2387 = vsub.s32 %v2384, %v2386
      %v2388 = vrot.slane %v2374, %v2387
      %v2389 = vcombine.low %v2364, %v2372
      %v2390 = vcombine.high %v2364, %v2372
      %v2392 = vunpack.c.l.s4 1934713408
      %v2393 = vunpack.c.0.s8 %v2392
      %v2394 = vlaneseq
      %v2395 = vshrl.u32 %v2394, 7
      %v2396 = vsub.s32 %v2393, %v2395
      %v2397 = vrot.slane %v2389, %v2396
      %v2399 = vunpack.c.l.s4 1934713408
      %v2400 = vunpack.c.0.s8 %v2399
      %v2401 = vlaneseq
      %v2402 = vshrl.u32 %v2401, 7
      %v2403 = vsub.s32 %v2400, %v2402
      %v2404 = vrot.slane %v2390, %v2403
      %v2405 = vcombine.low %v2381, %v2397
      %v2406 = vcombine.high %v2381, %v2397
      %v2407 = vcombine.low %v2388, %v2404
      %v2408 = vcombine.high %v2388, %v2404
      %v2409 = vcombine.low %v2177, %v2184
      %v2411 = vunpack.c.l.s4 1983009808
      %v2412 = vunpack.c.0.s8 %v2411
      %v2413 = vlaneseq
      %v2414 = vshrl.u32 %v2413, 7
      %v2415 = vsub.s32 %v2412, %v2414
      %v2416 = vrot.slane %v2409, %v2415
      %v2417 = vcombine.low %v2201, %v2202
      %v2419 = vunpack.c.l.s4 1983009808
      %v2420 = vunpack.c.0.s8 %v2419
      %v2421 = vlaneseq
      %v2422 = vshrl.u32 %v2421, 7
      %v2423 = vsub.s32 %v2420, %v2422
      %v2424 = vrot.slane %v2417, %v2423
      %v2425 = vcombine.low %v2193, %v2200
      %v2427 = vunpack.c.l.s4 1983009808
      %v2428 = vunpack.c.0.s8 %v2427
      %v2429 = vlaneseq
      %v2430 = vshrl.u32 %v2429, 7
      %v2431 = vsub.s32 %v2428, %v2430
      %v2432 = vrot.slane %v2425, %v2431
      %v2433 = vcombine.low %v2203, %v2204
      %v2435 = vunpack.c.l.s4 1983009808
      %v2436 = vunpack.c.0.s8 %v2435
      %v2437 = vlaneseq
      %v2438 = vshrl.u32 %v2437, 7
      %v2439 = vsub.s32 %v2436, %v2438
      %v2440 = vrot.slane %v2433, %v2439
      %v2441 = vcombine.low %v2416, %v2424
      %v2442 = vcombine.high %v2416, %v2424
      %v2444 = vunpack.c.l.s4 1934713408
      %v2445 = vunpack.c.0.s8 %v2444
      %v2446 = vlaneseq
      %v2447 = vshrl.u32 %v2446, 7
      %v2448 = vsub.s32 %v2445, %v2447
      %v2449 = vrot.slane %v2441, %v2448
      %v2451 = vunpack.c.l.s4 1934713408
      %v2452 = vunpack.c.0.s8 %v2451
      %v2453 = vlaneseq
      %v2454 = vshrl.u32 %v2453, 7
      %v2455 = vsub.s32 %v2452, %v2454
      %v2456 = vrot.slane %v2442, %v2455
      %v2457 = vcombine.low %v2432, %v2440
      %v2458 = vcombine.high %v2432, %v2440
      %v2460 = vunpack.c.l.s4 1934713408
      %v2461 = vunpack.c.0.s8 %v2460
      %v2462 = vlaneseq
      %v2463 = vshrl.u32 %v2462, 7
      %v2464 = vsub.s32 %v2461, %v2463
      %v2465 = vrot.slane %v2457, %v2464
      %v2467 = vunpack.c.l.s4 1934713408
      %v2468 = vunpack.c.0.s8 %v2467
      %v2469 = vlaneseq
      %v2470 = vshrl.u32 %v2469, 7
      %v2471 = vsub.s32 %v2468, %v2470
      %v2472 = vrot.slane %v2458, %v2471
      %v2473 = vcombine.low %v2449, %v2465
      %v2474 = vcombine.high %v2449, %v2465
      %v2475 = vcombine.low %v2456, %v2472
      %v2476 = vcombine.high %v2456, %v2472
      %2481 = vrot.lane.b32.xlu0 %v1291, 120
      %v2482 = vpop.permute.xlu0 %2481
      %2483 = vrot.lane.b32.xlu0 %v1296, 120
      %v2484 = vpop.permute.xlu0 %2483
      %2485 = vrot.lane.b32.xlu0 %v1301, 120
      %v2486 = vpop.permute.xlu0 %2485
      %2487 = vrot.lane.b32.xlu0 %v1306, 120
      %v2488 = vpop.permute.xlu0 %2487
      %2493 = vrot.lane.b32.xlu0 %v1291, 112
      %v2494 = vpop.permute.xlu0 %2493
      %2495 = vrot.lane.b32.xlu0 %v1296, 112
      %v2496 = vpop.permute.xlu0 %2495
      %2497 = vrot.lane.b32.xlu0 %v1301, 112
      %v2498 = vpop.permute.xlu0 %2497
      %2499 = vrot.lane.b32.xlu0 %v1306, 112
      %v2500 = vpop.permute.xlu0 %2499
      %2505 = vrot.lane.b32.xlu0 %v1291, 104
      %v2506 = vpop.permute.xlu0 %2505
      %2507 = vrot.lane.b32.xlu0 %v1296, 104
      %v2508 = vpop.permute.xlu0 %2507
      %2509 = vrot.lane.b32.xlu0 %v1301, 104
      %v2510 = vpop.permute.xlu0 %2509
      %2511 = vrot.lane.b32.xlu0 %v1306, 104
      %v2512 = vpop.permute.xlu0 %2511
      %v2517 = vcombine.low %v1291, %v2494
      %v2518 = vcombine.high %v1291, %v2494
      %v2520 = vunpack.c.l.s4 1983009808
      %v2521 = vunpack.c.0.s8 %v2520
      %v2522 = vlaneseq
      %v2523 = vshrl.u32 %v2522, 7
      %v2524 = vsub.s32 %v2521, %v2523
      %v2525 = vrot.slane %v2517, %v2524
      %v2527 = vunpack.c.l.s4 1983009808
      %v2528 = vunpack.c.0.s8 %v2527
      %v2529 = vlaneseq
      %v2530 = vshrl.u32 %v2529, 7
      %v2531 = vsub.s32 %v2528, %v2530
      %v2532 = vrot.slane %v2518, %v2531
      %v2533 = vcombine.low %v2482, %v2506
      %v2534 = vcombine.high %v2482, %v2506
      %v2536 = vunpack.c.l.s4 1983009808
      %v2537 = vunpack.c.0.s8 %v2536
      %v2538 = vlaneseq
      %v2539 = vshrl.u32 %v2538, 7
      %v2540 = vsub.s32 %v2537, %v2539
      %v2541 = vrot.slane %v2533, %v2540
      %v2543 = vunpack.c.l.s4 1983009808
      %v2544 = vunpack.c.0.s8 %v2543
      %v2545 = vlaneseq
      %v2546 = vshrl.u32 %v2545, 7
      %v2547 = vsub.s32 %v2544, %v2546
      %v2548 = vrot.slane %v2534, %v2547
      %v2549 = vcombine.low %v2525, %v2541
      %v2550 = vcombine.high %v2525, %v2541
      %v2552 = vunpack.c.l.s4 1934713408
      %v2553 = vunpack.c.0.s8 %v2552
      %v2554 = vlaneseq
      %v2555 = vshrl.u32 %v2554, 7
      %v2556 = vsub.s32 %v2553, %v2555
      %v2557 = vrot.slane %v2549, %v2556
      %v2559 = vunpack.c.l.s4 1934713408
      %v2560 = vunpack.c.0.s8 %v2559
      %v2561 = vlaneseq
      %v2562 = vshrl.u32 %v2561, 7
      %v2563 = vsub.s32 %v2560, %v2562
      %v2564 = vrot.slane %v2550, %v2563
      %v2565 = vcombine.low %v2532, %v2548
      %v2566 = vcombine.high %v2532, %v2548
      %v2568 = vunpack.c.l.s4 1934713408
      %v2569 = vunpack.c.0.s8 %v2568
      %v2570 = vlaneseq
      %v2571 = vshrl.u32 %v2570, 7
      %v2572 = vsub.s32 %v2569, %v2571
      %v2573 = vrot.slane %v2565, %v2572
      %v2575 = vunpack.c.l.s4 1934713408
      %v2576 = vunpack.c.0.s8 %v2575
      %v2577 = vlaneseq
      %v2578 = vshrl.u32 %v2577, 7
      %v2579 = vsub.s32 %v2576, %v2578
      %v2580 = vrot.slane %v2566, %v2579
      %v2581 = vcombine.high %v2557, 0.0
      %v2582 = vcombine.high %v2564, 0.0
      %v2583 = vcombine.high %v2573, 0.0
      %v2584 = vcombine.high %v2580, 0.0
      %v2585 = vcombine.low %v1296, %v2496
      %v2586 = vcombine.high %v1296, %v2496
      %v2588 = vunpack.c.l.s4 1983009808
      %v2589 = vunpack.c.0.s8 %v2588
      %v2590 = vlaneseq
      %v2591 = vshrl.u32 %v2590, 7
      %v2592 = vsub.s32 %v2589, %v2591
      %v2593 = vrot.slane %v2585, %v2592
      %v2595 = vunpack.c.l.s4 1983009808
      %v2596 = vunpack.c.0.s8 %v2595
      %v2597 = vlaneseq
      %v2598 = vshrl.u32 %v2597, 7
      %v2599 = vsub.s32 %v2596, %v2598
      %v2600 = vrot.slane %v2586, %v2599
      %v2601 = vcombine.low %v2484, %v2508
      %v2602 = vcombine.high %v2484, %v2508
      %v2604 = vunpack.c.l.s4 1983009808
      %v2605 = vunpack.c.0.s8 %v2604
      %v2606 = vlaneseq
      %v2607 = vshrl.u32 %v2606, 7
      %v2608 = vsub.s32 %v2605, %v2607
      %v2609 = vrot.slane %v2601, %v2608
      %v2611 = vunpack.c.l.s4 1983009808
      %v2612 = vunpack.c.0.s8 %v2611
      %v2613 = vlaneseq
      %v2614 = vshrl.u32 %v2613, 7
      %v2615 = vsub.s32 %v2612, %v2614
      %v2616 = vrot.slane %v2602, %v2615
      %v2617 = vcombine.low %v2593, %v2609
      %v2618 = vcombine.high %v2593, %v2609
      %v2620 = vunpack.c.l.s4 1934713408
      %v2621 = vunpack.c.0.s8 %v2620
      %v2622 = vlaneseq
      %v2623 = vshrl.u32 %v2622, 7
      %v2624 = vsub.s32 %v2621, %v2623
      %v2625 = vrot.slane %v2617, %v2624
      %v2627 = vunpack.c.l.s4 1934713408
      %v2628 = vunpack.c.0.s8 %v2627
      %v2629 = vlaneseq
      %v2630 = vshrl.u32 %v2629, 7
      %v2631 = vsub.s32 %v2628, %v2630
      %v2632 = vrot.slane %v2618, %v2631
      %v2633 = vcombine.low %v2600, %v2616
      %v2634 = vcombine.high %v2600, %v2616
      %v2636 = vunpack.c.l.s4 1934713408
      %v2637 = vunpack.c.0.s8 %v2636
      %v2638 = vlaneseq
      %v2639 = vshrl.u32 %v2638, 7
      %v2640 = vsub.s32 %v2637, %v2639
      %v2641 = vrot.slane %v2633, %v2640
      %v2643 = vunpack.c.l.s4 1934713408
      %v2644 = vunpack.c.0.s8 %v2643
      %v2645 = vlaneseq
      %v2646 = vshrl.u32 %v2645, 7
      %v2647 = vsub.s32 %v2644, %v2646
      %v2648 = vrot.slane %v2634, %v2647
      %v2649 = vcombine.high %v2625, 0.0
      %v2650 = vcombine.high %v2632, 0.0
      %v2651 = vcombine.high %v2641, 0.0
      %v2652 = vcombine.high %v2648, 0.0
      %v2653 = vcombine.low %v1301, %v2498
      %v2654 = vcombine.high %v1301, %v2498
      %v2656 = vunpack.c.l.s4 1983009808
      %v2657 = vunpack.c.0.s8 %v2656
      %v2658 = vlaneseq
      %v2659 = vshrl.u32 %v2658, 7
      %v2660 = vsub.s32 %v2657, %v2659
      %v2661 = vrot.slane %v2653, %v2660
      %v2663 = vunpack.c.l.s4 1983009808
      %v2664 = vunpack.c.0.s8 %v2663
      %v2665 = vlaneseq
      %v2666 = vshrl.u32 %v2665, 7
      %v2667 = vsub.s32 %v2664, %v2666
      %v2668 = vrot.slane %v2654, %v2667
      %v2669 = vcombine.low %v2486, %v2510
      %v2670 = vcombine.high %v2486, %v2510
      %v2672 = vunpack.c.l.s4 1983009808
      %v2673 = vunpack.c.0.s8 %v2672
      %v2674 = vlaneseq
      %v2675 = vshrl.u32 %v2674, 7
      %v2676 = vsub.s32 %v2673, %v2675
      %v2677 = vrot.slane %v2669, %v2676
      %v2679 = vunpack.c.l.s4 1983009808
      %v2680 = vunpack.c.0.s8 %v2679
      %v2681 = vlaneseq
      %v2682 = vshrl.u32 %v2681, 7
      %v2683 = vsub.s32 %v2680, %v2682
      %v2684 = vrot.slane %v2670, %v2683
      %v2685 = vcombine.low %v2661, %v2677
      %v2686 = vcombine.high %v2661, %v2677
      %v2688 = vunpack.c.l.s4 1934713408
      %v2689 = vunpack.c.0.s8 %v2688
      %v2690 = vlaneseq
      %v2691 = vshrl.u32 %v2690, 7
      %v2692 = vsub.s32 %v2689, %v2691
      %v2693 = vrot.slane %v2685, %v2692
      %v2695 = vunpack.c.l.s4 1934713408
      %v2696 = vunpack.c.0.s8 %v2695
      %v2697 = vlaneseq
      %v2698 = vshrl.u32 %v2697, 7
      %v2699 = vsub.s32 %v2696, %v2698
      %v2700 = vrot.slane %v2686, %v2699
      %v2701 = vcombine.low %v2668, %v2684
      %v2702 = vcombine.high %v2668, %v2684
      %v2704 = vunpack.c.l.s4 1934713408
      %v2705 = vunpack.c.0.s8 %v2704
      %v2706 = vlaneseq
      %v2707 = vshrl.u32 %v2706, 7
      %v2708 = vsub.s32 %v2705, %v2707
      %v2709 = vrot.slane %v2701, %v2708
      %v2711 = vunpack.c.l.s4 1934713408
      %v2712 = vunpack.c.0.s8 %v2711
      %v2713 = vlaneseq
      %v2714 = vshrl.u32 %v2713, 7
      %v2715 = vsub.s32 %v2712, %v2714
      %v2716 = vrot.slane %v2702, %v2715
      %v2717 = vcombine.high %v2693, 0.0
      %v2718 = vcombine.high %v2700, 0.0
      %v2719 = vcombine.high %v2709, 0.0
      %v2720 = vcombine.high %v2716, 0.0
      %v2721 = vcombine.low %v1306, %v2500
      %v2722 = vcombine.high %v1306, %v2500
      %v2724 = vunpack.c.l.s4 1983009808
      %v2725 = vunpack.c.0.s8 %v2724
      %v2726 = vlaneseq
      %v2727 = vshrl.u32 %v2726, 7
      %v2728 = vsub.s32 %v2725, %v2727
      %v2729 = vrot.slane %v2721, %v2728
      %v2731 = vunpack.c.l.s4 1983009808
      %v2732 = vunpack.c.0.s8 %v2731
      %v2733 = vlaneseq
      %v2734 = vshrl.u32 %v2733, 7
      %v2735 = vsub.s32 %v2732, %v2734
      %v2736 = vrot.slane %v2722, %v2735
      %v2737 = vcombine.low %v2488, %v2512
      %v2738 = vcombine.high %v2488, %v2512
      %v2740 = vunpack.c.l.s4 1983009808
      %v2741 = vunpack.c.0.s8 %v2740
      %v2742 = vlaneseq
      %v2743 = vshrl.u32 %v2742, 7
      %v2744 = vsub.s32 %v2741, %v2743
      %v2745 = vrot.slane %v2737, %v2744
      %v2747 = vunpack.c.l.s4 1983009808
      %v2748 = vunpack.c.0.s8 %v2747
      %v2749 = vlaneseq
      %v2750 = vshrl.u32 %v2749, 7
      %v2751 = vsub.s32 %v2748, %v2750
      %v2752 = vrot.slane %v2738, %v2751
      %v2753 = vcombine.low %v2729, %v2745
      %v2754 = vcombine.high %v2729, %v2745
      %v2756 = vunpack.c.l.s4 1934713408
      %v2757 = vunpack.c.0.s8 %v2756
      %v2758 = vlaneseq
      %v2759 = vshrl.u32 %v2758, 7
      %v2760 = vsub.s32 %v2757, %v2759
      %v2761 = vrot.slane %v2753, %v2760
      %v2763 = vunpack.c.l.s4 1934713408
      %v2764 = vunpack.c.0.s8 %v2763
      %v2765 = vlaneseq
      %v2766 = vshrl.u32 %v2765, 7
      %v2767 = vsub.s32 %v2764, %v2766
      %v2768 = vrot.slane %v2754, %v2767
      %v2769 = vcombine.low %v2736, %v2752
      %v2770 = vcombine.high %v2736, %v2752
      %v2772 = vunpack.c.l.s4 1934713408
      %v2773 = vunpack.c.0.s8 %v2772
      %v2774 = vlaneseq
      %v2775 = vshrl.u32 %v2774, 7
      %v2776 = vsub.s32 %v2773, %v2775
      %v2777 = vrot.slane %v2769, %v2776
      %v2779 = vunpack.c.l.s4 1934713408
      %v2780 = vunpack.c.0.s8 %v2779
      %v2781 = vlaneseq
      %v2782 = vshrl.u32 %v2781, 7
      %v2783 = vsub.s32 %v2780, %v2782
      %v2784 = vrot.slane %v2770, %v2783
      %v2785 = vcombine.high %v2761, 0.0
      %v2786 = vcombine.high %v2768, 0.0
      %v2787 = vcombine.high %v2777, 0.0
      %v2788 = vcombine.high %v2784, 0.0
      %v2789 = vcombine.low %v2557, %v2564
      %v2791 = vunpack.c.l.s4 1983009808
      %v2792 = vunpack.c.0.s8 %v2791
      %v2793 = vlaneseq
      %v2794 = vshrl.u32 %v2793, 7
      %v2795 = vsub.s32 %v2792, %v2794
      %v2796 = vrot.slane %v2789, %v2795
      %v2797 = vcombine.low %v2581, %v2582
      %v2799 = vunpack.c.l.s4 1983009808
      %v2800 = vunpack.c.0.s8 %v2799
      %v2801 = vlaneseq
      %v2802 = vshrl.u32 %v2801, 7
      %v2803 = vsub.s32 %v2800, %v2802
      %v2804 = vrot.slane %v2797, %v2803
      %v2805 = vcombine.low %v2573, %v2580
      %v2807 = vunpack.c.l.s4 1983009808
      %v2808 = vunpack.c.0.s8 %v2807
      %v2809 = vlaneseq
      %v2810 = vshrl.u32 %v2809, 7
      %v2811 = vsub.s32 %v2808, %v2810
      %v2812 = vrot.slane %v2805, %v2811
      %v2813 = vcombine.low %v2583, %v2584
      %v2815 = vunpack.c.l.s4 1983009808
      %v2816 = vunpack.c.0.s8 %v2815
      %v2817 = vlaneseq
      %v2818 = vshrl.u32 %v2817, 7
      %v2819 = vsub.s32 %v2816, %v2818
      %v2820 = vrot.slane %v2813, %v2819
      %v2821 = vcombine.low %v2796, %v2804
      %v2822 = vcombine.high %v2796, %v2804
      %v2824 = vunpack.c.l.s4 1934713408
      %v2825 = vunpack.c.0.s8 %v2824
      %v2826 = vlaneseq
      %v2827 = vshrl.u32 %v2826, 7
      %v2828 = vsub.s32 %v2825, %v2827
      %v2829 = vrot.slane %v2821, %v2828
      %v2831 = vunpack.c.l.s4 1934713408
      %v2832 = vunpack.c.0.s8 %v2831
      %v2833 = vlaneseq
      %v2834 = vshrl.u32 %v2833, 7
      %v2835 = vsub.s32 %v2832, %v2834
      %v2836 = vrot.slane %v2822, %v2835
      %v2837 = vcombine.low %v2812, %v2820
      %v2838 = vcombine.high %v2812, %v2820
      %v2840 = vunpack.c.l.s4 1934713408
      %v2841 = vunpack.c.0.s8 %v2840
      %v2842 = vlaneseq
      %v2843 = vshrl.u32 %v2842, 7
      %v2844 = vsub.s32 %v2841, %v2843
      %v2845 = vrot.slane %v2837, %v2844
      %v2847 = vunpack.c.l.s4 1934713408
      %v2848 = vunpack.c.0.s8 %v2847
      %v2849 = vlaneseq
      %v2850 = vshrl.u32 %v2849, 7
      %v2851 = vsub.s32 %v2848, %v2850
      %v2852 = vrot.slane %v2838, %v2851
      %v2853 = vcombine.low %v2829, %v2845
      %v2854 = vcombine.high %v2829, %v2845
      %v2855 = vcombine.low %v2836, %v2852
      %v2856 = vcombine.high %v2836, %v2852
      %v2857 = vcombine.low %v2625, %v2632
      %v2859 = vunpack.c.l.s4 1983009808
      %v2860 = vunpack.c.0.s8 %v2859
      %v2861 = vlaneseq
      %v2862 = vshrl.u32 %v2861, 7
      %v2863 = vsub.s32 %v2860, %v2862
      %v2864 = vrot.slane %v2857, %v2863
      %v2865 = vcombine.low %v2649, %v2650
      %v2867 = vunpack.c.l.s4 1983009808
      %v2868 = vunpack.c.0.s8 %v2867
      %v2869 = vlaneseq
      %v2870 = vshrl.u32 %v2869, 7
      %v2871 = vsub.s32 %v2868, %v2870
      %v2872 = vrot.slane %v2865, %v2871
      %v2873 = vcombine.low %v2641, %v2648
      %v2875 = vunpack.c.l.s4 1983009808
      %v2876 = vunpack.c.0.s8 %v2875
      %v2877 = vlaneseq
      %v2878 = vshrl.u32 %v2877, 7
      %v2879 = vsub.s32 %v2876, %v2878
      %v2880 = vrot.slane %v2873, %v2879
      %v2881 = vcombine.low %v2651, %v2652
      %v2883 = vunpack.c.l.s4 1983009808
      %v2884 = vunpack.c.0.s8 %v2883
      %v2885 = vlaneseq
      %v2886 = vshrl.u32 %v2885, 7
      %v2887 = vsub.s32 %v2884, %v2886
      %v2888 = vrot.slane %v2881, %v2887
      %v2889 = vcombine.low %v2864, %v2872
      %v2890 = vcombine.high %v2864, %v2872
      %v2892 = vunpack.c.l.s4 1934713408
      %v2893 = vunpack.c.0.s8 %v2892
      %v2894 = vlaneseq
      %v2895 = vshrl.u32 %v2894, 7
      %v2896 = vsub.s32 %v2893, %v2895
      %v2897 = vrot.slane %v2889, %v2896
      %v2899 = vunpack.c.l.s4 1934713408
      %v2900 = vunpack.c.0.s8 %v2899
      %v2901 = vlaneseq
      %v2902 = vshrl.u32 %v2901, 7
      %v2903 = vsub.s32 %v2900, %v2902
      %v2904 = vrot.slane %v2890, %v2903
      %v2905 = vcombine.low %v2880, %v2888
      %v2906 = vcombine.high %v2880, %v2888
      %v2908 = vunpack.c.l.s4 1934713408
      %v2909 = vunpack.c.0.s8 %v2908
      %v2910 = vlaneseq
      %v2911 = vshrl.u32 %v2910, 7
      %v2912 = vsub.s32 %v2909, %v2911
      %v2913 = vrot.slane %v2905, %v2912
      %v2915 = vunpack.c.l.s4 1934713408
      %v2916 = vunpack.c.0.s8 %v2915
      %v2917 = vlaneseq
      %v2918 = vshrl.u32 %v2917, 7
      %v2919 = vsub.s32 %v2916, %v2918
      %v2920 = vrot.slane %v2906, %v2919
      %v2921 = vcombine.low %v2897, %v2913
      %v2922 = vcombine.high %v2897, %v2913
      %v2923 = vcombine.low %v2904, %v2920
      %v2924 = vcombine.high %v2904, %v2920
      %v2925 = vcombine.low %v2693, %v2700
      %v2927 = vunpack.c.l.s4 1983009808
      %v2928 = vunpack.c.0.s8 %v2927
      %v2929 = vlaneseq
      %v2930 = vshrl.u32 %v2929, 7
      %v2931 = vsub.s32 %v2928, %v2930
      %v2932 = vrot.slane %v2925, %v2931
      %v2933 = vcombine.low %v2717, %v2718
      %v2935 = vunpack.c.l.s4 1983009808
      %v2936 = vunpack.c.0.s8 %v2935
      %v2937 = vlaneseq
      %v2938 = vshrl.u32 %v2937, 7
      %v2939 = vsub.s32 %v2936, %v2938
      %v2940 = vrot.slane %v2933, %v2939
      %v2941 = vcombine.low %v2709, %v2716
      %v2943 = vunpack.c.l.s4 1983009808
      %v2944 = vunpack.c.0.s8 %v2943
      %v2945 = vlaneseq
      %v2946 = vshrl.u32 %v2945, 7
      %v2947 = vsub.s32 %v2944, %v2946
      %v2948 = vrot.slane %v2941, %v2947
      %v2949 = vcombine.low %v2719, %v2720
      %v2951 = vunpack.c.l.s4 1983009808
      %v2952 = vunpack.c.0.s8 %v2951
      %v2953 = vlaneseq
      %v2954 = vshrl.u32 %v2953, 7
      %v2955 = vsub.s32 %v2952, %v2954
      %v2956 = vrot.slane %v2949, %v2955
      %v2957 = vcombine.low %v2932, %v2940
      %v2958 = vcombine.high %v2932, %v2940
      %v2960 = vunpack.c.l.s4 1934713408
      %v2961 = vunpack.c.0.s8 %v2960
      %v2962 = vlaneseq
      %v2963 = vshrl.u32 %v2962, 7
      %v2964 = vsub.s32 %v2961, %v2963
      %v2965 = vrot.slane %v2957, %v2964
      %v2967 = vunpack.c.l.s4 1934713408
      %v2968 = vunpack.c.0.s8 %v2967
      %v2969 = vlaneseq
      %v2970 = vshrl.u32 %v2969, 7
      %v2971 = vsub.s32 %v2968, %v2970
      %v2972 = vrot.slane %v2958, %v2971
      %v2973 = vcombine.low %v2948, %v2956
      %v2974 = vcombine.high %v2948, %v2956
      %v2976 = vunpack.c.l.s4 1934713408
      %v2977 = vunpack.c.0.s8 %v2976
      %v2978 = vlaneseq
      %v2979 = vshrl.u32 %v2978, 7
      %v2980 = vsub.s32 %v2977, %v2979
      %v2981 = vrot.slane %v2973, %v2980
      %v2983 = vunpack.c.l.s4 1934713408
      %v2984 = vunpack.c.0.s8 %v2983
      %v2985 = vlaneseq
      %v2986 = vshrl.u32 %v2985, 7
      %v2987 = vsub.s32 %v2984, %v2986
      %v2988 = vrot.slane %v2974, %v2987
      %v2989 = vcombine.low %v2965, %v2981
      %v2990 = vcombine.high %v2965, %v2981
      %v2991 = vcombine.low %v2972, %v2988
      %v2992 = vcombine.high %v2972, %v2988
      %v2993 = vcombine.low %v2761, %v2768
      %v2995 = vunpack.c.l.s4 1983009808
      %v2996 = vunpack.c.0.s8 %v2995
      %v2997 = vlaneseq
      %v2998 = vshrl.u32 %v2997, 7
      %v2999 = vsub.s32 %v2996, %v2998
      %v3000 = vrot.slane %v2993, %v2999
      %v3001 = vcombine.low %v2785, %v2786
      %v3003 = vunpack.c.l.s4 1983009808
      %v3004 = vunpack.c.0.s8 %v3003
      %v3005 = vlaneseq
      %v3006 = vshrl.u32 %v3005, 7
      %v3007 = vsub.s32 %v3004, %v3006
      %v3008 = vrot.slane %v3001, %v3007
      %v3009 = vcombine.low %v2777, %v2784
      %v3011 = vunpack.c.l.s4 1983009808
      %v3012 = vunpack.c.0.s8 %v3011
      %v3013 = vlaneseq
      %v3014 = vshrl.u32 %v3013, 7
      %v3015 = vsub.s32 %v3012, %v3014
      %v3016 = vrot.slane %v3009, %v3015
      %v3017 = vcombine.low %v2787, %v2788
      %v3019 = vunpack.c.l.s4 1983009808
      %v3020 = vunpack.c.0.s8 %v3019
      %v3021 = vlaneseq
      %v3022 = vshrl.u32 %v3021, 7
      %v3023 = vsub.s32 %v3020, %v3022
      %v3024 = vrot.slane %v3017, %v3023
      %v3025 = vcombine.low %v3000, %v3008
      %v3026 = vcombine.high %v3000, %v3008
      %v3028 = vunpack.c.l.s4 1934713408
      %v3029 = vunpack.c.0.s8 %v3028
      %v3030 = vlaneseq
      %v3031 = vshrl.u32 %v3030, 7
      %v3032 = vsub.s32 %v3029, %v3031
      %v3033 = vrot.slane %v3025, %v3032
      %v3035 = vunpack.c.l.s4 1934713408
      %v3036 = vunpack.c.0.s8 %v3035
      %v3037 = vlaneseq
      %v3038 = vshrl.u32 %v3037, 7
      %v3039 = vsub.s32 %v3036, %v3038
      %v3040 = vrot.slane %v3026, %v3039
      %v3041 = vcombine.low %v3016, %v3024
      %v3042 = vcombine.high %v3016, %v3024
      %v3044 = vunpack.c.l.s4 1934713408
      %v3045 = vunpack.c.0.s8 %v3044
      %v3046 = vlaneseq
      %v3047 = vshrl.u32 %v3046, 7
      %v3048 = vsub.s32 %v3045, %v3047
      %v3049 = vrot.slane %v3041, %v3048
      %v3051 = vunpack.c.l.s4 1934713408
      %v3052 = vunpack.c.0.s8 %v3051
      %v3053 = vlaneseq
      %v3054 = vshrl.u32 %v3053, 7
      %v3055 = vsub.s32 %v3052, %v3054
      %v3056 = vrot.slane %v3042, %v3055
      %v3057 = vcombine.low %v3033, %v3049
      %v3058 = vcombine.high %v3033, %v3049
      %v3059 = vcombine.low %v3040, %v3056
      %v3060 = vcombine.high %v3040, %v3056
      %vm3061 = vcmask 64512
      %v3063 = vsel %vm3061, %v1685, 0
      %v3066 = vsel %vm3061, %v2269, 0
      %3068 = vmatprep.subr.mxu0 0.0
      %3069 = vmatpush1.xpose.msra.mxu0 0.0
      %3070 = vmatprep.subr.mxu0 0.0
      %3071 = vmatpush1.xpose.msra.mxu0 0.0
      %3072 = vmatprep.subr.mxu0 0.0
      %3073 = vmatpush1.xpose.msra.mxu0 0.0
      %3074 = vmatprep.subr.mxu0 0.0
      %3075 = vmatpush1.xpose.msra.mxu0 0.0
      %3076 = vmatprep.subr.mxu0 0.0
      %3077 = vmatpush1.xpose.msra.mxu0 0.0
      %3078 = vmatprep.subr.mxu0 0.0
      %3079 = vmatpush1.xpose.msra.mxu0 0.0
      %3080 = vmatprep.subr.mxu0 0.0
      %3081 = vmatpush1.xpose.msra.mxu0 0.0
      %3082 = vmatprep.subr.mxu0 0.0
      %3083 = vmatpush1.xpose.msra.mxu0 0.0
      %3084 = vmatprep.subr.mxu0 0.0
      %3085 = vmatpush1.xpose.msra.mxu0 0.0
      %3086 = vmatprep.subr.mxu0 0.0
      %3087 = vmatpush1.xpose.msra.mxu0 0.0
      %3088 = vmatprep.subr.mxu0 0.0
      %3089 = vmatpush1.xpose.msra.mxu0 0.0
      %3090 = vmatprep.subr.mxu0 0.0
      %3091 = vmatpush1.xpose.msra.mxu0 0.0
      %3092 = vmatprep.subr.mxu0 0.0
      %3093 = vmatpush1.xpose.msra.mxu0 0.0
      %3094 = vmatprep.subr.mxu0 0.0
      %3095 = vmatpush1.xpose.msra.mxu0 0.0
      %3096 = vmatprep.subr.mxu0 0.0
      %3097 = vmatpush1.xpose.msra.mxu0 0.0
      %3098 = vmatprep.subr.mxu0 0.0
      %3099 = vmatpush1.xpose.msra.mxu0 %v3066
      %3100 = vmatprep.subr.mxu0 0.0
      %3101 = vmatpush2.xpose.msra.mxu0 0.0
      %3102 = vmatprep.subr.mxu0 0.0
      %3103 = vmatpush2.xpose.msra.mxu0 0.0
      %3104 = vmatprep.subr.mxu0 0.0
      %3105 = vmatpush2.xpose.msra.mxu0 0.0
      %3106 = vmatprep.subr.mxu0 0.0
      %3107 = vmatpush2.xpose.msra.mxu0 0.0
      %3108 = vmatprep.subr.mxu0 0.0
      %3109 = vmatpush2.xpose.msra.mxu0 0.0
      %3110 = vmatprep.subr.mxu0 0.0
      %3111 = vmatpush2.xpose.msra.mxu0 0.0
      %3112 = vmatprep.subr.mxu0 0.0
      %3113 = vmatpush2.xpose.msra.mxu0 0.0
      %3114 = vmatprep.subr.mxu0 0.0
      %3115 = vmatpush2.xpose.msra.mxu0 0.0
      %3116 = vmatprep.subr.mxu0 0.0
      %3117 = vmatpush2.xpose.msra.mxu0 0.0
      %3118 = vmatprep.subr.mxu0 0.0
      %3119 = vmatpush2.xpose.msra.mxu0 0.0
      %3120 = vmatprep.subr.mxu0 0.0
      %3121 = vmatpush2.xpose.msra.mxu0 0.0
      %3122 = vmatprep.subr.mxu0 0.0
      %3123 = vmatpush2.xpose.msra.mxu0 0.0
      %3124 = vmatprep.subr.mxu0 0.0
      %3125 = vmatpush2.xpose.msra.mxu0 0.0
      %3126 = vmatprep.subr.mxu0 0.0
      %3127 = vmatpush2.xpose.msra.mxu0 0.0
      %3128 = vmatprep.subr.mxu0 0.0
      %3129 = vmatpush2.xpose.msra.mxu0 0.0
      %3130 = vmatprep.subr.mxu0 0.0
      %3131 = vmatpush2.xpose.msra.mxu0 0.0
      %3132 = vmatprep.mubr.f32.mxu0 0.0
      %3133 = vmatmul.mubr.f32.gmra.mxu0 %v3063
      %v3134 = vpop.f32.mrf.mxu0
      %v3135 = vadd.f32 0.0, %v3134
      %v3136 = vpop.f32.mrf.mxu0
      %3137 = vdwg.mxu0
      %v3139 = vsel %vm3061, %v1686, 0
      %v3142 = vsel %vm3061, %v2270, 0
      %3144 = vmatprep.subr.mxu0 0.0
      %3145 = vmatpush1.xpose.msra.mxu0 0.0
      %3146 = vmatprep.subr.mxu0 0.0
      %3147 = vmatpush1.xpose.msra.mxu0 0.0
      %3148 = vmatprep.subr.mxu0 0.0
      %3149 = vmatpush1.xpose.msra.mxu0 0.0
      %3150 = vmatprep.subr.mxu0 0.0
      %3151 = vmatpush1.xpose.msra.mxu0 0.0
      %3152 = vmatprep.subr.mxu0 0.0
      %3153 = vmatpush1.xpose.msra.mxu0 0.0
      %3154 = vmatprep.subr.mxu0 0.0
      %3155 = vmatpush1.xpose.msra.mxu0 0.0
      %3156 = vmatprep.subr.mxu0 0.0
      %3157 = vmatpush1.xpose.msra.mxu0 0.0
      %3158 = vmatprep.subr.mxu0 0.0
      %3159 = vmatpush1.xpose.msra.mxu0 0.0
      %3160 = vmatprep.subr.mxu0 0.0
      %3161 = vmatpush1.xpose.msra.mxu0 0.0
      %3162 = vmatprep.subr.mxu0 0.0
      %3163 = vmatpush1.xpose.msra.mxu0 0.0
      %3164 = vmatprep.subr.mxu0 0.0
      %3165 = vmatpush1.xpose.msra.mxu0 0.0
      %3166 = vmatprep.subr.mxu0 0.0
      %3167 = vmatpush1.xpose.msra.mxu0 0.0
      %3168 = vmatprep.subr.mxu0 0.0
      %3169 = vmatpush1.xpose.msra.mxu0 0.0
      %3170 = vmatprep.subr.mxu0 0.0
      %3171 = vmatpush1.xpose.msra.mxu0 0.0
      %3172 = vmatprep.subr.mxu0 0.0
      %3173 = vmatpush1.xpose.msra.mxu0 0.0
      %3174 = vmatprep.subr.mxu0 0.0
      %3175 = vmatpush1.xpose.msra.mxu0 %v3142
      %3176 = vmatprep.subr.mxu0 0.0
      %3177 = vmatpush2.xpose.msra.mxu0 0.0
      %3178 = vmatprep.subr.mxu0 0.0
      %3179 = vmatpush2.xpose.msra.mxu0 0.0
      %3180 = vmatprep.subr.mxu0 0.0
      %3181 = vmatpush2.xpose.msra.mxu0 0.0
      %3182 = vmatprep.subr.mxu0 0.0
      %3183 = vmatpush2.xpose.msra.mxu0 0.0
      %3184 = vmatprep.subr.mxu0 0.0
      %3185 = vmatpush2.xpose.msra.mxu0 0.0
      %3186 = vmatprep.subr.mxu0 0.0
      %3187 = vmatpush2.xpose.msra.mxu0 0.0
      %3188 = vmatprep.subr.mxu0 0.0
      %3189 = vmatpush2.xpose.msra.mxu0 0.0
      %3190 = vmatprep.subr.mxu0 0.0
      %3191 = vmatpush2.xpose.msra.mxu0 0.0
      %3192 = vmatprep.subr.mxu0 0.0
      %3193 = vmatpush2.xpose.msra.mxu0 0.0
      %3194 = vmatprep.subr.mxu0 0.0
      %3195 = vmatpush2.xpose.msra.mxu0 0.0
      %3196 = vmatprep.subr.mxu0 0.0
      %3197 = vmatpush2.xpose.msra.mxu0 0.0
      %3198 = vmatprep.subr.mxu0 0.0
      %3199 = vmatpush2.xpose.msra.mxu0 0.0
      %3200 = vmatprep.subr.mxu0 0.0
      %3201 = vmatpush2.xpose.msra.mxu0 0.0
      %3202 = vmatprep.subr.mxu0 0.0
      %3203 = vmatpush2.xpose.msra.mxu0 0.0
      %3204 = vmatprep.subr.mxu0 0.0
      %3205 = vmatpush2.xpose.msra.mxu0 0.0
      %3206 = vmatprep.subr.mxu0 0.0
      %3207 = vmatpush2.xpose.msra.mxu0 0.0
      %3208 = vmatprep.mubr.f32.mxu0 0.0
      %3209 = vmatmul.mubr.f32.gmra.mxu0 %v3139
      %v3210 = vpop.f32.mrf.mxu0
      %v3211 = vadd.f32 0.0, %v3210
      %v3212 = vpop.f32.mrf.mxu0
      %3213 = vdwg.mxu0
      %v3215 = vsel %vm3061, %v1687, 0
      %v3218 = vsel %vm3061, %v2271, 0
      %3220 = vmatprep.subr.mxu0 0.0
      %3221 = vmatpush1.xpose.msra.mxu0 0.0
      %3222 = vmatprep.subr.mxu0 0.0
      %3223 = vmatpush1.xpose.msra.mxu0 0.0
      %3224 = vmatprep.subr.mxu0 0.0
      %3225 = vmatpush1.xpose.msra.mxu0 0.0
      %3226 = vmatprep.subr.mxu0 0.0
      %3227 = vmatpush1.xpose.msra.mxu0 0.0
      %3228 = vmatprep.subr.mxu0 0.0
      %3229 = vmatpush1.xpose.msra.mxu0 0.0
      %3230 = vmatprep.subr.mxu0 0.0
      %3231 = vmatpush1.xpose.msra.mxu0 0.0
      %3232 = vmatprep.subr.mxu0 0.0
      %3233 = vmatpush1.xpose.msra.mxu0 0.0
      %3234 = vmatprep.subr.mxu0 0.0
      %3235 = vmatpush1.xpose.msra.mxu0 0.0
      %3236 = vmatprep.subr.mxu0 0.0
      %3237 = vmatpush1.xpose.msra.mxu0 0.0
      %3238 = vmatprep.subr.mxu0 0.0
      %3239 = vmatpush1.xpose.msra.mxu0 0.0
      %3240 = vmatprep.subr.mxu0 0.0
      %3241 = vmatpush1.xpose.msra.mxu0 0.0
      %3242 = vmatprep.subr.mxu0 0.0
      %3243 = vmatpush1.xpose.msra.mxu0 0.0
      %3244 = vmatprep.subr.mxu0 0.0
      %3245 = vmatpush1.xpose.msra.mxu0 0.0
      %3246 = vmatprep.subr.mxu0 0.0
      %3247 = vmatpush1.xpose.msra.mxu0 0.0
      %3248 = vmatprep.subr.mxu0 0.0
      %3249 = vmatpush1.xpose.msra.mxu0 0.0
      %3250 = vmatprep.subr.mxu0 0.0
      %3251 = vmatpush1.xpose.msra.mxu0 %v3218
      %3252 = vmatprep.subr.mxu0 0.0
      %3253 = vmatpush2.xpose.msra.mxu0 0.0
      %3254 = vmatprep.subr.mxu0 0.0
      %3255 = vmatpush2.xpose.msra.mxu0 0.0
      %3256 = vmatprep.subr.mxu0 0.0
      %3257 = vmatpush2.xpose.msra.mxu0 0.0
      %3258 = vmatprep.subr.mxu0 0.0
      %3259 = vmatpush2.xpose.msra.mxu0 0.0
      %3260 = vmatprep.subr.mxu0 0.0
      %3261 = vmatpush2.xpose.msra.mxu0 0.0
      %3262 = vmatprep.subr.mxu0 0.0
      %3263 = vmatpush2.xpose.msra.mxu0 0.0
      %3264 = vmatprep.subr.mxu0 0.0
      %3265 = vmatpush2.xpose.msra.mxu0 0.0
      %3266 = vmatprep.subr.mxu0 0.0
      %3267 = vmatpush2.xpose.msra.mxu0 0.0
      %3268 = vmatprep.subr.mxu0 0.0
      %3269 = vmatpush2.xpose.msra.mxu0 0.0
      %3270 = vmatprep.subr.mxu0 0.0
      %3271 = vmatpush2.xpose.msra.mxu0 0.0
      %3272 = vmatprep.subr.mxu0 0.0
      %3273 = vmatpush2.xpose.msra.mxu0 0.0
      %3274 = vmatprep.subr.mxu0 0.0
      %3275 = vmatpush2.xpose.msra.mxu0 0.0
      %3276 = vmatprep.subr.mxu0 0.0
      %3277 = vmatpush2.xpose.msra.mxu0 0.0
      %3278 = vmatprep.subr.mxu0 0.0
      %3279 = vmatpush2.xpose.msra.mxu0 0.0
      %3280 = vmatprep.subr.mxu0 0.0
      %3281 = vmatpush2.xpose.msra.mxu0 0.0
      %3282 = vmatprep.subr.mxu0 0.0
      %3283 = vmatpush2.xpose.msra.mxu0 0.0
      %3284 = vmatprep.mubr.f32.mxu0 0.0
      %3285 = vmatmul.mubr.f32.gmra.mxu0 %v3215
      %v3286 = vpop.f32.mrf.mxu0
      %v3287 = vadd.f32 0.0, %v3286
      %v3288 = vpop.f32.mrf.mxu0
      %3289 = vdwg.mxu0
      %v3291 = vsel %vm3061, %v1688, 0
      %v3294 = vsel %vm3061, %v2272, 0
      %3296 = vmatprep.subr.mxu0 0.0
      %3297 = vmatpush1.xpose.msra.mxu0 0.0
      %3298 = vmatprep.subr.mxu0 0.0
      %3299 = vmatpush1.xpose.msra.mxu0 0.0
      %3300 = vmatprep.subr.mxu0 0.0
      %3301 = vmatpush1.xpose.msra.mxu0 0.0
      %3302 = vmatprep.subr.mxu0 0.0
      %3303 = vmatpush1.xpose.msra.mxu0 0.0
      %3304 = vmatprep.subr.mxu0 0.0
      %3305 = vmatpush1.xpose.msra.mxu0 0.0
      %3306 = vmatprep.subr.mxu0 0.0
      %3307 = vmatpush1.xpose.msra.mxu0 0.0
      %3308 = vmatprep.subr.mxu0 0.0
      %3309 = vmatpush1.xpose.msra.mxu0 0.0
      %3310 = vmatprep.subr.mxu0 0.0
      %3311 = vmatpush1.xpose.msra.mxu0 0.0
      %3312 = vmatprep.subr.mxu0 0.0
      %3313 = vmatpush1.xpose.msra.mxu0 0.0
      %3314 = vmatprep.subr.mxu0 0.0
      %3315 = vmatpush1.xpose.msra.mxu0 0.0
      %3316 = vmatprep.subr.mxu0 0.0
      %3317 = vmatpush1.xpose.msra.mxu0 0.0
      %3318 = vmatprep.subr.mxu0 0.0
      %3319 = vmatpush1.xpose.msra.mxu0 0.0
      %3320 = vmatprep.subr.mxu0 0.0
      %3321 = vmatpush1.xpose.msra.mxu0 0.0
      %3322 = vmatprep.subr.mxu0 0.0
      %3323 = vmatpush1.xpose.msra.mxu0 0.0
      %3324 = vmatprep.subr.mxu0 0.0
      %3325 = vmatpush1.xpose.msra.mxu0 0.0
      %3326 = vmatprep.subr.mxu0 0.0
      %3327 = vmatpush1.xpose.msra.mxu0 %v3294
      %3328 = vmatprep.subr.mxu0 0.0
      %3329 = vmatpush2.xpose.msra.mxu0 0.0
      %3330 = vmatprep.subr.mxu0 0.0
      %3331 = vmatpush2.xpose.msra.mxu0 0.0
      %3332 = vmatprep.subr.mxu0 0.0
      %3333 = vmatpush2.xpose.msra.mxu0 0.0
      %3334 = vmatprep.subr.mxu0 0.0
      %3335 = vmatpush2.xpose.msra.mxu0 0.0
      %3336 = vmatprep.subr.mxu0 0.0
      %3337 = vmatpush2.xpose.msra.mxu0 0.0
      %3338 = vmatprep.subr.mxu0 0.0
      %3339 = vmatpush2.xpose.msra.mxu0 0.0
      %3340 = vmatprep.subr.mxu0 0.0
      %3341 = vmatpush2.xpose.msra.mxu0 0.0
      %3342 = vmatprep.subr.mxu0 0.0
      %3343 = vmatpush2.xpose.msra.mxu0 0.0
      %3344 = vmatprep.subr.mxu0 0.0
      %3345 = vmatpush2.xpose.msra.mxu0 0.0
      %3346 = vmatprep.subr.mxu0 0.0
      %3347 = vmatpush2.xpose.msra.mxu0 0.0
      %3348 = vmatprep.subr.mxu0 0.0
      %3349 = vmatpush2.xpose.msra.mxu0 0.0
      %3350 = vmatprep.subr.mxu0 0.0
      %3351 = vmatpush2.xpose.msra.mxu0 0.0
      %3352 = vmatprep.subr.mxu0 0.0
      %3353 = vmatpush2.xpose.msra.mxu0 0.0
      %3354 = vmatprep.subr.mxu0 0.0
      %3355 = vmatpush2.xpose.msra.mxu0 0.0
      %3356 = vmatprep.subr.mxu0 0.0
      %3357 = vmatpush2.xpose.msra.mxu0 0.0
      %3358 = vmatprep.subr.mxu0 0.0
      %3359 = vmatpush2.xpose.msra.mxu0 0.0
      %3360 = vmatprep.mubr.f32.mxu0 0.0
      %3361 = vmatmul.mubr.f32.gmra.mxu0 %v3291
      %v3362 = vpop.f32.mrf.mxu0
      %v3363 = vadd.f32 0.0, %v3362
      %v3364 = vpop.f32.mrf.mxu0
      %3365 = vdwg.mxu0
      %v3367 = vsel %vm3061, %v1753, 0
      %v3370 = vsel %vm3061, %v2337, 0
      %3372 = vmatprep.subr.mxu0 0.0
      %3373 = vmatpush1.xpose.msra.mxu0 0.0
      %3374 = vmatprep.subr.mxu0 0.0
      %3375 = vmatpush1.xpose.msra.mxu0 0.0
      %3376 = vmatprep.subr.mxu0 0.0
      %3377 = vmatpush1.xpose.msra.mxu0 0.0
      %3378 = vmatprep.subr.mxu0 0.0
      %3379 = vmatpush1.xpose.msra.mxu0 0.0
      %3380 = vmatprep.subr.mxu0 0.0
      %3381 = vmatpush1.xpose.msra.mxu0 0.0
      %3382 = vmatprep.subr.mxu0 0.0
      %3383 = vmatpush1.xpose.msra.mxu0 0.0
      %3384 = vmatprep.subr.mxu0 0.0
      %3385 = vmatpush1.xpose.msra.mxu0 0.0
      %3386 = vmatprep.subr.mxu0 0.0
      %3387 = vmatpush1.xpose.msra.mxu0 0.0
      %3388 = vmatprep.subr.mxu0 0.0
      %3389 = vmatpush1.xpose.msra.mxu0 0.0
      %3390 = vmatprep.subr.mxu0 0.0
      %3391 = vmatpush1.xpose.msra.mxu0 0.0
      %3392 = vmatprep.subr.mxu0 0.0
      %3393 = vmatpush1.xpose.msra.mxu0 0.0
      %3394 = vmatprep.subr.mxu0 0.0
      %3395 = vmatpush1.xpose.msra.mxu0 0.0
      %3396 = vmatprep.subr.mxu0 0.0
      %3397 = vmatpush1.xpose.msra.mxu0 0.0
      %3398 = vmatprep.subr.mxu0 0.0
      %3399 = vmatpush1.xpose.msra.mxu0 0.0
      %3400 = vmatprep.subr.mxu0 0.0
      %3401 = vmatpush1.xpose.msra.mxu0 0.0
      %3402 = vmatprep.subr.mxu0 0.0
      %3403 = vmatpush1.xpose.msra.mxu0 %v3370
      %3404 = vmatprep.subr.mxu0 0.0
      %3405 = vmatpush2.xpose.msra.mxu0 0.0
      %3406 = vmatprep.subr.mxu0 0.0
      %3407 = vmatpush2.xpose.msra.mxu0 0.0
      %3408 = vmatprep.subr.mxu0 0.0
      %3409 = vmatpush2.xpose.msra.mxu0 0.0
      %3410 = vmatprep.subr.mxu0 0.0
      %3411 = vmatpush2.xpose.msra.mxu0 0.0
      %3412 = vmatprep.subr.mxu0 0.0
      %3413 = vmatpush2.xpose.msra.mxu0 0.0
      %3414 = vmatprep.subr.mxu0 0.0
      %3415 = vmatpush2.xpose.msra.mxu0 0.0
      %3416 = vmatprep.subr.mxu0 0.0
      %3417 = vmatpush2.xpose.msra.mxu0 0.0
      %3418 = vmatprep.subr.mxu0 0.0
      %3419 = vmatpush2.xpose.msra.mxu0 0.0
      %3420 = vmatprep.subr.mxu0 0.0
      %3421 = vmatpush2.xpose.msra.mxu0 0.0
      %3422 = vmatprep.subr.mxu0 0.0
      %3423 = vmatpush2.xpose.msra.mxu0 0.0
      %3424 = vmatprep.subr.mxu0 0.0
      %3425 = vmatpush2.xpose.msra.mxu0 0.0
      %3426 = vmatprep.subr.mxu0 0.0
      %3427 = vmatpush2.xpose.msra.mxu0 0.0
      %3428 = vmatprep.subr.mxu0 0.0
      %3429 = vmatpush2.xpose.msra.mxu0 0.0
      %3430 = vmatprep.subr.mxu0 0.0
      %3431 = vmatpush2.xpose.msra.mxu0 0.0
      %3432 = vmatprep.subr.mxu0 0.0
      %3433 = vmatpush2.xpose.msra.mxu0 0.0
      %3434 = vmatprep.subr.mxu0 0.0
      %3435 = vmatpush2.xpose.msra.mxu0 0.0
      %3436 = vmatprep.mubr.f32.mxu0 0.0
      %3437 = vmatmul.mubr.f32.gmra.mxu0 %v3367
      %v3438 = vpop.f32.mrf.mxu0
      %v3439 = vadd.f32 0.0, %v3438
      %v3440 = vpop.f32.mrf.mxu0
      %3441 = vdwg.mxu0
      %v3443 = vsel %vm3061, %v1754, 0
      %v3446 = vsel %vm3061, %v2338, 0
      %3448 = vmatprep.subr.mxu0 0.0
      %3449 = vmatpush1.xpose.msra.mxu0 0.0
      %3450 = vmatprep.subr.mxu0 0.0
      %3451 = vmatpush1.xpose.msra.mxu0 0.0
      %3452 = vmatprep.subr.mxu0 0.0
      %3453 = vmatpush1.xpose.msra.mxu0 0.0
      %3454 = vmatprep.subr.mxu0 0.0
      %3455 = vmatpush1.xpose.msra.mxu0 0.0
      %3456 = vmatprep.subr.mxu0 0.0
      %3457 = vmatpush1.xpose.msra.mxu0 0.0
      %3458 = vmatprep.subr.mxu0 0.0
      %3459 = vmatpush1.xpose.msra.mxu0 0.0
      %3460 = vmatprep.subr.mxu0 0.0
      %3461 = vmatpush1.xpose.msra.mxu0 0.0
      %3462 = vmatprep.subr.mxu0 0.0
      %3463 = vmatpush1.xpose.msra.mxu0 0.0
      %3464 = vmatprep.subr.mxu0 0.0
      %3465 = vmatpush1.xpose.msra.mxu0 0.0
      %3466 = vmatprep.subr.mxu0 0.0
      %3467 = vmatpush1.xpose.msra.mxu0 0.0
      %3468 = vmatprep.subr.mxu0 0.0
      %3469 = vmatpush1.xpose.msra.mxu0 0.0
      %3470 = vmatprep.subr.mxu0 0.0
      %3471 = vmatpush1.xpose.msra.mxu0 0.0
      %3472 = vmatprep.subr.mxu0 0.0
      %3473 = vmatpush1.xpose.msra.mxu0 0.0
      %3474 = vmatprep.subr.mxu0 0.0
      %3475 = vmatpush1.xpose.msra.mxu0 0.0
      %3476 = vmatprep.subr.mxu0 0.0
      %3477 = vmatpush1.xpose.msra.mxu0 0.0
      %3478 = vmatprep.subr.mxu0 0.0
      %3479 = vmatpush1.xpose.msra.mxu0 %v3446
      %3480 = vmatprep.subr.mxu0 0.0
      %3481 = vmatpush2.xpose.msra.mxu0 0.0
      %3482 = vmatprep.subr.mxu0 0.0
      %3483 = vmatpush2.xpose.msra.mxu0 0.0
      %3484 = vmatprep.subr.mxu0 0.0
      %3485 = vmatpush2.xpose.msra.mxu0 0.0
      %3486 = vmatprep.subr.mxu0 0.0
      %3487 = vmatpush2.xpose.msra.mxu0 0.0
      %3488 = vmatprep.subr.mxu0 0.0
      %3489 = vmatpush2.xpose.msra.mxu0 0.0
      %3490 = vmatprep.subr.mxu0 0.0
      %3491 = vmatpush2.xpose.msra.mxu0 0.0
      %3492 = vmatprep.subr.mxu0 0.0
      %3493 = vmatpush2.xpose.msra.mxu0 0.0
      %3494 = vmatprep.subr.mxu0 0.0
      %3495 = vmatpush2.xpose.msra.mxu0 0.0
      %3496 = vmatprep.subr.mxu0 0.0
      %3497 = vmatpush2.xpose.msra.mxu0 0.0
      %3498 = vmatprep.subr.mxu0 0.0
      %3499 = vmatpush2.xpose.msra.mxu0 0.0
      %3500 = vmatprep.subr.mxu0 0.0
      %3501 = vmatpush2.xpose.msra.mxu0 0.0
      %3502 = vmatprep.subr.mxu0 0.0
      %3503 = vmatpush2.xpose.msra.mxu0 0.0
      %3504 = vmatprep.subr.mxu0 0.0
      %3505 = vmatpush2.xpose.msra.mxu0 0.0
      %3506 = vmatprep.subr.mxu0 0.0
      %3507 = vmatpush2.xpose.msra.mxu0 0.0
      %3508 = vmatprep.subr.mxu0 0.0
      %3509 = vmatpush2.xpose.msra.mxu0 0.0
      %3510 = vmatprep.subr.mxu0 0.0
      %3511 = vmatpush2.xpose.msra.mxu0 0.0
      %3512 = vmatprep.mubr.f32.mxu0 0.0
      %3513 = vmatmul.mubr.f32.gmra.mxu0 %v3443
      %v3514 = vpop.f32.mrf.mxu0
      %v3515 = vadd.f32 0.0, %v3514
      %v3516 = vpop.f32.mrf.mxu0
      %3517 = vdwg.mxu0
      %v3519 = vsel %vm3061, %v1755, 0
      %v3522 = vsel %vm3061, %v2339, 0
      %3524 = vmatprep.subr.mxu0 0.0
      %3525 = vmatpush1.xpose.msra.mxu0 0.0
      %3526 = vmatprep.subr.mxu0 0.0
      %3527 = vmatpush1.xpose.msra.mxu0 0.0
      %3528 = vmatprep.subr.mxu0 0.0
      %3529 = vmatpush1.xpose.msra.mxu0 0.0
      %3530 = vmatprep.subr.mxu0 0.0
      %3531 = vmatpush1.xpose.msra.mxu0 0.0
      %3532 = vmatprep.subr.mxu0 0.0
      %3533 = vmatpush1.xpose.msra.mxu0 0.0
      %3534 = vmatprep.subr.mxu0 0.0
      %3535 = vmatpush1.xpose.msra.mxu0 0.0
      %3536 = vmatprep.subr.mxu0 0.0
      %3537 = vmatpush1.xpose.msra.mxu0 0.0
      %3538 = vmatprep.subr.mxu0 0.0
      %3539 = vmatpush1.xpose.msra.mxu0 0.0
      %3540 = vmatprep.subr.mxu0 0.0
      %3541 = vmatpush1.xpose.msra.mxu0 0.0
      %3542 = vmatprep.subr.mxu0 0.0
      %3543 = vmatpush1.xpose.msra.mxu0 0.0
      %3544 = vmatprep.subr.mxu0 0.0
      %3545 = vmatpush1.xpose.msra.mxu0 0.0
      %3546 = vmatprep.subr.mxu0 0.0
      %3547 = vmatpush1.xpose.msra.mxu0 0.0
      %3548 = vmatprep.subr.mxu0 0.0
      %3549 = vmatpush1.xpose.msra.mxu0 0.0
      %3550 = vmatprep.subr.mxu0 0.0
      %3551 = vmatpush1.xpose.msra.mxu0 0.0
      %3552 = vmatprep.subr.mxu0 0.0
      %3553 = vmatpush1.xpose.msra.mxu0 0.0
      %3554 = vmatprep.subr.mxu0 0.0
      %3555 = vmatpush1.xpose.msra.mxu0 %v3522
      %3556 = vmatprep.subr.mxu0 0.0
      %3557 = vmatpush2.xpose.msra.mxu0 0.0
      %3558 = vmatprep.subr.mxu0 0.0
      %3559 = vmatpush2.xpose.msra.mxu0 0.0
      %3560 = vmatprep.subr.mxu0 0.0
      %3561 = vmatpush2.xpose.msra.mxu0 0.0
      %3562 = vmatprep.subr.mxu0 0.0
      %3563 = vmatpush2.xpose.msra.mxu0 0.0
      %3564 = vmatprep.subr.mxu0 0.0
      %3565 = vmatpush2.xpose.msra.mxu0 0.0
      %3566 = vmatprep.subr.mxu0 0.0
      %3567 = vmatpush2.xpose.msra.mxu0 0.0
      %3568 = vmatprep.subr.mxu0 0.0
      %3569 = vmatpush2.xpose.msra.mxu0 0.0
      %3570 = vmatprep.subr.mxu0 0.0
      %3571 = vmatpush2.xpose.msra.mxu0 0.0
      %3572 = vmatprep.subr.mxu0 0.0
      %3573 = vmatpush2.xpose.msra.mxu0 0.0
      %3574 = vmatprep.subr.mxu0 0.0
      %3575 = vmatpush2.xpose.msra.mxu0 0.0
      %3576 = vmatprep.subr.mxu0 0.0
      %3577 = vmatpush2.xpose.msra.mxu0 0.0
      %3578 = vmatprep.subr.mxu0 0.0
      %3579 = vmatpush2.xpose.msra.mxu0 0.0
      %3580 = vmatprep.subr.mxu0 0.0
      %3581 = vmatpush2.xpose.msra.mxu0 0.0
      %3582 = vmatprep.subr.mxu0 0.0
      %3583 = vmatpush2.xpose.msra.mxu0 0.0
      %3584 = vmatprep.subr.mxu0 0.0
      %3585 = vmatpush2.xpose.msra.mxu0 0.0
      %3586 = vmatprep.subr.mxu0 0.0
      %3587 = vmatpush2.xpose.msra.mxu0 0.0
      %3588 = vmatprep.mubr.f32.mxu0 0.0
      %3589 = vmatmul.mubr.f32.gmra.mxu0 %v3519
      %v3590 = vpop.f32.mrf.mxu0
      %v3591 = vadd.f32 0.0, %v3590
      %v3592 = vpop.f32.mrf.mxu0
      %3593 = vdwg.mxu0
      %v3595 = vsel %vm3061, %v1756, 0
      %v3598 = vsel %vm3061, %v2340, 0
      %3600 = vmatprep.subr.mxu0 0.0
      %3601 = vmatpush1.xpose.msra.mxu0 0.0
      %3602 = vmatprep.subr.mxu0 0.0
      %3603 = vmatpush1.xpose.msra.mxu0 0.0
      %3604 = vmatprep.subr.mxu0 0.0
      %3605 = vmatpush1.xpose.msra.mxu0 0.0
      %3606 = vmatprep.subr.mxu0 0.0
      %3607 = vmatpush1.xpose.msra.mxu0 0.0
      %3608 = vmatprep.subr.mxu0 0.0
      %3609 = vmatpush1.xpose.msra.mxu0 0.0
      %3610 = vmatprep.subr.mxu0 0.0
      %3611 = vmatpush1.xpose.msra.mxu0 0.0
      %3612 = vmatprep.subr.mxu0 0.0
      %3613 = vmatpush1.xpose.msra.mxu0 0.0
      %3614 = vmatprep.subr.mxu0 0.0
      %3615 = vmatpush1.xpose.msra.mxu0 0.0
      %3616 = vmatprep.subr.mxu0 0.0
      %3617 = vmatpush1.xpose.msra.mxu0 0.0
      %3618 = vmatprep.subr.mxu0 0.0
      %3619 = vmatpush1.xpose.msra.mxu0 0.0
      %3620 = vmatprep.subr.mxu0 0.0
      %3621 = vmatpush1.xpose.msra.mxu0 0.0
      %3622 = vmatprep.subr.mxu0 0.0
      %3623 = vmatpush1.xpose.msra.mxu0 0.0
      %3624 = vmatprep.subr.mxu0 0.0
      %3625 = vmatpush1.xpose.msra.mxu0 0.0
      %3626 = vmatprep.subr.mxu0 0.0
      %3627 = vmatpush1.xpose.msra.mxu0 0.0
      %3628 = vmatprep.subr.mxu0 0.0
      %3629 = vmatpush1.xpose.msra.mxu0 0.0
      %3630 = vmatprep.subr.mxu0 0.0
      %3631 = vmatpush1.xpose.msra.mxu0 %v3598
      %3632 = vmatprep.subr.mxu0 0.0
      %3633 = vmatpush2.xpose.msra.mxu0 0.0
      %3634 = vmatprep.subr.mxu0 0.0
      %3635 = vmatpush2.xpose.msra.mxu0 0.0
      %3636 = vmatprep.subr.mxu0 0.0
      %3637 = vmatpush2.xpose.msra.mxu0 0.0
      %3638 = vmatprep.subr.mxu0 0.0
      %3639 = vmatpush2.xpose.msra.mxu0 0.0
      %3640 = vmatprep.subr.mxu0 0.0
      %3641 = vmatpush2.xpose.msra.mxu0 0.0
      %3642 = vmatprep.subr.mxu0 0.0
      %3643 = vmatpush2.xpose.msra.mxu0 0.0
      %3644 = vmatprep.subr.mxu0 0.0
      %3645 = vmatpush2.xpose.msra.mxu0 0.0
      %3646 = vmatprep.subr.mxu0 0.0
      %3647 = vmatpush2.xpose.msra.mxu0 0.0
      %3648 = vmatprep.subr.mxu0 0.0
      %3649 = vmatpush2.xpose.msra.mxu0 0.0
      %3650 = vmatprep.subr.mxu0 0.0
      %3651 = vmatpush2.xpose.msra.mxu0 0.0
      %3652 = vmatprep.subr.mxu0 0.0
      %3653 = vmatpush2.xpose.msra.mxu0 0.0
      %3654 = vmatprep.subr.mxu0 0.0
      %3655 = vmatpush2.xpose.msra.mxu0 0.0
      %3656 = vmatprep.subr.mxu0 0.0
      %3657 = vmatpush2.xpose.msra.mxu0 0.0
      %3658 = vmatprep.subr.mxu0 0.0
      %3659 = vmatpush2.xpose.msra.mxu0 0.0
      %3660 = vmatprep.subr.mxu0 0.0
      %3661 = vmatpush2.xpose.msra.mxu0 0.0
      %3662 = vmatprep.subr.mxu0 0.0
      %3663 = vmatpush2.xpose.msra.mxu0 0.0
      %3664 = vmatprep.mubr.f32.mxu0 0.0
      %3665 = vmatmul.mubr.f32.gmra.mxu0 %v3595
      %v3666 = vpop.f32.mrf.mxu0
      %v3667 = vadd.f32 0.0, %v3666
      %v3668 = vpop.f32.mrf.mxu0
      %3669 = vdwg.mxu0
      %v3671 = vsel %vm3061, %v1821, 0
      %v3674 = vsel %vm3061, %v2405, 0
      %3676 = vmatprep.subr.mxu0 0.0
      %3677 = vmatpush1.xpose.msra.mxu0 0.0
      %3678 = vmatprep.subr.mxu0 0.0
      %3679 = vmatpush1.xpose.msra.mxu0 0.0
      %3680 = vmatprep.subr.mxu0 0.0
      %3681 = vmatpush1.xpose.msra.mxu0 0.0
      %3682 = vmatprep.subr.mxu0 0.0
      %3683 = vmatpush1.xpose.msra.mxu0 0.0
      %3684 = vmatprep.subr.mxu0 0.0
      %3685 = vmatpush1.xpose.msra.mxu0 0.0
      %3686 = vmatprep.subr.mxu0 0.0
      %3687 = vmatpush1.xpose.msra.mxu0 0.0
      %3688 = vmatprep.subr.mxu0 0.0
      %3689 = vmatpush1.xpose.msra.mxu0 0.0
      %3690 = vmatprep.subr.mxu0 0.0
      %3691 = vmatpush1.xpose.msra.mxu0 0.0
      %3692 = vmatprep.subr.mxu0 0.0
      %3693 = vmatpush1.xpose.msra.mxu0 0.0
      %3694 = vmatprep.subr.mxu0 0.0
      %3695 = vmatpush1.xpose.msra.mxu0 0.0
      %3696 = vmatprep.subr.mxu0 0.0
      %3697 = vmatpush1.xpose.msra.mxu0 0.0
      %3698 = vmatprep.subr.mxu0 0.0
      %3699 = vmatpush1.xpose.msra.mxu0 0.0
      %3700 = vmatprep.subr.mxu0 0.0
      %3701 = vmatpush1.xpose.msra.mxu0 0.0
      %3702 = vmatprep.subr.mxu0 0.0
      %3703 = vmatpush1.xpose.msra.mxu0 0.0
      %3704 = vmatprep.subr.mxu0 0.0
      %3705 = vmatpush1.xpose.msra.mxu0 0.0
      %3706 = vmatprep.subr.mxu0 0.0
      %3707 = vmatpush1.xpose.msra.mxu0 %v3674
      %3708 = vmatprep.subr.mxu0 0.0
      %3709 = vmatpush2.xpose.msra.mxu0 0.0
      %3710 = vmatprep.subr.mxu0 0.0
      %3711 = vmatpush2.xpose.msra.mxu0 0.0
      %3712 = vmatprep.subr.mxu0 0.0
      %3713 = vmatpush2.xpose.msra.mxu0 0.0
      %3714 = vmatprep.subr.mxu0 0.0
      %3715 = vmatpush2.xpose.msra.mxu0 0.0
      %3716 = vmatprep.subr.mxu0 0.0
      %3717 = vmatpush2.xpose.msra.mxu0 0.0
      %3718 = vmatprep.subr.mxu0 0.0
      %3719 = vmatpush2.xpose.msra.mxu0 0.0
      %3720 = vmatprep.subr.mxu0 0.0
      %3721 = vmatpush2.xpose.msra.mxu0 0.0
      %3722 = vmatprep.subr.mxu0 0.0
      %3723 = vmatpush2.xpose.msra.mxu0 0.0
      %3724 = vmatprep.subr.mxu0 0.0
      %3725 = vmatpush2.xpose.msra.mxu0 0.0
      %3726 = vmatprep.subr.mxu0 0.0
      %3727 = vmatpush2.xpose.msra.mxu0 0.0
      %3728 = vmatprep.subr.mxu0 0.0
      %3729 = vmatpush2.xpose.msra.mxu0 0.0
      %3730 = vmatprep.subr.mxu0 0.0
      %3731 = vmatpush2.xpose.msra.mxu0 0.0
      %3732 = vmatprep.subr.mxu0 0.0
      %3733 = vmatpush2.xpose.msra.mxu0 0.0
      %3734 = vmatprep.subr.mxu0 0.0
      %3735 = vmatpush2.xpose.msra.mxu0 0.0
      %3736 = vmatprep.subr.mxu0 0.0
      %3737 = vmatpush2.xpose.msra.mxu0 0.0
      %3738 = vmatprep.subr.mxu0 0.0
      %3739 = vmatpush2.xpose.msra.mxu0 0.0
      %3740 = vmatprep.mubr.f32.mxu0 0.0
      %3741 = vmatmul.mubr.f32.gmra.mxu0 %v3671
      %v3742 = vpop.f32.mrf.mxu0
      %v3743 = vadd.f32 0.0, %v3742
      %v3744 = vpop.f32.mrf.mxu0
      %3745 = vdwg.mxu0
      %v3747 = vsel %vm3061, %v1822, 0
      %v3750 = vsel %vm3061, %v2406, 0
      %3752 = vmatprep.subr.mxu0 0.0
      %3753 = vmatpush1.xpose.msra.mxu0 0.0
      %3754 = vmatprep.subr.mxu0 0.0
      %3755 = vmatpush1.xpose.msra.mxu0 0.0
      %3756 = vmatprep.subr.mxu0 0.0
      %3757 = vmatpush1.xpose.msra.mxu0 0.0
      %3758 = vmatprep.subr.mxu0 0.0
      %3759 = vmatpush1.xpose.msra.mxu0 0.0
      %3760 = vmatprep.subr.mxu0 0.0
      %3761 = vmatpush1.xpose.msra.mxu0 0.0
      %3762 = vmatprep.subr.mxu0 0.0
      %3763 = vmatpush1.xpose.msra.mxu0 0.0
      %3764 = vmatprep.subr.mxu0 0.0
      %3765 = vmatpush1.xpose.msra.mxu0 0.0
      %3766 = vmatprep.subr.mxu0 0.0
      %3767 = vmatpush1.xpose.msra.mxu0 0.0
      %3768 = vmatprep.subr.mxu0 0.0
      %3769 = vmatpush1.xpose.msra.mxu0 0.0
      %3770 = vmatprep.subr.mxu0 0.0
      %3771 = vmatpush1.xpose.msra.mxu0 0.0
      %3772 = vmatprep.subr.mxu0 0.0
      %3773 = vmatpush1.xpose.msra.mxu0 0.0
      %3774 = vmatprep.subr.mxu0 0.0
      %3775 = vmatpush1.xpose.msra.mxu0 0.0
      %3776 = vmatprep.subr.mxu0 0.0
      %3777 = vmatpush1.xpose.msra.mxu0 0.0
      %3778 = vmatprep.subr.mxu0 0.0
      %3779 = vmatpush1.xpose.msra.mxu0 0.0
      %3780 = vmatprep.subr.mxu0 0.0
      %3781 = vmatpush1.xpose.msra.mxu0 0.0
      %3782 = vmatprep.subr.mxu0 0.0
      %3783 = vmatpush1.xpose.msra.mxu0 %v3750
      %3784 = vmatprep.subr.mxu0 0.0
      %3785 = vmatpush2.xpose.msra.mxu0 0.0
      %3786 = vmatprep.subr.mxu0 0.0
      %3787 = vmatpush2.xpose.msra.mxu0 0.0
      %3788 = vmatprep.subr.mxu0 0.0
      %3789 = vmatpush2.xpose.msra.mxu0 0.0
      %3790 = vmatprep.subr.mxu0 0.0
      %3791 = vmatpush2.xpose.msra.mxu0 0.0
      %3792 = vmatprep.subr.mxu0 0.0
      %3793 = vmatpush2.xpose.msra.mxu0 0.0
      %3794 = vmatprep.subr.mxu0 0.0
      %3795 = vmatpush2.xpose.msra.mxu0 0.0
      %3796 = vmatprep.subr.mxu0 0.0
      %3797 = vmatpush2.xpose.msra.mxu0 0.0
      %3798 = vmatprep.subr.mxu0 0.0
      %3799 = vmatpush2.xpose.msra.mxu0 0.0
      %3800 = vmatprep.subr.mxu0 0.0
      %3801 = vmatpush2.xpose.msra.mxu0 0.0
      %3802 = vmatprep.subr.mxu0 0.0
      %3803 = vmatpush2.xpose.msra.mxu0 0.0
      %3804 = vmatprep.subr.mxu0 0.0
      %3805 = vmatpush2.xpose.msra.mxu0 0.0
      %3806 = vmatprep.subr.mxu0 0.0
      %3807 = vmatpush2.xpose.msra.mxu0 0.0
      %3808 = vmatprep.subr.mxu0 0.0
      %3809 = vmatpush2.xpose.msra.mxu0 0.0
      %3810 = vmatprep.subr.mxu0 0.0
      %3811 = vmatpush2.xpose.msra.mxu0 0.0
      %3812 = vmatprep.subr.mxu0 0.0
      %3813 = vmatpush2.xpose.msra.mxu0 0.0
      %3814 = vmatprep.subr.mxu0 0.0
      %3815 = vmatpush2.xpose.msra.mxu0 0.0
      %3816 = vmatprep.mubr.f32.mxu0 0.0
      %3817 = vmatmul.mubr.f32.gmra.mxu0 %v3747
      %v3818 = vpop.f32.mrf.mxu0
      %v3819 = vadd.f32 0.0, %v3818
      %v3820 = vpop.f32.mrf.mxu0
      %3821 = vdwg.mxu0
      %v3823 = vsel %vm3061, %v1823, 0
      %v3826 = vsel %vm3061, %v2407, 0
      %3828 = vmatprep.subr.mxu0 0.0
      %3829 = vmatpush1.xpose.msra.mxu0 0.0
      %3830 = vmatprep.subr.mxu0 0.0
      %3831 = vmatpush1.xpose.msra.mxu0 0.0
      %3832 = vmatprep.subr.mxu0 0.0
      %3833 = vmatpush1.xpose.msra.mxu0 0.0
      %3834 = vmatprep.subr.mxu0 0.0
      %3835 = vmatpush1.xpose.msra.mxu0 0.0
      %3836 = vmatprep.subr.mxu0 0.0
      %3837 = vmatpush1.xpose.msra.mxu0 0.0
      %3838 = vmatprep.subr.mxu0 0.0
      %3839 = vmatpush1.xpose.msra.mxu0 0.0
      %3840 = vmatprep.subr.mxu0 0.0
      %3841 = vmatpush1.xpose.msra.mxu0 0.0
      %3842 = vmatprep.subr.mxu0 0.0
      %3843 = vmatpush1.xpose.msra.mxu0 0.0
      %3844 = vmatprep.subr.mxu0 0.0
      %3845 = vmatpush1.xpose.msra.mxu0 0.0
      %3846 = vmatprep.subr.mxu0 0.0
      %3847 = vmatpush1.xpose.msra.mxu0 0.0
      %3848 = vmatprep.subr.mxu0 0.0
      %3849 = vmatpush1.xpose.msra.mxu0 0.0
      %3850 = vmatprep.subr.mxu0 0.0
      %3851 = vmatpush1.xpose.msra.mxu0 0.0
      %3852 = vmatprep.subr.mxu0 0.0
      %3853 = vmatpush1.xpose.msra.mxu0 0.0
      %3854 = vmatprep.subr.mxu0 0.0
      %3855 = vmatpush1.xpose.msra.mxu0 0.0
      %3856 = vmatprep.subr.mxu0 0.0
      %3857 = vmatpush1.xpose.msra.mxu0 0.0
      %3858 = vmatprep.subr.mxu0 0.0
      %3859 = vmatpush1.xpose.msra.mxu0 %v3826
      %3860 = vmatprep.subr.mxu0 0.0
      %3861 = vmatpush2.xpose.msra.mxu0 0.0
      %3862 = vmatprep.subr.mxu0 0.0
      %3863 = vmatpush2.xpose.msra.mxu0 0.0
      %3864 = vmatprep.subr.mxu0 0.0
      %3865 = vmatpush2.xpose.msra.mxu0 0.0
      %3866 = vmatprep.subr.mxu0 0.0
      %3867 = vmatpush2.xpose.msra.mxu0 0.0
      %3868 = vmatprep.subr.mxu0 0.0
      %3869 = vmatpush2.xpose.msra.mxu0 0.0
      %3870 = vmatprep.subr.mxu0 0.0
      %3871 = vmatpush2.xpose.msra.mxu0 0.0
      %3872 = vmatprep.subr.mxu0 0.0
      %3873 = vmatpush2.xpose.msra.mxu0 0.0
      %3874 = vmatprep.subr.mxu0 0.0
      %3875 = vmatpush2.xpose.msra.mxu0 0.0
      %3876 = vmatprep.subr.mxu0 0.0
      %3877 = vmatpush2.xpose.msra.mxu0 0.0
      %3878 = vmatprep.subr.mxu0 0.0
      %3879 = vmatpush2.xpose.msra.mxu0 0.0
      %3880 = vmatprep.subr.mxu0 0.0
      %3881 = vmatpush2.xpose.msra.mxu0 0.0
      %3882 = vmatprep.subr.mxu0 0.0
      %3883 = vmatpush2.xpose.msra.mxu0 0.0
      %3884 = vmatprep.subr.mxu0 0.0
      %3885 = vmatpush2.xpose.msra.mxu0 0.0
      %3886 = vmatprep.subr.mxu0 0.0
      %3887 = vmatpush2.xpose.msra.mxu0 0.0
      %3888 = vmatprep.subr.mxu0 0.0
      %3889 = vmatpush2.xpose.msra.mxu0 0.0
      %3890 = vmatprep.subr.mxu0 0.0
      %3891 = vmatpush2.xpose.msra.mxu0 0.0
      %3892 = vmatprep.mubr.f32.mxu0 0.0
      %3893 = vmatmul.mubr.f32.gmra.mxu0 %v3823
      %v3894 = vpop.f32.mrf.mxu0
      %v3895 = vadd.f32 0.0, %v3894
      %v3896 = vpop.f32.mrf.mxu0
      %3897 = vdwg.mxu0
      %v3899 = vsel %vm3061, %v1824, 0
      %v3902 = vsel %vm3061, %v2408, 0
      %3904 = vmatprep.subr.mxu0 0.0
      %3905 = vmatpush1.xpose.msra.mxu0 0.0
      %3906 = vmatprep.subr.mxu0 0.0
      %3907 = vmatpush1.xpose.msra.mxu0 0.0
      %3908 = vmatprep.subr.mxu0 0.0
      %3909 = vmatpush1.xpose.msra.mxu0 0.0
      %3910 = vmatprep.subr.mxu0 0.0
      %3911 = vmatpush1.xpose.msra.mxu0 0.0
      %3912 = vmatprep.subr.mxu0 0.0
      %3913 = vmatpush1.xpose.msra.mxu0 0.0
      %3914 = vmatprep.subr.mxu0 0.0
      %3915 = vmatpush1.xpose.msra.mxu0 0.0
      %3916 = vmatprep.subr.mxu0 0.0
      %3917 = vmatpush1.xpose.msra.mxu0 0.0
      %3918 = vmatprep.subr.mxu0 0.0
      %3919 = vmatpush1.xpose.msra.mxu0 0.0
      %3920 = vmatprep.subr.mxu0 0.0
      %3921 = vmatpush1.xpose.msra.mxu0 0.0
      %3922 = vmatprep.subr.mxu0 0.0
      %3923 = vmatpush1.xpose.msra.mxu0 0.0
      %3924 = vmatprep.subr.mxu0 0.0
      %3925 = vmatpush1.xpose.msra.mxu0 0.0
      %3926 = vmatprep.subr.mxu0 0.0
      %3927 = vmatpush1.xpose.msra.mxu0 0.0
      %3928 = vmatprep.subr.mxu0 0.0
      %3929 = vmatpush1.xpose.msra.mxu0 0.0
      %3930 = vmatprep.subr.mxu0 0.0
      %3931 = vmatpush1.xpose.msra.mxu0 0.0
      %3932 = vmatprep.subr.mxu0 0.0
      %3933 = vmatpush1.xpose.msra.mxu0 0.0
      %3934 = vmatprep.subr.mxu0 0.0
      %3935 = vmatpush1.xpose.msra.mxu0 %v3902
      %3936 = vmatprep.subr.mxu0 0.0
      %3937 = vmatpush2.xpose.msra.mxu0 0.0
      %3938 = vmatprep.subr.mxu0 0.0
      %3939 = vmatpush2.xpose.msra.mxu0 0.0
      %3940 = vmatprep.subr.mxu0 0.0
      %3941 = vmatpush2.xpose.msra.mxu0 0.0
      %3942 = vmatprep.subr.mxu0 0.0
      %3943 = vmatpush2.xpose.msra.mxu0 0.0
      %3944 = vmatprep.subr.mxu0 0.0
      %3945 = vmatpush2.xpose.msra.mxu0 0.0
      %3946 = vmatprep.subr.mxu0 0.0
      %3947 = vmatpush2.xpose.msra.mxu0 0.0
      %3948 = vmatprep.subr.mxu0 0.0
      %3949 = vmatpush2.xpose.msra.mxu0 0.0
      %3950 = vmatprep.subr.mxu0 0.0
      %3951 = vmatpush2.xpose.msra.mxu0 0.0
      %3952 = vmatprep.subr.mxu0 0.0
      %3953 = vmatpush2.xpose.msra.mxu0 0.0
      %3954 = vmatprep.subr.mxu0 0.0
      %3955 = vmatpush2.xpose.msra.mxu0 0.0
      %3956 = vmatprep.subr.mxu0 0.0
      %3957 = vmatpush2.xpose.msra.mxu0 0.0
      %3958 = vmatprep.subr.mxu0 0.0
      %3959 = vmatpush2.xpose.msra.mxu0 0.0
      %3960 = vmatprep.subr.mxu0 0.0
      %3961 = vmatpush2.xpose.msra.mxu0 0.0
      %3962 = vmatprep.subr.mxu0 0.0
      %3963 = vmatpush2.xpose.msra.mxu0 0.0
      %3964 = vmatprep.subr.mxu0 0.0
      %3965 = vmatpush2.xpose.msra.mxu0 0.0
      %3966 = vmatprep.subr.mxu0 0.0
      %3967 = vmatpush2.xpose.msra.mxu0 0.0
      %3968 = vmatprep.mubr.f32.mxu0 0.0
      %3969 = vmatmul.mubr.f32.gmra.mxu0 %v3899
      %v3970 = vpop.f32.mrf.mxu0
      %v3971 = vadd.f32 0.0, %v3970
      %v3972 = vpop.f32.mrf.mxu0
      %3973 = vdwg.mxu0
      %v3975 = vsel %vm3061, %v1889, 0
      %v3978 = vsel %vm3061, %v2473, 0
      %3980 = vmatprep.subr.mxu0 0.0
      %3981 = vmatpush1.xpose.msra.mxu0 0.0
      %3982 = vmatprep.subr.mxu0 0.0
      %3983 = vmatpush1.xpose.msra.mxu0 0.0
      %3984 = vmatprep.subr.mxu0 0.0
      %3985 = vmatpush1.xpose.msra.mxu0 0.0
      %3986 = vmatprep.subr.mxu0 0.0
      %3987 = vmatpush1.xpose.msra.mxu0 0.0
      %3988 = vmatprep.subr.mxu0 0.0
      %3989 = vmatpush1.xpose.msra.mxu0 0.0
      %3990 = vmatprep.subr.mxu0 0.0
      %3991 = vmatpush1.xpose.msra.mxu0 0.0
      %3992 = vmatprep.subr.mxu0 0.0
      %3993 = vmatpush1.xpose.msra.mxu0 0.0
      %3994 = vmatprep.subr.mxu0 0.0
      %3995 = vmatpush1.xpose.msra.mxu0 0.0
      %3996 = vmatprep.subr.mxu0 0.0
      %3997 = vmatpush1.xpose.msra.mxu0 0.0
      %3998 = vmatprep.subr.mxu0 0.0
      %3999 = vmatpush1.xpose.msra.mxu0 0.0
      %4000 = vmatprep.subr.mxu0 0.0
      %4001 = vmatpush1.xpose.msra.mxu0 0.0
      %4002 = vmatprep.subr.mxu0 0.0
      %4003 = vmatpush1.xpose.msra.mxu0 0.0
      %4004 = vmatprep.subr.mxu0 0.0
      %4005 = vmatpush1.xpose.msra.mxu0 0.0
      %4006 = vmatprep.subr.mxu0 0.0
      %4007 = vmatpush1.xpose.msra.mxu0 0.0
      %4008 = vmatprep.subr.mxu0 0.0
      %4009 = vmatpush1.xpose.msra.mxu0 0.0
      %4010 = vmatprep.subr.mxu0 0.0
      %4011 = vmatpush1.xpose.msra.mxu0 %v3978
      %4012 = vmatprep.subr.mxu0 0.0
      %4013 = vmatpush2.xpose.msra.mxu0 0.0
      %4014 = vmatprep.subr.mxu0 0.0
      %4015 = vmatpush2.xpose.msra.mxu0 0.0
      %4016 = vmatprep.subr.mxu0 0.0
      %4017 = vmatpush2.xpose.msra.mxu0 0.0
      %4018 = vmatprep.subr.mxu0 0.0
      %4019 = vmatpush2.xpose.msra.mxu0 0.0
      %4020 = vmatprep.subr.mxu0 0.0
      %4021 = vmatpush2.xpose.msra.mxu0 0.0
      %4022 = vmatprep.subr.mxu0 0.0
      %4023 = vmatpush2.xpose.msra.mxu0 0.0
      %4024 = vmatprep.subr.mxu0 0.0
      %4025 = vmatpush2.xpose.msra.mxu0 0.0
      %4026 = vmatprep.subr.mxu0 0.0
      %4027 = vmatpush2.xpose.msra.mxu0 0.0
      %4028 = vmatprep.subr.mxu0 0.0
      %4029 = vmatpush2.xpose.msra.mxu0 0.0
      %4030 = vmatprep.subr.mxu0 0.0
      %4031 = vmatpush2.xpose.msra.mxu0 0.0
      %4032 = vmatprep.subr.mxu0 0.0
      %4033 = vmatpush2.xpose.msra.mxu0 0.0
      %4034 = vmatprep.subr.mxu0 0.0
      %4035 = vmatpush2.xpose.msra.mxu0 0.0
      %4036 = vmatprep.subr.mxu0 0.0
      %4037 = vmatpush2.xpose.msra.mxu0 0.0
      %4038 = vmatprep.subr.mxu0 0.0
      %4039 = vmatpush2.xpose.msra.mxu0 0.0
      %4040 = vmatprep.subr.mxu0 0.0
      %4041 = vmatpush2.xpose.msra.mxu0 0.0
      %4042 = vmatprep.subr.mxu0 0.0
      %4043 = vmatpush2.xpose.msra.mxu0 0.0
      %4044 = vmatprep.mubr.f32.mxu0 0.0
      %4045 = vmatmul.mubr.f32.gmra.mxu0 %v3975
      %v4046 = vpop.f32.mrf.mxu0
      %v4047 = vadd.f32 0.0, %v4046
      %v4048 = vpop.f32.mrf.mxu0
      %4049 = vdwg.mxu0
      %v4051 = vsel %vm3061, %v1890, 0
      %v4054 = vsel %vm3061, %v2474, 0
      %4056 = vmatprep.subr.mxu0 0.0
      %4057 = vmatpush1.xpose.msra.mxu0 0.0
      %4058 = vmatprep.subr.mxu0 0.0
      %4059 = vmatpush1.xpose.msra.mxu0 0.0
      %4060 = vmatprep.subr.mxu0 0.0
      %4061 = vmatpush1.xpose.msra.mxu0 0.0
      %4062 = vmatprep.subr.mxu0 0.0
      %4063 = vmatpush1.xpose.msra.mxu0 0.0
      %4064 = vmatprep.subr.mxu0 0.0
      %4065 = vmatpush1.xpose.msra.mxu0 0.0
      %4066 = vmatprep.subr.mxu0 0.0
      %4067 = vmatpush1.xpose.msra.mxu0 0.0
      %4068 = vmatprep.subr.mxu0 0.0
      %4069 = vmatpush1.xpose.msra.mxu0 0.0
      %4070 = vmatprep.subr.mxu0 0.0
      %4071 = vmatpush1.xpose.msra.mxu0 0.0
      %4072 = vmatprep.subr.mxu0 0.0
      %4073 = vmatpush1.xpose.msra.mxu0 0.0
      %4074 = vmatprep.subr.mxu0 0.0
      %4075 = vmatpush1.xpose.msra.mxu0 0.0
      %4076 = vmatprep.subr.mxu0 0.0
      %4077 = vmatpush1.xpose.msra.mxu0 0.0
      %4078 = vmatprep.subr.mxu0 0.0
      %4079 = vmatpush1.xpose.msra.mxu0 0.0
      %4080 = vmatprep.subr.mxu0 0.0
      %4081 = vmatpush1.xpose.msra.mxu0 0.0
      %4082 = vmatprep.subr.mxu0 0.0
      %4083 = vmatpush1.xpose.msra.mxu0 0.0
      %4084 = vmatprep.subr.mxu0 0.0
      %4085 = vmatpush1.xpose.msra.mxu0 0.0
      %4086 = vmatprep.subr.mxu0 0.0
      %4087 = vmatpush1.xpose.msra.mxu0 %v4054
      %4088 = vmatprep.subr.mxu0 0.0
      %4089 = vmatpush2.xpose.msra.mxu0 0.0
      %4090 = vmatprep.subr.mxu0 0.0
      %4091 = vmatpush2.xpose.msra.mxu0 0.0
      %4092 = vmatprep.subr.mxu0 0.0
      %4093 = vmatpush2.xpose.msra.mxu0 0.0
      %4094 = vmatprep.subr.mxu0 0.0
      %4095 = vmatpush2.xpose.msra.mxu0 0.0
      %4096 = vmatprep.subr.mxu0 0.0
      %4097 = vmatpush2.xpose.msra.mxu0 0.0
      %4098 = vmatprep.subr.mxu0 0.0
      %4099 = vmatpush2.xpose.msra.mxu0 0.0
      %4100 = vmatprep.subr.mxu0 0.0
      %4101 = vmatpush2.xpose.msra.mxu0 0.0
      %4102 = vmatprep.subr.mxu0 0.0
      %4103 = vmatpush2.xpose.msra.mxu0 0.0
      %4104 = vmatprep.subr.mxu0 0.0
      %4105 = vmatpush2.xpose.msra.mxu0 0.0
      %4106 = vmatprep.subr.mxu0 0.0
      %4107 = vmatpush2.xpose.msra.mxu0 0.0
      %4108 = vmatprep.subr.mxu0 0.0
      %4109 = vmatpush2.xpose.msra.mxu0 0.0
      %4110 = vmatprep.subr.mxu0 0.0
      %4111 = vmatpush2.xpose.msra.mxu0 0.0
      %4112 = vmatprep.subr.mxu0 0.0
      %4113 = vmatpush2.xpose.msra.mxu0 0.0
      %4114 = vmatprep.subr.mxu0 0.0
      %4115 = vmatpush2.xpose.msra.mxu0 0.0
      %4116 = vmatprep.subr.mxu0 0.0
      %4117 = vmatpush2.xpose.msra.mxu0 0.0
      %4118 = vmatprep.subr.mxu0 0.0
      %4119 = vmatpush2.xpose.msra.mxu0 0.0
      %4120 = vmatprep.mubr.f32.mxu0 0.0
      %4121 = vmatmul.mubr.f32.gmra.mxu0 %v4051
      %v4122 = vpop.f32.mrf.mxu0
      %v4123 = vadd.f32 0.0, %v4122
      %v4124 = vpop.f32.mrf.mxu0
      %4125 = vdwg.mxu0
      %v4127 = vsel %vm3061, %v1891, 0
      %v4130 = vsel %vm3061, %v2475, 0
      %4132 = vmatprep.subr.mxu0 0.0
      %4133 = vmatpush1.xpose.msra.mxu0 0.0
      %4134 = vmatprep.subr.mxu0 0.0
      %4135 = vmatpush1.xpose.msra.mxu0 0.0
      %4136 = vmatprep.subr.mxu0 0.0
      %4137 = vmatpush1.xpose.msra.mxu0 0.0
      %4138 = vmatprep.subr.mxu0 0.0
      %4139 = vmatpush1.xpose.msra.mxu0 0.0
      %4140 = vmatprep.subr.mxu0 0.0
      %4141 = vmatpush1.xpose.msra.mxu0 0.0
      %4142 = vmatprep.subr.mxu0 0.0
      %4143 = vmatpush1.xpose.msra.mxu0 0.0
      %4144 = vmatprep.subr.mxu0 0.0
      %4145 = vmatpush1.xpose.msra.mxu0 0.0
      %4146 = vmatprep.subr.mxu0 0.0
      %4147 = vmatpush1.xpose.msra.mxu0 0.0
      %4148 = vmatprep.subr.mxu0 0.0
      %4149 = vmatpush1.xpose.msra.mxu0 0.0
      %4150 = vmatprep.subr.mxu0 0.0
      %4151 = vmatpush1.xpose.msra.mxu0 0.0
      %4152 = vmatprep.subr.mxu0 0.0
      %4153 = vmatpush1.xpose.msra.mxu0 0.0
      %4154 = vmatprep.subr.mxu0 0.0
      %4155 = vmatpush1.xpose.msra.mxu0 0.0
      %4156 = vmatprep.subr.mxu0 0.0
      %4157 = vmatpush1.xpose.msra.mxu0 0.0
      %4158 = vmatprep.subr.mxu0 0.0
      %4159 = vmatpush1.xpose.msra.mxu0 0.0
      %4160 = vmatprep.subr.mxu0 0.0
      %4161 = vmatpush1.xpose.msra.mxu0 0.0
      %4162 = vmatprep.subr.mxu0 0.0
      %4163 = vmatpush1.xpose.msra.mxu0 %v4130
      %4164 = vmatprep.subr.mxu0 0.0
      %4165 = vmatpush2.xpose.msra.mxu0 0.0
      %4166 = vmatprep.subr.mxu0 0.0
      %4167 = vmatpush2.xpose.msra.mxu0 0.0
      %4168 = vmatprep.subr.mxu0 0.0
      %4169 = vmatpush2.xpose.msra.mxu0 0.0
      %4170 = vmatprep.subr.mxu0 0.0
      %4171 = vmatpush2.xpose.msra.mxu0 0.0
      %4172 = vmatprep.subr.mxu0 0.0
      %4173 = vmatpush2.xpose.msra.mxu0 0.0
      %4174 = vmatprep.subr.mxu0 0.0
      %4175 = vmatpush2.xpose.msra.mxu0 0.0
      %4176 = vmatprep.subr.mxu0 0.0
      %4177 = vmatpush2.xpose.msra.mxu0 0.0
      %4178 = vmatprep.subr.mxu0 0.0
      %4179 = vmatpush2.xpose.msra.mxu0 0.0
      %4180 = vmatprep.subr.mxu0 0.0
      %4181 = vmatpush2.xpose.msra.mxu0 0.0
      %4182 = vmatprep.subr.mxu0 0.0
      %4183 = vmatpush2.xpose.msra.mxu0 0.0
      %4184 = vmatprep.subr.mxu0 0.0
      %4185 = vmatpush2.xpose.msra.mxu0 0.0
      %4186 = vmatprep.subr.mxu0 0.0
      %4187 = vmatpush2.xpose.msra.mxu0 0.0
      %4188 = vmatprep.subr.mxu0 0.0
      %4189 = vmatpush2.xpose.msra.mxu0 0.0
      %4190 = vmatprep.subr.mxu0 0.0
      %4191 = vmatpush2.xpose.msra.mxu0 0.0
      %4192 = vmatprep.subr.mxu0 0.0
      %4193 = vmatpush2.xpose.msra.mxu0 0.0
      %4194 = vmatprep.subr.mxu0 0.0
      %4195 = vmatpush2.xpose.msra.mxu0 0.0
      %4196 = vmatprep.mubr.f32.mxu0 0.0
      %4197 = vmatmul.mubr.f32.gmra.mxu0 %v4127
      %v4198 = vpop.f32.mrf.mxu0
      %v4199 = vadd.f32 0.0, %v4198
      %v4200 = vpop.f32.mrf.mxu0
      %4201 = vdwg.mxu0
      %v4203 = vsel %vm3061, %v1892, 0
      %v4206 = vsel %vm3061, %v2476, 0
      %4208 = vmatprep.subr.mxu0 0.0
      %4209 = vmatpush1.xpose.msra.mxu0 0.0
      %4210 = vmatprep.subr.mxu0 0.0
      %4211 = vmatpush1.xpose.msra.mxu0 0.0
      %4212 = vmatprep.subr.mxu0 0.0
      %4213 = vmatpush1.xpose.msra.mxu0 0.0
      %4214 = vmatprep.subr.mxu0 0.0
      %4215 = vmatpush1.xpose.msra.mxu0 0.0
      %4216 = vmatprep.subr.mxu0 0.0
      %4217 = vmatpush1.xpose.msra.mxu0 0.0
      %4218 = vmatprep.subr.mxu0 0.0
      %4219 = vmatpush1.xpose.msra.mxu0 0.0
      %4220 = vmatprep.subr.mxu0 0.0
      %4221 = vmatpush1.xpose.msra.mxu0 0.0
      %4222 = vmatprep.subr.mxu0 0.0
      %4223 = vmatpush1.xpose.msra.mxu0 0.0
      %4224 = vmatprep.subr.mxu0 0.0
      %4225 = vmatpush1.xpose.msra.mxu0 0.0
      %4226 = vmatprep.subr.mxu0 0.0
      %4227 = vmatpush1.xpose.msra.mxu0 0.0
      %4228 = vmatprep.subr.mxu0 0.0
      %4229 = vmatpush1.xpose.msra.mxu0 0.0
      %4230 = vmatprep.subr.mxu0 0.0
      %4231 = vmatpush1.xpose.msra.mxu0 0.0
      %4232 = vmatprep.subr.mxu0 0.0
      %4233 = vmatpush1.xpose.msra.mxu0 0.0
      %4234 = vmatprep.subr.mxu0 0.0
      %4235 = vmatpush1.xpose.msra.mxu0 0.0
      %4236 = vmatprep.subr.mxu0 0.0
      %4237 = vmatpush1.xpose.msra.mxu0 0.0
      %4238 = vmatprep.subr.mxu0 0.0
      %4239 = vmatpush1.xpose.msra.mxu0 %v4206
      %4240 = vmatprep.subr.mxu0 0.0
      %4241 = vmatpush2.xpose.msra.mxu0 0.0
      %4242 = vmatprep.subr.mxu0 0.0
      %4243 = vmatpush2.xpose.msra.mxu0 0.0
      %4244 = vmatprep.subr.mxu0 0.0
      %4245 = vmatpush2.xpose.msra.mxu0 0.0
      %4246 = vmatprep.subr.mxu0 0.0
      %4247 = vmatpush2.xpose.msra.mxu0 0.0
      %4248 = vmatprep.subr.mxu0 0.0
      %4249 = vmatpush2.xpose.msra.mxu0 0.0
      %4250 = vmatprep.subr.mxu0 0.0
      %4251 = vmatpush2.xpose.msra.mxu0 0.0
      %4252 = vmatprep.subr.mxu0 0.0
      %4253 = vmatpush2.xpose.msra.mxu0 0.0
      %4254 = vmatprep.subr.mxu0 0.0
      %4255 = vmatpush2.xpose.msra.mxu0 0.0
      %4256 = vmatprep.subr.mxu0 0.0
      %4257 = vmatpush2.xpose.msra.mxu0 0.0
      %4258 = vmatprep.subr.mxu0 0.0
      %4259 = vmatpush2.xpose.msra.mxu0 0.0
      %4260 = vmatprep.subr.mxu0 0.0
      %4261 = vmatpush2.xpose.msra.mxu0 0.0
      %4262 = vmatprep.subr.mxu0 0.0
      %4263 = vmatpush2.xpose.msra.mxu0 0.0
      %4264 = vmatprep.subr.mxu0 0.0
      %4265 = vmatpush2.xpose.msra.mxu0 0.0
      %4266 = vmatprep.subr.mxu0 0.0
      %4267 = vmatpush2.xpose.msra.mxu0 0.0
      %4268 = vmatprep.subr.mxu0 0.0
      %4269 = vmatpush2.xpose.msra.mxu0 0.0
      %4270 = vmatprep.subr.mxu0 0.0
      %4271 = vmatpush2.xpose.msra.mxu0 0.0
      %4272 = vmatprep.mubr.f32.mxu0 0.0
      %4273 = vmatmul.mubr.f32.gmra.mxu0 %v4203
      %v4274 = vpop.f32.mrf.mxu0
      %v4275 = vadd.f32 0.0, %v4274
      %v4276 = vpop.f32.mrf.mxu0
      %4277 = vdwg.mxu0
      %v4278 = vsel %vm3061, %v3135, -inf
      %4279 = vmax.xlane.f32.xlu0 %v4278
      %v4280 = vpop.xlane.xlu0 %4279
      %v4281 = vsel %vm3061, %v3211, -inf
      %4282 = vmax.xlane.f32.xlu0 %v4281
      %v4283 = vpop.xlane.xlu0 %4282
      %v4284 = vsel %vm3061, %v3287, -inf
      %4285 = vmax.xlane.f32.xlu0 %v4284
      %v4286 = vpop.xlane.xlu0 %4285
      %v4287 = vsel %vm3061, %v3363, -inf
      %4288 = vmax.xlane.f32.xlu0 %v4287
      %v4289 = vpop.xlane.xlu0 %4288
      %v4290 = vsel %vm3061, %v3439, -inf
      %4291 = vmax.xlane.f32.xlu0 %v4290
      %v4292 = vpop.xlane.xlu0 %4291
      %v4293 = vsel %vm3061, %v3515, -inf
      %4294 = vmax.xlane.f32.xlu0 %v4293
      %v4295 = vpop.xlane.xlu0 %4294
      %v4296 = vsel %vm3061, %v3591, -inf
      %4297 = vmax.xlane.f32.xlu0 %v4296
      %v4298 = vpop.xlane.xlu0 %4297
      %v4299 = vsel %vm3061, %v3667, -inf
      %4300 = vmax.xlane.f32.xlu0 %v4299
      %v4301 = vpop.xlane.xlu0 %4300
      %v4302 = vsel %vm3061, %v3743, -inf
      %4303 = vmax.xlane.f32.xlu0 %v4302
      %v4304 = vpop.xlane.xlu0 %4303
      %v4305 = vsel %vm3061, %v3819, -inf
      %4306 = vmax.xlane.f32.xlu0 %v4305
      %v4307 = vpop.xlane.xlu0 %4306
      %v4308 = vsel %vm3061, %v3895, -inf
      %4309 = vmax.xlane.f32.xlu0 %v4308
      %v4310 = vpop.xlane.xlu0 %4309
      %v4311 = vsel %vm3061, %v3971, -inf
      %4312 = vmax.xlane.f32.xlu0 %v4311
      %v4313 = vpop.xlane.xlu0 %4312
      %v4314 = vsel %vm3061, %v4047, -inf
      %4315 = vmax.xlane.f32.xlu0 %v4314
      %v4316 = vpop.xlane.xlu0 %4315
      %v4317 = vsel %vm3061, %v4123, -inf
      %4318 = vmax.xlane.f32.xlu0 %v4317
      %v4319 = vpop.xlane.xlu0 %4318
      %v4320 = vsel %vm3061, %v4199, -inf
      %4321 = vmax.xlane.f32.xlu0 %v4320
      %v4322 = vpop.xlane.xlu0 %4321
      %v4323 = vsel %vm3061, %v4275, -inf
      %4324 = vmax.xlane.f32.xlu0 %v4323
      %v4325 = vpop.xlane.xlu0 %4324
      %v4326 = vsub.f32 %v3135, %v4280
      %v4327 = vsub.f32 %v3211, %v4283
      %v4328 = vsub.f32 %v3287, %v4286
      %v4329 = vsub.f32 %v3363, %v4289
      %v4330 = vsub.f32 %v3439, %v4292
      %v4331 = vsub.f32 %v3515, %v4295
      %v4332 = vsub.f32 %v3591, %v4298
      %v4333 = vsub.f32 %v3667, %v4301
      %v4334 = vsub.f32 %v3743, %v4304
      %v4335 = vsub.f32 %v3819, %v4307
      %v4336 = vsub.f32 %v3895, %v4310
      %v4337 = vsub.f32 %v3971, %v4313
      %v4338 = vsub.f32 %v4047, %v4316
      %v4339 = vsub.f32 %v4123, %v4319
      %v4340 = vsub.f32 %v4199, %v4322
      %v4341 = vsub.f32 %v4275, %v4325
      %v4342 = vmul.f32 %v4326, 1.442695
      %v4343 = vpow.pop %v4342
      %v4344 = vmul.f32 %v4327, 1.442695
      %v4345 = vpow.pop %v4344
      %v4346 = vmul.f32 %v4328, 1.442695
      %v4347 = vpow.pop %v4346
      %v4348 = vmul.f32 %v4329, 1.442695
      %v4349 = vpow.pop %v4348
      %v4350 = vmul.f32 %v4330, 1.442695
      %v4351 = vpow.pop %v4350
      %v4352 = vmul.f32 %v4331, 1.442695
      %v4353 = vpow.pop %v4352
      %v4354 = vmul.f32 %v4332, 1.442695
      %v4355 = vpow.pop %v4354
      %v4356 = vmul.f32 %v4333, 1.442695
      %v4357 = vpow.pop %v4356
      %v4358 = vmul.f32 %v4334, 1.442695
      %v4359 = vpow.pop %v4358
      %v4360 = vmul.f32 %v4335, 1.442695
      %v4361 = vpow.pop %v4360
      %v4362 = vmul.f32 %v4336, 1.442695
      %v4363 = vpow.pop %v4362
      %v4364 = vmul.f32 %v4337, 1.442695
      %v4365 = vpow.pop %v4364
      %v4366 = vmul.f32 %v4338, 1.442695
      %v4367 = vpow.pop %v4366
      %v4368 = vmul.f32 %v4339, 1.442695
      %v4369 = vpow.pop %v4368
      %v4370 = vmul.f32 %v4340, 1.442695
      %v4371 = vpow.pop %v4370
      %v4372 = vmul.f32 %v4341, 1.442695
      %v4373 = vpow.pop %v4372
      %v4374 = vsel %vm3061, %v4343, 0.0
      %4375 = vadd.xlane.f32.xlu0 %v4374
      %v4376 = vpop.xlane.xlu0 %4375
      %v4377 = vsel %vm3061, %v4345, 0.0
      %4378 = vadd.xlane.f32.xlu0 %v4377
      %v4379 = vpop.xlane.xlu0 %4378
      %v4380 = vsel %vm3061, %v4347, 0.0
      %4381 = vadd.xlane.f32.xlu0 %v4380
      %v4382 = vpop.xlane.xlu0 %4381
      %v4383 = vsel %vm3061, %v4349, 0.0
      %4384 = vadd.xlane.f32.xlu0 %v4383
      %v4385 = vpop.xlane.xlu0 %4384
      %v4386 = vsel %vm3061, %v4351, 0.0
      %4387 = vadd.xlane.f32.xlu0 %v4386
      %v4388 = vpop.xlane.xlu0 %4387
      %v4389 = vsel %vm3061, %v4353, 0.0
      %4390 = vadd.xlane.f32.xlu0 %v4389
      %v4391 = vpop.xlane.xlu0 %4390
      %v4392 = vsel %vm3061, %v4355, 0.0
      %4393 = vadd.xlane.f32.xlu0 %v4392
      %v4394 = vpop.xlane.xlu0 %4393
      %v4395 = vsel %vm3061, %v4357, 0.0
      %4396 = vadd.xlane.f32.xlu0 %v4395
      %v4397 = vpop.xlane.xlu0 %4396
      %v4398 = vsel %vm3061, %v4359, 0.0
      %4399 = vadd.xlane.f32.xlu0 %v4398
      %v4400 = vpop.xlane.xlu0 %4399
      %v4401 = vsel %vm3061, %v4361, 0.0
      %4402 = vadd.xlane.f32.xlu0 %v4401
      %v4403 = vpop.xlane.xlu0 %4402
      %v4404 = vsel %vm3061, %v4363, 0.0
      %4405 = vadd.xlane.f32.xlu0 %v4404
      %v4406 = vpop.xlane.xlu0 %4405
      %v4407 = vsel %vm3061, %v4365, 0.0
      %4408 = vadd.xlane.f32.xlu0 %v4407
      %v4409 = vpop.xlane.xlu0 %4408
      %v4410 = vsel %vm3061, %v4367, 0.0
      %4411 = vadd.xlane.f32.xlu0 %v4410
      %v4412 = vpop.xlane.xlu0 %4411
      %v4413 = vsel %vm3061, %v4369, 0.0
      %4414 = vadd.xlane.f32.xlu0 %v4413
      %v4415 = vpop.xlane.xlu0 %4414
      %v4416 = vsel %vm3061, %v4371, 0.0
      %4417 = vadd.xlane.f32.xlu0 %v4416
      %v4418 = vpop.xlane.xlu0 %4417
      %v4419 = vsel %vm3061, %v4373, 0.0
      %4420 = vadd.xlane.f32.xlu0 %v4419
      %v4421 = vpop.xlane.xlu0 %4420
      %v4422 = vrcp.pop %v4376
      %v4423 = vrcp.pop %v4379
      %v4424 = vrcp.pop %v4382
      %v4425 = vrcp.pop %v4385
      %v4426 = vrcp.pop %v4388
      %v4427 = vrcp.pop %v4391
      %v4428 = vrcp.pop %v4394
      %v4429 = vrcp.pop %v4397
      %v4430 = vrcp.pop %v4400
      %v4431 = vrcp.pop %v4403
      %v4432 = vrcp.pop %v4406
      %v4433 = vrcp.pop %v4409
      %v4434 = vrcp.pop %v4412
      %v4435 = vrcp.pop %v4415
      %v4436 = vrcp.pop %v4418
      %v4437 = vrcp.pop %v4421
      %v4438 = vmul.f32 %v4343, %v4422
      %v4439 = vmul.f32 %v4345, %v4423
      %v4440 = vmul.f32 %v4347, %v4424
      %v4441 = vmul.f32 %v4349, %v4425
      %v4442 = vmul.f32 %v4351, %v4426
      %v4443 = vmul.f32 %v4353, %v4427
      %v4444 = vmul.f32 %v4355, %v4428
      %v4445 = vmul.f32 %v4357, %v4429
      %v4446 = vmul.f32 %v4359, %v4430
      %v4447 = vmul.f32 %v4361, %v4431
      %v4448 = vmul.f32 %v4363, %v4432
      %v4449 = vmul.f32 %v4365, %v4433
      %v4450 = vmul.f32 %v4367, %v4434
      %v4451 = vmul.f32 %v4369, %v4435
      %v4452 = vmul.f32 %v4371, %v4436
      %v4453 = vmul.f32 %v4373, %v4437
      %v4455 = vsel %vm3061, %v4438, 0
      %4457 = vmatprep.subr.mxu0 0.0
      %4458 = vmatpush1.msra.mxu0 0.0
      %4459 = vmatprep.subr.mxu0 0.0
      %4460 = vmatpush1.msra.mxu0 0.0
      %4461 = vmatprep.subr.mxu0 0.0
      %4462 = vmatpush1.msra.mxu0 0.0
      %4463 = vmatprep.subr.mxu0 0.0
      %4464 = vmatpush1.msra.mxu0 0.0
      %4465 = vmatprep.subr.mxu0 0.0
      %4466 = vmatpush1.msra.mxu0 0.0
      %4467 = vmatprep.subr.mxu0 0.0
      %4468 = vmatpush1.msra.mxu0 0.0
      %4469 = vmatprep.subr.mxu0 0.0
      %4470 = vmatpush1.msra.mxu0 0.0
      %4471 = vmatprep.subr.mxu0 0.0
      %4472 = vmatpush1.msra.mxu0 0.0
      %4473 = vmatprep.subr.mxu0 0.0
      %4474 = vmatpush1.msra.mxu0 0.0
      %4475 = vmatprep.subr.mxu0 0.0
      %4476 = vmatpush1.msra.mxu0 0.0
      %4477 = vmatprep.subr.mxu0 0.0
      %4478 = vmatpush1.msra.mxu0 0.0
      %4479 = vmatprep.subr.mxu0 0.0
      %4480 = vmatpush1.msra.mxu0 0.0
      %4481 = vmatprep.subr.mxu0 0.0
      %4482 = vmatpush1.msra.mxu0 0.0
      %4483 = vmatprep.subr.mxu0 0.0
      %4484 = vmatpush1.msra.mxu0 0.0
      %4485 = vmatprep.subr.mxu0 0.0
      %4486 = vmatpush1.msra.mxu0 0.0
      %4487 = vmatprep.subr.mxu0 0.0
      %4488 = vmatpush1.msra.mxu0 %v2853
      %4489 = vmatprep.subr.mxu0 0.0
      %4490 = vmatpush2.msra.mxu0 0.0
      %4491 = vmatprep.subr.mxu0 0.0
      %4492 = vmatpush2.msra.mxu0 0.0
      %4493 = vmatprep.subr.mxu0 0.0
      %4494 = vmatpush2.msra.mxu0 0.0
      %4495 = vmatprep.subr.mxu0 0.0
      %4496 = vmatpush2.msra.mxu0 0.0
      %4497 = vmatprep.subr.mxu0 0.0
      %4498 = vmatpush2.msra.mxu0 0.0
      %4499 = vmatprep.subr.mxu0 0.0
      %4500 = vmatpush2.msra.mxu0 0.0
      %4501 = vmatprep.subr.mxu0 0.0
      %4502 = vmatpush2.msra.mxu0 0.0
      %4503 = vmatprep.subr.mxu0 0.0
      %4504 = vmatpush2.msra.mxu0 0.0
      %4505 = vmatprep.subr.mxu0 0.0
      %4506 = vmatpush2.msra.mxu0 0.0
      %4507 = vmatprep.subr.mxu0 0.0
      %4508 = vmatpush2.msra.mxu0 0.0
      %4509 = vmatprep.subr.mxu0 0.0
      %4510 = vmatpush2.msra.mxu0 0.0
      %4511 = vmatprep.subr.mxu0 0.0
      %4512 = vmatpush2.msra.mxu0 0.0
      %4513 = vmatprep.subr.mxu0 0.0
      %4514 = vmatpush2.msra.mxu0 0.0
      %4515 = vmatprep.subr.mxu0 0.0
      %4516 = vmatpush2.msra.mxu0 0.0
      %4517 = vmatprep.subr.mxu0 0.0
      %4518 = vmatpush2.msra.mxu0 0.0
      %4519 = vmatprep.subr.mxu0 0.0
      %4520 = vmatpush2.msra.mxu0 0.0
      %4521 = vmatprep.mubr.f32.mxu0 0.0
      %4522 = vmatmul.mubr.f32.gmra.mxu0 %v4455
      %v4523 = vpop.f32.mrf.mxu0
      %v4524 = vadd.f32 0.0, %v4523
      %v4525 = vpop.f32.mrf.mxu0
      %4526 = vdwg.mxu0
      %v4528 = vsel %vm3061, %v4439, 0
      %4530 = vmatprep.subr.mxu0 0.0
      %4531 = vmatpush1.msra.mxu0 0.0
      %4532 = vmatprep.subr.mxu0 0.0
      %4533 = vmatpush1.msra.mxu0 0.0
      %4534 = vmatprep.subr.mxu0 0.0
      %4535 = vmatpush1.msra.mxu0 0.0
      %4536 = vmatprep.subr.mxu0 0.0
      %4537 = vmatpush1.msra.mxu0 0.0
      %4538 = vmatprep.subr.mxu0 0.0
      %4539 = vmatpush1.msra.mxu0 0.0
      %4540 = vmatprep.subr.mxu0 0.0
      %4541 = vmatpush1.msra.mxu0 0.0
      %4542 = vmatprep.subr.mxu0 0.0
      %4543 = vmatpush1.msra.mxu0 0.0
      %4544 = vmatprep.subr.mxu0 0.0
      %4545 = vmatpush1.msra.mxu0 0.0
      %4546 = vmatprep.subr.mxu0 0.0
      %4547 = vmatpush1.msra.mxu0 0.0
      %4548 = vmatprep.subr.mxu0 0.0
      %4549 = vmatpush1.msra.mxu0 0.0
      %4550 = vmatprep.subr.mxu0 0.0
      %4551 = vmatpush1.msra.mxu0 0.0
      %4552 = vmatprep.subr.mxu0 0.0
      %4553 = vmatpush1.msra.mxu0 0.0
      %4554 = vmatprep.subr.mxu0 0.0
      %4555 = vmatpush1.msra.mxu0 0.0
      %4556 = vmatprep.subr.mxu0 0.0
      %4557 = vmatpush1.msra.mxu0 0.0
      %4558 = vmatprep.subr.mxu0 0.0
      %4559 = vmatpush1.msra.mxu0 0.0
      %4560 = vmatprep.subr.mxu0 0.0
      %4561 = vmatpush1.msra.mxu0 %v2854
      %4562 = vmatprep.subr.mxu0 0.0
      %4563 = vmatpush2.msra.mxu0 0.0
      %4564 = vmatprep.subr.mxu0 0.0
      %4565 = vmatpush2.msra.mxu0 0.0
      %4566 = vmatprep.subr.mxu0 0.0
      %4567 = vmatpush2.msra.mxu0 0.0
      %4568 = vmatprep.subr.mxu0 0.0
      %4569 = vmatpush2.msra.mxu0 0.0
      %4570 = vmatprep.subr.mxu0 0.0
      %4571 = vmatpush2.msra.mxu0 0.0
      %4572 = vmatprep.subr.mxu0 0.0
      %4573 = vmatpush2.msra.mxu0 0.0
      %4574 = vmatprep.subr.mxu0 0.0
      %4575 = vmatpush2.msra.mxu0 0.0
      %4576 = vmatprep.subr.mxu0 0.0
      %4577 = vmatpush2.msra.mxu0 0.0
      %4578 = vmatprep.subr.mxu0 0.0
      %4579 = vmatpush2.msra.mxu0 0.0
      %4580 = vmatprep.subr.mxu0 0.0
      %4581 = vmatpush2.msra.mxu0 0.0
      %4582 = vmatprep.subr.mxu0 0.0
      %4583 = vmatpush2.msra.mxu0 0.0
      %4584 = vmatprep.subr.mxu0 0.0
      %4585 = vmatpush2.msra.mxu0 0.0
      %4586 = vmatprep.subr.mxu0 0.0
      %4587 = vmatpush2.msra.mxu0 0.0
      %4588 = vmatprep.subr.mxu0 0.0
      %4589 = vmatpush2.msra.mxu0 0.0
      %4590 = vmatprep.subr.mxu0 0.0
      %4591 = vmatpush2.msra.mxu0 0.0
      %4592 = vmatprep.subr.mxu0 0.0
      %4593 = vmatpush2.msra.mxu0 0.0
      %4594 = vmatprep.mubr.f32.mxu0 0.0
      %4595 = vmatmul.mubr.f32.gmra.mxu0 %v4528
      %v4596 = vpop.f32.mrf.mxu0
      %v4597 = vadd.f32 0.0, %v4596
      %v4598 = vpop.f32.mrf.mxu0
      %4599 = vdwg.mxu0
      %v4601 = vsel %vm3061, %v4440, 0
      %4603 = vmatprep.subr.mxu0 0.0
      %4604 = vmatpush1.msra.mxu0 0.0
      %4605 = vmatprep.subr.mxu0 0.0
      %4606 = vmatpush1.msra.mxu0 0.0
      %4607 = vmatprep.subr.mxu0 0.0
      %4608 = vmatpush1.msra.mxu0 0.0
      %4609 = vmatprep.subr.mxu0 0.0
      %4610 = vmatpush1.msra.mxu0 0.0
      %4611 = vmatprep.subr.mxu0 0.0
      %4612 = vmatpush1.msra.mxu0 0.0
      %4613 = vmatprep.subr.mxu0 0.0
      %4614 = vmatpush1.msra.mxu0 0.0
      %4615 = vmatprep.subr.mxu0 0.0
      %4616 = vmatpush1.msra.mxu0 0.0
      %4617 = vmatprep.subr.mxu0 0.0
      %4618 = vmatpush1.msra.mxu0 0.0
      %4619 = vmatprep.subr.mxu0 0.0
      %4620 = vmatpush1.msra.mxu0 0.0
      %4621 = vmatprep.subr.mxu0 0.0
      %4622 = vmatpush1.msra.mxu0 0.0
      %4623 = vmatprep.subr.mxu0 0.0
      %4624 = vmatpush1.msra.mxu0 0.0
      %4625 = vmatprep.subr.mxu0 0.0
      %4626 = vmatpush1.msra.mxu0 0.0
      %4627 = vmatprep.subr.mxu0 0.0
      %4628 = vmatpush1.msra.mxu0 0.0
      %4629 = vmatprep.subr.mxu0 0.0
      %4630 = vmatpush1.msra.mxu0 0.0
      %4631 = vmatprep.subr.mxu0 0.0
      %4632 = vmatpush1.msra.mxu0 0.0
      %4633 = vmatprep.subr.mxu0 0.0
      %4634 = vmatpush1.msra.mxu0 %v2855
      %4635 = vmatprep.subr.mxu0 0.0
      %4636 = vmatpush2.msra.mxu0 0.0
      %4637 = vmatprep.subr.mxu0 0.0
      %4638 = vmatpush2.msra.mxu0 0.0
      %4639 = vmatprep.subr.mxu0 0.0
      %4640 = vmatpush2.msra.mxu0 0.0
      %4641 = vmatprep.subr.mxu0 0.0
      %4642 = vmatpush2.msra.mxu0 0.0
      %4643 = vmatprep.subr.mxu0 0.0
      %4644 = vmatpush2.msra.mxu0 0.0
      %4645 = vmatprep.subr.mxu0 0.0
      %4646 = vmatpush2.msra.mxu0 0.0
      %4647 = vmatprep.subr.mxu0 0.0
      %4648 = vmatpush2.msra.mxu0 0.0
      %4649 = vmatprep.subr.mxu0 0.0
      %4650 = vmatpush2.msra.mxu0 0.0
      %4651 = vmatprep.subr.mxu0 0.0
      %4652 = vmatpush2.msra.mxu0 0.0
      %4653 = vmatprep.subr.mxu0 0.0
      %4654 = vmatpush2.msra.mxu0 0.0
      %4655 = vmatprep.subr.mxu0 0.0
      %4656 = vmatpush2.msra.mxu0 0.0
      %4657 = vmatprep.subr.mxu0 0.0
      %4658 = vmatpush2.msra.mxu0 0.0
      %4659 = vmatprep.subr.mxu0 0.0
      %4660 = vmatpush2.msra.mxu0 0.0
      %4661 = vmatprep.subr.mxu0 0.0
      %4662 = vmatpush2.msra.mxu0 0.0
      %4663 = vmatprep.subr.mxu0 0.0
      %4664 = vmatpush2.msra.mxu0 0.0
      %4665 = vmatprep.subr.mxu0 0.0
      %4666 = vmatpush2.msra.mxu0 0.0
      %4667 = vmatprep.mubr.f32.mxu0 0.0
      %4668 = vmatmul.mubr.f32.gmra.mxu0 %v4601
      %v4669 = vpop.f32.mrf.mxu0
      %v4670 = vadd.f32 0.0, %v4669
      %v4671 = vpop.f32.mrf.mxu0
      %4672 = vdwg.mxu0
      %v4674 = vsel %vm3061, %v4441, 0
      %4676 = vmatprep.subr.mxu0 0.0
      %4677 = vmatpush1.msra.mxu0 0.0
      %4678 = vmatprep.subr.mxu0 0.0
      %4679 = vmatpush1.msra.mxu0 0.0
      %4680 = vmatprep.subr.mxu0 0.0
      %4681 = vmatpush1.msra.mxu0 0.0
      %4682 = vmatprep.subr.mxu0 0.0
      %4683 = vmatpush1.msra.mxu0 0.0
      %4684 = vmatprep.subr.mxu0 0.0
      %4685 = vmatpush1.msra.mxu0 0.0
      %4686 = vmatprep.subr.mxu0 0.0
      %4687 = vmatpush1.msra.mxu0 0.0
      %4688 = vmatprep.subr.mxu0 0.0
      %4689 = vmatpush1.msra.mxu0 0.0
      %4690 = vmatprep.subr.mxu0 0.0
      %4691 = vmatpush1.msra.mxu0 0.0
      %4692 = vmatprep.subr.mxu0 0.0
      %4693 = vmatpush1.msra.mxu0 0.0
      %4694 = vmatprep.subr.mxu0 0.0
      %4695 = vmatpush1.msra.mxu0 0.0
      %4696 = vmatprep.subr.mxu0 0.0
      %4697 = vmatpush1.msra.mxu0 0.0
      %4698 = vmatprep.subr.mxu0 0.0
      %4699 = vmatpush1.msra.mxu0 0.0
      %4700 = vmatprep.subr.mxu0 0.0
      %4701 = vmatpush1.msra.mxu0 0.0
      %4702 = vmatprep.subr.mxu0 0.0
      %4703 = vmatpush1.msra.mxu0 0.0
      %4704 = vmatprep.subr.mxu0 0.0
      %4705 = vmatpush1.msra.mxu0 0.0
      %4706 = vmatprep.subr.mxu0 0.0
      %4707 = vmatpush1.msra.mxu0 %v2856
      %4708 = vmatprep.subr.mxu0 0.0
      %4709 = vmatpush2.msra.mxu0 0.0
      %4710 = vmatprep.subr.mxu0 0.0
      %4711 = vmatpush2.msra.mxu0 0.0
      %4712 = vmatprep.subr.mxu0 0.0
      %4713 = vmatpush2.msra.mxu0 0.0
      %4714 = vmatprep.subr.mxu0 0.0
      %4715 = vmatpush2.msra.mxu0 0.0
      %4716 = vmatprep.subr.mxu0 0.0
      %4717 = vmatpush2.msra.mxu0 0.0
      %4718 = vmatprep.subr.mxu0 0.0
      %4719 = vmatpush2.msra.mxu0 0.0
      %4720 = vmatprep.subr.mxu0 0.0
      %4721 = vmatpush2.msra.mxu0 0.0
      %4722 = vmatprep.subr.mxu0 0.0
      %4723 = vmatpush2.msra.mxu0 0.0
      %4724 = vmatprep.subr.mxu0 0.0
      %4725 = vmatpush2.msra.mxu0 0.0
      %4726 = vmatprep.subr.mxu0 0.0
      %4727 = vmatpush2.msra.mxu0 0.0
      %4728 = vmatprep.subr.mxu0 0.0
      %4729 = vmatpush2.msra.mxu0 0.0
      %4730 = vmatprep.subr.mxu0 0.0
      %4731 = vmatpush2.msra.mxu0 0.0
      %4732 = vmatprep.subr.mxu0 0.0
      %4733 = vmatpush2.msra.mxu0 0.0
      %4734 = vmatprep.subr.mxu0 0.0
      %4735 = vmatpush2.msra.mxu0 0.0
      %4736 = vmatprep.subr.mxu0 0.0
      %4737 = vmatpush2.msra.mxu0 0.0
      %4738 = vmatprep.subr.mxu0 0.0
      %4739 = vmatpush2.msra.mxu0 0.0
      %4740 = vmatprep.mubr.f32.mxu0 0.0
      %4741 = vmatmul.mubr.f32.gmra.mxu0 %v4674
      %v4742 = vpop.f32.mrf.mxu0
      %v4743 = vadd.f32 0.0, %v4742
      %v4744 = vpop.f32.mrf.mxu0
      %4745 = vdwg.mxu0
      %v4747 = vsel %vm3061, %v4442, 0
      %4749 = vmatprep.subr.mxu0 0.0
      %4750 = vmatpush1.msra.mxu0 0.0
      %4751 = vmatprep.subr.mxu0 0.0
      %4752 = vmatpush1.msra.mxu0 0.0
      %4753 = vmatprep.subr.mxu0 0.0
      %4754 = vmatpush1.msra.mxu0 0.0
      %4755 = vmatprep.subr.mxu0 0.0
      %4756 = vmatpush1.msra.mxu0 0.0
      %4757 = vmatprep.subr.mxu0 0.0
      %4758 = vmatpush1.msra.mxu0 0.0
      %4759 = vmatprep.subr.mxu0 0.0
      %4760 = vmatpush1.msra.mxu0 0.0
      %4761 = vmatprep.subr.mxu0 0.0
      %4762 = vmatpush1.msra.mxu0 0.0
      %4763 = vmatprep.subr.mxu0 0.0
      %4764 = vmatpush1.msra.mxu0 0.0
      %4765 = vmatprep.subr.mxu0 0.0
      %4766 = vmatpush1.msra.mxu0 0.0
      %4767 = vmatprep.subr.mxu0 0.0
      %4768 = vmatpush1.msra.mxu0 0.0
      %4769 = vmatprep.subr.mxu0 0.0
      %4770 = vmatpush1.msra.mxu0 0.0
      %4771 = vmatprep.subr.mxu0 0.0
      %4772 = vmatpush1.msra.mxu0 0.0
      %4773 = vmatprep.subr.mxu0 0.0
      %4774 = vmatpush1.msra.mxu0 0.0
      %4775 = vmatprep.subr.mxu0 0.0
      %4776 = vmatpush1.msra.mxu0 0.0
      %4777 = vmatprep.subr.mxu0 0.0
      %4778 = vmatpush1.msra.mxu0 0.0
      %4779 = vmatprep.subr.mxu0 0.0
      %4780 = vmatpush1.msra.mxu0 %v2921
      %4781 = vmatprep.subr.mxu0 0.0
      %4782 = vmatpush2.msra.mxu0 0.0
      %4783 = vmatprep.subr.mxu0 0.0
      %4784 = vmatpush2.msra.mxu0 0.0
      %4785 = vmatprep.subr.mxu0 0.0
      %4786 = vmatpush2.msra.mxu0 0.0
      %4787 = vmatprep.subr.mxu0 0.0
      %4788 = vmatpush2.msra.mxu0 0.0
      %4789 = vmatprep.subr.mxu0 0.0
      %4790 = vmatpush2.msra.mxu0 0.0
      %4791 = vmatprep.subr.mxu0 0.0
      %4792 = vmatpush2.msra.mxu0 0.0
      %4793 = vmatprep.subr.mxu0 0.0
      %4794 = vmatpush2.msra.mxu0 0.0
      %4795 = vmatprep.subr.mxu0 0.0
      %4796 = vmatpush2.msra.mxu0 0.0
      %4797 = vmatprep.subr.mxu0 0.0
      %4798 = vmatpush2.msra.mxu0 0.0
      %4799 = vmatprep.subr.mxu0 0.0
      %4800 = vmatpush2.msra.mxu0 0.0
      %4801 = vmatprep.subr.mxu0 0.0
      %4802 = vmatpush2.msra.mxu0 0.0
      %4803 = vmatprep.subr.mxu0 0.0
      %4804 = vmatpush2.msra.mxu0 0.0
      %4805 = vmatprep.subr.mxu0 0.0
      %4806 = vmatpush2.msra.mxu0 0.0
      %4807 = vmatprep.subr.mxu0 0.0
      %4808 = vmatpush2.msra.mxu0 0.0
      %4809 = vmatprep.subr.mxu0 0.0
      %4810 = vmatpush2.msra.mxu0 0.0
      %4811 = vmatprep.subr.mxu0 0.0
      %4812 = vmatpush2.msra.mxu0 0.0
      %4813 = vmatprep.mubr.f32.mxu0 0.0
      %4814 = vmatmul.mubr.f32.gmra.mxu0 %v4747
      %v4815 = vpop.f32.mrf.mxu0
      %v4816 = vadd.f32 0.0, %v4815
      %v4817 = vpop.f32.mrf.mxu0
      %4818 = vdwg.mxu0
      %v4820 = vsel %vm3061, %v4443, 0
      %4822 = vmatprep.subr.mxu0 0.0
      %4823 = vmatpush1.msra.mxu0 0.0
      %4824 = vmatprep.subr.mxu0 0.0
      %4825 = vmatpush1.msra.mxu0 0.0
      %4826 = vmatprep.subr.mxu0 0.0
      %4827 = vmatpush1.msra.mxu0 0.0
      %4828 = vmatprep.subr.mxu0 0.0
      %4829 = vmatpush1.msra.mxu0 0.0
      %4830 = vmatprep.subr.mxu0 0.0
      %4831 = vmatpush1.msra.mxu0 0.0
      %4832 = vmatprep.subr.mxu0 0.0
      %4833 = vmatpush1.msra.mxu0 0.0
      %4834 = vmatprep.subr.mxu0 0.0
      %4835 = vmatpush1.msra.mxu0 0.0
      %4836 = vmatprep.subr.mxu0 0.0
      %4837 = vmatpush1.msra.mxu0 0.0
      %4838 = vmatprep.subr.mxu0 0.0
      %4839 = vmatpush1.msra.mxu0 0.0
      %4840 = vmatprep.subr.mxu0 0.0
      %4841 = vmatpush1.msra.mxu0 0.0
      %4842 = vmatprep.subr.mxu0 0.0
      %4843 = vmatpush1.msra.mxu0 0.0
      %4844 = vmatprep.subr.mxu0 0.0
      %4845 = vmatpush1.msra.mxu0 0.0
      %4846 = vmatprep.subr.mxu0 0.0
      %4847 = vmatpush1.msra.mxu0 0.0
      %4848 = vmatprep.subr.mxu0 0.0
      %4849 = vmatpush1.msra.mxu0 0.0
      %4850 = vmatprep.subr.mxu0 0.0
      %4851 = vmatpush1.msra.mxu0 0.0
      %4852 = vmatprep.subr.mxu0 0.0
      %4853 = vmatpush1.msra.mxu0 %v2922
      %4854 = vmatprep.subr.mxu0 0.0
      %4855 = vmatpush2.msra.mxu0 0.0
      %4856 = vmatprep.subr.mxu0 0.0
      %4857 = vmatpush2.msra.mxu0 0.0
      %4858 = vmatprep.subr.mxu0 0.0
      %4859 = vmatpush2.msra.mxu0 0.0
      %4860 = vmatprep.subr.mxu0 0.0
      %4861 = vmatpush2.msra.mxu0 0.0
      %4862 = vmatprep.subr.mxu0 0.0
      %4863 = vmatpush2.msra.mxu0 0.0
      %4864 = vmatprep.subr.mxu0 0.0
      %4865 = vmatpush2.msra.mxu0 0.0
      %4866 = vmatprep.subr.mxu0 0.0
      %4867 = vmatpush2.msra.mxu0 0.0
      %4868 = vmatprep.subr.mxu0 0.0
      %4869 = vmatpush2.msra.mxu0 0.0
      %4870 = vmatprep.subr.mxu0 0.0
      %4871 = vmatpush2.msra.mxu0 0.0
      %4872 = vmatprep.subr.mxu0 0.0
      %4873 = vmatpush2.msra.mxu0 0.0
      %4874 = vmatprep.subr.mxu0 0.0
      %4875 = vmatpush2.msra.mxu0 0.0
      %4876 = vmatprep.subr.mxu0 0.0
      %4877 = vmatpush2.msra.mxu0 0.0
      %4878 = vmatprep.subr.mxu0 0.0
      %4879 = vmatpush2.msra.mxu0 0.0
      %4880 = vmatprep.subr.mxu0 0.0
      %4881 = vmatpush2.msra.mxu0 0.0
      %4882 = vmatprep.subr.mxu0 0.0
      %4883 = vmatpush2.msra.mxu0 0.0
      %4884 = vmatprep.subr.mxu0 0.0
      %4885 = vmatpush2.msra.mxu0 0.0
      %4886 = vmatprep.mubr.f32.mxu0 0.0
      %4887 = vmatmul.mubr.f32.gmra.mxu0 %v4820
      %v4888 = vpop.f32.mrf.mxu0
      %v4889 = vadd.f32 0.0, %v4888
      %v4890 = vpop.f32.mrf.mxu0
      %4891 = vdwg.mxu0
      %v4893 = vsel %vm3061, %v4444, 0
      %4895 = vmatprep.subr.mxu0 0.0
      %4896 = vmatpush1.msra.mxu0 0.0
      %4897 = vmatprep.subr.mxu0 0.0
      %4898 = vmatpush1.msra.mxu0 0.0
      %4899 = vmatprep.subr.mxu0 0.0
      %4900 = vmatpush1.msra.mxu0 0.0
      %4901 = vmatprep.subr.mxu0 0.0
      %4902 = vmatpush1.msra.mxu0 0.0
      %4903 = vmatprep.subr.mxu0 0.0
      %4904 = vmatpush1.msra.mxu0 0.0
      %4905 = vmatprep.subr.mxu0 0.0
      %4906 = vmatpush1.msra.mxu0 0.0
      %4907 = vmatprep.subr.mxu0 0.0
      %4908 = vmatpush1.msra.mxu0 0.0
      %4909 = vmatprep.subr.mxu0 0.0
      %4910 = vmatpush1.msra.mxu0 0.0
      %4911 = vmatprep.subr.mxu0 0.0
      %4912 = vmatpush1.msra.mxu0 0.0
      %4913 = vmatprep.subr.mxu0 0.0
      %4914 = vmatpush1.msra.mxu0 0.0
      %4915 = vmatprep.subr.mxu0 0.0
      %4916 = vmatpush1.msra.mxu0 0.0
      %4917 = vmatprep.subr.mxu0 0.0
      %4918 = vmatpush1.msra.mxu0 0.0
      %4919 = vmatprep.subr.mxu0 0.0
      %4920 = vmatpush1.msra.mxu0 0.0
      %4921 = vmatprep.subr.mxu0 0.0
      %4922 = vmatpush1.msra.mxu0 0.0
      %4923 = vmatprep.subr.mxu0 0.0
      %4924 = vmatpush1.msra.mxu0 0.0
      %4925 = vmatprep.subr.mxu0 0.0
      %4926 = vmatpush1.msra.mxu0 %v2923
      %4927 = vmatprep.subr.mxu0 0.0
      %4928 = vmatpush2.msra.mxu0 0.0
      %4929 = vmatprep.subr.mxu0 0.0
      %4930 = vmatpush2.msra.mxu0 0.0
      %4931 = vmatprep.subr.mxu0 0.0
      %4932 = vmatpush2.msra.mxu0 0.0
      %4933 = vmatprep.subr.mxu0 0.0
      %4934 = vmatpush2.msra.mxu0 0.0
      %4935 = vmatprep.subr.mxu0 0.0
      %4936 = vmatpush2.msra.mxu0 0.0
      %4937 = vmatprep.subr.mxu0 0.0
      %4938 = vmatpush2.msra.mxu0 0.0
      %4939 = vmatprep.subr.mxu0 0.0
      %4940 = vmatpush2.msra.mxu0 0.0
      %4941 = vmatprep.subr.mxu0 0.0
      %4942 = vmatpush2.msra.mxu0 0.0
      %4943 = vmatprep.subr.mxu0 0.0
      %4944 = vmatpush2.msra.mxu0 0.0
      %4945 = vmatprep.subr.mxu0 0.0
      %4946 = vmatpush2.msra.mxu0 0.0
      %4947 = vmatprep.subr.mxu0 0.0
      %4948 = vmatpush2.msra.mxu0 0.0
      %4949 = vmatprep.subr.mxu0 0.0
      %4950 = vmatpush2.msra.mxu0 0.0
      %4951 = vmatprep.subr.mxu0 0.0
      %4952 = vmatpush2.msra.mxu0 0.0
      %4953 = vmatprep.subr.mxu0 0.0
      %4954 = vmatpush2.msra.mxu0 0.0
      %4955 = vmatprep.subr.mxu0 0.0
      %4956 = vmatpush2.msra.mxu0 0.0
      %4957 = vmatprep.subr.mxu0 0.0
      %4958 = vmatpush2.msra.mxu0 0.0
      %4959 = vmatprep.mubr.f32.mxu0 0.0
      %4960 = vmatmul.mubr.f32.gmra.mxu0 %v4893
      %v4961 = vpop.f32.mrf.mxu0
      %v4962 = vadd.f32 0.0, %v4961
      %v4963 = vpop.f32.mrf.mxu0
      %4964 = vdwg.mxu0
      %v4966 = vsel %vm3061, %v4445, 0
      %4968 = vmatprep.subr.mxu0 0.0
      %4969 = vmatpush1.msra.mxu0 0.0
      %4970 = vmatprep.subr.mxu0 0.0
      %4971 = vmatpush1.msra.mxu0 0.0
      %4972 = vmatprep.subr.mxu0 0.0
      %4973 = vmatpush1.msra.mxu0 0.0
      %4974 = vmatprep.subr.mxu0 0.0
      %4975 = vmatpush1.msra.mxu0 0.0
      %4976 = vmatprep.subr.mxu0 0.0
      %4977 = vmatpush1.msra.mxu0 0.0
      %4978 = vmatprep.subr.mxu0 0.0
      %4979 = vmatpush1.msra.mxu0 0.0
      %4980 = vmatprep.subr.mxu0 0.0
      %4981 = vmatpush1.msra.mxu0 0.0
      %4982 = vmatprep.subr.mxu0 0.0
      %4983 = vmatpush1.msra.mxu0 0.0
      %4984 = vmatprep.subr.mxu0 0.0
      %4985 = vmatpush1.msra.mxu0 0.0
      %4986 = vmatprep.subr.mxu0 0.0
      %4987 = vmatpush1.msra.mxu0 0.0
      %4988 = vmatprep.subr.mxu0 0.0
      %4989 = vmatpush1.msra.mxu0 0.0
      %4990 = vmatprep.subr.mxu0 0.0
      %4991 = vmatpush1.msra.mxu0 0.0
      %4992 = vmatprep.subr.mxu0 0.0
      %4993 = vmatpush1.msra.mxu0 0.0
      %4994 = vmatprep.subr.mxu0 0.0
      %4995 = vmatpush1.msra.mxu0 0.0
      %4996 = vmatprep.subr.mxu0 0.0
      %4997 = vmatpush1.msra.mxu0 0.0
      %4998 = vmatprep.subr.mxu0 0.0
      %4999 = vmatpush1.msra.mxu0 %v2924
      %5000 = vmatprep.subr.mxu0 0.0
      %5001 = vmatpush2.msra.mxu0 0.0
      %5002 = vmatprep.subr.mxu0 0.0
      %5003 = vmatpush2.msra.mxu0 0.0
      %5004 = vmatprep.subr.mxu0 0.0
      %5005 = vmatpush2.msra.mxu0 0.0
      %5006 = vmatprep.subr.mxu0 0.0
      %5007 = vmatpush2.msra.mxu0 0.0
      %5008 = vmatprep.subr.mxu0 0.0
      %5009 = vmatpush2.msra.mxu0 0.0
      %5010 = vmatprep.subr.mxu0 0.0
      %5011 = vmatpush2.msra.mxu0 0.0
      %5012 = vmatprep.subr.mxu0 0.0
      %5013 = vmatpush2.msra.mxu0 0.0
      %5014 = vmatprep.subr.mxu0 0.0
      %5015 = vmatpush2.msra.mxu0 0.0
      %5016 = vmatprep.subr.mxu0 0.0
      %5017 = vmatpush2.msra.mxu0 0.0
      %5018 = vmatprep.subr.mxu0 0.0
      %5019 = vmatpush2.msra.mxu0 0.0
      %5020 = vmatprep.subr.mxu0 0.0
      %5021 = vmatpush2.msra.mxu0 0.0
      %5022 = vmatprep.subr.mxu0 0.0
      %5023 = vmatpush2.msra.mxu0 0.0
      %5024 = vmatprep.subr.mxu0 0.0
      %5025 = vmatpush2.msra.mxu0 0.0
      %5026 = vmatprep.subr.mxu0 0.0
      %5027 = vmatpush2.msra.mxu0 0.0
      %5028 = vmatprep.subr.mxu0 0.0
      %5029 = vmatpush2.msra.mxu0 0.0
      %5030 = vmatprep.subr.mxu0 0.0
      %5031 = vmatpush2.msra.mxu0 0.0
      %5032 = vmatprep.mubr.f32.mxu0 0.0
      %5033 = vmatmul.mubr.f32.gmra.mxu0 %v4966
      %v5034 = vpop.f32.mrf.mxu0
      %v5035 = vadd.f32 0.0, %v5034
      %v5036 = vpop.f32.mrf.mxu0
      %5037 = vdwg.mxu0
      %v5039 = vsel %vm3061, %v4446, 0
      %5041 = vmatprep.subr.mxu0 0.0
      %5042 = vmatpush1.msra.mxu0 0.0
      %5043 = vmatprep.subr.mxu0 0.0
      %5044 = vmatpush1.msra.mxu0 0.0
      %5045 = vmatprep.subr.mxu0 0.0
      %5046 = vmatpush1.msra.mxu0 0.0
      %5047 = vmatprep.subr.mxu0 0.0
      %5048 = vmatpush1.msra.mxu0 0.0
      %5049 = vmatprep.subr.mxu0 0.0
      %5050 = vmatpush1.msra.mxu0 0.0
      %5051 = vmatprep.subr.mxu0 0.0
      %5052 = vmatpush1.msra.mxu0 0.0
      %5053 = vmatprep.subr.mxu0 0.0
      %5054 = vmatpush1.msra.mxu0 0.0
      %5055 = vmatprep.subr.mxu0 0.0
      %5056 = vmatpush1.msra.mxu0 0.0
      %5057 = vmatprep.subr.mxu0 0.0
      %5058 = vmatpush1.msra.mxu0 0.0
      %5059 = vmatprep.subr.mxu0 0.0
      %5060 = vmatpush1.msra.mxu0 0.0
      %5061 = vmatprep.subr.mxu0 0.0
      %5062 = vmatpush1.msra.mxu0 0.0
      %5063 = vmatprep.subr.mxu0 0.0
      %5064 = vmatpush1.msra.mxu0 0.0
      %5065 = vmatprep.subr.mxu0 0.0
      %5066 = vmatpush1.msra.mxu0 0.0
      %5067 = vmatprep.subr.mxu0 0.0
      %5068 = vmatpush1.msra.mxu0 0.0
      %5069 = vmatprep.subr.mxu0 0.0
      %5070 = vmatpush1.msra.mxu0 0.0
      %5071 = vmatprep.subr.mxu0 0.0
      %5072 = vmatpush1.msra.mxu0 %v2989
      %5073 = vmatprep.subr.mxu0 0.0
      %5074 = vmatpush2.msra.mxu0 0.0
      %5075 = vmatprep.subr.mxu0 0.0
      %5076 = vmatpush2.msra.mxu0 0.0
      %5077 = vmatprep.subr.mxu0 0.0
      %5078 = vmatpush2.msra.mxu0 0.0
      %5079 = vmatprep.subr.mxu0 0.0
      %5080 = vmatpush2.msra.mxu0 0.0
      %5081 = vmatprep.subr.mxu0 0.0
      %5082 = vmatpush2.msra.mxu0 0.0
      %5083 = vmatprep.subr.mxu0 0.0
      %5084 = vmatpush2.msra.mxu0 0.0
      %5085 = vmatprep.subr.mxu0 0.0
      %5086 = vmatpush2.msra.mxu0 0.0
      %5087 = vmatprep.subr.mxu0 0.0
      %5088 = vmatpush2.msra.mxu0 0.0
      %5089 = vmatprep.subr.mxu0 0.0
      %5090 = vmatpush2.msra.mxu0 0.0
      %5091 = vmatprep.subr.mxu0 0.0
      %5092 = vmatpush2.msra.mxu0 0.0
      %5093 = vmatprep.subr.mxu0 0.0
      %5094 = vmatpush2.msra.mxu0 0.0
      %5095 = vmatprep.subr.mxu0 0.0
      %5096 = vmatpush2.msra.mxu0 0.0
      %5097 = vmatprep.subr.mxu0 0.0
      %5098 = vmatpush2.msra.mxu0 0.0
      %5099 = vmatprep.subr.mxu0 0.0
      %5100 = vmatpush2.msra.mxu0 0.0
      %5101 = vmatprep.subr.mxu0 0.0
      %5102 = vmatpush2.msra.mxu0 0.0
      %5103 = vmatprep.subr.mxu0 0.0
      %5104 = vmatpush2.msra.mxu0 0.0
      %5105 = vmatprep.mubr.f32.mxu0 0.0
      %5106 = vmatmul.mubr.f32.gmra.mxu0 %v5039
      %v5107 = vpop.f32.mrf.mxu0
      %v5108 = vadd.f32 0.0, %v5107
      %v5109 = vpop.f32.mrf.mxu0
      %5110 = vdwg.mxu0
      %v5112 = vsel %vm3061, %v4447, 0
      %5114 = vmatprep.subr.mxu0 0.0
      %5115 = vmatpush1.msra.mxu0 0.0
      %5116 = vmatprep.subr.mxu0 0.0
      %5117 = vmatpush1.msra.mxu0 0.0
      %5118 = vmatprep.subr.mxu0 0.0
      %5119 = vmatpush1.msra.mxu0 0.0
      %5120 = vmatprep.subr.mxu0 0.0
      %5121 = vmatpush1.msra.mxu0 0.0
      %5122 = vmatprep.subr.mxu0 0.0
      %5123 = vmatpush1.msra.mxu0 0.0
      %5124 = vmatprep.subr.mxu0 0.0
      %5125 = vmatpush1.msra.mxu0 0.0
      %5126 = vmatprep.subr.mxu0 0.0
      %5127 = vmatpush1.msra.mxu0 0.0
      %5128 = vmatprep.subr.mxu0 0.0
      %5129 = vmatpush1.msra.mxu0 0.0
      %5130 = vmatprep.subr.mxu0 0.0
      %5131 = vmatpush1.msra.mxu0 0.0
      %5132 = vmatprep.subr.mxu0 0.0
      %5133 = vmatpush1.msra.mxu0 0.0
      %5134 = vmatprep.subr.mxu0 0.0
      %5135 = vmatpush1.msra.mxu0 0.0
      %5136 = vmatprep.subr.mxu0 0.0
      %5137 = vmatpush1.msra.mxu0 0.0
      %5138 = vmatprep.subr.mxu0 0.0
      %5139 = vmatpush1.msra.mxu0 0.0
      %5140 = vmatprep.subr.mxu0 0.0
      %5141 = vmatpush1.msra.mxu0 0.0
      %5142 = vmatprep.subr.mxu0 0.0
      %5143 = vmatpush1.msra.mxu0 0.0
      %5144 = vmatprep.subr.mxu0 0.0
      %5145 = vmatpush1.msra.mxu0 %v2990
      %5146 = vmatprep.subr.mxu0 0.0
      %5147 = vmatpush2.msra.mxu0 0.0
      %5148 = vmatprep.subr.mxu0 0.0
      %5149 = vmatpush2.msra.mxu0 0.0
      %5150 = vmatprep.subr.mxu0 0.0
      %5151 = vmatpush2.msra.mxu0 0.0
      %5152 = vmatprep.subr.mxu0 0.0
      %5153 = vmatpush2.msra.mxu0 0.0
      %5154 = vmatprep.subr.mxu0 0.0
      %5155 = vmatpush2.msra.mxu0 0.0
      %5156 = vmatprep.subr.mxu0 0.0
      %5157 = vmatpush2.msra.mxu0 0.0
      %5158 = vmatprep.subr.mxu0 0.0
      %5159 = vmatpush2.msra.mxu0 0.0
      %5160 = vmatprep.subr.mxu0 0.0
      %5161 = vmatpush2.msra.mxu0 0.0
      %5162 = vmatprep.subr.mxu0 0.0
      %5163 = vmatpush2.msra.mxu0 0.0
      %5164 = vmatprep.subr.mxu0 0.0
      %5165 = vmatpush2.msra.mxu0 0.0
      %5166 = vmatprep.subr.mxu0 0.0
      %5167 = vmatpush2.msra.mxu0 0.0
      %5168 = vmatprep.subr.mxu0 0.0
      %5169 = vmatpush2.msra.mxu0 0.0
      %5170 = vmatprep.subr.mxu0 0.0
      %5171 = vmatpush2.msra.mxu0 0.0
      %5172 = vmatprep.subr.mxu0 0.0
      %5173 = vmatpush2.msra.mxu0 0.0
      %5174 = vmatprep.subr.mxu0 0.0
      %5175 = vmatpush2.msra.mxu0 0.0
      %5176 = vmatprep.subr.mxu0 0.0
      %5177 = vmatpush2.msra.mxu0 0.0
      %5178 = vmatprep.mubr.f32.mxu0 0.0
      %5179 = vmatmul.mubr.f32.gmra.mxu0 %v5112
      %v5180 = vpop.f32.mrf.mxu0
      %v5181 = vadd.f32 0.0, %v5180
      %v5182 = vpop.f32.mrf.mxu0
      %5183 = vdwg.mxu0
      %v5185 = vsel %vm3061, %v4448, 0
      %5187 = vmatprep.subr.mxu0 0.0
      %5188 = vmatpush1.msra.mxu0 0.0
      %5189 = vmatprep.subr.mxu0 0.0
      %5190 = vmatpush1.msra.mxu0 0.0
      %5191 = vmatprep.subr.mxu0 0.0
      %5192 = vmatpush1.msra.mxu0 0.0
      %5193 = vmatprep.subr.mxu0 0.0
      %5194 = vmatpush1.msra.mxu0 0.0
      %5195 = vmatprep.subr.mxu0 0.0
      %5196 = vmatpush1.msra.mxu0 0.0
      %5197 = vmatprep.subr.mxu0 0.0
      %5198 = vmatpush1.msra.mxu0 0.0
      %5199 = vmatprep.subr.mxu0 0.0
      %5200 = vmatpush1.msra.mxu0 0.0
      %5201 = vmatprep.subr.mxu0 0.0
      %5202 = vmatpush1.msra.mxu0 0.0
      %5203 = vmatprep.subr.mxu0 0.0
      %5204 = vmatpush1.msra.mxu0 0.0
      %5205 = vmatprep.subr.mxu0 0.0
      %5206 = vmatpush1.msra.mxu0 0.0
      %5207 = vmatprep.subr.mxu0 0.0
      %5208 = vmatpush1.msra.mxu0 0.0
      %5209 = vmatprep.subr.mxu0 0.0
      %5210 = vmatpush1.msra.mxu0 0.0
      %5211 = vmatprep.subr.mxu0 0.0
      %5212 = vmatpush1.msra.mxu0 0.0
      %5213 = vmatprep.subr.mxu0 0.0
      %5214 = vmatpush1.msra.mxu0 0.0
      %5215 = vmatprep.subr.mxu0 0.0
      %5216 = vmatpush1.msra.mxu0 0.0
      %5217 = vmatprep.subr.mxu0 0.0
      %5218 = vmatpush1.msra.mxu0 %v2991
      %5219 = vmatprep.subr.mxu0 0.0
      %5220 = vmatpush2.msra.mxu0 0.0
      %5221 = vmatprep.subr.mxu0 0.0
      %5222 = vmatpush2.msra.mxu0 0.0
      %5223 = vmatprep.subr.mxu0 0.0
      %5224 = vmatpush2.msra.mxu0 0.0
      %5225 = vmatprep.subr.mxu0 0.0
      %5226 = vmatpush2.msra.mxu0 0.0
      %5227 = vmatprep.subr.mxu0 0.0
      %5228 = vmatpush2.msra.mxu0 0.0
      %5229 = vmatprep.subr.mxu0 0.0
      %5230 = vmatpush2.msra.mxu0 0.0
      %5231 = vmatprep.subr.mxu0 0.0
      %5232 = vmatpush2.msra.mxu0 0.0
      %5233 = vmatprep.subr.mxu0 0.0
      %5234 = vmatpush2.msra.mxu0 0.0
      %5235 = vmatprep.subr.mxu0 0.0
      %5236 = vmatpush2.msra.mxu0 0.0
      %5237 = vmatprep.subr.mxu0 0.0
      %5238 = vmatpush2.msra.mxu0 0.0
      %5239 = vmatprep.subr.mxu0 0.0
      %5240 = vmatpush2.msra.mxu0 0.0
      %5241 = vmatprep.subr.mxu0 0.0
      %5242 = vmatpush2.msra.mxu0 0.0
      %5243 = vmatprep.subr.mxu0 0.0
      %5244 = vmatpush2.msra.mxu0 0.0
      %5245 = vmatprep.subr.mxu0 0.0
      %5246 = vmatpush2.msra.mxu0 0.0
      %5247 = vmatprep.subr.mxu0 0.0
      %5248 = vmatpush2.msra.mxu0 0.0
      %5249 = vmatprep.subr.mxu0 0.0
      %5250 = vmatpush2.msra.mxu0 0.0
      %5251 = vmatprep.mubr.f32.mxu0 0.0
      %5252 = vmatmul.mubr.f32.gmra.mxu0 %v5185
      %v5253 = vpop.f32.mrf.mxu0
      %v5254 = vadd.f32 0.0, %v5253
      %v5255 = vpop.f32.mrf.mxu0
      %5256 = vdwg.mxu0
      %v5258 = vsel %vm3061, %v4449, 0
      %5260 = vmatprep.subr.mxu0 0.0
      %5261 = vmatpush1.msra.mxu0 0.0
      %5262 = vmatprep.subr.mxu0 0.0
      %5263 = vmatpush1.msra.mxu0 0.0
      %5264 = vmatprep.subr.mxu0 0.0
      %5265 = vmatpush1.msra.mxu0 0.0
      %5266 = vmatprep.subr.mxu0 0.0
      %5267 = vmatpush1.msra.mxu0 0.0
      %5268 = vmatprep.subr.mxu0 0.0
      %5269 = vmatpush1.msra.mxu0 0.0
      %5270 = vmatprep.subr.mxu0 0.0
      %5271 = vmatpush1.msra.mxu0 0.0
      %5272 = vmatprep.subr.mxu0 0.0
      %5273 = vmatpush1.msra.mxu0 0.0
      %5274 = vmatprep.subr.mxu0 0.0
      %5275 = vmatpush1.msra.mxu0 0.0
      %5276 = vmatprep.subr.mxu0 0.0
      %5277 = vmatpush1.msra.mxu0 0.0
      %5278 = vmatprep.subr.mxu0 0.0
      %5279 = vmatpush1.msra.mxu0 0.0
      %5280 = vmatprep.subr.mxu0 0.0
      %5281 = vmatpush1.msra.mxu0 0.0
      %5282 = vmatprep.subr.mxu0 0.0
      %5283 = vmatpush1.msra.mxu0 0.0
      %5284 = vmatprep.subr.mxu0 0.0
      %5285 = vmatpush1.msra.mxu0 0.0
      %5286 = vmatprep.subr.mxu0 0.0
      %5287 = vmatpush1.msra.mxu0 0.0
      %5288 = vmatprep.subr.mxu0 0.0
      %5289 = vmatpush1.msra.mxu0 0.0
      %5290 = vmatprep.subr.mxu0 0.0
      %5291 = vmatpush1.msra.mxu0 %v2992
      %5292 = vmatprep.subr.mxu0 0.0
      %5293 = vmatpush2.msra.mxu0 0.0
      %5294 = vmatprep.subr.mxu0 0.0
      %5295 = vmatpush2.msra.mxu0 0.0
      %5296 = vmatprep.subr.mxu0 0.0
      %5297 = vmatpush2.msra.mxu0 0.0
      %5298 = vmatprep.subr.mxu0 0.0
      %5299 = vmatpush2.msra.mxu0 0.0
      %5300 = vmatprep.subr.mxu0 0.0
      %5301 = vmatpush2.msra.mxu0 0.0
      %5302 = vmatprep.subr.mxu0 0.0
      %5303 = vmatpush2.msra.mxu0 0.0
      %5304 = vmatprep.subr.mxu0 0.0
      %5305 = vmatpush2.msra.mxu0 0.0
      %5306 = vmatprep.subr.mxu0 0.0
      %5307 = vmatpush2.msra.mxu0 0.0
      %5308 = vmatprep.subr.mxu0 0.0
      %5309 = vmatpush2.msra.mxu0 0.0
      %5310 = vmatprep.subr.mxu0 0.0
      %5311 = vmatpush2.msra.mxu0 0.0
      %5312 = vmatprep.subr.mxu0 0.0
      %5313 = vmatpush2.msra.mxu0 0.0
      %5314 = vmatprep.subr.mxu0 0.0
      %5315 = vmatpush2.msra.mxu0 0.0
      %5316 = vmatprep.subr.mxu0 0.0
      %5317 = vmatpush2.msra.mxu0 0.0
      %5318 = vmatprep.subr.mxu0 0.0
      %5319 = vmatpush2.msra.mxu0 0.0
      %5320 = vmatprep.subr.mxu0 0.0
      %5321 = vmatpush2.msra.mxu0 0.0
      %5322 = vmatprep.subr.mxu0 0.0
      %5323 = vmatpush2.msra.mxu0 0.0
      %5324 = vmatprep.mubr.f32.mxu0 0.0
      %5325 = vmatmul.mubr.f32.gmra.mxu0 %v5258
      %v5326 = vpop.f32.mrf.mxu0
      %v5327 = vadd.f32 0.0, %v5326
      %v5328 = vpop.f32.mrf.mxu0
      %5329 = vdwg.mxu0
      %v5331 = vsel %vm3061, %v4450, 0
      %5333 = vmatprep.subr.mxu0 0.0
      %5334 = vmatpush1.msra.mxu0 0.0
      %5335 = vmatprep.subr.mxu0 0.0
      %5336 = vmatpush1.msra.mxu0 0.0
      %5337 = vmatprep.subr.mxu0 0.0
      %5338 = vmatpush1.msra.mxu0 0.0
      %5339 = vmatprep.subr.mxu0 0.0
      %5340 = vmatpush1.msra.mxu0 0.0
      %5341 = vmatprep.subr.mxu0 0.0
      %5342 = vmatpush1.msra.mxu0 0.0
      %5343 = vmatprep.subr.mxu0 0.0
      %5344 = vmatpush1.msra.mxu0 0.0
      %5345 = vmatprep.subr.mxu0 0.0
      %5346 = vmatpush1.msra.mxu0 0.0
      %5347 = vmatprep.subr.mxu0 0.0
      %5348 = vmatpush1.msra.mxu0 0.0
      %5349 = vmatprep.subr.mxu0 0.0
      %5350 = vmatpush1.msra.mxu0 0.0
      %5351 = vmatprep.subr.mxu0 0.0
      %5352 = vmatpush1.msra.mxu0 0.0
      %5353 = vmatprep.subr.mxu0 0.0
      %5354 = vmatpush1.msra.mxu0 0.0
      %5355 = vmatprep.subr.mxu0 0.0
      %5356 = vmatpush1.msra.mxu0 0.0
      %5357 = vmatprep.subr.mxu0 0.0
      %5358 = vmatpush1.msra.mxu0 0.0
      %5359 = vmatprep.subr.mxu0 0.0
      %5360 = vmatpush1.msra.mxu0 0.0
      %5361 = vmatprep.subr.mxu0 0.0
      %5362 = vmatpush1.msra.mxu0 0.0
      %5363 = vmatprep.subr.mxu0 0.0
      %5364 = vmatpush1.msra.mxu0 %v3057
      %5365 = vmatprep.subr.mxu0 0.0
      %5366 = vmatpush2.msra.mxu0 0.0
      %5367 = vmatprep.subr.mxu0 0.0
      %5368 = vmatpush2.msra.mxu0 0.0
      %5369 = vmatprep.subr.mxu0 0.0
      %5370 = vmatpush2.msra.mxu0 0.0
      %5371 = vmatprep.subr.mxu0 0.0
      %5372 = vmatpush2.msra.mxu0 0.0
      %5373 = vmatprep.subr.mxu0 0.0
      %5374 = vmatpush2.msra.mxu0 0.0
      %5375 = vmatprep.subr.mxu0 0.0
      %5376 = vmatpush2.msra.mxu0 0.0
      %5377 = vmatprep.subr.mxu0 0.0
      %5378 = vmatpush2.msra.mxu0 0.0
      %5379 = vmatprep.subr.mxu0 0.0
      %5380 = vmatpush2.msra.mxu0 0.0
      %5381 = vmatprep.subr.mxu0 0.0
      %5382 = vmatpush2.msra.mxu0 0.0
      %5383 = vmatprep.subr.mxu0 0.0
      %5384 = vmatpush2.msra.mxu0 0.0
      %5385 = vmatprep.subr.mxu0 0.0
      %5386 = vmatpush2.msra.mxu0 0.0
      %5387 = vmatprep.subr.mxu0 0.0
      %5388 = vmatpush2.msra.mxu0 0.0
      %5389 = vmatprep.subr.mxu0 0.0
      %5390 = vmatpush2.msra.mxu0 0.0
      %5391 = vmatprep.subr.mxu0 0.0
      %5392 = vmatpush2.msra.mxu0 0.0
      %5393 = vmatprep.subr.mxu0 0.0
      %5394 = vmatpush2.msra.mxu0 0.0
      %5395 = vmatprep.subr.mxu0 0.0
      %5396 = vmatpush2.msra.mxu0 0.0
      %5397 = vmatprep.mubr.f32.mxu0 0.0
      %5398 = vmatmul.mubr.f32.gmra.mxu0 %v5331
      %v5399 = vpop.f32.mrf.mxu0
      %v5400 = vadd.f32 0.0, %v5399
      %v5401 = vpop.f32.mrf.mxu0
      %5402 = vdwg.mxu0
      %v5404 = vsel %vm3061, %v4451, 0
      %5406 = vmatprep.subr.mxu0 0.0
      %5407 = vmatpush1.msra.mxu0 0.0
      %5408 = vmatprep.subr.mxu0 0.0
      %5409 = vmatpush1.msra.mxu0 0.0
      %5410 = vmatprep.subr.mxu0 0.0
      %5411 = vmatpush1.msra.mxu0 0.0
      %5412 = vmatprep.subr.mxu0 0.0
      %5413 = vmatpush1.msra.mxu0 0.0
      %5414 = vmatprep.subr.mxu0 0.0
      %5415 = vmatpush1.msra.mxu0 0.0
      %5416 = vmatprep.subr.mxu0 0.0
      %5417 = vmatpush1.msra.mxu0 0.0
      %5418 = vmatprep.subr.mxu0 0.0
      %5419 = vmatpush1.msra.mxu0 0.0
      %5420 = vmatprep.subr.mxu0 0.0
      %5421 = vmatpush1.msra.mxu0 0.0
      %5422 = vmatprep.subr.mxu0 0.0
      %5423 = vmatpush1.msra.mxu0 0.0
      %5424 = vmatprep.subr.mxu0 0.0
      %5425 = vmatpush1.msra.mxu0 0.0
      %5426 = vmatprep.subr.mxu0 0.0
      %5427 = vmatpush1.msra.mxu0 0.0
      %5428 = vmatprep.subr.mxu0 0.0
      %5429 = vmatpush1.msra.mxu0 0.0
      %5430 = vmatprep.subr.mxu0 0.0
      %5431 = vmatpush1.msra.mxu0 0.0
      %5432 = vmatprep.subr.mxu0 0.0
      %5433 = vmatpush1.msra.mxu0 0.0
      %5434 = vmatprep.subr.mxu0 0.0
      %5435 = vmatpush1.msra.mxu0 0.0
      %5436 = vmatprep.subr.mxu0 0.0
      %5437 = vmatpush1.msra.mxu0 %v3058
      %5438 = vmatprep.subr.mxu0 0.0
      %5439 = vmatpush2.msra.mxu0 0.0
      %5440 = vmatprep.subr.mxu0 0.0
      %5441 = vmatpush2.msra.mxu0 0.0
      %5442 = vmatprep.subr.mxu0 0.0
      %5443 = vmatpush2.msra.mxu0 0.0
      %5444 = vmatprep.subr.mxu0 0.0
      %5445 = vmatpush2.msra.mxu0 0.0
      %5446 = vmatprep.subr.mxu0 0.0
      %5447 = vmatpush2.msra.mxu0 0.0
      %5448 = vmatprep.subr.mxu0 0.0
      %5449 = vmatpush2.msra.mxu0 0.0
      %5450 = vmatprep.subr.mxu0 0.0
      %5451 = vmatpush2.msra.mxu0 0.0
      %5452 = vmatprep.subr.mxu0 0.0
      %5453 = vmatpush2.msra.mxu0 0.0
      %5454 = vmatprep.subr.mxu0 0.0
      %5455 = vmatpush2.msra.mxu0 0.0
      %5456 = vmatprep.subr.mxu0 0.0
      %5457 = vmatpush2.msra.mxu0 0.0
      %5458 = vmatprep.subr.mxu0 0.0
      %5459 = vmatpush2.msra.mxu0 0.0
      %5460 = vmatprep.subr.mxu0 0.0
      %5461 = vmatpush2.msra.mxu0 0.0
      %5462 = vmatprep.subr.mxu0 0.0
      %5463 = vmatpush2.msra.mxu0 0.0
      %5464 = vmatprep.subr.mxu0 0.0
      %5465 = vmatpush2.msra.mxu0 0.0
      %5466 = vmatprep.subr.mxu0 0.0
      %5467 = vmatpush2.msra.mxu0 0.0
      %5468 = vmatprep.subr.mxu0 0.0
      %5469 = vmatpush2.msra.mxu0 0.0
      %5470 = vmatprep.mubr.f32.mxu0 0.0
      %5471 = vmatmul.mubr.f32.gmra.mxu0 %v5404
      %v5472 = vpop.f32.mrf.mxu0
      %v5473 = vadd.f32 0.0, %v5472
      %v5474 = vpop.f32.mrf.mxu0
      %5475 = vdwg.mxu0
      %v5477 = vsel %vm3061, %v4452, 0
      %5479 = vmatprep.subr.mxu0 0.0
      %5480 = vmatpush1.msra.mxu0 0.0
      %5481 = vmatprep.subr.mxu0 0.0
      %5482 = vmatpush1.msra.mxu0 0.0
      %5483 = vmatprep.subr.mxu0 0.0
      %5484 = vmatpush1.msra.mxu0 0.0
      %5485 = vmatprep.subr.mxu0 0.0
      %5486 = vmatpush1.msra.mxu0 0.0
      %5487 = vmatprep.subr.mxu0 0.0
      %5488 = vmatpush1.msra.mxu0 0.0
      %5489 = vmatprep.subr.mxu0 0.0
      %5490 = vmatpush1.msra.mxu0 0.0
      %5491 = vmatprep.subr.mxu0 0.0
      %5492 = vmatpush1.msra.mxu0 0.0
      %5493 = vmatprep.subr.mxu0 0.0
      %5494 = vmatpush1.msra.mxu0 0.0
      %5495 = vmatprep.subr.mxu0 0.0
      %5496 = vmatpush1.msra.mxu0 0.0
      %5497 = vmatprep.subr.mxu0 0.0
      %5498 = vmatpush1.msra.mxu0 0.0
      %5499 = vmatprep.subr.mxu0 0.0
      %5500 = vmatpush1.msra.mxu0 0.0
      %5501 = vmatprep.subr.mxu0 0.0
      %5502 = vmatpush1.msra.mxu0 0.0
      %5503 = vmatprep.subr.mxu0 0.0
      %5504 = vmatpush1.msra.mxu0 0.0
      %5505 = vmatprep.subr.mxu0 0.0
      %5506 = vmatpush1.msra.mxu0 0.0
      %5507 = vmatprep.subr.mxu0 0.0
      %5508 = vmatpush1.msra.mxu0 0.0
      %5509 = vmatprep.subr.mxu0 0.0
      %5510 = vmatpush1.msra.mxu0 %v3059
      %5511 = vmatprep.subr.mxu0 0.0
      %5512 = vmatpush2.msra.mxu0 0.0
      %5513 = vmatprep.subr.mxu0 0.0
      %5514 = vmatpush2.msra.mxu0 0.0
      %5515 = vmatprep.subr.mxu0 0.0
      %5516 = vmatpush2.msra.mxu0 0.0
      %5517 = vmatprep.subr.mxu0 0.0
      %5518 = vmatpush2.msra.mxu0 0.0
      %5519 = vmatprep.subr.mxu0 0.0
      %5520 = vmatpush2.msra.mxu0 0.0
      %5521 = vmatprep.subr.mxu0 0.0
      %5522 = vmatpush2.msra.mxu0 0.0
      %5523 = vmatprep.subr.mxu0 0.0
      %5524 = vmatpush2.msra.mxu0 0.0
      %5525 = vmatprep.subr.mxu0 0.0
      %5526 = vmatpush2.msra.mxu0 0.0
      %5527 = vmatprep.subr.mxu0 0.0
      %5528 = vmatpush2.msra.mxu0 0.0
      %5529 = vmatprep.subr.mxu0 0.0
      %5530 = vmatpush2.msra.mxu0 0.0
      %5531 = vmatprep.subr.mxu0 0.0
      %5532 = vmatpush2.msra.mxu0 0.0
      %5533 = vmatprep.subr.mxu0 0.0
      %5534 = vmatpush2.msra.mxu0 0.0
      %5535 = vmatprep.subr.mxu0 0.0
      %5536 = vmatpush2.msra.mxu0 0.0
      %5537 = vmatprep.subr.mxu0 0.0
      %5538 = vmatpush2.msra.mxu0 0.0
      %5539 = vmatprep.subr.mxu0 0.0
      %5540 = vmatpush2.msra.mxu0 0.0
      %5541 = vmatprep.subr.mxu0 0.0
      %5542 = vmatpush2.msra.mxu0 0.0
      %5543 = vmatprep.mubr.f32.mxu0 0.0
      %5544 = vmatmul.mubr.f32.gmra.mxu0 %v5477
      %v5545 = vpop.f32.mrf.mxu0
      %v5546 = vadd.f32 0.0, %v5545
      %v5547 = vpop.f32.mrf.mxu0
      %5548 = vdwg.mxu0
      %v5550 = vsel %vm3061, %v4453, 0
      %5552 = vmatprep.subr.mxu0 0.0
      %5553 = vmatpush1.msra.mxu0 0.0
      %5554 = vmatprep.subr.mxu0 0.0
      %5555 = vmatpush1.msra.mxu0 0.0
      %5556 = vmatprep.subr.mxu0 0.0
      %5557 = vmatpush1.msra.mxu0 0.0
      %5558 = vmatprep.subr.mxu0 0.0
      %5559 = vmatpush1.msra.mxu0 0.0
      %5560 = vmatprep.subr.mxu0 0.0
      %5561 = vmatpush1.msra.mxu0 0.0
      %5562 = vmatprep.subr.mxu0 0.0
      %5563 = vmatpush1.msra.mxu0 0.0
      %5564 = vmatprep.subr.mxu0 0.0
      %5565 = vmatpush1.msra.mxu0 0.0
      %5566 = vmatprep.subr.mxu0 0.0
      %5567 = vmatpush1.msra.mxu0 0.0
      %5568 = vmatprep.subr.mxu0 0.0
      %5569 = vmatpush1.msra.mxu0 0.0
      %5570 = vmatprep.subr.mxu0 0.0
      %5571 = vmatpush1.msra.mxu0 0.0
      %5572 = vmatprep.subr.mxu0 0.0
      %5573 = vmatpush1.msra.mxu0 0.0
      %5574 = vmatprep.subr.mxu0 0.0
      %5575 = vmatpush1.msra.mxu0 0.0
      %5576 = vmatprep.subr.mxu0 0.0
      %5577 = vmatpush1.msra.mxu0 0.0
      %5578 = vmatprep.subr.mxu0 0.0
      %5579 = vmatpush1.msra.mxu0 0.0
      %5580 = vmatprep.subr.mxu0 0.0
      %5581 = vmatpush1.msra.mxu0 0.0
      %5582 = vmatprep.subr.mxu0 0.0
      %5583 = vmatpush1.msra.mxu0 %v3060
      %5584 = vmatprep.subr.mxu0 0.0
      %5585 = vmatpush2.msra.mxu0 0.0
      %5586 = vmatprep.subr.mxu0 0.0
      %5587 = vmatpush2.msra.mxu0 0.0
      %5588 = vmatprep.subr.mxu0 0.0
      %5589 = vmatpush2.msra.mxu0 0.0
      %5590 = vmatprep.subr.mxu0 0.0
      %5591 = vmatpush2.msra.mxu0 0.0
      %5592 = vmatprep.subr.mxu0 0.0
      %5593 = vmatpush2.msra.mxu0 0.0
      %5594 = vmatprep.subr.mxu0 0.0
      %5595 = vmatpush2.msra.mxu0 0.0
      %5596 = vmatprep.subr.mxu0 0.0
      %5597 = vmatpush2.msra.mxu0 0.0
      %5598 = vmatprep.subr.mxu0 0.0
      %5599 = vmatpush2.msra.mxu0 0.0
      %5600 = vmatprep.subr.mxu0 0.0
      %5601 = vmatpush2.msra.mxu0 0.0
      %5602 = vmatprep.subr.mxu0 0.0
      %5603 = vmatpush2.msra.mxu0 0.0
      %5604 = vmatprep.subr.mxu0 0.0
      %5605 = vmatpush2.msra.mxu0 0.0
      %5606 = vmatprep.subr.mxu0 0.0
      %5607 = vmatpush2.msra.mxu0 0.0
      %5608 = vmatprep.subr.mxu0 0.0
      %5609 = vmatpush2.msra.mxu0 0.0
      %5610 = vmatprep.subr.mxu0 0.0
      %5611 = vmatpush2.msra.mxu0 0.0
      %5612 = vmatprep.subr.mxu0 0.0
      %5613 = vmatpush2.msra.mxu0 0.0
      %5614 = vmatprep.subr.mxu0 0.0
      %5615 = vmatpush2.msra.mxu0 0.0
      %5616 = vmatprep.mubr.f32.mxu0 0.0
      %5617 = vmatmul.mubr.f32.gmra.mxu0 %v5550
      %v5618 = vpop.f32.mrf.mxu0
      %v5619 = vadd.f32 0.0, %v5618
      %v5620 = vpop.f32.mrf.mxu0
      %5621 = vdwg.mxu0
      %v5622 = vcombine.low %v4524, %v4670
      %v5623 = vcombine.high %v4524, %v4670
      %v5625 = vunpack.c.l.s4 1983009808
      %v5626 = vunpack.c.0.s8 %v5625
      %v5627 = vlaneseq
      %v5628 = vshrl.u32 %v5627, 7
      %v5629 = vsub.s32 %v5626, %v5628
      %v5630 = vrot.slane %v5622, %v5629
      %v5632 = vunpack.c.l.s4 1983009808
      %v5633 = vunpack.c.0.s8 %v5632
      %v5634 = vlaneseq
      %v5635 = vshrl.u32 %v5634, 7
      %v5636 = vsub.s32 %v5633, %v5635
      %v5637 = vrot.slane %v5623, %v5636
      %v5638 = vcombine.low %v4597, %v4743
      %v5639 = vcombine.high %v4597, %v4743
      %v5641 = vunpack.c.l.s4 1983009808
      %v5642 = vunpack.c.0.s8 %v5641
      %v5643 = vlaneseq
      %v5644 = vshrl.u32 %v5643, 7
      %v5645 = vsub.s32 %v5642, %v5644
      %v5646 = vrot.slane %v5638, %v5645
      %v5648 = vunpack.c.l.s4 1983009808
      %v5649 = vunpack.c.0.s8 %v5648
      %v5650 = vlaneseq
      %v5651 = vshrl.u32 %v5650, 7
      %v5652 = vsub.s32 %v5649, %v5651
      %v5653 = vrot.slane %v5639, %v5652
      %v5654 = vcombine.low %v5630, %v5646
      %v5655 = vcombine.high %v5630, %v5646
      %v5657 = vunpack.c.l.s4 1934713408
      %v5658 = vunpack.c.0.s8 %v5657
      %v5659 = vlaneseq
      %v5660 = vshrl.u32 %v5659, 7
      %v5661 = vsub.s32 %v5658, %v5660
      %v5662 = vrot.slane %v5654, %v5661
      %v5664 = vunpack.c.l.s4 1934713408
      %v5665 = vunpack.c.0.s8 %v5664
      %v5666 = vlaneseq
      %v5667 = vshrl.u32 %v5666, 7
      %v5668 = vsub.s32 %v5665, %v5667
      %v5669 = vrot.slane %v5655, %v5668
      %v5670 = vcombine.low %v5637, %v5653
      %v5671 = vcombine.high %v5637, %v5653
      %v5673 = vunpack.c.l.s4 1934713408
      %v5674 = vunpack.c.0.s8 %v5673
      %v5675 = vlaneseq
      %v5676 = vshrl.u32 %v5675, 7
      %v5677 = vsub.s32 %v5674, %v5676
      %v5678 = vrot.slane %v5670, %v5677
      %v5680 = vunpack.c.l.s4 1934713408
      %v5681 = vunpack.c.0.s8 %v5680
      %v5682 = vlaneseq
      %v5683 = vshrl.u32 %v5682, 7
      %v5684 = vsub.s32 %v5681, %v5683
      %v5685 = vrot.slane %v5671, %v5684
      %v5686 = vcombine.high %v5662, 0.0
      %v5687 = vcombine.high %v5669, 0.0
      %v5688 = vcombine.high %v5678, 0.0
      %v5689 = vcombine.high %v5685, 0.0
      %v5690 = vcombine.low %v4816, %v4962
      %v5691 = vcombine.high %v4816, %v4962
      %v5693 = vunpack.c.l.s4 1983009808
      %v5694 = vunpack.c.0.s8 %v5693
      %v5695 = vlaneseq
      %v5696 = vshrl.u32 %v5695, 7
      %v5697 = vsub.s32 %v5694, %v5696
      %v5698 = vrot.slane %v5690, %v5697
      %v5700 = vunpack.c.l.s4 1983009808
      %v5701 = vunpack.c.0.s8 %v5700
      %v5702 = vlaneseq
      %v5703 = vshrl.u32 %v5702, 7
      %v5704 = vsub.s32 %v5701, %v5703
      %v5705 = vrot.slane %v5691, %v5704
      %v5706 = vcombine.low %v4889, %v5035
      %v5707 = vcombine.high %v4889, %v5035
      %v5709 = vunpack.c.l.s4 1983009808
      %v5710 = vunpack.c.0.s8 %v5709
      %v5711 = vlaneseq
      %v5712 = vshrl.u32 %v5711, 7
      %v5713 = vsub.s32 %v5710, %v5712
      %v5714 = vrot.slane %v5706, %v5713
      %v5716 = vunpack.c.l.s4 1983009808
      %v5717 = vunpack.c.0.s8 %v5716
      %v5718 = vlaneseq
      %v5719 = vshrl.u32 %v5718, 7
      %v5720 = vsub.s32 %v5717, %v5719
      %v5721 = vrot.slane %v5707, %v5720
      %v5722 = vcombine.low %v5698, %v5714
      %v5723 = vcombine.high %v5698, %v5714
      %v5725 = vunpack.c.l.s4 1934713408
      %v5726 = vunpack.c.0.s8 %v5725
      %v5727 = vlaneseq
      %v5728 = vshrl.u32 %v5727, 7
      %v5729 = vsub.s32 %v5726, %v5728
      %v5730 = vrot.slane %v5722, %v5729
      %v5732 = vunpack.c.l.s4 1934713408
      %v5733 = vunpack.c.0.s8 %v5732
      %v5734 = vlaneseq
      %v5735 = vshrl.u32 %v5734, 7
      %v5736 = vsub.s32 %v5733, %v5735
      %v5737 = vrot.slane %v5723, %v5736
      %v5738 = vcombine.low %v5705, %v5721
      %v5739 = vcombine.high %v5705, %v5721
      %v5741 = vunpack.c.l.s4 1934713408
      %v5742 = vunpack.c.0.s8 %v5741
      %v5743 = vlaneseq
      %v5744 = vshrl.u32 %v5743, 7
      %v5745 = vsub.s32 %v5742, %v5744
      %v5746 = vrot.slane %v5738, %v5745
      %v5748 = vunpack.c.l.s4 1934713408
      %v5749 = vunpack.c.0.s8 %v5748
      %v5750 = vlaneseq
      %v5751 = vshrl.u32 %v5750, 7
      %v5752 = vsub.s32 %v5749, %v5751
      %v5753 = vrot.slane %v5739, %v5752
      %v5754 = vcombine.high %v5730, 0.0
      %v5755 = vcombine.high %v5737, 0.0
      %v5756 = vcombine.high %v5746, 0.0
      %v5757 = vcombine.high %v5753, 0.0
      %v5758 = vcombine.low %v5108, %v5254
      %v5759 = vcombine.high %v5108, %v5254
      %v5761 = vunpack.c.l.s4 1983009808
      %v5762 = vunpack.c.0.s8 %v5761
      %v5763 = vlaneseq
      %v5764 = vshrl.u32 %v5763, 7
      %v5765 = vsub.s32 %v5762, %v5764
      %v5766 = vrot.slane %v5758, %v5765
      %v5768 = vunpack.c.l.s4 1983009808
      %v5769 = vunpack.c.0.s8 %v5768
      %v5770 = vlaneseq
      %v5771 = vshrl.u32 %v5770, 7
      %v5772 = vsub.s32 %v5769, %v5771
      %v5773 = vrot.slane %v5759, %v5772
      %v5774 = vcombine.low %v5181, %v5327
      %v5775 = vcombine.high %v5181, %v5327
      %v5777 = vunpack.c.l.s4 1983009808
      %v5778 = vunpack.c.0.s8 %v5777
      %v5779 = vlaneseq
      %v5780 = vshrl.u32 %v5779, 7
      %v5781 = vsub.s32 %v5778, %v5780
      %v5782 = vrot.slane %v5774, %v5781
      %v5784 = vunpack.c.l.s4 1983009808
      %v5785 = vunpack.c.0.s8 %v5784
      %v5786 = vlaneseq
      %v5787 = vshrl.u32 %v5786, 7
      %v5788 = vsub.s32 %v5785, %v5787
      %v5789 = vrot.slane %v5775, %v5788
      %v5790 = vcombine.low %v5766, %v5782
      %v5791 = vcombine.high %v5766, %v5782
      %v5793 = vunpack.c.l.s4 1934713408
      %v5794 = vunpack.c.0.s8 %v5793
      %v5795 = vlaneseq
      %v5796 = vshrl.u32 %v5795, 7
      %v5797 = vsub.s32 %v5794, %v5796
      %v5798 = vrot.slane %v5790, %v5797
      %v5800 = vunpack.c.l.s4 1934713408
      %v5801 = vunpack.c.0.s8 %v5800
      %v5802 = vlaneseq
      %v5803 = vshrl.u32 %v5802, 7
      %v5804 = vsub.s32 %v5801, %v5803
      %v5805 = vrot.slane %v5791, %v5804
      %v5806 = vcombine.low %v5773, %v5789
      %v5807 = vcombine.high %v5773, %v5789
      %v5809 = vunpack.c.l.s4 1934713408
      %v5810 = vunpack.c.0.s8 %v5809
      %v5811 = vlaneseq
      %v5812 = vshrl.u32 %v5811, 7
      %v5813 = vsub.s32 %v5810, %v5812
      %v5814 = vrot.slane %v5806, %v5813
      %v5816 = vunpack.c.l.s4 1934713408
      %v5817 = vunpack.c.0.s8 %v5816
      %v5818 = vlaneseq
      %v5819 = vshrl.u32 %v5818, 7
      %v5820 = vsub.s32 %v5817, %v5819
      %v5821 = vrot.slane %v5807, %v5820
      %v5822 = vcombine.high %v5798, 0.0
      %v5823 = vcombine.high %v5805, 0.0
      %v5824 = vcombine.high %v5814, 0.0
      %v5825 = vcombine.high %v5821, 0.0
      %v5826 = vcombine.low %v5400, %v5546
      %v5827 = vcombine.high %v5400, %v5546
      %v5829 = vunpack.c.l.s4 1983009808
      %v5830 = vunpack.c.0.s8 %v5829
      %v5831 = vlaneseq
      %v5832 = vshrl.u32 %v5831, 7
      %v5833 = vsub.s32 %v5830, %v5832
      %v5834 = vrot.slane %v5826, %v5833
      %v5836 = vunpack.c.l.s4 1983009808
      %v5837 = vunpack.c.0.s8 %v5836
      %v5838 = vlaneseq
      %v5839 = vshrl.u32 %v5838, 7
      %v5840 = vsub.s32 %v5837, %v5839
      %v5841 = vrot.slane %v5827, %v5840
      %v5842 = vcombine.low %v5473, %v5619
      %v5843 = vcombine.high %v5473, %v5619
      %v5845 = vunpack.c.l.s4 1983009808
      %v5846 = vunpack.c.0.s8 %v5845
      %v5847 = vlaneseq
      %v5848 = vshrl.u32 %v5847, 7
      %v5849 = vsub.s32 %v5846, %v5848
      %v5850 = vrot.slane %v5842, %v5849
      %v5852 = vunpack.c.l.s4 1983009808
      %v5853 = vunpack.c.0.s8 %v5852
      %v5854 = vlaneseq
      %v5855 = vshrl.u32 %v5854, 7
      %v5856 = vsub.s32 %v5853, %v5855
      %v5857 = vrot.slane %v5843, %v5856
      %v5858 = vcombine.low %v5834, %v5850
      %v5859 = vcombine.high %v5834, %v5850
      %v5861 = vunpack.c.l.s4 1934713408
      %v5862 = vunpack.c.0.s8 %v5861
      %v5863 = vlaneseq
      %v5864 = vshrl.u32 %v5863, 7
      %v5865 = vsub.s32 %v5862, %v5864
      %v5866 = vrot.slane %v5858, %v5865
      %v5868 = vunpack.c.l.s4 1934713408
      %v5869 = vunpack.c.0.s8 %v5868
      %v5870 = vlaneseq
      %v5871 = vshrl.u32 %v5870, 7
      %v5872 = vsub.s32 %v5869, %v5871
      %v5873 = vrot.slane %v5859, %v5872
      %v5874 = vcombine.low %v5841, %v5857
      %v5875 = vcombine.high %v5841, %v5857
      %v5877 = vunpack.c.l.s4 1934713408
      %v5878 = vunpack.c.0.s8 %v5877
      %v5879 = vlaneseq
      %v5880 = vshrl.u32 %v5879, 7
      %v5881 = vsub.s32 %v5878, %v5880
      %v5882 = vrot.slane %v5874, %v5881
      %v5884 = vunpack.c.l.s4 1934713408
      %v5885 = vunpack.c.0.s8 %v5884
      %v5886 = vlaneseq
      %v5887 = vshrl.u32 %v5886, 7
      %v5888 = vsub.s32 %v5885, %v5887
      %v5889 = vrot.slane %v5875, %v5888
      %v5890 = vcombine.high %v5866, 0.0
      %v5891 = vcombine.high %v5873, 0.0
      %v5892 = vcombine.high %v5882, 0.0
      %v5893 = vcombine.high %v5889, 0.0
      %v5894 = vcombine.low %v5662, %v5669
      %v5896 = vunpack.c.l.s4 1983009808
      %v5897 = vunpack.c.0.s8 %v5896
      %v5898 = vlaneseq
      %v5899 = vshrl.u32 %v5898, 7
      %v5900 = vsub.s32 %v5897, %v5899
      %v5901 = vrot.slane %v5894, %v5900
      %v5902 = vcombine.low %v5686, %v5687
      %v5904 = vunpack.c.l.s4 1983009808
      %v5905 = vunpack.c.0.s8 %v5904
      %v5906 = vlaneseq
      %v5907 = vshrl.u32 %v5906, 7
      %v5908 = vsub.s32 %v5905, %v5907
      %v5909 = vrot.slane %v5902, %v5908
      %v5910 = vcombine.low %v5678, %v5685
      %v5912 = vunpack.c.l.s4 1983009808
      %v5913 = vunpack.c.0.s8 %v5912
      %v5914 = vlaneseq
      %v5915 = vshrl.u32 %v5914, 7
      %v5916 = vsub.s32 %v5913, %v5915
      %v5917 = vrot.slane %v5910, %v5916
      %v5918 = vcombine.low %v5688, %v5689
      %v5920 = vunpack.c.l.s4 1983009808
      %v5921 = vunpack.c.0.s8 %v5920
      %v5922 = vlaneseq
      %v5923 = vshrl.u32 %v5922, 7
      %v5924 = vsub.s32 %v5921, %v5923
      %v5925 = vrot.slane %v5918, %v5924
      %v5926 = vcombine.low %v5901, %v5909
      %v5927 = vcombine.high %v5901, %v5909
      %v5929 = vunpack.c.l.s4 1934713408
      %v5930 = vunpack.c.0.s8 %v5929
      %v5931 = vlaneseq
      %v5932 = vshrl.u32 %v5931, 7
      %v5933 = vsub.s32 %v5930, %v5932
      %v5934 = vrot.slane %v5926, %v5933
      %v5936 = vunpack.c.l.s4 1934713408
      %v5937 = vunpack.c.0.s8 %v5936
      %v5938 = vlaneseq
      %v5939 = vshrl.u32 %v5938, 7
      %v5940 = vsub.s32 %v5937, %v5939
      %v5941 = vrot.slane %v5927, %v5940
      %v5942 = vcombine.low %v5917, %v5925
      %v5943 = vcombine.high %v5917, %v5925
      %v5945 = vunpack.c.l.s4 1934713408
      %v5946 = vunpack.c.0.s8 %v5945
      %v5947 = vlaneseq
      %v5948 = vshrl.u32 %v5947, 7
      %v5949 = vsub.s32 %v5946, %v5948
      %v5950 = vrot.slane %v5942, %v5949
      %v5952 = vunpack.c.l.s4 1934713408
      %v5953 = vunpack.c.0.s8 %v5952
      %v5954 = vlaneseq
      %v5955 = vshrl.u32 %v5954, 7
      %v5956 = vsub.s32 %v5953, %v5955
      %v5957 = vrot.slane %v5943, %v5956
      %v5958 = vcombine.low %v5934, %v5950
      %v5959 = vcombine.high %v5934, %v5950
      %v5960 = vcombine.low %v5941, %v5957
      %v5961 = vcombine.high %v5941, %v5957
      %v5962 = vcombine.low %v5730, %v5737
      %v5964 = vunpack.c.l.s4 1983009808
      %v5965 = vunpack.c.0.s8 %v5964
      %v5966 = vlaneseq
      %v5967 = vshrl.u32 %v5966, 7
      %v5968 = vsub.s32 %v5965, %v5967
      %v5969 = vrot.slane %v5962, %v5968
      %v5970 = vcombine.low %v5754, %v5755
      %v5972 = vunpack.c.l.s4 1983009808
      %v5973 = vunpack.c.0.s8 %v5972
      %v5974 = vlaneseq
      %v5975 = vshrl.u32 %v5974, 7
      %v5976 = vsub.s32 %v5973, %v5975
      %v5977 = vrot.slane %v5970, %v5976
      %v5978 = vcombine.low %v5746, %v5753
      %v5980 = vunpack.c.l.s4 1983009808
      %v5981 = vunpack.c.0.s8 %v5980
      %v5982 = vlaneseq
      %v5983 = vshrl.u32 %v5982, 7
      %v5984 = vsub.s32 %v5981, %v5983
      %v5985 = vrot.slane %v5978, %v5984
      %v5986 = vcombine.low %v5756, %v5757
      %v5988 = vunpack.c.l.s4 1983009808
      %v5989 = vunpack.c.0.s8 %v5988
      %v5990 = vlaneseq
      %v5991 = vshrl.u32 %v5990, 7
      %v5992 = vsub.s32 %v5989, %v5991
      %v5993 = vrot.slane %v5986, %v5992
      %v5994 = vcombine.low %v5969, %v5977
      %v5995 = vcombine.high %v5969, %v5977
      %v5997 = vunpack.c.l.s4 1934713408
      %v5998 = vunpack.c.0.s8 %v5997
      %v5999 = vlaneseq
      %v6000 = vshrl.u32 %v5999, 7
      %v6001 = vsub.s32 %v5998, %v6000
      %v6002 = vrot.slane %v5994, %v6001
      %v6004 = vunpack.c.l.s4 1934713408
      %v6005 = vunpack.c.0.s8 %v6004
      %v6006 = vlaneseq
      %v6007 = vshrl.u32 %v6006, 7
      %v6008 = vsub.s32 %v6005, %v6007
      %v6009 = vrot.slane %v5995, %v6008
      %v6010 = vcombine.low %v5985, %v5993
      %v6011 = vcombine.high %v5985, %v5993
      %v6013 = vunpack.c.l.s4 1934713408
      %v6014 = vunpack.c.0.s8 %v6013
      %v6015 = vlaneseq
      %v6016 = vshrl.u32 %v6015, 7
      %v6017 = vsub.s32 %v6014, %v6016
      %v6018 = vrot.slane %v6010, %v6017
      %v6020 = vunpack.c.l.s4 1934713408
      %v6021 = vunpack.c.0.s8 %v6020
      %v6022 = vlaneseq
      %v6023 = vshrl.u32 %v6022, 7
      %v6024 = vsub.s32 %v6021, %v6023
      %v6025 = vrot.slane %v6011, %v6024
      %v6026 = vcombine.low %v6002, %v6018
      %v6027 = vcombine.high %v6002, %v6018
      %v6028 = vcombine.low %v6009, %v6025
      %v6029 = vcombine.high %v6009, %v6025
      %v6030 = vcombine.low %v5798, %v5805
      %v6032 = vunpack.c.l.s4 1983009808
      %v6033 = vunpack.c.0.s8 %v6032
      %v6034 = vlaneseq
      %v6035 = vshrl.u32 %v6034, 7
      %v6036 = vsub.s32 %v6033, %v6035
      %v6037 = vrot.slane %v6030, %v6036
      %v6038 = vcombine.low %v5822, %v5823
      %v6040 = vunpack.c.l.s4 1983009808
      %v6041 = vunpack.c.0.s8 %v6040
      %v6042 = vlaneseq
      %v6043 = vshrl.u32 %v6042, 7
      %v6044 = vsub.s32 %v6041, %v6043
      %v6045 = vrot.slane %v6038, %v6044
      %v6046 = vcombine.low %v5814, %v5821
      %v6048 = vunpack.c.l.s4 1983009808
      %v6049 = vunpack.c.0.s8 %v6048
      %v6050 = vlaneseq
      %v6051 = vshrl.u32 %v6050, 7
      %v6052 = vsub.s32 %v6049, %v6051
      %v6053 = vrot.slane %v6046, %v6052
      %v6054 = vcombine.low %v5824, %v5825
      %v6056 = vunpack.c.l.s4 1983009808
      %v6057 = vunpack.c.0.s8 %v6056
      %v6058 = vlaneseq
      %v6059 = vshrl.u32 %v6058, 7
      %v6060 = vsub.s32 %v6057, %v6059
      %v6061 = vrot.slane %v6054, %v6060
      %v6062 = vcombine.low %v6037, %v6045
      %v6063 = vcombine.high %v6037, %v6045
      %v6065 = vunpack.c.l.s4 1934713408
      %v6066 = vunpack.c.0.s8 %v6065
      %v6067 = vlaneseq
      %v6068 = vshrl.u32 %v6067, 7
      %v6069 = vsub.s32 %v6066, %v6068
      %v6070 = vrot.slane %v6062, %v6069
      %v6072 = vunpack.c.l.s4 1934713408
      %v6073 = vunpack.c.0.s8 %v6072
      %v6074 = vlaneseq
      %v6075 = vshrl.u32 %v6074, 7
      %v6076 = vsub.s32 %v6073, %v6075
      %v6077 = vrot.slane %v6063, %v6076
      %v6078 = vcombine.low %v6053, %v6061
      %v6079 = vcombine.high %v6053, %v6061
      %v6081 = vunpack.c.l.s4 1934713408
      %v6082 = vunpack.c.0.s8 %v6081
      %v6083 = vlaneseq
      %v6084 = vshrl.u32 %v6083, 7
      %v6085 = vsub.s32 %v6082, %v6084
      %v6086 = vrot.slane %v6078, %v6085
      %v6088 = vunpack.c.l.s4 1934713408
      %v6089 = vunpack.c.0.s8 %v6088
      %v6090 = vlaneseq
      %v6091 = vshrl.u32 %v6090, 7
      %v6092 = vsub.s32 %v6089, %v6091
      %v6093 = vrot.slane %v6079, %v6092
      %v6094 = vcombine.low %v6070, %v6086
      %v6095 = vcombine.high %v6070, %v6086
      %v6096 = vcombine.low %v6077, %v6093
      %v6097 = vcombine.high %v6077, %v6093
      %v6098 = vcombine.low %v5866, %v5873
      %v6100 = vunpack.c.l.s4 1983009808
      %v6101 = vunpack.c.0.s8 %v6100
      %v6102 = vlaneseq
      %v6103 = vshrl.u32 %v6102, 7
      %v6104 = vsub.s32 %v6101, %v6103
      %v6105 = vrot.slane %v6098, %v6104
      %v6106 = vcombine.low %v5890, %v5891
      %v6108 = vunpack.c.l.s4 1983009808
      %v6109 = vunpack.c.0.s8 %v6108
      %v6110 = vlaneseq
      %v6111 = vshrl.u32 %v6110, 7
      %v6112 = vsub.s32 %v6109, %v6111
      %v6113 = vrot.slane %v6106, %v6112
      %v6114 = vcombine.low %v5882, %v5889
      %v6116 = vunpack.c.l.s4 1983009808
      %v6117 = vunpack.c.0.s8 %v6116
      %v6118 = vlaneseq
      %v6119 = vshrl.u32 %v6118, 7
      %v6120 = vsub.s32 %v6117, %v6119
      %v6121 = vrot.slane %v6114, %v6120
      %v6122 = vcombine.low %v5892, %v5893
      %v6124 = vunpack.c.l.s4 1983009808
      %v6125 = vunpack.c.0.s8 %v6124
      %v6126 = vlaneseq
      %v6127 = vshrl.u32 %v6126, 7
      %v6128 = vsub.s32 %v6125, %v6127
      %v6129 = vrot.slane %v6122, %v6128
      %v6130 = vcombine.low %v6105, %v6113
      %v6131 = vcombine.high %v6105, %v6113
      %v6133 = vunpack.c.l.s4 1934713408
      %v6134 = vunpack.c.0.s8 %v6133
      %v6135 = vlaneseq
      %v6136 = vshrl.u32 %v6135, 7
      %v6137 = vsub.s32 %v6134, %v6136
      %v6138 = vrot.slane %v6130, %v6137
      %v6140 = vunpack.c.l.s4 1934713408
      %v6141 = vunpack.c.0.s8 %v6140
      %v6142 = vlaneseq
      %v6143 = vshrl.u32 %v6142, 7
      %v6144 = vsub.s32 %v6141, %v6143
      %v6145 = vrot.slane %v6131, %v6144
      %v6146 = vcombine.low %v6121, %v6129
      %v6147 = vcombine.high %v6121, %v6129
      %v6149 = vunpack.c.l.s4 1934713408
      %v6150 = vunpack.c.0.s8 %v6149
      %v6151 = vlaneseq
      %v6152 = vshrl.u32 %v6151, 7
      %v6153 = vsub.s32 %v6150, %v6152
      %v6154 = vrot.slane %v6146, %v6153
      %v6156 = vunpack.c.l.s4 1934713408
      %v6157 = vunpack.c.0.s8 %v6156
      %v6158 = vlaneseq
      %v6159 = vshrl.u32 %v6158, 7
      %v6160 = vsub.s32 %v6157, %v6159
      %v6161 = vrot.slane %v6147, %v6160
      %v6162 = vcombine.low %v6138, %v6154
      %v6163 = vcombine.high %v6138, %v6154
      %v6164 = vcombine.low %v6145, %v6161
      %v6165 = vcombine.high %v6145, %v6161
      %6170 = vrot.lane.b32.xlu0 %v5959, 8
      %v6171 = vpop.permute.xlu0 %6170
      %6172 = vrot.lane.b32.xlu0 %v6027, 8
      %v6173 = vpop.permute.xlu0 %6172
      %6174 = vrot.lane.b32.xlu0 %v6095, 8
      %v6175 = vpop.permute.xlu0 %6174
      %6176 = vrot.lane.b32.xlu0 %v6163, 8
      %v6177 = vpop.permute.xlu0 %6176
      %6186 = vrot.lane.b32.xlu0 %v5960, 16
      %v6187 = vpop.permute.xlu0 %6186
      %6188 = vrot.lane.b32.xlu0 %v6028, 16
      %v6189 = vpop.permute.xlu0 %6188
      %6190 = vrot.lane.b32.xlu0 %v6096, 16
      %v6191 = vpop.permute.xlu0 %6190
      %6192 = vrot.lane.b32.xlu0 %v6164, 16
      %v6193 = vpop.permute.xlu0 %6192
      %6202 = vrot.lane.b32.xlu0 %v5961, 24
      %v6203 = vpop.permute.xlu0 %6202
      %6204 = vrot.lane.b32.xlu0 %v6029, 24
      %v6205 = vpop.permute.xlu0 %6204
      %6206 = vrot.lane.b32.xlu0 %v6097, 24
      %v6207 = vpop.permute.xlu0 %6206
      %6208 = vrot.lane.b32.xlu0 %v6165, 24
      %v6209 = vpop.permute.xlu0 %6208
      %v6214 = vsel %vm3061, %v5958, %v6171
      %v6215 = vsel %vm3061, %v6026, %v6173
      %v6216 = vsel %vm3061, %v6094, %v6175
      %v6217 = vsel %vm3061, %v6162, %v6177
      %vm6218 = vcmask 130048
      %v6219 = vsel %vm6218, %v6214, %v6187
      %v6220 = vsel %vm6218, %v6215, %v6189
      %v6221 = vsel %vm6218, %v6216, %v6191
      %v6222 = vsel %vm6218, %v6217, %v6193
      %vm6223 = vcmask 195584
      %v6224 = vsel %vm6223, %v6219, %v6203
      %v6225 = vsel %vm6223, %v6220, %v6205
      %v6226 = vsel %vm6223, %v6221, %v6207
      %v6227 = vsel %vm6223, %v6222, %v6209
      %v6229 = vlaneseq
      %v6230 = vshrl.u32 %v6229, 7
      %v6231 = vsub.s32 0, %v6230
      %v6232 = vrot.slane %v907, %v6231
      %v6235 = vsel %vm946, %v6224, 0
      %v6238 = vsel %vm946, %v6225, 0
      %v6241 = vsel %vm946, %v6226, 0
      %v6244 = vsel %vm946, %v6227, 0
      %6246 = vmatprep.subr.mxu0 0.0
      %6247 = vmatpush1.msra.mxu0 0.0
      %6248 = vmatprep.subr.mxu0 0.0
      %6249 = vmatpush1.msra.mxu0 0.0
      %6250 = vmatprep.subr.mxu0 0.0
      %6251 = vmatpush1.msra.mxu0 0.0
      %6252 = vmatprep.subr.mxu0 0.0
      %6253 = vmatpush1.msra.mxu0 0.0
      %6254 = vmatprep.subr.mxu0 0.0
      %6255 = vmatpush1.msra.mxu0 0.0
      %6256 = vmatprep.subr.mxu0 0.0
      %6257 = vmatpush1.msra.mxu0 0.0
      %6258 = vmatprep.subr.mxu0 0.0
      %6259 = vmatpush1.msra.mxu0 0.0
      %6260 = vmatprep.subr.mxu0 0.0
      %6261 = vmatpush1.msra.mxu0 0.0
      %6262 = vmatprep.subr.mxu0 0.0
      %6263 = vmatpush1.msra.mxu0 0.0
      %6264 = vmatprep.subr.mxu0 0.0
      %6265 = vmatpush1.msra.mxu0 0.0
      %6266 = vmatprep.subr.mxu0 0.0
      %6267 = vmatpush1.msra.mxu0 0.0
      %6268 = vmatprep.subr.mxu0 0.0
      %6269 = vmatpush1.msra.mxu0 0.0
      %6270 = vmatprep.subr.mxu0 0.0
      %6271 = vmatpush1.msra.mxu0 %v925
      %6272 = vmatprep.subr.mxu0 0.0
      %6273 = vmatpush1.msra.mxu0 %v924
      %6274 = vmatprep.subr.mxu0 0.0
      %6275 = vmatpush1.msra.mxu0 %v923
      %6276 = vmatprep.subr.mxu0 0.0
      %6277 = vmatpush1.msra.mxu0 %v922
      %6278 = vmatprep.subr.mxu0 0.0
      %6279 = vmatpush2.msra.mxu0 0.0
      %6280 = vmatprep.subr.mxu0 0.0
      %6281 = vmatpush2.msra.mxu0 0.0
      %6282 = vmatprep.subr.mxu0 0.0
      %6283 = vmatpush2.msra.mxu0 0.0
      %6284 = vmatprep.subr.mxu0 0.0
      %6285 = vmatpush2.msra.mxu0 0.0
      %6286 = vmatprep.subr.mxu0 0.0
      %6287 = vmatpush2.msra.mxu0 0.0
      %6288 = vmatprep.subr.mxu0 0.0
      %6289 = vmatpush2.msra.mxu0 0.0
      %6290 = vmatprep.subr.mxu0 0.0
      %6291 = vmatpush2.msra.mxu0 0.0
      %6292 = vmatprep.subr.mxu0 0.0
      %6293 = vmatpush2.msra.mxu0 0.0
      %6294 = vmatprep.subr.mxu0 0.0
      %6295 = vmatpush2.msra.mxu0 0.0
      %6296 = vmatprep.subr.mxu0 0.0
      %6297 = vmatpush2.msra.mxu0 0.0
      %6298 = vmatprep.subr.mxu0 0.0
      %6299 = vmatpush2.msra.mxu0 0.0
      %6300 = vmatprep.subr.mxu0 0.0
      %6301 = vmatpush2.msra.mxu0 0.0
      %6302 = vmatprep.subr.mxu0 0.0
      %6303 = vmatpush2.msra.mxu0 0.0
      %6304 = vmatprep.subr.mxu0 0.0
      %6305 = vmatpush2.msra.mxu0 0.0
      %6306 = vmatprep.subr.mxu0 0.0
      %6307 = vmatpush2.msra.mxu0 0.0
      %6308 = vmatprep.subr.mxu0 0.0
      %6309 = vmatpush2.msra.mxu0 0.0
      %6310 = vmatprep.mubr.f32.mxu0 0.0
      %6311 = vmatmul.mubr.f32.gmra.mxu0 %v6235
      %v6312 = vpop.f32.mrf.mxu0
      %v6313 = vadd.f32 %v6232, %v6312
      %v6314 = vpop.f32.mrf.mxu0
      %6315 = vmatprep.mubr.f32.mxu0 0.0
      %6316 = vmatmul.mubr.f32.gmra.mxu0 %v6238
      %v6317 = vpop.f32.mrf.mxu0
      %v6318 = vadd.f32 %v6232, %v6317
      %v6319 = vpop.f32.mrf.mxu0
      %6320 = vmatprep.mubr.f32.mxu0 0.0
      %6321 = vmatmul.mubr.f32.gmra.mxu0 %v6241
      %v6322 = vpop.f32.mrf.mxu0
      %v6323 = vadd.f32 %v6232, %v6322
      %v6324 = vpop.f32.mrf.mxu0
      %6325 = vmatprep.mubr.f32.mxu0 0.0
      %6326 = vmatmul.mubr.f32.gmra.mxu0 %v6244
      %v6327 = vpop.f32.mrf.mxu0
      %v6328 = vadd.f32 %v6232, %v6327
      %v6329 = vpop.f32.mrf.mxu0
      %6330 = vdwg.mxu0
      %v6331 = vadd.f32 %v896, %v6313
      %v6332 = vadd.f32 %v897, %v6318
      %v6333 = vadd.f32 %v898, %v6323
      %v6334 = vadd.f32 %v899, %v6328
      %v6335 = vsel %vm946, %v6331, 0.0
      %6336 = vadd.xlane.f32.xlu0 %v6335
      %v6337 = vpop.xlane.xlu0 %6336
      %v6338 = vsel %vm946, %v6332, 0.0
      %6339 = vadd.xlane.f32.xlu0 %v6338
      %v6340 = vpop.xlane.xlu0 %6339
      %v6341 = vsel %vm946, %v6333, 0.0
      %6342 = vadd.xlane.f32.xlu0 %v6341
      %v6343 = vpop.xlane.xlu0 %6342
      %v6344 = vsel %vm946, %v6334, 0.0
      %6345 = vadd.xlane.f32.xlu0 %v6344
      %v6346 = vpop.xlane.xlu0 %6345
      %v6347 = vmul.f32 %v6337, %v959
      %v6348 = vmul.f32 %v6340, %v959
      %v6349 = vmul.f32 %v6343, %v959
      %v6350 = vmul.f32 %v6346, %v959
      %v6351 = vsub.f32 %v6331, %v6347
      %v6352 = vsub.f32 %v6332, %v6348
      %v6353 = vsub.f32 %v6333, %v6349
      %v6354 = vsub.f32 %v6334, %v6350
      %v6355 = vmul.f32 %v6351, %v6351
      %v6356 = vmul.f32 %v6352, %v6352
      %v6357 = vmul.f32 %v6353, %v6353
      %v6358 = vmul.f32 %v6354, %v6354
      %v6359 = vsel %vm946, %v6355, 0.0
      %6360 = vadd.xlane.f32.xlu0 %v6359
      %v6361 = vpop.xlane.xlu0 %6360
      %v6362 = vsel %vm946, %v6356, 0.0
      %6363 = vadd.xlane.f32.xlu0 %v6362
      %v6364 = vpop.xlane.xlu0 %6363
      %v6365 = vsel %vm946, %v6357, 0.0
      %6366 = vadd.xlane.f32.xlu0 %v6365
      %v6367 = vpop.xlane.xlu0 %6366
      %v6368 = vsel %vm946, %v6358, 0.0
      %6369 = vadd.xlane.f32.xlu0 %v6368
      %v6370 = vpop.xlane.xlu0 %6369
      %v6371 = vmul.f32 %v6361, %v959
      %v6372 = vmul.f32 %v6364, %v959
      %v6373 = vmul.f32 %v6367, %v959
      %v6374 = vmul.f32 %v6370, %v959
      %v6375 = vadd.f32 %v6371, 1e-05
      %v6376 = vadd.f32 %v6372, 1e-05
      %v6377 = vadd.f32 %v6373, 1e-05
      %v6378 = vadd.f32 %v6374, 1e-05
      %v6379 = vrsqrt.pop %v6375
      %v6380 = vrsqrt.pop %v6376
      %v6381 = vrsqrt.pop %v6377
      %v6382 = vrsqrt.pop %v6378
      %v6383 = vmul.f32 %v6351, %v6379
      %v6384 = vmul.f32 %v6352, %v6380
      %v6385 = vmul.f32 %v6353, %v6381
      %v6386 = vmul.f32 %v6354, %v6382
      %v6388 = vlaneseq
      %v6389 = vshrl.u32 %v6388, 7
      %v6390 = vsub.s32 0, %v6389
      %v6391 = vrot.slane %v902, %v6390
      %v6393 = vmul.f32 %v6383, %v6391
      %v6394 = vmul.f32 %v6384, %v6391
      %v6395 = vmul.f32 %v6385, %v6391
      %v6396 = vmul.f32 %v6386, %v6391
      %v6398 = vlaneseq
      %v6399 = vshrl.u32 %v6398, 7
      %v6400 = vsub.s32 0, %v6399
      %v6401 = vrot.slane %v903, %v6400
      %v6403 = vadd.f32 %v6393, %v6401
      %v6404 = vadd.f32 %v6394, %v6401
      %v6405 = vadd.f32 %v6395, %v6401
      %v6406 = vadd.f32 %v6396, %v6401
      %v6408 = vlaneseq
      %v6409 = vshrl.u32 %v6408, 7
      %v6410 = vsub.s32 0, %v6409
      %v6411 = vrot.slane %v908, %v6410
      %v6414 = vsel %vm946, %v6403, 0
      %v6417 = vsel %vm946, %v6404, 0
      %v6420 = vsel %vm946, %v6405, 0
      %v6423 = vsel %vm946, %v6406, 0
      %6425 = vmatprep.subr.mxu0 0.0
      %6426 = vmatpush1.msra.mxu0 0.0
      %6427 = vmatprep.subr.mxu0 0.0
      %6428 = vmatpush1.msra.mxu0 0.0
      %6429 = vmatprep.subr.mxu0 0.0
      %6430 = vmatpush1.msra.mxu0 0.0
      %6431 = vmatprep.subr.mxu0 0.0
      %6432 = vmatpush1.msra.mxu0 0.0
      %6433 = vmatprep.subr.mxu0 0.0
      %6434 = vmatpush1.msra.mxu0 0.0
      %6435 = vmatprep.subr.mxu0 0.0
      %6436 = vmatpush1.msra.mxu0 0.0
      %6437 = vmatprep.subr.mxu0 0.0
      %6438 = vmatpush1.msra.mxu0 0.0
      %6439 = vmatprep.subr.mxu0 0.0
      %6440 = vmatpush1.msra.mxu0 0.0
      %6441 = vmatprep.subr.mxu0 0.0
      %6442 = vmatpush1.msra.mxu0 0.0
      %6443 = vmatprep.subr.mxu0 0.0
      %6444 = vmatpush1.msra.mxu0 0.0
      %6445 = vmatprep.subr.mxu0 0.0
      %6446 = vmatpush1.msra.mxu0 0.0
      %6447 = vmatprep.subr.mxu0 0.0
      %6448 = vmatpush1.msra.mxu0 0.0
      %6449 = vmatprep.subr.mxu0 0.0
      %6450 = vmatpush1.msra.mxu0 %v929
      %6451 = vmatprep.subr.mxu0 0.0
      %6452 = vmatpush1.msra.mxu0 %v928
      %6453 = vmatprep.subr.mxu0 0.0
      %6454 = vmatpush1.msra.mxu0 %v927
      %6455 = vmatprep.subr.mxu0 0.0
      %6456 = vmatpush1.msra.mxu0 %v926
      %6457 = vmatprep.subr.mxu0 0.0
      %6458 = vmatpush2.msra.mxu0 0.0
      %6459 = vmatprep.subr.mxu0 0.0
      %6460 = vmatpush2.msra.mxu0 0.0
      %6461 = vmatprep.subr.mxu0 0.0
      %6462 = vmatpush2.msra.mxu0 0.0
      %6463 = vmatprep.subr.mxu0 0.0
      %6464 = vmatpush2.msra.mxu0 0.0
      %6465 = vmatprep.subr.mxu0 0.0
      %6466 = vmatpush2.msra.mxu0 0.0
      %6467 = vmatprep.subr.mxu0 0.0
      %6468 = vmatpush2.msra.mxu0 0.0
      %6469 = vmatprep.subr.mxu0 0.0
      %6470 = vmatpush2.msra.mxu0 0.0
      %6471 = vmatprep.subr.mxu0 0.0
      %6472 = vmatpush2.msra.mxu0 0.0
      %6473 = vmatprep.subr.mxu0 0.0
      %6474 = vmatpush2.msra.mxu0 0.0
      %6475 = vmatprep.subr.mxu0 0.0
      %6476 = vmatpush2.msra.mxu0 0.0
      %6477 = vmatprep.subr.mxu0 0.0
      %6478 = vmatpush2.msra.mxu0 0.0
      %6479 = vmatprep.subr.mxu0 0.0
      %6480 = vmatpush2.msra.mxu0 0.0
      %6481 = vmatprep.subr.mxu0 0.0
      %6482 = vmatpush2.msra.mxu0 0.0
      %6483 = vmatprep.subr.mxu0 0.0
      %6484 = vmatpush2.msra.mxu0 0.0
      %6485 = vmatprep.subr.mxu0 0.0
      %6486 = vmatpush2.msra.mxu0 0.0
      %6487 = vmatprep.subr.mxu0 0.0
      %6488 = vmatpush2.msra.mxu0 0.0
      %6489 = vmatprep.mubr.f32.mxu0 0.0
      %6490 = vmatmul.mubr.f32.gmra.mxu0 %v6414
      %v6491 = vpop.f32.mrf.mxu0
      %v6492 = vadd.f32 %v6411, %v6491
      %v6493 = vpop.f32.mrf.mxu0
      %6494 = vmatprep.mubr.f32.mxu0 0.0
      %6495 = vmatmul.mubr.f32.gmra.mxu0 %v6417
      %v6496 = vpop.f32.mrf.mxu0
      %v6497 = vadd.f32 %v6411, %v6496
      %v6498 = vpop.f32.mrf.mxu0
      %6499 = vmatprep.mubr.f32.mxu0 0.0
      %6500 = vmatmul.mubr.f32.gmra.mxu0 %v6420
      %v6501 = vpop.f32.mrf.mxu0
      %v6502 = vadd.f32 %v6411, %v6501
      %v6503 = vpop.f32.mrf.mxu0
      %6504 = vmatprep.mubr.f32.mxu0 0.0
      %6505 = vmatmul.mubr.f32.gmra.mxu0 %v6423
      %v6506 = vpop.f32.mrf.mxu0
      %v6507 = vadd.f32 %v6411, %v6506
      %v6508 = vpop.f32.mrf.mxu0
      %6509 = vdwg.mxu0
      %v6510 = vmul.f32 %v6492, 0.5
      %v6511 = vmul.f32 %v6497, 0.5
      %v6512 = vmul.f32 %v6502, 0.5
      %v6513 = vmul.f32 %v6507, 0.5
      %v6514 = vmul.f32 %v6492, 0.70710677
      %v6515 = vmul.f32 %v6497, 0.70710677
      %v6516 = vmul.f32 %v6502, 0.70710677
      %v6517 = vmul.f32 %v6507, 0.70710677
      %vm6518 = vcmp.ge.f32.partialorder %v6514, 0.0
      %vm6519 = vcmp.ge.f32.partialorder %v6515, 0.0
      %vm6520 = vcmp.ge.f32.partialorder %v6516, 0.0
      %vm6521 = vcmp.ge.f32.partialorder %v6517, 0.0
      %v6522 = vsel %vm6518, 1.0, -1.0
      %v6523 = vsel %vm6519, 1.0, -1.0
      %v6524 = vsel %vm6520, 1.0, -1.0
      %v6525 = vsel %vm6521, 1.0, -1.0
      %v6526 = vand.u32 2147483647, %v6514
      %v6527 = vand.u32 2147483647, %v6515
      %v6528 = vand.u32 2147483647, %v6516
      %v6529 = vand.u32 2147483647, %v6517
      %v6530 = vmul.f32 %v6526, 0.3275911
      %v6531 = vmul.f32 %v6527, 0.3275911
      %v6532 = vmul.f32 %v6528, 0.3275911
      %v6533 = vmul.f32 %v6529, 0.3275911
      %v6534 = vadd.f32 %v6530, 1.0
      %v6535 = vadd.f32 %v6531, 1.0
      %v6536 = vadd.f32 %v6532, 1.0
      %v6537 = vadd.f32 %v6533, 1.0
      %v6538 = vrcp.pop %v6534
      %v6539 = vmul.f32 1.0, %v6538
      %v6540 = vrcp.pop %v6535
      %v6541 = vmul.f32 1.0, %v6540
      %v6542 = vrcp.pop %v6536
      %v6543 = vmul.f32 1.0, %v6542
      %v6544 = vrcp.pop %v6537
      %v6545 = vmul.f32 1.0, %v6544
      %v6546 = vmul.f32 %v6539, 1.0614054
      %v6547 = vmul.f32 %v6541, 1.0614054
      %v6548 = vmul.f32 %v6543, 1.0614054
      %v6549 = vmul.f32 %v6545, 1.0614054
      %v6550 = vadd.f32 %v6546, -1.4531521
      %v6551 = vadd.f32 %v6547, -1.4531521
      %v6552 = vadd.f32 %v6548, -1.4531521
      %v6553 = vadd.f32 %v6549, -1.4531521
      %v6554 = vmul.f32 %v6539, %v6550
      %v6555 = vmul.f32 %v6541, %v6551
      %v6556 = vmul.f32 %v6543, %v6552
      %v6557 = vmul.f32 %v6545, %v6553
      %v6558 = vadd.f32 %v6554, 1.4214138
      %v6559 = vadd.f32 %v6555, 1.4214138
      %v6560 = vadd.f32 %v6556, 1.4214138
      %v6561 = vadd.f32 %v6557, 1.4214138
      %v6562 = vmul.f32 %v6539, %v6558
      %v6563 = vmul.f32 %v6541, %v6559
      %v6564 = vmul.f32 %v6543, %v6560
      %v6565 = vmul.f32 %v6545, %v6561
      %v6566 = vadd.f32 %v6562, -0.28449672
      %v6567 = vadd.f32 %v6563, -0.28449672
      %v6568 = vadd.f32 %v6564, -0.28449672
      %v6569 = vadd.f32 %v6565, -0.28449672
      %v6570 = vmul.f32 %v6539, %v6566
      %v6571 = vmul.f32 %v6541, %v6567
      %v6572 = vmul.f32 %v6543, %v6568
      %v6573 = vmul.f32 %v6545, %v6569
      %v6574 = vadd.f32 %v6570, 0.2548296
      %v6575 = vadd.f32 %v6571, 0.2548296
      %v6576 = vadd.f32 %v6572, 0.2548296
      %v6577 = vadd.f32 %v6573, 0.2548296
      %v6578 = vmul.f32 %v6539, %v6574
      %v6579 = vmul.f32 %v6541, %v6575
      %v6580 = vmul.f32 %v6543, %v6576
      %v6581 = vmul.f32 %v6545, %v6577
      %v6582 = vsub.f32 0.0, %v6526
      %v6583 = vsub.f32 0.0, %v6527
      %v6584 = vsub.f32 0.0, %v6528
      %v6585 = vsub.f32 0.0, %v6529
      %v6586 = vmul.f32 %v6582, %v6526
      %v6587 = vmul.f32 %v6583, %v6527
      %v6588 = vmul.f32 %v6584, %v6528
      %v6589 = vmul.f32 %v6585, %v6529
      %v6590 = vmul.f32 %v6586, 1.442695
      %v6591 = vpow.pop %v6590
      %v6592 = vmul.f32 %v6587, 1.442695
      %v6593 = vpow.pop %v6592
      %v6594 = vmul.f32 %v6588, 1.442695
      %v6595 = vpow.pop %v6594
      %v6596 = vmul.f32 %v6589, 1.442695
      %v6597 = vpow.pop %v6596
      %v6598 = vmul.f32 %v6578, %v6591
      %v6599 = vmul.f32 %v6579, %v6593
      %v6600 = vmul.f32 %v6580, %v6595
      %v6601 = vmul.f32 %v6581, %v6597
      %v6602 = vsub.f32 1.0, %v6598
      %v6603 = vsub.f32 1.0, %v6599
      %v6604 = vsub.f32 1.0, %v6600
      %v6605 = vsub.f32 1.0, %v6601
      %v6606 = vmul.f32 %v6522, %v6602
      %v6607 = vmul.f32 %v6523, %v6603
      %v6608 = vmul.f32 %v6524, %v6604
      %v6609 = vmul.f32 %v6525, %v6605
      %v6610 = vadd.f32 %v6606, 1.0
      %v6611 = vadd.f32 %v6607, 1.0
      %v6612 = vadd.f32 %v6608, 1.0
      %v6613 = vadd.f32 %v6609, 1.0
      %v6614 = vmul.f32 %v6510, %v6610
      %v6615 = vmul.f32 %v6511, %v6611
      %v6616 = vmul.f32 %v6512, %v6612
      %v6617 = vmul.f32 %v6513, %v6613
      %v6619 = vlaneseq
      %v6620 = vshrl.u32 %v6619, 7
      %v6621 = vsub.s32 0, %v6620
      %v6622 = vrot.slane %v909, %v6621
      %6624 = vmatprep.subr.mxu0 0.0
      %6625 = vmatpush1.msra.mxu0 %v945
      %6626 = vmatprep.subr.mxu0 0.0
      %6627 = vmatpush1.msra.mxu0 %v944
      %6628 = vmatprep.subr.mxu0 0.0
      %6629 = vmatpush1.msra.mxu0 %v943
      %6630 = vmatprep.subr.mxu0 0.0
      %6631 = vmatpush1.msra.mxu0 %v942
      %6632 = vmatprep.subr.mxu0 0.0
      %6633 = vmatpush1.msra.mxu0 %v941
      %6634 = vmatprep.subr.mxu0 0.0
      %6635 = vmatpush1.msra.mxu0 %v940
      %6636 = vmatprep.subr.mxu0 0.0
      %6637 = vmatpush1.msra.mxu0 %v939
      %6638 = vmatprep.subr.mxu0 0.0
      %6639 = vmatpush1.msra.mxu0 %v938
      %6640 = vmatprep.subr.mxu0 0.0
      %6641 = vmatpush1.msra.mxu0 %v937
      %6642 = vmatprep.subr.mxu0 0.0
      %6643 = vmatpush1.msra.mxu0 %v936
      %6644 = vmatprep.subr.mxu0 0.0
      %6645 = vmatpush1.msra.mxu0 %v935
      %6646 = vmatprep.subr.mxu0 0.0
      %6647 = vmatpush1.msra.mxu0 %v934
      %6648 = vmatprep.subr.mxu0 0.0
      %6649 = vmatpush1.msra.mxu0 %v933
      %6650 = vmatprep.subr.mxu0 0.0
      %6651 = vmatpush1.msra.mxu0 %v932
      %6652 = vmatprep.subr.mxu0 0.0
      %6653 = vmatpush1.msra.mxu0 %v931
      %6654 = vmatprep.subr.mxu0 0.0
      %6655 = vmatpush1.msra.mxu0 %v930
      %6656 = vmatprep.subr.mxu0 0.0
      %6657 = vmatpush2.msra.mxu0 0.0
      %6658 = vmatprep.subr.mxu0 0.0
      %6659 = vmatpush2.msra.mxu0 0.0
      %6660 = vmatprep.subr.mxu0 0.0
      %6661 = vmatpush2.msra.mxu0 0.0
      %6662 = vmatprep.subr.mxu0 0.0
      %6663 = vmatpush2.msra.mxu0 0.0
      %6664 = vmatprep.subr.mxu0 0.0
      %6665 = vmatpush2.msra.mxu0 0.0
      %6666 = vmatprep.subr.mxu0 0.0
      %6667 = vmatpush2.msra.mxu0 0.0
      %6668 = vmatprep.subr.mxu0 0.0
      %6669 = vmatpush2.msra.mxu0 0.0
      %6670 = vmatprep.subr.mxu0 0.0
      %6671 = vmatpush2.msra.mxu0 0.0
      %6672 = vmatprep.subr.mxu0 0.0
      %6673 = vmatpush2.msra.mxu0 0.0
      %6674 = vmatprep.subr.mxu0 0.0
      %6675 = vmatpush2.msra.mxu0 0.0
      %6676 = vmatprep.subr.mxu0 0.0
      %6677 = vmatpush2.msra.mxu0 0.0
      %6678 = vmatprep.subr.mxu0 0.0
      %6679 = vmatpush2.msra.mxu0 0.0
      %6680 = vmatprep.subr.mxu0 0.0
      %6681 = vmatpush2.msra.mxu0 0.0
      %6682 = vmatprep.subr.mxu0 0.0
      %6683 = vmatpush2.msra.mxu0 0.0
      %6684 = vmatprep.subr.mxu0 0.0
      %6685 = vmatpush2.msra.mxu0 0.0
      %6686 = vmatprep.subr.mxu0 0.0
      %6687 = vmatpush2.msra.mxu0 0.0
      %6688 = vmatprep.mubr.f32.mxu0 0.0
      %6689 = vmatmul.mubr.f32.gmra.mxu0 %v6614
      %v6690 = vpop.f32.mrf.mxu0
      %v6691 = vadd.f32 %v6622, %v6690
      %v6692 = vpop.f32.mrf.mxu0
      %6693 = vmatprep.mubr.f32.mxu0 0.0
      %6694 = vmatmul.mubr.f32.gmra.mxu0 %v6615
      %v6695 = vpop.f32.mrf.mxu0
      %v6696 = vadd.f32 %v6622, %v6695
      %v6697 = vpop.f32.mrf.mxu0
      %6698 = vmatprep.mubr.f32.mxu0 0.0
      %6699 = vmatmul.mubr.f32.gmra.mxu0 %v6616
      %v6700 = vpop.f32.mrf.mxu0
      %v6701 = vadd.f32 %v6622, %v6700
      %v6702 = vpop.f32.mrf.mxu0
      %6703 = vmatprep.mubr.f32.mxu0 0.0
      %6704 = vmatmul.mubr.f32.gmra.mxu0 %v6617
      %v6705 = vpop.f32.mrf.mxu0
      %v6706 = vadd.f32 %v6622, %v6705
      %v6707 = vpop.f32.mrf.mxu0
      %6708 = vdwg.mxu0
      %v6709 = vadd.f32 %v6331, %v6691
      %v6710 = vadd.f32 %v6332, %v6696
      %v6711 = vadd.f32 %v6333, %v6701
      %v6712 = vadd.f32 %v6334, %v6706
      %6713 = vst.msk [vmem:[#allocation2] sm:$0xff] %vm946, %v6709
      %6714 = vst.msk [vmem:[#allocation2 + $0x8] sm:$0xff] %vm946, %v6710
      %6715 = vst.msk [vmem:[#allocation2 + $0x10] sm:$0xff] %vm946, %v6711
      %6716 = vst.msk [vmem:[#allocation2 + $0x18] sm:$0xff] %vm946, %v6712
      %p6717 = scmp.eq.s32.totalorder %s32, 1
      // Predicated region
      $region109: #{rnamsm_forward.1} parent=103 // pred_check
        %p6718 = pneg %p6717
      $region110: #{rnamsm_forward.1} parent=103 // pred_check_branch
        %6720 = sbr.rel (%p6718) target = $region112
      $region111: #{rnamsm_forward.1} parent=103 // pred_region
        %v6721 = vld [vmem:[%s17] sm:$0x1]
        %v6722 = vld [vmem:[%s18] sm:$0x1]
        %v6725 = vrot.slane %v6710, 7
        %vm6726 = vcmask 1041409
        %v6727 = vsel %vm6726, %v6725, %v6709
        %vm6729 = vcmask 254976
        %v6730 = vsel %vm6729, %v6727, 0.0
        %6731 = vadd.xlane.f32.xlu0 %v6730
        %v6732 = vpop.xlane.xlu0 %6731
        %v6733 = vmul.f32 %v6732, %v959
        %v6735 = vrot.slane %v6733, 1
        %v6738 = vsub.f32 %v6709, %v6733
        %v6739 = vsub.f32 %v6710, %v6735
        %v6740 = vmul.f32 %v6738, %v6738
        %v6741 = vmul.f32 %v6739, %v6739
        %v6744 = vrot.slane %v6741, 7
        %v6745 = vsel %vm6726, %v6744, %v6740
        %v6747 = vsel %vm6729, %v6745, 0.0
        %6748 = vadd.xlane.f32.xlu0 %v6747
        %v6749 = vpop.xlane.xlu0 %6748
        %v6750 = vmul.f32 %v6749, %v959
        %v6751 = vadd.f32 %v6750, 1e-05
        %v6752 = vrsqrt.pop %v6751
        %v6754 = vrot.slane %v6752, 1
        %v6757 = vmul.f32 %v6738, %v6752
        %v6758 = vmul.f32 %v6739, %v6754
        %v6760 = vlaneseq
        %v6761 = vshrl.u32 %v6760, 7
        %v6762 = vsub.s32 0, %v6761
        %v6763 = vrot.slane %v6721, %v6762
        %v6765 = vmul.f32 %v6757, %v6763
        %v6766 = vmul.f32 %v6758, %v6763
        %v6768 = vlaneseq
        %v6769 = vshrl.u32 %v6768, 7
        %v6770 = vsub.s32 0, %v6769
        %v6771 = vrot.slane %v6722, %v6770
        %v6773 = vadd.f32 %v6765, %v6771
        %v6774 = vadd.f32 %v6766, %v6771
        %v6777 = vrot.slane %v6774, 7
        %v6778 = vsel %vm6726, %v6777, %v6773
        %vm6780 = vcmask 1041408
        %v6781 = vsel %vm6780, %v6778, 0.0
        %v6782 = vld [vmem:[%s19] sm:$0xff]
        %v6783 = vld [vmem:[%s19 + $0x8] sm:$0xff]
        %v6784 = vld [vmem:[%s19 + $0x10] sm:$0xff]
        %v6785 = vld [vmem:[%s19 + $0x18] sm:$0xff]
        %v6786 = vld [vmem:[%s20] sm:$0x1]
        %v6788 = vlaneseq
        %v6789 = vshrl.u32 %v6788, 7
        %v6790 = vsub.s32 0, %v6789
        %v6791 = vrot.slane %v6786, %v6790
        %v6794 = vsel %vm946, %v6781, 0
        %6796 = vmatprep.subr.mxu0 0.0
        %6797 = vmatpush1.msra.mxu0 0.0
        %6798 = vmatprep.subr.mxu0 0.0
        %6799 = vmatpush1.msra.mxu0 0.0
        %6800 = vmatprep.subr.mxu0 0.0
        %6801 = vmatpush1.msra.mxu0 0.0
        %6802 = vmatprep.subr.mxu0 0.0
        %6803 = vmatpush1.msra.mxu0 0.0
        %6804 = vmatprep.subr.mxu0 0.0
        %6805 = vmatpush1.msra.mxu0 0.0
        %6806 = vmatprep.subr.mxu0 0.0
        %6807 = vmatpush1.msra.mxu0 0.0
        %6808 = vmatprep.subr.mxu0 0.0
        %6809 = vmatpush1.msra.mxu0 0.0
        %6810 = vmatprep.subr.mxu0 0.0
        %6811 = vmatpush1.msra.mxu0 0.0
        %6812 = vmatprep.subr.mxu0 0.0
        %6813 = vmatpush1.msra.mxu0 0.0
        %6814 = vmatprep.subr.mxu0 0.0
        %6815 = vmatpush1.msra.mxu0 0.0
        %6816 = vmatprep.subr.mxu0 0.0
        %6817 = vmatpush1.msra.mxu0 0.0
        %6818 = vmatprep.subr.mxu0 0.0
        %6819 = vmatpush1.msra.mxu0 0.0
        %6820 = vmatprep.subr.mxu0 0.0
        %6821 = vmatpush1.msra.mxu0 %v6785
        %6822 = vmatprep.subr.mxu0 0.0
        %6823 = vmatpush1.msra.mxu0 %v6784
        %6824 = vmatprep.subr.mxu0 0.0
        %6825 = vmatpush1.msra.mxu0 %v6783
        %6826 = vmatprep.subr.mxu0 0.0
        %6827 = vmatpush1.msra.mxu0 %v6782
        %6828 = vmatprep.subr.mxu0 0.0
        %6829 = vmatpush2.msra.mxu0 0.0
        %6830 = vmatprep.subr.mxu0 0.0
        %6831 = vmatpush2.msra.mxu0 0.0
        %6832 = vmatprep.subr.mxu0 0.0
        %6833 = vmatpush2.msra.mxu0 0.0
        %6834 = vmatprep.subr.mxu0 0.0
        %6835 = vmatpush2.msra.mxu0 0.0
        %6836 = vmatprep.subr.mxu0 0.0
        %6837 = vmatpush2.msra.mxu0 0.0
        %6838 = vmatprep.subr.mxu0 0.0
        %6839 = vmatpush2.msra.mxu0 0.0
        %6840 = vmatprep.subr.mxu0 0.0
        %6841 = vmatpush2.msra.mxu0 0.0
        %6842 = vmatprep.subr.mxu0 0.0
        %6843 = vmatpush2.msra.mxu0 0.0
        %6844 = vmatprep.subr.mxu0 0.0
        %6845 = vmatpush2.msra.mxu0 0.0
        %6846 = vmatprep.subr.mxu0 0.0
        %6847 = vmatpush2.msra.mxu0 0.0
        %6848 = vmatprep.subr.mxu0 0.0
        %6849 = vmatpush2.msra.mxu0 0.0
        %6850 = vmatprep.subr.mxu0 0.0
        %6851 = vmatpush2.msra.mxu0 0.0
        %6852 = vmatprep.subr.mxu0 0.0
        %6853 = vmatpush2.msra.mxu0 0.0
        %6854 = vmatprep.subr.mxu0 0.0
        %6855 = vmatpush2.msra.mxu0 0.0
        %6856 = vmatprep.subr.mxu0 0.0
        %6857 = vmatpush2.msra.mxu0 0.0
        %6858 = vmatprep.subr.mxu0 0.0
        %6859 = vmatpush2.msra.mxu0 0.0
        %6860 = vmatprep.mubr.f32.mxu0 0.0
        %6861 = vmatmul.mubr.f32.gmra.mxu0 %v6794
        %v6862 = vpop.f32.mrf.mxu0
        %v6863 = vadd.f32 %v6791, %v6862
        %v6864 = vpop.f32.mrf.mxu0
        %6865 = vdwg.mxu0
        %6866 = vst [vmem:[%s21] sm:$0xff] %v6863
      $region112: #{rnamsm_forward.1} parent=103 // pred_fallthru
        _
      // Predicated region
      $region113: #{rnamsm_forward.1} parent=103 // pred_check
        %p6867 = pneg %p566
      $region114: #{rnamsm_forward.1} parent=103 // pred_check_branch
        %6869 = sbr.rel (%p6867) target = $region116
      $region115: #{rnamsm_forward.1} parent=103 // pred_region
        _
      $region116: #{rnamsm_forward.1} parent=103 // pred_fallthru
        _
      // Predicated region
      $region117: #{rnamsm_forward.1} parent=103 // pred_check
        %p6870 = pneg %p566
      $region118: #{rnamsm_forward.1} parent=103 // pred_check_branch
        %6872 = sbr.rel (%p6870) target = $region120
      $region119: #{rnamsm_forward.1} parent=103 // pred_region
        _
      $region120: #{rnamsm_forward.1} parent=103 // pred_fallthru
        _
    $region104: #{rnamsm_forward.1} parent=5 // pred_fallthru
      _
    %p6873 = scmp.le.s32.totalorder 2, %s27
    // Predicated region
    $region121: #{rnamsm_forward.1} parent=5 // pred_check
      %p6874 = pneg %p6873
    $region122: #{rnamsm_forward.1} parent=5 // pred_check_branch
      %6876 = sbr.rel (%p6874) target = $region124
    $region123: #{rnamsm_forward.1} parent=5 // pred_region
      %s6877 = ssub.s32 %s27, 2
    $region124: #{rnamsm_forward.1} parent=5 // pred_fallthru
      _
  $region6: #{rnamsm_forward.1} parent=0 // loop_footer
    %s31 = sadd.s32 1, %s27
  $region7: #{rnamsm_forward.1} parent=0 // loop_footer_branch
    %26 = sbr.rel target = $region3
  $region8: #{rnamsm_forward.1} parent=0 // loop_exit
    _

</llo_original>
